<compile_context>
chip_gen: v7x
topology: tpu7x:2x2x1
jax: 0.10.0
libtpu: 0.0.40
codegen_flags: <defaults>
</compile_context>

<pallas_src>
import functools

import jax
import jax.numpy as jnp
from jax import lax
from jax.experimental import pallas as pl
from jax.experimental.pallas import tpu as pltpu

BN_EPS = 1e-5
_VMEM_LIMIT = 32 * 1024 * 1024  # >= default on v6e/v7x, raises v5e's 16 MiB


def _full_spec(shape):
    # Block covers the full array (last two dims == full dims, so the (8,128)
    # divisibility constraint does not apply).
    n = len(shape)
    return pl.BlockSpec(shape, lambda i, n=n: (0,) * n)


# ----------------------------------------------------------------------------
# in-kernel helpers
# ----------------------------------------------------------------------------
def _fill_padded(pad_ref, a):
    """Write activation `a` (N,H,W,C) into the zero border of pad_ref
    (N,H+2,W+2,C) -- in-kernel "same" padding, VMEM only."""
    h, w = a.shape[1], a.shape[2]
    pad_ref[...] = jnp.zeros(pad_ref.shape, pad_ref.dtype)
    pad_ref[:, 1:h + 1, 1:w + 1, :] = a.astype(pad_ref.dtype)


def _im2col(pad_ref, h, w):
    """Build the (N*H*W, 9*C) im2col slab (tap-major columns) from a padded
    VMEM scratch, cast to bf16 for the MXU."""
    n = pad_ref.shape[0]
    c = pad_ref.shape[3]
    cols = [pad_ref[:, kh:kh + h, kw:kw + w, :]
            for kh in range(3) for kw in range(3)]
    slab = jnp.concatenate(cols, axis=-1)            # (N,H,W,9C)
    return slab.reshape(n * h * w, 9 * c).astype(jnp.bfloat16)


def _bn_relu(acc, gamma, beta):
    """BatchNorm2d (training-mode batch stats, biased variance) + ReLU.
    Single pass over `acc`: per-channel sum and sum-of-squares, rsqrt on EUP."""
    inv_n = 1.0 / float(acc.shape[0])
    mean = jnp.sum(acc, axis=0, keepdims=True) * inv_n
    msq = jnp.sum(acc * acc, axis=0, keepdims=True) * inv_n
    var = msq - mean * mean
    scale = gamma * lax.rsqrt(var + BN_EPS)
    shift = beta - mean * scale
    return jnp.maximum(acc * scale + shift, 0.0)


# ----------------------------------------------------------------------------
# fused decoder-block kernel: concat + conv3x3+BN+ReLU x2 (+ optional final 1x1)
# ----------------------------------------------------------------------------
def _decoder_block_kernel(*refs, with_final):
    if with_final:
        (x_ref, e_ref, w1x_ref, w1e_ref, g1_ref, b1_ref,
         w2_ref, g2_ref, b2_ref, wf_ref, bf_ref,
         o_ref, padx_ref, pade_ref, pady_ref) = refs
    else:
        (x_ref, e_ref, w1x_ref, w1e_ref, g1_ref, b1_ref,
         w2_ref, g2_ref, b2_ref,
         o_ref, padx_ref, pade_ref, pady_ref) = refs
        wf_ref = bf_ref = None

    n, h, w, _ = x_ref.shape
    cout = w2_ref.shape[1]

    # ---- conv1 over the (pass_on ++ encoder) channel concat --------------
    # The concat is fused: the weight is split along Cin into a pass_on chunk
    # and an encoder chunk; each is one K = 9*Cin_chunk bf16 MXU matmul.
    _fill_padded(padx_ref, x_ref[...])
    _fill_padded(pade_ref, e_ref[...])
    acc = jnp.dot(_im2col(padx_ref, h, w), w1x_ref[...],
                  preferred_element_type=jnp.float32)
    acc = acc + jnp.dot(_im2col(pade_ref, h, w), w1e_ref[...],
                        preferred_element_type=jnp.float32)
    y = _bn_relu(acc, g1_ref[...], b1_ref[...])          # (N*H*W, Cout) f32

    # ---- conv2 (intermediate activation never leaves VMEM) ---------------
    _fill_padded(pady_ref, y.reshape(n, h, w, cout))
    acc2 = jnp.dot(_im2col(pady_ref, h, w), w2_ref[...],
                   preferred_element_type=jnp.float32)
    y2 = _bn_relu(acc2, g2_ref[...], b2_ref[...])        # (N*H*W, Cout) f32

    if with_final:
        # Final 1x1 conv folded into the last block (tiny K, keep f32).
        yf = jnp.dot(y2, wf_ref[...].astype(jnp.float32),
                     preferred_element_type=jnp.float32) + bf_ref[...]
        o_ref[...] = yf.reshape(n, h, w, o_ref.shape[3]).astype(o_ref.dtype)
    else:
        o_ref[...] = y2.reshape(n, h, w, cout).astype(o_ref.dtype)


def decoder_block(x, e, w1x, w1e, g1, b1, w2, g2, b2, final_params=None):
    n, h, w, c1 = x.shape
    c2 = e.shape[3]
    cout = w2.shape[1]
    if final_params is None:
        out_c, out_dtype = cout, jnp.bfloat16     # bf16 inter-block activations
        inputs = (x, e, w1x, w1e, g1, b1, w2, g2, b2)
    else:
        wf, bf = final_params
        out_c, out_dtype = wf.shape[1], jnp.float32
        inputs = (x, e, w1x, w1e, g1, b1, w2, g2, b2, wf, bf)
    out_shape = (n, h, w, out_c)
    kernel = functools.partial(_decoder_block_kernel,
                               with_final=final_params is not None)
    return pl.pallas_call(
        kernel,
        out_shape=jax.ShapeDtypeStruct(out_shape, out_dtype),
        grid=(1,),  # whole batch in one step: training-mode BN needs batch stats
        in_specs=[_full_spec(a.shape) for a in inputs],
        out_specs=_full_spec(out_shape),
        scratch_shapes=[
            pltpu.VMEM((n, h + 2, w + 2, c1), jnp.float32),   # padded pass_on
            pltpu.VMEM((n, h + 2, w + 2, c2), jnp.float32),   # padded encoder
            pltpu.VMEM((n, h + 2, w + 2, cout), jnp.float32),  # padded conv1 out
        ],
        compiler_params=pltpu.CompilerParams(
            dimension_semantics=("arbitrary",),
            vmem_limit_bytes=_VMEM_LIMIT,
        ),
    )(*inputs)


# ----------------------------------------------------------------------------
# standalone 1x1 conv (only used when skip_connection=False)
# ----------------------------------------------------------------------------
def _conv1x1_kernel(x_ref, w_ref, b_ref, o_ref):
    n, h, w, cout = o_ref.shape
    cin = x_ref.shape[3]
    x2 = x_ref[...].reshape(n * h * w, cin).astype(jnp.float32)
    y = jnp.dot(x2, w_ref[...].astype(jnp.float32),
                preferred_element_type=jnp.float32) + b_ref[...]
    o_ref[...] = y.reshape(n, h, w, cout).astype(o_ref.dtype)


def conv1x1(x, w, b):
    n, h, w_, _ = x.shape
    cout = w.shape[1]
    out_shape = (n, h, w_, cout)
    return pl.pallas_call(
        _conv1x1_kernel,
        out_shape=jax.ShapeDtypeStruct(out_shape, jnp.float32),
        grid=(1,),
        in_specs=[_full_spec(x.shape), _full_spec(w.shape), _full_spec(b.shape)],
        out_specs=_full_spec(out_shape),
        compiler_params=pltpu.CompilerParams(
            dimension_semantics=("arbitrary",),
            vmem_limit_bytes=_VMEM_LIMIT,
        ),
    )(x, w, b)


# ----------------------------------------------------------------------------
# parameters & forward
# ----------------------------------------------------------------------------
def init_decoder_params(key, hidden_channels, out_channels,
                        mults=((16, 8), (12, 4), (6, 2), (3, 1))):
    """Deterministic synthetic parameters matching the PyTorch module's shapes.

    3x3 conv weights are stored pre-folded for im2col as (9*Cin, Cout) in bf16
    (row order: tap-major kh*3+kw, then channel).  3x3 conv biases are omitted:
    the following BatchNorm mean-subtraction cancels them exactly."""
    params = {"blocks": []}
    for (m_in, m_out) in mults:
        cin = hidden_channels * m_in
        cout = hidden_channels * m_out
        layers = []
        for (ci, co) in ((cin, cout), (cout, cout)):
            key, k1, k2, k3 = jax.random.split(key, 4)
            w = (jax.random.normal(k1, (9 * ci, co), jnp.float32)
                 / (3.0 * ci ** 0.5)).astype(jnp.bfloat16)
            gamma = 1.0 + 0.1 * jax.random.normal(k2, (1, co), jnp.float32)
            beta = 0.1 * jax.random.normal(k3, (1, co), jnp.float32)
            layers.append((w, gamma, beta))
        params["blocks"].append(layers)
    key, k1, k2 = jax.random.split(key, 3)
    wf = 0.1 * jax.random.normal(k1, (hidden_channels, out_channels), jnp.float32)
    bf = 0.1 * jax.random.normal(k2, (1, out_channels), jnp.float32)
    params["final"] = (wf, bf)
    return params


def _split_w1(w1, c_pass):
    """Split a folded (9*Cin, Cout) conv weight along Cin into the pass_on
    channel chunk and the encoder channel chunk (fuses the channel concat)."""
    k, cout = w1.shape
    cin = k // 9
    w3 = w1.reshape(9, cin, cout)
    wx = w3[:, :c_pass, :].reshape(9 * c_pass, cout)
    we = w3[:, c_pass:, :].reshape(9 * (cin - c_pass), cout)
    return wx, we


def decoder_forward(params, encoders_values, backbone_values, skip_connection=True):
    """Mirrors Decoder.forward: iterate reversed encoder skips, concat on the
    channel axis, conv-BN-ReLU x2 per block, then the 1x1 final conv (folded
    into the last block's kernel)."""
    blocks = params["blocks"]
    if len(encoders_values) != len(blocks):
        raise ValueError("asymmetric UNets not (yet) supported")
    pass_on = backbone_values
    if skip_connection:
        last = len(blocks) - 1
        for index, encoder in enumerate(reversed(encoders_values)):
            (w1, g1, b1), (w2, g2, b2) = blocks[index]
            w1x, w1e = _split_w1(w1, pass_on.shape[-1])
            final = params["final"] if index == last else None
            pass_on = decoder_block(pass_on, encoder, w1x, w1e, g1, b1,
                                    w2, g2, b2, final_params=final)
        return pass_on
    # No skip connections: the module applies only the final 1x1 conv.
    wf, bf = params["final"]
    return conv1x1(pass_on, wf, bf)


if __name__ == "__main__":
    hidden_channels = 4
    out_channels = 3
    N, H, W = 2, 16, 16

    key = jax.random.PRNGKey(0)
    kp, kb, k0, k1, k2, k3 = jax.random.split(key, 6)

    params = init_decoder_params(kp, hidden_channels, out_channels)

    # Encoder skip activations (encoder order: shallow -> deep), NHWC.
    encoders_values = (
        jax.random.normal(k0, (N, H, W, hidden_channels * 1), jnp.float32),
        jax.random.normal(k1, (N, H, W, hidden_channels * 2), jnp.float32),
        jax.random.normal(k2, (N, H, W, hidden_channels * 4), jnp.float32),
        jax.random.normal(k3, (N, H, W, hidden_channels * 8), jnp.float32),
    )
    backbone_values = jax.random.normal(kb, (N, H, W, hidden_channels * 8),
                                        jnp.float32)

    out = decoder_forward(params, encoders_values, backbone_values)
    out = jax.block_until_ready(out)
    assert out.shape == (N, H, W, out_channels), out.shape
    assert bool(jnp.all(jnp.isfinite(out)))
    print("KERNEL_OK")
</pallas_src>

<mosaic_0001>
module attributes {stable_mosaic.version = 11 : i64} {
  func.func @_decoder_block_kernel(%arg0: i32, %arg1: memref<2x16x16x32xf32, #tpu.memory_space<vmem>>, %arg2: memref<2x16x16x32xf32, #tpu.memory_space<vmem>>, %arg3: memref<288x32xbf16, #tpu.memory_space<vmem>>, %arg4: memref<288x32xbf16, #tpu.memory_space<vmem>>, %arg5: memref<1x32xf32, #tpu.memory_space<vmem>>, %arg6: memref<1x32xf32, #tpu.memory_space<vmem>>, %arg7: memref<288x32xbf16, #tpu.memory_space<vmem>>, %arg8: memref<1x32xf32, #tpu.memory_space<vmem>>, %arg9: memref<1x32xf32, #tpu.memory_space<vmem>>, %arg10: memref<2x16x16x32xbf16, #tpu.memory_space<vmem>>, %arg11: memref<2x18x18x32xf32, #tpu.memory_space<vmem>>, %arg12: memref<2x18x18x32xf32, #tpu.memory_space<vmem>>, %arg13: memref<2x18x18x32xf32, #tpu.memory_space<vmem>>) attributes {dimension_semantics = [#tpu.dimension_semantics<arbitrary>], iteration_bounds = array<i64: 1>, scalar_prefetch = 0 : i64, scratch_operands = 3 : i64, tpu.core_type = #tpu.core_type<tc>, window_params = [{pipeline_mode = #tpu.pipeline_mode<synchronous>, transform_indices = @transform_0, window_bounds = array<i64: 2, 16, 16, 32>}, {pipeline_mode = #tpu.pipeline_mode<synchronous>, transform_indices = @transform_1, window_bounds = array<i64: 2, 16, 16, 32>}, {pipeline_mode = #tpu.pipeline_mode<synchronous>, transform_indices = @transform_2, window_bounds = array<i64: 288, 32>}, {pipeline_mode = #tpu.pipeline_mode<synchronous>, transform_indices = @transform_3, window_bounds = array<i64: 288, 32>}, {pipeline_mode = #tpu.pipeline_mode<synchronous>, transform_indices = @transform_4, window_bounds = array<i64: 1, 32>}, {pipeline_mode = #tpu.pipeline_mode<synchronous>, transform_indices = @transform_5, window_bounds = array<i64: 1, 32>}, {pipeline_mode = #tpu.pipeline_mode<synchronous>, transform_indices = @transform_6, window_bounds = array<i64: 288, 32>}, {pipeline_mode = #tpu.pipeline_mode<synchronous>, transform_indices = @transform_7, window_bounds = array<i64: 1, 32>}, {pipeline_mode = #tpu.pipeline_mode<synchronous>, transform_indices = @transform_8, window_bounds = array<i64: 1, 32>}, {pipeline_mode = #tpu.pipeline_mode<synchronous>, transform_indices = @transform_9, window_bounds = array<i64: 2, 16, 16, 32>}]} {
    %c0 = arith.constant 0 : index
    %c0_0 = arith.constant 0 : index
    %c0_1 = arith.constant 0 : index
    %c0_2 = arith.constant 0 : index
    %0 = vector.load %arg1[%c0, %c0_0, %c0_1, %c0_2] : memref<2x16x16x32xf32, #tpu.memory_space<vmem>>, vector<2x16x16x32xf32>
    %cst = arith.constant 0.000000e+00 : f32
    %1 = vector.broadcast %cst : f32 to vector<2x18x18x32xf32>
    %c0_3 = arith.constant 0 : index
    %c0_4 = arith.constant 0 : index
    %c0_5 = arith.constant 0 : index
    %c0_6 = arith.constant 0 : index
    %2 = vector.load %arg11[%c0_3, %c0_4, %c0_5, %c0_6] : memref<2x18x18x32xf32, #tpu.memory_space<vmem>>, vector<2x18x18x32xf32>
    tpu.vector_store %arg11[%c0_3, %c0_4, %c0_5, %c0_6], %1 {strides = array<i32>} : memref<2x18x18x32xf32, #tpu.memory_space<vmem>>, vector<2x18x18x32xf32>,
    %c0_7 = arith.constant 0 : index
    %c1 = arith.constant 1 : index
    %c1_8 = arith.constant 1 : index
    %c0_9 = arith.constant 0 : index
    %3 = vector.load %arg11[%c0_7, %c1, %c1_8, %c0_9] : memref<2x18x18x32xf32, #tpu.memory_space<vmem>>, vector<2x16x16x32xf32>
    tpu.vector_store %arg11[%c0_7, %c1, %c1_8, %c0_9], %0 {strides = array<i32>} : memref<2x18x18x32xf32, #tpu.memory_space<vmem>>, vector<2x16x16x32xf32>,
    %c0_10 = arith.constant 0 : index
    %c0_11 = arith.constant 0 : index
    %c0_12 = arith.constant 0 : index
    %c0_13 = arith.constant 0 : index
    %4 = vector.load %arg2[%c0_10, %c0_11, %c0_12, %c0_13] : memref<2x16x16x32xf32, #tpu.memory_space<vmem>>, vector<2x16x16x32xf32>
    %cst_14 = arith.constant 0.000000e+00 : f32
    %5 = vector.broadcast %cst_14 : f32 to vector<2x18x18x32xf32>
    %c0_15 = arith.constant 0 : index
    %c0_16 = arith.constant 0 : index
    %c0_17 = arith.constant 0 : index
    %c0_18 = arith.constant 0 : index
    %6 = vector.load %arg12[%c0_15, %c0_16, %c0_17, %c0_18] : memref<2x18x18x32xf32, #tpu.memory_space<vmem>>, vector<2x18x18x32xf32>
    tpu.vector_store %arg12[%c0_15, %c0_16, %c0_17, %c0_18], %5 {strides = array<i32>} : memref<2x18x18x32xf32, #tpu.memory_space<vmem>>, vector<2x18x18x32xf32>,
    %c0_19 = arith.constant 0 : index
    %c1_20 = arith.constant 1 : index
    %c1_21 = arith.constant 1 : index
    %c0_22 = arith.constant 0 : index
    %7 = vector.load %arg12[%c0_19, %c1_20, %c1_21, %c0_22] : memref<2x18x18x32xf32, #tpu.memory_space<vmem>>, vector<2x16x16x32xf32>
    tpu.vector_store %arg12[%c0_19, %c1_20, %c1_21, %c0_22], %4 {strides = array<i32>} : memref<2x18x18x32xf32, #tpu.memory_space<vmem>>, vector<2x16x16x32xf32>,
    %c0_23 = arith.constant 0 : index
    %c0_24 = arith.constant 0 : index
    %c0_25 = arith.constant 0 : index
    %c0_26 = arith.constant 0 : index
    %8 = vector.load %arg11[%c0_23, %c0_24, %c0_25, %c0_26] : memref<2x18x18x32xf32, #tpu.memory_space<vmem>>, vector<2x16x16x32xf32>
    %c0_27 = arith.constant 0 : index
    %c0_28 = arith.constant 0 : index
    %c1_29 = arith.constant 1 : index
    %c0_30 = arith.constant 0 : index
    %9 = vector.load %arg11[%c0_27, %c0_28, %c1_29, %c0_30] : memref<2x18x18x32xf32, #tpu.memory_space<vmem>>, vector<2x16x16x32xf32>
    %c0_31 = arith.constant 0 : index
    %c0_32 = arith.constant 0 : index
    %c2 = arith.constant 2 : index
    %c0_33 = arith.constant 0 : index
    %10 = vector.load %arg11[%c0_31, %c0_32, %c2, %c0_33] : memref<2x18x18x32xf32, #tpu.memory_space<vmem>>, vector<2x16x16x32xf32>
    %c0_34 = arith.constant 0 : index
    %c1_35 = arith.constant 1 : index
    %c0_36 = arith.constant 0 : index
    %c0_37 = arith.constant 0 : index
    %11 = vector.load %arg11[%c0_34, %c1_35, %c0_36, %c0_37] : memref<2x18x18x32xf32, #tpu.memory_space<vmem>>, vector<2x16x16x32xf32>
    %c0_38 = arith.constant 0 : index
    %c1_39 = arith.constant 1 : index
    %c1_40 = arith.constant 1 : index
    %c0_41 = arith.constant 0 : index
    %12 = vector.load %arg11[%c0_38, %c1_39, %c1_40, %c0_41] : memref<2x18x18x32xf32, #tpu.memory_space<vmem>>, vector<2x16x16x32xf32>
    %c0_42 = arith.constant 0 : index
    %c1_43 = arith.constant 1 : index
    %c2_44 = arith.constant 2 : index
    %c0_45 = arith.constant 0 : index
    %13 = vector.load %arg11[%c0_42, %c1_43, %c2_44, %c0_45] : memref<2x18x18x32xf32, #tpu.memory_space<vmem>>, vector<2x16x16x32xf32>
    %c0_46 = arith.constant 0 : index
    %c2_47 = arith.constant 2 : index
    %c0_48 = arith.constant 0 : index
    %c0_49 = arith.constant 0 : index
    %14 = vector.load %arg11[%c0_46, %c2_47, %c0_48, %c0_49] : memref<2x18x18x32xf32, #tpu.memory_space<vmem>>, vector<2x16x16x32xf32>
    %c0_50 = arith.constant 0 : index
    %c2_51 = arith.constant 2 : index
    %c1_52 = arith.constant 1 : index
    %c0_53 = arith.constant 0 : index
    %15 = vector.load %arg11[%c0_50, %c2_51, %c1_52, %c0_53] : memref<2x18x18x32xf32, #tpu.memory_space<vmem>>, vector<2x16x16x32xf32>
    %c0_54 = arith.constant 0 : index
    %c2_55 = arith.constant 2 : index
    %c2_56 = arith.constant 2 : index
    %c0_57 = arith.constant 0 : index
    %16 = vector.load %arg11[%c0_54, %c2_55, %c2_56, %c0_57] : memref<2x18x18x32xf32, #tpu.memory_space<vmem>>, vector<2x16x16x32xf32>
    %17 = tpu.concatenate %8, %9, %10, %11, %12, %13, %14, %15, %16 in 3 : vector<2x16x16x32xf32>, vector<2x16x16x32xf32>, vector<2x16x16x32xf32>, vector<2x16x16x32xf32>, vector<2x16x16x32xf32>, vector<2x16x16x32xf32>, vector<2x16x16x32xf32>, vector<2x16x16x32xf32>, vector<2x16x16x32xf32> -> vector<2x16x16x288xf32>
    %18 = vector.shape_cast %17 : vector<2x16x16x288xf32> to vector<512x288xf32>
    %19 = arith.truncf %18 : vector<512x288xf32> to vector<512x288xbf16>
    %c0_58 = arith.constant 0 : index
    %c0_59 = arith.constant 0 : index
    %20 = vector.load %arg3[%c0_58, %c0_59] : memref<288x32xbf16, #tpu.memory_space<vmem>>, vector<288x32xbf16>
    %cst_60 = arith.constant dense<0.000000e+00> : vector<512x32xf32>
    %21 = tpu.matmul %19, %20, %cst_60 {dimension_numbers = #tpu.dot_dimension_numbers<[1], [0], [0], [1], [0, 0, 1, 1], [], []>} : vector<512x288xbf16>, vector<288x32xbf16>, vector<512x32xf32> -> vector<512x32xf32>
    %c0_61 = arith.constant 0 : index
    %c0_62 = arith.constant 0 : index
    %c0_63 = arith.constant 0 : index
    %c0_64 = arith.constant 0 : index
    %22 = vector.load %arg12[%c0_61, %c0_62, %c0_63, %c0_64] : memref<2x18x18x32xf32, #tpu.memory_space<vmem>>, vector<2x16x16x32xf32>
    %c0_65 = arith.constant 0 : index
    %c0_66 = arith.constant 0 : index
    %c1_67 = arith.constant 1 : index
    %c0_68 = arith.constant 0 : index
    %23 = vector.load %arg12[%c0_65, %c0_66, %c1_67, %c0_68] : memref<2x18x18x32xf32, #tpu.memory_space<vmem>>, vector<2x16x16x32xf32>
    %c0_69 = arith.constant 0 : index
    %c0_70 = arith.constant 0 : index
    %c2_71 = arith.constant 2 : index
    %c0_72 = arith.constant 0 : index
    %24 = vector.load %arg12[%c0_69, %c0_70, %c2_71, %c0_72] : memref<2x18x18x32xf32, #tpu.memory_space<vmem>>, vector<2x16x16x32xf32>
    %c0_73 = arith.constant 0 : index
    %c1_74 = arith.constant 1 : index
    %c0_75 = arith.constant 0 : index
    %c0_76 = arith.constant 0 : index
    %25 = vector.load %arg12[%c0_73, %c1_74, %c0_75, %c0_76] : memref<2x18x18x32xf32, #tpu.memory_space<vmem>>, vector<2x16x16x32xf32>
    %c0_77 = arith.constant 0 : index
    %c1_78 = arith.constant 1 : index
    %c1_79 = arith.constant 1 : index
    %c0_80 = arith.constant 0 : index
    %26 = vector.load %arg12[%c0_77, %c1_78, %c1_79, %c0_80] : memref<2x18x18x32xf32, #tpu.memory_space<vmem>>, vector<2x16x16x32xf32>
    %c0_81 = arith.constant 0 : index
    %c1_82 = arith.constant 1 : index
    %c2_83 = arith.constant 2 : index
    %c0_84 = arith.constant 0 : index
    %27 = vector.load %arg12[%c0_81, %c1_82, %c2_83, %c0_84] : memref<2x18x18x32xf32, #tpu.memory_space<vmem>>, vector<2x16x16x32xf32>
    %c0_85 = arith.constant 0 : index
    %c2_86 = arith.constant 2 : index
    %c0_87 = arith.constant 0 : index
    %c0_88 = arith.constant 0 : index
    %28 = vector.load %arg12[%c0_85, %c2_86, %c0_87, %c0_88] : memref<2x18x18x32xf32, #tpu.memory_space<vmem>>, vector<2x16x16x32xf32>
    %c0_89 = arith.constant 0 : index
    %c2_90 = arith.constant 2 : index
    %c1_91 = arith.constant 1 : index
    %c0_92 = arith.constant 0 : index
    %29 = vector.load %arg12[%c0_89, %c2_90, %c1_91, %c0_92] : memref<2x18x18x32xf32, #tpu.memory_space<vmem>>, vector<2x16x16x32xf32>
    %c0_93 = arith.constant 0 : index
    %c2_94 = arith.constant 2 : index
    %c2_95 = arith.constant 2 : index
    %c0_96 = arith.constant 0 : index
    %30 = vector.load %arg12[%c0_93, %c2_94, %c2_95, %c0_96] : memref<2x18x18x32xf32, #tpu.memory_space<vmem>>, vector<2x16x16x32xf32>
    %31 = tpu.concatenate %22, %23, %24, %25, %26, %27, %28, %29, %30 in 3 : vector<2x16x16x32xf32>, vector<2x16x16x32xf32>, vector<2x16x16x32xf32>, vector<2x16x16x32xf32>, vector<2x16x16x32xf32>, vector<2x16x16x32xf32>, vector<2x16x16x32xf32>, vector<2x16x16x32xf32>, vector<2x16x16x32xf32> -> vector<2x16x16x288xf32>
    %32 = vector.shape_cast %31 : vector<2x16x16x288xf32> to vector<512x288xf32>
    %33 = arith.truncf %32 : vector<512x288xf32> to vector<512x288xbf16>
    %c0_97 = arith.constant 0 : index
    %c0_98 = arith.constant 0 : index
    %34 = vector.load %arg4[%c0_97, %c0_98] : memref<288x32xbf16, #tpu.memory_space<vmem>>, vector<288x32xbf16>
    %cst_99 = arith.constant dense<0.000000e+00> : vector<512x32xf32>
    %35 = tpu.matmul %33, %34, %cst_99 {dimension_numbers = #tpu.dot_dimension_numbers<[1], [0], [0], [1], [0, 0, 1, 1], [], []>} : vector<512x288xbf16>, vector<288x32xbf16>, vector<512x32xf32> -> vector<512x32xf32>
    %36 = arith.addf %21, %35 : vector<512x32xf32>
    %c0_100 = arith.constant 0 : index
    %c0_101 = arith.constant 0 : index
    %37 = vector.load %arg5[%c0_100, %c0_101] : memref<1x32xf32, #tpu.memory_space<vmem>>, vector<1x32xf32>
    %c0_102 = arith.constant 0 : index
    %c0_103 = arith.constant 0 : index
    %38 = vector.load %arg6[%c0_102, %c0_103] : memref<1x32xf32, #tpu.memory_space<vmem>>, vector<1x32xf32>
    %cst_104 = arith.constant dense<0.000000e+00> : vector<32xf32>
    %39 = vector.multi_reduction <add>, %36, %cst_104 [0] : vector<512x32xf32> to vector<32xf32>
    %40 = vector.shape_cast %39 : vector<32xf32> to vector<1x32xf32>
    %cst_105 = arith.constant 0.001953125 : f32
    %41 = vector.broadcast %cst_105 : f32 to vector<1x32xf32>
    %42 = arith.mulf %40, %41 : vector<1x32xf32>
    %43 = arith.mulf %36, %36 : vector<512x32xf32>
    %cst_106 = arith.constant dense<0.000000e+00> : vector<32xf32>
    %44 = vector.multi_reduction <add>, %43, %cst_106 [0] : vector<512x32xf32> to vector<32xf32>
    %45 = vector.shape_cast %44 : vector<32xf32> to vector<1x32xf32>
    %cst_107 = arith.constant 0.001953125 : f32
    %46 = vector.broadcast %cst_107 : f32 to vector<1x32xf32>
    %47 = arith.mulf %45, %46 : vector<1x32xf32>
    %48 = arith.mulf %42, %42 : vector<1x32xf32>
    %49 = arith.subf %47, %48 : vector<1x32xf32>
    %cst_108 = arith.constant 9.99999974E-6 : f32
    %50 = vector.broadcast %cst_108 : f32 to vector<1x32xf32>
    %51 = arith.addf %49, %50 : vector<1x32xf32>
    %52 = math.rsqrt %51 : vector<1x32xf32>
    %53 = arith.mulf %37, %52 : vector<1x32xf32>
    %54 = arith.mulf %42, %53 : vector<1x32xf32>
    %55 = arith.subf %38, %54 : vector<1x32xf32>
    %56 = vector.broadcast %53 : vector<1x32xf32> to vector<512x32xf32>
    %57 = arith.mulf %36, %56 : vector<512x32xf32>
    %58 = vector.broadcast %55 : vector<1x32xf32> to vector<512x32xf32>
    %59 = arith.addf %57, %58 : vector<512x32xf32>
    %cst_109 = arith.constant 0.000000e+00 : f32
    %60 = vector.broadcast %cst_109 : f32 to vector<512x32xf32>
    %61 = arith.maximumf %59, %60 : vector<512x32xf32>
    %62 = vector.shape_cast %61 : vector<512x32xf32> to vector<2x16x16x32xf32>
    %cst_110 = arith.constant 0.000000e+00 : f32
    %63 = vector.broadcast %cst_110 : f32 to vector<2x18x18x32xf32>
    %c0_111 = arith.constant 0 : index
    %c0_112 = arith.constant 0 : index
    %c0_113 = arith.constant 0 : index
    %c0_114 = arith.constant 0 : index
    %64 = vector.load %arg13[%c0_111, %c0_112, %c0_113, %c0_114] : memref<2x18x18x32xf32, #tpu.memory_space<vmem>>, vector<2x18x18x32xf32>
    tpu.vector_store %arg13[%c0_111, %c0_112, %c0_113, %c0_114], %63 {strides = array<i32>} : memref<2x18x18x32xf32, #tpu.memory_space<vmem>>, vector<2x18x18x32xf32>,
    %c0_115 = arith.constant 0 : index
    %c1_116 = arith.constant 1 : index
    %c1_117 = arith.constant 1 : index
    %c0_118 = arith.constant 0 : index
    %65 = vector.load %arg13[%c0_115, %c1_116, %c1_117, %c0_118] : memref<2x18x18x32xf32, #tpu.memory_space<vmem>>, vector<2x16x16x32xf32>
    tpu.vector_store %arg13[%c0_115, %c1_116, %c1_117, %c0_118], %62 {strides = array<i32>} : memref<2x18x18x32xf32, #tpu.memory_space<vmem>>, vector<2x16x16x32xf32>,
    %c0_119 = arith.constant 0 : index
    %c0_120 = arith.constant 0 : index
    %c0_121 = arith.constant 0 : index
    %c0_122 = arith.constant 0 : index
    %66 = vector.load %arg13[%c0_119, %c0_120, %c0_121, %c0_122] : memref<2x18x18x32xf32, #tpu.memory_space<vmem>>, vector<2x16x16x32xf32>
    %c0_123 = arith.constant 0 : index
    %c0_124 = arith.constant 0 : index
    %c1_125 = arith.constant 1 : index
    %c0_126 = arith.constant 0 : index
    %67 = vector.load %arg13[%c0_123, %c0_124, %c1_125, %c0_126] : memref<2x18x18x32xf32, #tpu.memory_space<vmem>>, vector<2x16x16x32xf32>
    %c0_127 = arith.constant 0 : index
    %c0_128 = arith.constant 0 : index
    %c2_129 = arith.constant 2 : index
    %c0_130 = arith.constant 0 : index
    %68 = vector.load %arg13[%c0_127, %c0_128, %c2_129, %c0_130] : memref<2x18x18x32xf32, #tpu.memory_space<vmem>>, vector<2x16x16x32xf32>
    %c0_131 = arith.constant 0 : index
    %c1_132 = arith.constant 1 : index
    %c0_133 = arith.constant 0 : index
    %c0_134 = arith.constant 0 : index
    %69 = vector.load %arg13[%c0_131, %c1_132, %c0_133, %c0_134] : memref<2x18x18x32xf32, #tpu.memory_space<vmem>>, vector<2x16x16x32xf32>
    %c0_135 = arith.constant 0 : index
    %c1_136 = arith.constant 1 : index
    %c1_137 = arith.constant 1 : index
    %c0_138 = arith.constant 0 : index
    %70 = vector.load %arg13[%c0_135, %c1_136, %c1_137, %c0_138] : memref<2x18x18x32xf32, #tpu.memory_space<vmem>>, vector<2x16x16x32xf32>
    %c0_139 = arith.constant 0 : index
    %c1_140 = arith.constant 1 : index
    %c2_141 = arith.constant 2 : index
    %c0_142 = arith.constant 0 : index
    %71 = vector.load %arg13[%c0_139, %c1_140, %c2_141, %c0_142] : memref<2x18x18x32xf32, #tpu.memory_space<vmem>>, vector<2x16x16x32xf32>
    %c0_143 = arith.constant 0 : index
    %c2_144 = arith.constant 2 : index
    %c0_145 = arith.constant 0 : index
    %c0_146 = arith.constant 0 : index
    %72 = vector.load %arg13[%c0_143, %c2_144, %c0_145, %c0_146] : memref<2x18x18x32xf32, #tpu.memory_space<vmem>>, vector<2x16x16x32xf32>
    %c0_147 = arith.constant 0 : index
    %c2_148 = arith.constant 2 : index
    %c1_149 = arith.constant 1 : index
    %c0_150 = arith.constant 0 : index
    %73 = vector.load %arg13[%c0_147, %c2_148, %c1_149, %c0_150] : memref<2x18x18x32xf32, #tpu.memory_space<vmem>>, vector<2x16x16x32xf32>
    %c0_151 = arith.constant 0 : index
    %c2_152 = arith.constant 2 : index
    %c2_153 = arith.constant 2 : index
    %c0_154 = arith.constant 0 : index
    %74 = vector.load %arg13[%c0_151, %c2_152, %c2_153, %c0_154] : memref<2x18x18x32xf32, #tpu.memory_space<vmem>>, vector<2x16x16x32xf32>
    %75 = tpu.concatenate %66, %67, %68, %69, %70, %71, %72, %73, %74 in 3 : vector<2x16x16x32xf32>, vector<2x16x16x32xf32>, vector<2x16x16x32xf32>, vector<2x16x16x32xf32>, vector<2x16x16x32xf32>, vector<2x16x16x32xf32>, vector<2x16x16x32xf32>, vector<2x16x16x32xf32>, vector<2x16x16x32xf32> -> vector<2x16x16x288xf32>
    %76 = vector.shape_cast %75 : vector<2x16x16x288xf32> to vector<512x288xf32>
    %77 = arith.truncf %76 : vector<512x288xf32> to vector<512x288xbf16>
    %c0_155 = arith.constant 0 : index
    %c0_156 = arith.constant 0 : index
    %78 = vector.load %arg7[%c0_155, %c0_156] : memref<288x32xbf16, #tpu.memory_space<vmem>>, vector<288x32xbf16>
    %cst_157 = arith.constant dense<0.000000e+00> : vector<512x32xf32>
    %79 = tpu.matmul %77, %78, %cst_157 {dimension_numbers = #tpu.dot_dimension_numbers<[1], [0], [0], [1], [0, 0, 1, 1], [], []>} : vector<512x288xbf16>, vector<288x32xbf16>, vector<512x32xf32> -> vector<512x32xf32>
    %c0_158 = arith.constant 0 : index
    %c0_159 = arith.constant 0 : index
    %80 = vector.load %arg8[%c0_158, %c0_159] : memref<1x32xf32, #tpu.memory_space<vmem>>, vector<1x32xf32>
    %c0_160 = arith.constant 0 : index
    %c0_161 = arith.constant 0 : index
    %81 = vector.load %arg9[%c0_160, %c0_161] : memref<1x32xf32, #tpu.memory_space<vmem>>, vector<1x32xf32>
    %cst_162 = arith.constant dense<0.000000e+00> : vector<32xf32>
    %82 = vector.multi_reduction <add>, %79, %cst_162 [0] : vector<512x32xf32> to vector<32xf32>
    %83 = vector.shape_cast %82 : vector<32xf32> to vector<1x32xf32>
    %cst_163 = arith.constant 0.001953125 : f32
    %84 = vector.broadcast %cst_163 : f32 to vector<1x32xf32>
    %85 = arith.mulf %83, %84 : vector<1x32xf32>
    %86 = arith.mulf %79, %79 : vector<512x32xf32>
    %cst_164 = arith.constant dense<0.000000e+00> : vector<32xf32>
    %87 = vector.multi_reduction <add>, %86, %cst_164 [0] : vector<512x32xf32> to vector<32xf32>
    %88 = vector.shape_cast %87 : vector<32xf32> to vector<1x32xf32>
    %cst_165 = arith.constant 0.001953125 : f32
    %89 = vector.broadcast %cst_165 : f32 to vector<1x32xf32>
    %90 = arith.mulf %88, %89 : vector<1x32xf32>
    %91 = arith.mulf %85, %85 : vector<1x32xf32>
    %92 = arith.subf %90, %91 : vector<1x32xf32>
    %cst_166 = arith.constant 9.99999974E-6 : f32
    %93 = vector.broadcast %cst_166 : f32 to vector<1x32xf32>
    %94 = arith.addf %92, %93 : vector<1x32xf32>
    %95 = math.rsqrt %94 : vector<1x32xf32>
    %96 = arith.mulf %80, %95 : vector<1x32xf32>
    %97 = arith.mulf %85, %96 : vector<1x32xf32>
    %98 = arith.subf %81, %97 : vector<1x32xf32>
    %99 = vector.broadcast %96 : vector<1x32xf32> to vector<512x32xf32>
    %100 = arith.mulf %79, %99 : vector<512x32xf32>
    %101 = vector.broadcast %98 : vector<1x32xf32> to vector<512x32xf32>
    %102 = arith.addf %100, %101 : vector<512x32xf32>
    %cst_167 = arith.constant 0.000000e+00 : f32
    %103 = vector.broadcast %cst_167 : f32 to vector<512x32xf32>
    %104 = arith.maximumf %102, %103 : vector<512x32xf32>
    %105 = vector.shape_cast %104 : vector<512x32xf32> to vector<2x16x16x32xf32>
    %106 = arith.truncf %105 : vector<2x16x16x32xf32> to vector<2x16x16x32xbf16>
    %c0_168 = arith.constant 0 : index
    %c0_169 = arith.constant 0 : index
    %c0_170 = arith.constant 0 : index
    %c0_171 = arith.constant 0 : index
    %107 = vector.load %arg10[%c0_168, %c0_169, %c0_170, %c0_171] : memref<2x16x16x32xbf16, #tpu.memory_space<vmem>>, vector<2x16x16x32xbf16>
    tpu.vector_store %arg10[%c0_168, %c0_169, %c0_170, %c0_171], %106 {strides = array<i32>} : memref<2x16x16x32xbf16, #tpu.memory_space<vmem>>, vector<2x16x16x32xbf16>,
    return
  }
  func.func @transform_0(%arg0: i32) -> (i32, i32, i32, i32) {
    %c0_i32 = arith.constant 0 : i32
    %c0_i32_0 = arith.constant 0 : i32
    %c0_i32_1 = arith.constant 0 : i32
    %c0_i32_2 = arith.constant 0 : i32
    %c0_i32_3 = arith.constant 0 : i32
    return %c0_i32, %c0_i32_0, %c0_i32_1, %c0_i32_2 : i32, i32, i32, i32
  }
  func.func @transform_1(%arg0: i32) -> (i32, i32, i32, i32) {
    %c0_i32 = arith.constant 0 : i32
    %c0_i32_0 = arith.constant 0 : i32
    %c0_i32_1 = arith.constant 0 : i32
    %c0_i32_2 = arith.constant 0 : i32
    %c0_i32_3 = arith.constant 0 : i32
    return %c0_i32, %c0_i32_0, %c0_i32_1, %c0_i32_2 : i32, i32, i32, i32
  }
  func.func @transform_2(%arg0: i32) -> (i32, i32) {
    %c0_i32 = arith.constant 0 : i32
    %c0_i32_0 = arith.constant 0 : i32
    %c0_i32_1 = arith.constant 0 : i32
    return %c0_i32, %c0_i32_0 : i32, i32
  }
  func.func @transform_3(%arg0: i32) -> (i32, i32) {
    %c0_i32 = arith.constant 0 : i32
    %c0_i32_0 = arith.constant 0 : i32
    %c0_i32_1 = arith.constant 0 : i32
    return %c0_i32, %c0_i32_0 : i32, i32
  }
  func.func @transform_4(%arg0: i32) -> (i32, i32) {
    %c0_i32 = arith.constant 0 : i32
    %c0_i32_0 = arith.constant 0 : i32
    %c0_i32_1 = arith.constant 0 : i32
    return %c0_i32, %c0_i32_0 : i32, i32
  }
  func.func @transform_5(%arg0: i32) -> (i32, i32) {
    %c0_i32 = arith.constant 0 : i32
    %c0_i32_0 = arith.constant 0 : i32
    %c0_i32_1 = arith.constant 0 : i32
    return %c0_i32, %c0_i32_0 : i32, i32
  }
  func.func @transform_6(%arg0: i32) -> (i32, i32) {
    %c0_i32 = arith.constant 0 : i32
    %c0_i32_0 = arith.constant 0 : i32
    %c0_i32_1 = arith.constant 0 : i32
    return %c0_i32, %c0_i32_0 : i32, i32
  }
  func.func @transform_7(%arg0: i32) -> (i32, i32) {
    %c0_i32 = arith.constant 0 : i32
    %c0_i32_0 = arith.constant 0 : i32
    %c0_i32_1 = arith.constant 0 : i32
    return %c0_i32, %c0_i32_0 : i32, i32
  }
  func.func @transform_8(%arg0: i32) -> (i32, i32) {
    %c0_i32 = arith.constant 0 : i32
    %c0_i32_0 = arith.constant 0 : i32
    %c0_i32_1 = arith.constant 0 : i32
    return %c0_i32, %c0_i32_0 : i32, i32
  }
  func.func @transform_9(%arg0: i32) -> (i32, i32, i32, i32) {
    %c0_i32 = arith.constant 0 : i32
    %c0_i32_0 = arith.constant 0 : i32
    %c0_i32_1 = arith.constant 0 : i32
    %c0_i32_2 = arith.constant 0 : i32
    %c0_i32_3 = arith.constant 0 : i32
    return %c0_i32, %c0_i32_0, %c0_i32_1, %c0_i32_2 : i32, i32, i32, i32
  }
}

</mosaic_0001>

<llo_original>
// kernel: tpu_custom_call.1
$region0: #{tpu_custom_call.1}
  #allocation0 [shape = 'u32[]', space=smem, size = 0x4, offset = 0x4, fixed_abs, tag = 'smem constant byte address 0x4 - core index']
  #allocation1 [shape = 'u32[144,128]{1,0:T(1,128)}', space=vmem, size = 0x12000, scoped, tag = 'internal scratch']
  #allocation2 [shape = 'f32[2,18,18,32]{3,2,1,0:T(8,128)}', space=vmem, size = 0x6c000, scoped, tag = 'scratch operand']
  #allocation3 [shape = 'f32[2,18,18,32]{3,2,1,0:T(8,128)}', space=vmem, size = 0x6c000, scoped, tag = 'scratch operand']
  #allocation4 [shape = 'f32[2,18,18,32]{3,2,1,0:T(8,128)}', space=vmem, size = 0x6c000, scoped, tag = 'scratch operand']
  %s0 = inlined_call_operand.vmem [shape: f32[2,16,16,32], index: 0, kind: input, shape index: {}]
  %s1 = inlined_call_operand.hbm [shape: f32[2,16,16,32], index: 1, kind: input, shape index: {}]
  %s2 = inlined_call_operand.vmem [shape: bf16[288,32], index: 2, kind: input, shape index: {}]
  %s3 = inlined_call_operand.vmem [shape: bf16[288,32], index: 3, kind: input, shape index: {}]
  %s4 = inlined_call_operand.vmem [shape: f32[1,32], index: 4, kind: input, shape index: {}]
  %s5 = inlined_call_operand.vmem [shape: f32[1,32], index: 5, kind: input, shape index: {}]
  %s6 = inlined_call_operand.vmem [shape: bf16[288,32], index: 6, kind: input, shape index: {}]
  %s7 = inlined_call_operand.vmem [shape: f32[1,32], index: 7, kind: input, shape index: {}]
  %s8 = inlined_call_operand.vmem [shape: f32[1,32], index: 8, kind: input, shape index: {}]
  %s9 = inlined_call_operand.hbm [shape: bf16[2,16,16,32], index: 9, kind: output, shape index: {}]
  %s10 = sld [smem:[#allocation0]]
  $region50: #{tpu_custom_call.1} parent=0
    _
  %s12 = ssub.s32 1, %s10
  %s13 = scalar_select 0, %s12, %s10
  $region1: #{tpu_custom_call.1} parent=0
    #allocation5 [shape = 'u8[262144]{0}', space=vmem, size = 0x40000, scoped, tag = 'input window, operand 1, single buffered']
    #allocation6 [shape = 's32[1]{0}', space=sflag, size = 0x4, scoped, tag = 'scoped memory for tpu_custom_call.1']
    #allocation7 [shape = 's32[1]{0}', space=sflag, size = 0x4, scoped, tag = 'scoped memory for tpu_custom_call.1']
    #allocation8 [shape = 'u8[131072]{0}', space=vmem, size = 0x20000, scoped, tag = 'output window, operand 0, single buffered']
    %14 = vsyncpa [#allocation6], 0
    %15 = vsyncpa [#allocation7], 0
    // Predicated region
    $region2: #{tpu_custom_call.1} parent=1 // pred_check
      _
    $region3: #{tpu_custom_call.1} parent=1 // pred_check_branch
      %17 = sbr.rel (0) target = $region5
    $region4: #{tpu_custom_call.1} parent=1 // pred_region
      _
    $region5: #{tpu_custom_call.1} parent=1 // pred_fallthru
      _
    // Predicated region
    $region6: #{tpu_custom_call.1} parent=1 // pred_check
      _
    $region7: #{tpu_custom_call.1} parent=1 // pred_check_branch
      %19 = sbr.rel (0) target = $region9
    $region8: #{tpu_custom_call.1} parent=1 // pred_region
      %s21 = ssub.s32 8192, 8192
      %22 = vsyncadd [#allocation6], %s21
      %s23 = sshll.u32 [#allocation5], 4
      %s24 = int_to_ptr.vmem [resolvable:$true] %s23
      %29 = dma.hbm_to_vmem [thread:$0]  %s1, 8192, %s24, [#allocation6], 128, 128, 8
    $region9: #{tpu_custom_call.1} parent=1 // pred_fallthru
      _
    // Predicated region
    $region10: #{tpu_custom_call.1} parent=1 // pred_check
      _
    $region11: #{tpu_custom_call.1} parent=1 // pred_check_branch
      %31 = sbr.rel (0) target = $region13
    $region12: #{tpu_custom_call.1} parent=1 // pred_region
      _
    $region13: #{tpu_custom_call.1} parent=1 // pred_fallthru
      _
    // Predicated region
    $region14: #{tpu_custom_call.1} parent=1 // pred_check
      _
    $region15: #{tpu_custom_call.1} parent=1 // pred_check_branch
      %33 = sbr.rel (0) target = $region17
    $region16: #{tpu_custom_call.1} parent=1 // pred_region
      _
    $region17: #{tpu_custom_call.1} parent=1 // pred_fallthru
      _
    // Predicated region
    $region18: #{tpu_custom_call.1} parent=1 // pred_check
      _
    $region19: #{tpu_custom_call.1} parent=1 // pred_check_branch
      %35 = sbr.rel (0) target = $region21
    $region20: #{tpu_custom_call.1} parent=1 // pred_region
      _
    $region21: #{tpu_custom_call.1} parent=1 // pred_fallthru
      _
    // Predicated region
    $region22: #{tpu_custom_call.1} parent=1 // pred_check
      _
    $region23: #{tpu_custom_call.1} parent=1 // pred_check_branch
      %37 = sbr.rel (0) target = $region25
    $region24: #{tpu_custom_call.1} parent=1 // pred_region
      _
    $region25: #{tpu_custom_call.1} parent=1 // pred_fallthru
      _
    // Predicated region
    $region26: #{tpu_custom_call.1} parent=1 // pred_check
      _
    $region27: #{tpu_custom_call.1} parent=1 // pred_check_branch
      %39 = sbr.rel (0) target = $region29
    $region28: #{tpu_custom_call.1} parent=1 // pred_region
      _
    $region29: #{tpu_custom_call.1} parent=1 // pred_fallthru
      _
    // Predicated region
    $region30: #{tpu_custom_call.1} parent=1 // pred_check
      _
    $region31: #{tpu_custom_call.1} parent=1 // pred_check_branch
      %41 = sbr.rel (0) target = $region33
    $region32: #{tpu_custom_call.1} parent=1 // pred_region
      _
    $region33: #{tpu_custom_call.1} parent=1 // pred_fallthru
      _
    // Predicated region
    $region34: #{tpu_custom_call.1} parent=1 // pred_check
      _
    $region35: #{tpu_custom_call.1} parent=1 // pred_check_branch
      %43 = sbr.rel (0) target = $region37
    $region36: #{tpu_custom_call.1} parent=1 // pred_region
      _
    $region37: #{tpu_custom_call.1} parent=1 // pred_fallthru
      _
    // Predicated region
    $region38: #{tpu_custom_call.1} parent=1 // pred_check
      _
    $region39: #{tpu_custom_call.1} parent=1 // pred_check_branch
      %45 = sbr.rel (0) target = $region41
    $region40: #{tpu_custom_call.1} parent=1 // pred_region
      %46 = dma.done [#allocation6], 8192
    $region41: #{tpu_custom_call.1} parent=1 // pred_fallthru
      _
    %v48 = vld [vmem:[%s0] sm:$0xff]
    %v49 = vld [vmem:[%s0 + $0x8] sm:$0xff]
    %v50 = vld [vmem:[%s0 + $0x10] sm:$0xff]
    %v51 = vld [vmem:[%s0 + $0x18] sm:$0xff]
    %v52 = vld [vmem:[%s0 + $0x20] sm:$0xff]
    %v53 = vld [vmem:[%s0 + $0x28] sm:$0xff]
    %v54 = vld [vmem:[%s0 + $0x30] sm:$0xff]
    %v55 = vld [vmem:[%s0 + $0x38] sm:$0xff]
    %v56 = vld [vmem:[%s0 + $0x40] sm:$0xff]
    %v57 = vld [vmem:[%s0 + $0x48] sm:$0xff]
    %v58 = vld [vmem:[%s0 + $0x50] sm:$0xff]
    %v59 = vld [vmem:[%s0 + $0x58] sm:$0xff]
    %v60 = vld [vmem:[%s0 + $0x60] sm:$0xff]
    %v61 = vld [vmem:[%s0 + $0x68] sm:$0xff]
    %v62 = vld [vmem:[%s0 + $0x70] sm:$0xff]
    %v63 = vld [vmem:[%s0 + $0x78] sm:$0xff]
    %v64 = vld [vmem:[%s0 + $0x80] sm:$0xff]
    %v65 = vld [vmem:[%s0 + $0x88] sm:$0xff]
    %v66 = vld [vmem:[%s0 + $0x90] sm:$0xff]
    %v67 = vld [vmem:[%s0 + $0x98] sm:$0xff]
    %v68 = vld [vmem:[%s0 + $0xa0] sm:$0xff]
    %v69 = vld [vmem:[%s0 + $0xa8] sm:$0xff]
    %v70 = vld [vmem:[%s0 + $0xb0] sm:$0xff]
    %v71 = vld [vmem:[%s0 + $0xb8] sm:$0xff]
    %v72 = vld [vmem:[%s0 + $0xc0] sm:$0xff]
    %v73 = vld [vmem:[%s0 + $0xc8] sm:$0xff]
    %v74 = vld [vmem:[%s0 + $0xd0] sm:$0xff]
    %v75 = vld [vmem:[%s0 + $0xd8] sm:$0xff]
    %v76 = vld [vmem:[%s0 + $0xe0] sm:$0xff]
    %v77 = vld [vmem:[%s0 + $0xe8] sm:$0xff]
    %v78 = vld [vmem:[%s0 + $0xf0] sm:$0xff]
    %v79 = vld [vmem:[%s0 + $0xf8] sm:$0xff]
    %v80 = vld [vmem:[%s0 + $0x100] sm:$0xff]
    %v81 = vld [vmem:[%s0 + $0x108] sm:$0xff]
    %v82 = vld [vmem:[%s0 + $0x110] sm:$0xff]
    %v83 = vld [vmem:[%s0 + $0x118] sm:$0xff]
    %v84 = vld [vmem:[%s0 + $0x120] sm:$0xff]
    %v85 = vld [vmem:[%s0 + $0x128] sm:$0xff]
    %v86 = vld [vmem:[%s0 + $0x130] sm:$0xff]
    %v87 = vld [vmem:[%s0 + $0x138] sm:$0xff]
    %v88 = vld [vmem:[%s0 + $0x140] sm:$0xff]
    %v89 = vld [vmem:[%s0 + $0x148] sm:$0xff]
    %v90 = vld [vmem:[%s0 + $0x150] sm:$0xff]
    %v91 = vld [vmem:[%s0 + $0x158] sm:$0xff]
    %v92 = vld [vmem:[%s0 + $0x160] sm:$0xff]
    %v93 = vld [vmem:[%s0 + $0x168] sm:$0xff]
    %v94 = vld [vmem:[%s0 + $0x170] sm:$0xff]
    %v95 = vld [vmem:[%s0 + $0x178] sm:$0xff]
    %v96 = vld [vmem:[%s0 + $0x180] sm:$0xff]
    %v97 = vld [vmem:[%s0 + $0x188] sm:$0xff]
    %v98 = vld [vmem:[%s0 + $0x190] sm:$0xff]
    %v99 = vld [vmem:[%s0 + $0x198] sm:$0xff]
    %v100 = vld [vmem:[%s0 + $0x1a0] sm:$0xff]
    %v101 = vld [vmem:[%s0 + $0x1a8] sm:$0xff]
    %v102 = vld [vmem:[%s0 + $0x1b0] sm:$0xff]
    %v103 = vld [vmem:[%s0 + $0x1b8] sm:$0xff]
    %v104 = vld [vmem:[%s0 + $0x1c0] sm:$0xff]
    %v105 = vld [vmem:[%s0 + $0x1c8] sm:$0xff]
    %v106 = vld [vmem:[%s0 + $0x1d0] sm:$0xff]
    %v107 = vld [vmem:[%s0 + $0x1d8] sm:$0xff]
    %v108 = vld [vmem:[%s0 + $0x1e0] sm:$0xff]
    %v109 = vld [vmem:[%s0 + $0x1e8] sm:$0xff]
    %v110 = vld [vmem:[%s0 + $0x1f0] sm:$0xff]
    %v111 = vld [vmem:[%s0 + $0x1f8] sm:$0xff]
    %vm112 = vcmask 261120
    %113 = vst.msk [vmem:[#allocation2] sm:$0xff] %vm112, 0.0
    %114 = vst.msk [vmem:[#allocation2 + $0x8] sm:$0xff] %vm112, 0.0
    %vm115 = vcmask 254976
    %116 = vst.msk [vmem:[#allocation2 + $0x10] sm:$0x3] %vm115, 0.0
    %117 = vst.msk [vmem:[#allocation2 + $0x18] sm:$0xff] %vm112, 0.0
    %118 = vst.msk [vmem:[#allocation2 + $0x20] sm:$0xff] %vm112, 0.0
    %119 = vst.msk [vmem:[#allocation2 + $0x28] sm:$0x3] %vm115, 0.0
    %120 = vst.msk [vmem:[#allocation2 + $0x30] sm:$0xff] %vm112, 0.0
    %121 = vst.msk [vmem:[#allocation2 + $0x38] sm:$0xff] %vm112, 0.0
    %122 = vst.msk [vmem:[#allocation2 + $0x40] sm:$0x3] %vm115, 0.0
    %123 = vst.msk [vmem:[#allocation2 + $0x48] sm:$0xff] %vm112, 0.0
    %124 = vst.msk [vmem:[#allocation2 + $0x50] sm:$0xff] %vm112, 0.0
    %125 = vst.msk [vmem:[#allocation2 + $0x58] sm:$0x3] %vm115, 0.0
    %126 = vst.msk [vmem:[#allocation2 + $0x60] sm:$0xff] %vm112, 0.0
    %127 = vst.msk [vmem:[#allocation2 + $0x68] sm:$0xff] %vm112, 0.0
    %128 = vst.msk [vmem:[#allocation2 + $0x70] sm:$0x3] %vm115, 0.0
    %129 = vst.msk [vmem:[#allocation2 + $0x78] sm:$0xff] %vm112, 0.0
    %130 = vst.msk [vmem:[#allocation2 + $0x80] sm:$0xff] %vm112, 0.0
    %131 = vst.msk [vmem:[#allocation2 + $0x88] sm:$0x3] %vm115, 0.0
    %132 = vst.msk [vmem:[#allocation2 + $0x90] sm:$0xff] %vm112, 0.0
    %133 = vst.msk [vmem:[#allocation2 + $0x98] sm:$0xff] %vm112, 0.0
    %134 = vst.msk [vmem:[#allocation2 + $0xa0] sm:$0x3] %vm115, 0.0
    %135 = vst.msk [vmem:[#allocation2 + $0xa8] sm:$0xff] %vm112, 0.0
    %136 = vst.msk [vmem:[#allocation2 + $0xb0] sm:$0xff] %vm112, 0.0
    %137 = vst.msk [vmem:[#allocation2 + $0xb8] sm:$0x3] %vm115, 0.0
    %138 = vst.msk [vmem:[#allocation2 + $0xc0] sm:$0xff] %vm112, 0.0
    %139 = vst.msk [vmem:[#allocation2 + $0xc8] sm:$0xff] %vm112, 0.0
    %140 = vst.msk [vmem:[#allocation2 + $0xd0] sm:$0x3] %vm115, 0.0
    %141 = vst.msk [vmem:[#allocation2 + $0xd8] sm:$0xff] %vm112, 0.0
    %142 = vst.msk [vmem:[#allocation2 + $0xe0] sm:$0xff] %vm112, 0.0
    %143 = vst.msk [vmem:[#allocation2 + $0xe8] sm:$0x3] %vm115, 0.0
    %144 = vst.msk [vmem:[#allocation2 + $0xf0] sm:$0xff] %vm112, 0.0
    %145 = vst.msk [vmem:[#allocation2 + $0xf8] sm:$0xff] %vm112, 0.0
    %146 = vst.msk [vmem:[#allocation2 + $0x100] sm:$0x3] %vm115, 0.0
    %147 = vst.msk [vmem:[#allocation2 + $0x108] sm:$0xff] %vm112, 0.0
    %148 = vst.msk [vmem:[#allocation2 + $0x110] sm:$0xff] %vm112, 0.0
    %149 = vst.msk [vmem:[#allocation2 + $0x118] sm:$0x3] %vm115, 0.0
    %150 = vst.msk [vmem:[#allocation2 + $0x120] sm:$0xff] %vm112, 0.0
    %151 = vst.msk [vmem:[#allocation2 + $0x128] sm:$0xff] %vm112, 0.0
    %152 = vst.msk [vmem:[#allocation2 + $0x130] sm:$0x3] %vm115, 0.0
    %153 = vst.msk [vmem:[#allocation2 + $0x138] sm:$0xff] %vm112, 0.0
    %154 = vst.msk [vmem:[#allocation2 + $0x140] sm:$0xff] %vm112, 0.0
    %155 = vst.msk [vmem:[#allocation2 + $0x148] sm:$0x3] %vm115, 0.0
    %156 = vst.msk [vmem:[#allocation2 + $0x150] sm:$0xff] %vm112, 0.0
    %157 = vst.msk [vmem:[#allocation2 + $0x158] sm:$0xff] %vm112, 0.0
    %158 = vst.msk [vmem:[#allocation2 + $0x160] sm:$0x3] %vm115, 0.0
    %159 = vst.msk [vmem:[#allocation2 + $0x168] sm:$0xff] %vm112, 0.0
    %160 = vst.msk [vmem:[#allocation2 + $0x170] sm:$0xff] %vm112, 0.0
    %161 = vst.msk [vmem:[#allocation2 + $0x178] sm:$0x3] %vm115, 0.0
    %162 = vst.msk [vmem:[#allocation2 + $0x180] sm:$0xff] %vm112, 0.0
    %163 = vst.msk [vmem:[#allocation2 + $0x188] sm:$0xff] %vm112, 0.0
    %164 = vst.msk [vmem:[#allocation2 + $0x190] sm:$0x3] %vm115, 0.0
    %165 = vst.msk [vmem:[#allocation2 + $0x198] sm:$0xff] %vm112, 0.0
    %166 = vst.msk [vmem:[#allocation2 + $0x1a0] sm:$0xff] %vm112, 0.0
    %167 = vst.msk [vmem:[#allocation2 + $0x1a8] sm:$0x3] %vm115, 0.0
    %168 = vst.msk [vmem:[#allocation2 + $0x1b0] sm:$0xff] %vm112, 0.0
    %169 = vst.msk [vmem:[#allocation2 + $0x1b8] sm:$0xff] %vm112, 0.0
    %170 = vst.msk [vmem:[#allocation2 + $0x1c0] sm:$0x3] %vm115, 0.0
    %171 = vst.msk [vmem:[#allocation2 + $0x1c8] sm:$0xff] %vm112, 0.0
    %172 = vst.msk [vmem:[#allocation2 + $0x1d0] sm:$0xff] %vm112, 0.0
    %173 = vst.msk [vmem:[#allocation2 + $0x1d8] sm:$0x3] %vm115, 0.0
    %174 = vst.msk [vmem:[#allocation2 + $0x1e0] sm:$0xff] %vm112, 0.0
    %175 = vst.msk [vmem:[#allocation2 + $0x1e8] sm:$0xff] %vm112, 0.0
    %176 = vst.msk [vmem:[#allocation2 + $0x1f0] sm:$0x3] %vm115, 0.0
    %177 = vst.msk [vmem:[#allocation2 + $0x1f8] sm:$0xff] %vm112, 0.0
    %178 = vst.msk [vmem:[#allocation2 + $0x200] sm:$0xff] %vm112, 0.0
    %179 = vst.msk [vmem:[#allocation2 + $0x208] sm:$0x3] %vm115, 0.0
    %180 = vst.msk [vmem:[#allocation2 + $0x210] sm:$0xff] %vm112, 0.0
    %181 = vst.msk [vmem:[#allocation2 + $0x218] sm:$0xff] %vm112, 0.0
    %182 = vst.msk [vmem:[#allocation2 + $0x220] sm:$0x3] %vm115, 0.0
    %183 = vst.msk [vmem:[#allocation2 + $0x228] sm:$0xff] %vm112, 0.0
    %184 = vst.msk [vmem:[#allocation2 + $0x230] sm:$0xff] %vm112, 0.0
    %185 = vst.msk [vmem:[#allocation2 + $0x238] sm:$0x3] %vm115, 0.0
    %186 = vst.msk [vmem:[#allocation2 + $0x240] sm:$0xff] %vm112, 0.0
    %187 = vst.msk [vmem:[#allocation2 + $0x248] sm:$0xff] %vm112, 0.0
    %188 = vst.msk [vmem:[#allocation2 + $0x250] sm:$0x3] %vm115, 0.0
    %189 = vst.msk [vmem:[#allocation2 + $0x258] sm:$0xff] %vm112, 0.0
    %190 = vst.msk [vmem:[#allocation2 + $0x260] sm:$0xff] %vm112, 0.0
    %191 = vst.msk [vmem:[#allocation2 + $0x268] sm:$0x3] %vm115, 0.0
    %192 = vst.msk [vmem:[#allocation2 + $0x270] sm:$0xff] %vm112, 0.0
    %193 = vst.msk [vmem:[#allocation2 + $0x278] sm:$0xff] %vm112, 0.0
    %194 = vst.msk [vmem:[#allocation2 + $0x280] sm:$0x3] %vm115, 0.0
    %195 = vst.msk [vmem:[#allocation2 + $0x288] sm:$0xff] %vm112, 0.0
    %196 = vst.msk [vmem:[#allocation2 + $0x290] sm:$0xff] %vm112, 0.0
    %197 = vst.msk [vmem:[#allocation2 + $0x298] sm:$0x3] %vm115, 0.0
    %198 = vst.msk [vmem:[#allocation2 + $0x2a0] sm:$0xff] %vm112, 0.0
    %199 = vst.msk [vmem:[#allocation2 + $0x2a8] sm:$0xff] %vm112, 0.0
    %200 = vst.msk [vmem:[#allocation2 + $0x2b0] sm:$0x3] %vm115, 0.0
    %201 = vst.msk [vmem:[#allocation2 + $0x2b8] sm:$0xff] %vm112, 0.0
    %202 = vst.msk [vmem:[#allocation2 + $0x2c0] sm:$0xff] %vm112, 0.0
    %203 = vst.msk [vmem:[#allocation2 + $0x2c8] sm:$0x3] %vm115, 0.0
    %204 = vst.msk [vmem:[#allocation2 + $0x2d0] sm:$0xff] %vm112, 0.0
    %205 = vst.msk [vmem:[#allocation2 + $0x2d8] sm:$0xff] %vm112, 0.0
    %206 = vst.msk [vmem:[#allocation2 + $0x2e0] sm:$0x3] %vm115, 0.0
    %207 = vst.msk [vmem:[#allocation2 + $0x2e8] sm:$0xff] %vm112, 0.0
    %208 = vst.msk [vmem:[#allocation2 + $0x2f0] sm:$0xff] %vm112, 0.0
    %209 = vst.msk [vmem:[#allocation2 + $0x2f8] sm:$0x3] %vm115, 0.0
    %210 = vst.msk [vmem:[#allocation2 + $0x300] sm:$0xff] %vm112, 0.0
    %211 = vst.msk [vmem:[#allocation2 + $0x308] sm:$0xff] %vm112, 0.0
    %212 = vst.msk [vmem:[#allocation2 + $0x310] sm:$0x3] %vm115, 0.0
    %213 = vst.msk [vmem:[#allocation2 + $0x318] sm:$0xff] %vm112, 0.0
    %214 = vst.msk [vmem:[#allocation2 + $0x320] sm:$0xff] %vm112, 0.0
    %215 = vst.msk [vmem:[#allocation2 + $0x328] sm:$0x3] %vm115, 0.0
    %216 = vst.msk [vmem:[#allocation2 + $0x330] sm:$0xff] %vm112, 0.0
    %217 = vst.msk [vmem:[#allocation2 + $0x338] sm:$0xff] %vm112, 0.0
    %218 = vst.msk [vmem:[#allocation2 + $0x340] sm:$0x3] %vm115, 0.0
    %219 = vst.msk [vmem:[#allocation2 + $0x348] sm:$0xff] %vm112, 0.0
    %220 = vst.msk [vmem:[#allocation2 + $0x350] sm:$0xff] %vm112, 0.0
    %221 = vst.msk [vmem:[#allocation2 + $0x358] sm:$0x3] %vm115, 0.0
    %s222 = scalar_lea.vmem [#allocation2], 24
    %223 = vst.msk [vmem:[%s222 + $0x1] sm:$0xff] %vm112, %v48
    %224 = vst.msk [vmem:[%s222 + $0x9] sm:$0xff] %vm112, %v49
    %225 = vst.msk [vmem:[%s222 + $0x19] sm:$0xff] %vm112, %v50
    %226 = vst.msk [vmem:[%s222 + $0x21] sm:$0xff] %vm112, %v51
    %227 = vst.msk [vmem:[%s222 + $0x31] sm:$0xff] %vm112, %v52
    %228 = vst.msk [vmem:[%s222 + $0x39] sm:$0xff] %vm112, %v53
    %229 = vst.msk [vmem:[%s222 + $0x49] sm:$0xff] %vm112, %v54
    %230 = vst.msk [vmem:[%s222 + $0x51] sm:$0xff] %vm112, %v55
    %231 = vst.msk [vmem:[%s222 + $0x61] sm:$0xff] %vm112, %v56
    %232 = vst.msk [vmem:[%s222 + $0x69] sm:$0xff] %vm112, %v57
    %233 = vst.msk [vmem:[%s222 + $0x79] sm:$0xff] %vm112, %v58
    %234 = vst.msk [vmem:[%s222 + $0x81] sm:$0xff] %vm112, %v59
    %235 = vst.msk [vmem:[%s222 + $0x91] sm:$0xff] %vm112, %v60
    %236 = vst.msk [vmem:[%s222 + $0x99] sm:$0xff] %vm112, %v61
    %237 = vst.msk [vmem:[%s222 + $0xa9] sm:$0xff] %vm112, %v62
    %238 = vst.msk [vmem:[%s222 + $0xb1] sm:$0xff] %vm112, %v63
    %239 = vst.msk [vmem:[%s222 + $0xc1] sm:$0xff] %vm112, %v64
    %240 = vst.msk [vmem:[%s222 + $0xc9] sm:$0xff] %vm112, %v65
    %241 = vst.msk [vmem:[%s222 + $0xd9] sm:$0xff] %vm112, %v66
    %242 = vst.msk [vmem:[%s222 + $0xe1] sm:$0xff] %vm112, %v67
    %243 = vst.msk [vmem:[%s222 + $0xf1] sm:$0xff] %vm112, %v68
    %244 = vst.msk [vmem:[%s222 + $0xf9] sm:$0xff] %vm112, %v69
    %245 = vst.msk [vmem:[%s222 + $0x109] sm:$0xff] %vm112, %v70
    %246 = vst.msk [vmem:[%s222 + $0x111] sm:$0xff] %vm112, %v71
    %247 = vst.msk [vmem:[%s222 + $0x121] sm:$0xff] %vm112, %v72
    %248 = vst.msk [vmem:[%s222 + $0x129] sm:$0xff] %vm112, %v73
    %249 = vst.msk [vmem:[%s222 + $0x139] sm:$0xff] %vm112, %v74
    %250 = vst.msk [vmem:[%s222 + $0x141] sm:$0xff] %vm112, %v75
    %251 = vst.msk [vmem:[%s222 + $0x151] sm:$0xff] %vm112, %v76
    %252 = vst.msk [vmem:[%s222 + $0x159] sm:$0xff] %vm112, %v77
    %253 = vst.msk [vmem:[%s222 + $0x169] sm:$0xff] %vm112, %v78
    %254 = vst.msk [vmem:[%s222 + $0x171] sm:$0xff] %vm112, %v79
    %255 = vst.msk [vmem:[%s222 + $0x1b1] sm:$0xff] %vm112, %v80
    %256 = vst.msk [vmem:[%s222 + $0x1b9] sm:$0xff] %vm112, %v81
    %257 = vst.msk [vmem:[%s222 + $0x1c9] sm:$0xff] %vm112, %v82
    %258 = vst.msk [vmem:[%s222 + $0x1d1] sm:$0xff] %vm112, %v83
    %259 = vst.msk [vmem:[%s222 + $0x1e1] sm:$0xff] %vm112, %v84
    %260 = vst.msk [vmem:[%s222 + $0x1e9] sm:$0xff] %vm112, %v85
    %261 = vst.msk [vmem:[%s222 + $0x1f9] sm:$0xff] %vm112, %v86
    %262 = vst.msk [vmem:[%s222 + $0x201] sm:$0xff] %vm112, %v87
    %263 = vst.msk [vmem:[%s222 + $0x211] sm:$0xff] %vm112, %v88
    %264 = vst.msk [vmem:[%s222 + $0x219] sm:$0xff] %vm112, %v89
    %265 = vst.msk [vmem:[%s222 + $0x229] sm:$0xff] %vm112, %v90
    %266 = vst.msk [vmem:[%s222 + $0x231] sm:$0xff] %vm112, %v91
    %267 = vst.msk [vmem:[%s222 + $0x241] sm:$0xff] %vm112, %v92
    %268 = vst.msk [vmem:[%s222 + $0x249] sm:$0xff] %vm112, %v93
    %269 = vst.msk [vmem:[%s222 + $0x259] sm:$0xff] %vm112, %v94
    %270 = vst.msk [vmem:[%s222 + $0x261] sm:$0xff] %vm112, %v95
    %271 = vst.msk [vmem:[%s222 + $0x271] sm:$0xff] %vm112, %v96
    %272 = vst.msk [vmem:[%s222 + $0x279] sm:$0xff] %vm112, %v97
    %273 = vst.msk [vmem:[%s222 + $0x289] sm:$0xff] %vm112, %v98
    %274 = vst.msk [vmem:[%s222 + $0x291] sm:$0xff] %vm112, %v99
    %275 = vst.msk [vmem:[%s222 + $0x2a1] sm:$0xff] %vm112, %v100
    %276 = vst.msk [vmem:[%s222 + $0x2a9] sm:$0xff] %vm112, %v101
    %277 = vst.msk [vmem:[%s222 + $0x2b9] sm:$0xff] %vm112, %v102
    %278 = vst.msk [vmem:[%s222 + $0x2c1] sm:$0xff] %vm112, %v103
    %279 = vst.msk [vmem:[%s222 + $0x2d1] sm:$0xff] %vm112, %v104
    %280 = vst.msk [vmem:[%s222 + $0x2d9] sm:$0xff] %vm112, %v105
    %281 = vst.msk [vmem:[%s222 + $0x2e9] sm:$0xff] %vm112, %v106
    %282 = vst.msk [vmem:[%s222 + $0x2f1] sm:$0xff] %vm112, %v107
    %283 = vst.msk [vmem:[%s222 + $0x301] sm:$0xff] %vm112, %v108
    %284 = vst.msk [vmem:[%s222 + $0x309] sm:$0xff] %vm112, %v109
    %285 = vst.msk [vmem:[%s222 + $0x319] sm:$0xff] %vm112, %v110
    %286 = vst.msk [vmem:[%s222 + $0x321] sm:$0xff] %vm112, %v111
    %v287 = vld [vmem:[#allocation5] sm:$0xff]
    %v288 = vld [vmem:[#allocation5 + $0x8] sm:$0xff]
    %v289 = vld [vmem:[#allocation5 + $0x10] sm:$0xff]
    %v290 = vld [vmem:[#allocation5 + $0x18] sm:$0xff]
    %v291 = vld [vmem:[#allocation5 + $0x20] sm:$0xff]
    %v292 = vld [vmem:[#allocation5 + $0x28] sm:$0xff]
    %v293 = vld [vmem:[#allocation5 + $0x30] sm:$0xff]
    %v294 = vld [vmem:[#allocation5 + $0x38] sm:$0xff]
    %v295 = vld [vmem:[#allocation5 + $0x40] sm:$0xff]
    %v296 = vld [vmem:[#allocation5 + $0x48] sm:$0xff]
    %v297 = vld [vmem:[#allocation5 + $0x50] sm:$0xff]
    %v298 = vld [vmem:[#allocation5 + $0x58] sm:$0xff]
    %v299 = vld [vmem:[#allocation5 + $0x60] sm:$0xff]
    %v300 = vld [vmem:[#allocation5 + $0x68] sm:$0xff]
    %v301 = vld [vmem:[#allocation5 + $0x70] sm:$0xff]
    %v302 = vld [vmem:[#allocation5 + $0x78] sm:$0xff]
    %v303 = vld [vmem:[#allocation5 + $0x80] sm:$0xff]
    %v304 = vld [vmem:[#allocation5 + $0x88] sm:$0xff]
    %v305 = vld [vmem:[#allocation5 + $0x90] sm:$0xff]
    %v306 = vld [vmem:[#allocation5 + $0x98] sm:$0xff]
    %v307 = vld [vmem:[#allocation5 + $0xa0] sm:$0xff]
    %v308 = vld [vmem:[#allocation5 + $0xa8] sm:$0xff]
    %v309 = vld [vmem:[#allocation5 + $0xb0] sm:$0xff]
    %v310 = vld [vmem:[#allocation5 + $0xb8] sm:$0xff]
    %v311 = vld [vmem:[#allocation5 + $0xc0] sm:$0xff]
    %v312 = vld [vmem:[#allocation5 + $0xc8] sm:$0xff]
    %v313 = vld [vmem:[#allocation5 + $0xd0] sm:$0xff]
    %v314 = vld [vmem:[#allocation5 + $0xd8] sm:$0xff]
    %v315 = vld [vmem:[#allocation5 + $0xe0] sm:$0xff]
    %v316 = vld [vmem:[#allocation5 + $0xe8] sm:$0xff]
    %v317 = vld [vmem:[#allocation5 + $0xf0] sm:$0xff]
    %v318 = vld [vmem:[#allocation5 + $0xf8] sm:$0xff]
    %v319 = vld [vmem:[#allocation5 + $0x100] sm:$0xff]
    %v320 = vld [vmem:[#allocation5 + $0x108] sm:$0xff]
    %v321 = vld [vmem:[#allocation5 + $0x110] sm:$0xff]
    %v322 = vld [vmem:[#allocation5 + $0x118] sm:$0xff]
    %v323 = vld [vmem:[#allocation5 + $0x120] sm:$0xff]
    %v324 = vld [vmem:[#allocation5 + $0x128] sm:$0xff]
    %v325 = vld [vmem:[#allocation5 + $0x130] sm:$0xff]
    %v326 = vld [vmem:[#allocation5 + $0x138] sm:$0xff]
    %v327 = vld [vmem:[#allocation5 + $0x140] sm:$0xff]
    %v328 = vld [vmem:[#allocation5 + $0x148] sm:$0xff]
    %v329 = vld [vmem:[#allocation5 + $0x150] sm:$0xff]
    %v330 = vld [vmem:[#allocation5 + $0x158] sm:$0xff]
    %v331 = vld [vmem:[#allocation5 + $0x160] sm:$0xff]
    %v332 = vld [vmem:[#allocation5 + $0x168] sm:$0xff]
    %v333 = vld [vmem:[#allocation5 + $0x170] sm:$0xff]
    %v334 = vld [vmem:[#allocation5 + $0x178] sm:$0xff]
    %v335 = vld [vmem:[#allocation5 + $0x180] sm:$0xff]
    %v336 = vld [vmem:[#allocation5 + $0x188] sm:$0xff]
    %v337 = vld [vmem:[#allocation5 + $0x190] sm:$0xff]
    %v338 = vld [vmem:[#allocation5 + $0x198] sm:$0xff]
    %v339 = vld [vmem:[#allocation5 + $0x1a0] sm:$0xff]
    %v340 = vld [vmem:[#allocation5 + $0x1a8] sm:$0xff]
    %v341 = vld [vmem:[#allocation5 + $0x1b0] sm:$0xff]
    %v342 = vld [vmem:[#allocation5 + $0x1b8] sm:$0xff]
    %v343 = vld [vmem:[#allocation5 + $0x1c0] sm:$0xff]
    %v344 = vld [vmem:[#allocation5 + $0x1c8] sm:$0xff]
    %v345 = vld [vmem:[#allocation5 + $0x1d0] sm:$0xff]
    %v346 = vld [vmem:[#allocation5 + $0x1d8] sm:$0xff]
    %v347 = vld [vmem:[#allocation5 + $0x1e0] sm:$0xff]
    %v348 = vld [vmem:[#allocation5 + $0x1e8] sm:$0xff]
    %v349 = vld [vmem:[#allocation5 + $0x1f0] sm:$0xff]
    %v350 = vld [vmem:[#allocation5 + $0x1f8] sm:$0xff]
    %351 = vst.msk [vmem:[#allocation3] sm:$0xff] %vm112, 0.0
    %352 = vst.msk [vmem:[#allocation3 + $0x8] sm:$0xff] %vm112, 0.0
    %353 = vst.msk [vmem:[#allocation3 + $0x10] sm:$0x3] %vm115, 0.0
    %354 = vst.msk [vmem:[#allocation3 + $0x18] sm:$0xff] %vm112, 0.0
    %355 = vst.msk [vmem:[#allocation3 + $0x20] sm:$0xff] %vm112, 0.0
    %356 = vst.msk [vmem:[#allocation3 + $0x28] sm:$0x3] %vm115, 0.0
    %357 = vst.msk [vmem:[#allocation3 + $0x30] sm:$0xff] %vm112, 0.0
    %358 = vst.msk [vmem:[#allocation3 + $0x38] sm:$0xff] %vm112, 0.0
    %359 = vst.msk [vmem:[#allocation3 + $0x40] sm:$0x3] %vm115, 0.0
    %360 = vst.msk [vmem:[#allocation3 + $0x48] sm:$0xff] %vm112, 0.0
    %361 = vst.msk [vmem:[#allocation3 + $0x50] sm:$0xff] %vm112, 0.0
    %362 = vst.msk [vmem:[#allocation3 + $0x58] sm:$0x3] %vm115, 0.0
    %363 = vst.msk [vmem:[#allocation3 + $0x60] sm:$0xff] %vm112, 0.0
    %364 = vst.msk [vmem:[#allocation3 + $0x68] sm:$0xff] %vm112, 0.0
    %365 = vst.msk [vmem:[#allocation3 + $0x70] sm:$0x3] %vm115, 0.0
    %366 = vst.msk [vmem:[#allocation3 + $0x78] sm:$0xff] %vm112, 0.0
    %367 = vst.msk [vmem:[#allocation3 + $0x80] sm:$0xff] %vm112, 0.0
    %368 = vst.msk [vmem:[#allocation3 + $0x88] sm:$0x3] %vm115, 0.0
    %369 = vst.msk [vmem:[#allocation3 + $0x90] sm:$0xff] %vm112, 0.0
    %370 = vst.msk [vmem:[#allocation3 + $0x98] sm:$0xff] %vm112, 0.0
    %371 = vst.msk [vmem:[#allocation3 + $0xa0] sm:$0x3] %vm115, 0.0
    %372 = vst.msk [vmem:[#allocation3 + $0xa8] sm:$0xff] %vm112, 0.0
    %373 = vst.msk [vmem:[#allocation3 + $0xb0] sm:$0xff] %vm112, 0.0
    %374 = vst.msk [vmem:[#allocation3 + $0xb8] sm:$0x3] %vm115, 0.0
    %375 = vst.msk [vmem:[#allocation3 + $0xc0] sm:$0xff] %vm112, 0.0
    %376 = vst.msk [vmem:[#allocation3 + $0xc8] sm:$0xff] %vm112, 0.0
    %377 = vst.msk [vmem:[#allocation3 + $0xd0] sm:$0x3] %vm115, 0.0
    %378 = vst.msk [vmem:[#allocation3 + $0xd8] sm:$0xff] %vm112, 0.0
    %379 = vst.msk [vmem:[#allocation3 + $0xe0] sm:$0xff] %vm112, 0.0
    %380 = vst.msk [vmem:[#allocation3 + $0xe8] sm:$0x3] %vm115, 0.0
    %381 = vst.msk [vmem:[#allocation3 + $0xf0] sm:$0xff] %vm112, 0.0
    %382 = vst.msk [vmem:[#allocation3 + $0xf8] sm:$0xff] %vm112, 0.0
    %383 = vst.msk [vmem:[#allocation3 + $0x100] sm:$0x3] %vm115, 0.0
    %384 = vst.msk [vmem:[#allocation3 + $0x108] sm:$0xff] %vm112, 0.0
    %385 = vst.msk [vmem:[#allocation3 + $0x110] sm:$0xff] %vm112, 0.0
    %386 = vst.msk [vmem:[#allocation3 + $0x118] sm:$0x3] %vm115, 0.0
    %387 = vst.msk [vmem:[#allocation3 + $0x120] sm:$0xff] %vm112, 0.0
    %388 = vst.msk [vmem:[#allocation3 + $0x128] sm:$0xff] %vm112, 0.0
    %389 = vst.msk [vmem:[#allocation3 + $0x130] sm:$0x3] %vm115, 0.0
    %390 = vst.msk [vmem:[#allocation3 + $0x138] sm:$0xff] %vm112, 0.0
    %391 = vst.msk [vmem:[#allocation3 + $0x140] sm:$0xff] %vm112, 0.0
    %392 = vst.msk [vmem:[#allocation3 + $0x148] sm:$0x3] %vm115, 0.0
    %393 = vst.msk [vmem:[#allocation3 + $0x150] sm:$0xff] %vm112, 0.0
    %394 = vst.msk [vmem:[#allocation3 + $0x158] sm:$0xff] %vm112, 0.0
    %395 = vst.msk [vmem:[#allocation3 + $0x160] sm:$0x3] %vm115, 0.0
    %396 = vst.msk [vmem:[#allocation3 + $0x168] sm:$0xff] %vm112, 0.0
    %397 = vst.msk [vmem:[#allocation3 + $0x170] sm:$0xff] %vm112, 0.0
    %398 = vst.msk [vmem:[#allocation3 + $0x178] sm:$0x3] %vm115, 0.0
    %399 = vst.msk [vmem:[#allocation3 + $0x180] sm:$0xff] %vm112, 0.0
    %400 = vst.msk [vmem:[#allocation3 + $0x188] sm:$0xff] %vm112, 0.0
    %401 = vst.msk [vmem:[#allocation3 + $0x190] sm:$0x3] %vm115, 0.0
    %402 = vst.msk [vmem:[#allocation3 + $0x198] sm:$0xff] %vm112, 0.0
    %403 = vst.msk [vmem:[#allocation3 + $0x1a0] sm:$0xff] %vm112, 0.0
    %404 = vst.msk [vmem:[#allocation3 + $0x1a8] sm:$0x3] %vm115, 0.0
    %405 = vst.msk [vmem:[#allocation3 + $0x1b0] sm:$0xff] %vm112, 0.0
    %406 = vst.msk [vmem:[#allocation3 + $0x1b8] sm:$0xff] %vm112, 0.0
    %407 = vst.msk [vmem:[#allocation3 + $0x1c0] sm:$0x3] %vm115, 0.0
    %408 = vst.msk [vmem:[#allocation3 + $0x1c8] sm:$0xff] %vm112, 0.0
    %409 = vst.msk [vmem:[#allocation3 + $0x1d0] sm:$0xff] %vm112, 0.0
    %410 = vst.msk [vmem:[#allocation3 + $0x1d8] sm:$0x3] %vm115, 0.0
    %411 = vst.msk [vmem:[#allocation3 + $0x1e0] sm:$0xff] %vm112, 0.0
    %412 = vst.msk [vmem:[#allocation3 + $0x1e8] sm:$0xff] %vm112, 0.0
    %413 = vst.msk [vmem:[#allocation3 + $0x1f0] sm:$0x3] %vm115, 0.0
    %414 = vst.msk [vmem:[#allocation3 + $0x1f8] sm:$0xff] %vm112, 0.0
    %415 = vst.msk [vmem:[#allocation3 + $0x200] sm:$0xff] %vm112, 0.0
    %416 = vst.msk [vmem:[#allocation3 + $0x208] sm:$0x3] %vm115, 0.0
    %417 = vst.msk [vmem:[#allocation3 + $0x210] sm:$0xff] %vm112, 0.0
    %418 = vst.msk [vmem:[#allocation3 + $0x218] sm:$0xff] %vm112, 0.0
    %419 = vst.msk [vmem:[#allocation3 + $0x220] sm:$0x3] %vm115, 0.0
    %420 = vst.msk [vmem:[#allocation3 + $0x228] sm:$0xff] %vm112, 0.0
    %421 = vst.msk [vmem:[#allocation3 + $0x230] sm:$0xff] %vm112, 0.0
    %422 = vst.msk [vmem:[#allocation3 + $0x238] sm:$0x3] %vm115, 0.0
    %423 = vst.msk [vmem:[#allocation3 + $0x240] sm:$0xff] %vm112, 0.0
    %424 = vst.msk [vmem:[#allocation3 + $0x248] sm:$0xff] %vm112, 0.0
    %425 = vst.msk [vmem:[#allocation3 + $0x250] sm:$0x3] %vm115, 0.0
    %426 = vst.msk [vmem:[#allocation3 + $0x258] sm:$0xff] %vm112, 0.0
    %427 = vst.msk [vmem:[#allocation3 + $0x260] sm:$0xff] %vm112, 0.0
    %428 = vst.msk [vmem:[#allocation3 + $0x268] sm:$0x3] %vm115, 0.0
    %429 = vst.msk [vmem:[#allocation3 + $0x270] sm:$0xff] %vm112, 0.0
    %430 = vst.msk [vmem:[#allocation3 + $0x278] sm:$0xff] %vm112, 0.0
    %431 = vst.msk [vmem:[#allocation3 + $0x280] sm:$0x3] %vm115, 0.0
    %432 = vst.msk [vmem:[#allocation3 + $0x288] sm:$0xff] %vm112, 0.0
    %433 = vst.msk [vmem:[#allocation3 + $0x290] sm:$0xff] %vm112, 0.0
    %434 = vst.msk [vmem:[#allocation3 + $0x298] sm:$0x3] %vm115, 0.0
    %435 = vst.msk [vmem:[#allocation3 + $0x2a0] sm:$0xff] %vm112, 0.0
    %436 = vst.msk [vmem:[#allocation3 + $0x2a8] sm:$0xff] %vm112, 0.0
    %437 = vst.msk [vmem:[#allocation3 + $0x2b0] sm:$0x3] %vm115, 0.0
    %438 = vst.msk [vmem:[#allocation3 + $0x2b8] sm:$0xff] %vm112, 0.0
    %439 = vst.msk [vmem:[#allocation3 + $0x2c0] sm:$0xff] %vm112, 0.0
    %440 = vst.msk [vmem:[#allocation3 + $0x2c8] sm:$0x3] %vm115, 0.0
    %441 = vst.msk [vmem:[#allocation3 + $0x2d0] sm:$0xff] %vm112, 0.0
    %442 = vst.msk [vmem:[#allocation3 + $0x2d8] sm:$0xff] %vm112, 0.0
    %443 = vst.msk [vmem:[#allocation3 + $0x2e0] sm:$0x3] %vm115, 0.0
    %444 = vst.msk [vmem:[#allocation3 + $0x2e8] sm:$0xff] %vm112, 0.0
    %445 = vst.msk [vmem:[#allocation3 + $0x2f0] sm:$0xff] %vm112, 0.0
    %446 = vst.msk [vmem:[#allocation3 + $0x2f8] sm:$0x3] %vm115, 0.0
    %447 = vst.msk [vmem:[#allocation3 + $0x300] sm:$0xff] %vm112, 0.0
    %448 = vst.msk [vmem:[#allocation3 + $0x308] sm:$0xff] %vm112, 0.0
    %449 = vst.msk [vmem:[#allocation3 + $0x310] sm:$0x3] %vm115, 0.0
    %450 = vst.msk [vmem:[#allocation3 + $0x318] sm:$0xff] %vm112, 0.0
    %451 = vst.msk [vmem:[#allocation3 + $0x320] sm:$0xff] %vm112, 0.0
    %452 = vst.msk [vmem:[#allocation3 + $0x328] sm:$0x3] %vm115, 0.0
    %453 = vst.msk [vmem:[#allocation3 + $0x330] sm:$0xff] %vm112, 0.0
    %454 = vst.msk [vmem:[#allocation3 + $0x338] sm:$0xff] %vm112, 0.0
    %455 = vst.msk [vmem:[#allocation3 + $0x340] sm:$0x3] %vm115, 0.0
    %456 = vst.msk [vmem:[#allocation3 + $0x348] sm:$0xff] %vm112, 0.0
    %457 = vst.msk [vmem:[#allocation3 + $0x350] sm:$0xff] %vm112, 0.0
    %458 = vst.msk [vmem:[#allocation3 + $0x358] sm:$0x3] %vm115, 0.0
    %s459 = scalar_lea.vmem [#allocation3], 24
    %460 = vst.msk [vmem:[%s459 + $0x1] sm:$0xff] %vm112, %v287
    %461 = vst.msk [vmem:[%s459 + $0x9] sm:$0xff] %vm112, %v288
    %462 = vst.msk [vmem:[%s459 + $0x19] sm:$0xff] %vm112, %v289
    %463 = vst.msk [vmem:[%s459 + $0x21] sm:$0xff] %vm112, %v290
    %464 = vst.msk [vmem:[%s459 + $0x31] sm:$0xff] %vm112, %v291
    %465 = vst.msk [vmem:[%s459 + $0x39] sm:$0xff] %vm112, %v292
    %466 = vst.msk [vmem:[%s459 + $0x49] sm:$0xff] %vm112, %v293
    %467 = vst.msk [vmem:[%s459 + $0x51] sm:$0xff] %vm112, %v294
    %468 = vst.msk [vmem:[%s459 + $0x61] sm:$0xff] %vm112, %v295
    %469 = vst.msk [vmem:[%s459 + $0x69] sm:$0xff] %vm112, %v296
    %470 = vst.msk [vmem:[%s459 + $0x79] sm:$0xff] %vm112, %v297
    %471 = vst.msk [vmem:[%s459 + $0x81] sm:$0xff] %vm112, %v298
    %472 = vst.msk [vmem:[%s459 + $0x91] sm:$0xff] %vm112, %v299
    %473 = vst.msk [vmem:[%s459 + $0x99] sm:$0xff] %vm112, %v300
    %474 = vst.msk [vmem:[%s459 + $0xa9] sm:$0xff] %vm112, %v301
    %475 = vst.msk [vmem:[%s459 + $0xb1] sm:$0xff] %vm112, %v302
    %476 = vst.msk [vmem:[%s459 + $0xc1] sm:$0xff] %vm112, %v303
    %477 = vst.msk [vmem:[%s459 + $0xc9] sm:$0xff] %vm112, %v304
    %478 = vst.msk [vmem:[%s459 + $0xd9] sm:$0xff] %vm112, %v305
    %479 = vst.msk [vmem:[%s459 + $0xe1] sm:$0xff] %vm112, %v306
    %480 = vst.msk [vmem:[%s459 + $0xf1] sm:$0xff] %vm112, %v307
    %481 = vst.msk [vmem:[%s459 + $0xf9] sm:$0xff] %vm112, %v308
    %482 = vst.msk [vmem:[%s459 + $0x109] sm:$0xff] %vm112, %v309
    %483 = vst.msk [vmem:[%s459 + $0x111] sm:$0xff] %vm112, %v310
    %484 = vst.msk [vmem:[%s459 + $0x121] sm:$0xff] %vm112, %v311
    %485 = vst.msk [vmem:[%s459 + $0x129] sm:$0xff] %vm112, %v312
    %486 = vst.msk [vmem:[%s459 + $0x139] sm:$0xff] %vm112, %v313
    %487 = vst.msk [vmem:[%s459 + $0x141] sm:$0xff] %vm112, %v314
    %488 = vst.msk [vmem:[%s459 + $0x151] sm:$0xff] %vm112, %v315
    %489 = vst.msk [vmem:[%s459 + $0x159] sm:$0xff] %vm112, %v316
    %490 = vst.msk [vmem:[%s459 + $0x169] sm:$0xff] %vm112, %v317
    %491 = vst.msk [vmem:[%s459 + $0x171] sm:$0xff] %vm112, %v318
    %492 = vst.msk [vmem:[%s459 + $0x1b1] sm:$0xff] %vm112, %v319
    %493 = vst.msk [vmem:[%s459 + $0x1b9] sm:$0xff] %vm112, %v320
    %494 = vst.msk [vmem:[%s459 + $0x1c9] sm:$0xff] %vm112, %v321
    %495 = vst.msk [vmem:[%s459 + $0x1d1] sm:$0xff] %vm112, %v322
    %496 = vst.msk [vmem:[%s459 + $0x1e1] sm:$0xff] %vm112, %v323
    %497 = vst.msk [vmem:[%s459 + $0x1e9] sm:$0xff] %vm112, %v324
    %498 = vst.msk [vmem:[%s459 + $0x1f9] sm:$0xff] %vm112, %v325
    %499 = vst.msk [vmem:[%s459 + $0x201] sm:$0xff] %vm112, %v326
    %500 = vst.msk [vmem:[%s459 + $0x211] sm:$0xff] %vm112, %v327
    %501 = vst.msk [vmem:[%s459 + $0x219] sm:$0xff] %vm112, %v328
    %502 = vst.msk [vmem:[%s459 + $0x229] sm:$0xff] %vm112, %v329
    %503 = vst.msk [vmem:[%s459 + $0x231] sm:$0xff] %vm112, %v330
    %504 = vst.msk [vmem:[%s459 + $0x241] sm:$0xff] %vm112, %v331
    %505 = vst.msk [vmem:[%s459 + $0x249] sm:$0xff] %vm112, %v332
    %506 = vst.msk [vmem:[%s459 + $0x259] sm:$0xff] %vm112, %v333
    %507 = vst.msk [vmem:[%s459 + $0x261] sm:$0xff] %vm112, %v334
    %508 = vst.msk [vmem:[%s459 + $0x271] sm:$0xff] %vm112, %v335
    %509 = vst.msk [vmem:[%s459 + $0x279] sm:$0xff] %vm112, %v336
    %510 = vst.msk [vmem:[%s459 + $0x289] sm:$0xff] %vm112, %v337
    %511 = vst.msk [vmem:[%s459 + $0x291] sm:$0xff] %vm112, %v338
    %512 = vst.msk [vmem:[%s459 + $0x2a1] sm:$0xff] %vm112, %v339
    %513 = vst.msk [vmem:[%s459 + $0x2a9] sm:$0xff] %vm112, %v340
    %514 = vst.msk [vmem:[%s459 + $0x2b9] sm:$0xff] %vm112, %v341
    %515 = vst.msk [vmem:[%s459 + $0x2c1] sm:$0xff] %vm112, %v342
    %516 = vst.msk [vmem:[%s459 + $0x2d1] sm:$0xff] %vm112, %v343
    %517 = vst.msk [vmem:[%s459 + $0x2d9] sm:$0xff] %vm112, %v344
    %518 = vst.msk [vmem:[%s459 + $0x2e9] sm:$0xff] %vm112, %v345
    %519 = vst.msk [vmem:[%s459 + $0x2f1] sm:$0xff] %vm112, %v346
    %520 = vst.msk [vmem:[%s459 + $0x301] sm:$0xff] %vm112, %v347
    %521 = vst.msk [vmem:[%s459 + $0x309] sm:$0xff] %vm112, %v348
    %522 = vst.msk [vmem:[%s459 + $0x319] sm:$0xff] %vm112, %v349
    %523 = vst.msk [vmem:[%s459 + $0x321] sm:$0xff] %vm112, %v350
    %v524 = vld [vmem:[#allocation2] sm:$0xff]
    %v525 = vld [vmem:[#allocation2 + $0x8] sm:$0xff]
    %v526 = vld [vmem:[#allocation2 + $0x18] sm:$0xff]
    %v527 = vld [vmem:[#allocation2 + $0x20] sm:$0xff]
    %v528 = vld [vmem:[#allocation2 + $0x30] sm:$0xff]
    %v529 = vld [vmem:[#allocation2 + $0x38] sm:$0xff]
    %v530 = vld [vmem:[#allocation2 + $0x48] sm:$0xff]
    %v531 = vld [vmem:[#allocation2 + $0x50] sm:$0xff]
    %v532 = vld [vmem:[#allocation2 + $0x60] sm:$0xff]
    %v533 = vld [vmem:[#allocation2 + $0x68] sm:$0xff]
    %v534 = vld [vmem:[#allocation2 + $0x78] sm:$0xff]
    %v535 = vld [vmem:[#allocation2 + $0x80] sm:$0xff]
    %v536 = vld [vmem:[#allocation2 + $0x90] sm:$0xff]
    %v537 = vld [vmem:[#allocation2 + $0x98] sm:$0xff]
    %v538 = vld [vmem:[#allocation2 + $0xa8] sm:$0xff]
    %v539 = vld [vmem:[#allocation2 + $0xb0] sm:$0xff]
    %v540 = vld [vmem:[#allocation2 + $0xc0] sm:$0xff]
    %v541 = vld [vmem:[#allocation2 + $0xc8] sm:$0xff]
    %v542 = vld [vmem:[#allocation2 + $0xd8] sm:$0xff]
    %v543 = vld [vmem:[#allocation2 + $0xe0] sm:$0xff]
    %v544 = vld [vmem:[#allocation2 + $0xf0] sm:$0xff]
    %v545 = vld [vmem:[#allocation2 + $0xf8] sm:$0xff]
    %v546 = vld [vmem:[#allocation2 + $0x108] sm:$0xff]
    %v547 = vld [vmem:[#allocation2 + $0x110] sm:$0xff]
    %v548 = vld [vmem:[#allocation2 + $0x120] sm:$0xff]
    %v549 = vld [vmem:[#allocation2 + $0x128] sm:$0xff]
    %v550 = vld [vmem:[#allocation2 + $0x138] sm:$0xff]
    %v551 = vld [vmem:[#allocation2 + $0x140] sm:$0xff]
    %v552 = vld [vmem:[#allocation2 + $0x150] sm:$0xff]
    %v553 = vld [vmem:[#allocation2 + $0x158] sm:$0xff]
    %v554 = vld [vmem:[#allocation2 + $0x168] sm:$0xff]
    %v555 = vld [vmem:[#allocation2 + $0x170] sm:$0xff]
    %v556 = vld [vmem:[#allocation2 + $0x1b0] sm:$0xff]
    %v557 = vld [vmem:[#allocation2 + $0x1b8] sm:$0xff]
    %v558 = vld [vmem:[#allocation2 + $0x1c8] sm:$0xff]
    %v559 = vld [vmem:[#allocation2 + $0x1d0] sm:$0xff]
    %v560 = vld [vmem:[#allocation2 + $0x1e0] sm:$0xff]
    %v561 = vld [vmem:[#allocation2 + $0x1e8] sm:$0xff]
    %v562 = vld [vmem:[#allocation2 + $0x1f8] sm:$0xff]
    %v563 = vld [vmem:[#allocation2 + $0x200] sm:$0xff]
    %v564 = vld [vmem:[#allocation2 + $0x210] sm:$0xff]
    %v565 = vld [vmem:[#allocation2 + $0x218] sm:$0xff]
    %v566 = vld [vmem:[#allocation2 + $0x228] sm:$0xff]
    %v567 = vld [vmem:[#allocation2 + $0x230] sm:$0xff]
    %v568 = vld [vmem:[#allocation2 + $0x240] sm:$0xff]
    %v569 = vld [vmem:[#allocation2 + $0x248] sm:$0xff]
    %v570 = vld [vmem:[#allocation2 + $0x258] sm:$0xff]
    %v571 = vld [vmem:[#allocation2 + $0x260] sm:$0xff]
    %v572 = vld [vmem:[#allocation2 + $0x270] sm:$0xff]
    %v573 = vld [vmem:[#allocation2 + $0x278] sm:$0xff]
    %v574 = vld [vmem:[#allocation2 + $0x288] sm:$0xff]
    %v575 = vld [vmem:[#allocation2 + $0x290] sm:$0xff]
    %v576 = vld [vmem:[#allocation2 + $0x2a0] sm:$0xff]
    %v577 = vld [vmem:[#allocation2 + $0x2a8] sm:$0xff]
    %v578 = vld [vmem:[#allocation2 + $0x2b8] sm:$0xff]
    %v579 = vld [vmem:[#allocation2 + $0x2c0] sm:$0xff]
    %v580 = vld [vmem:[#allocation2 + $0x2d0] sm:$0xff]
    %v581 = vld [vmem:[#allocation2 + $0x2d8] sm:$0xff]
    %v582 = vld [vmem:[#allocation2 + $0x2e8] sm:$0xff]
    %v583 = vld [vmem:[#allocation2 + $0x2f0] sm:$0xff]
    %v584 = vld [vmem:[#allocation2 + $0x300] sm:$0xff]
    %v585 = vld [vmem:[#allocation2 + $0x308] sm:$0xff]
    %v586 = vld [vmem:[#allocation2 + $0x318] sm:$0xff]
    %v587 = vld [vmem:[#allocation2 + $0x320] sm:$0xff]
    %v588 = vld [vmem:[#allocation2 + $0x1] sm:$0xff]
    %v589 = vld [vmem:[#allocation2 + $0x9] sm:$0xff]
    %v590 = vld [vmem:[#allocation2 + $0x19] sm:$0xff]
    %v591 = vld [vmem:[#allocation2 + $0x21] sm:$0xff]
    %v592 = vld [vmem:[#allocation2 + $0x31] sm:$0xff]
    %v593 = vld [vmem:[#allocation2 + $0x39] sm:$0xff]
    %v594 = vld [vmem:[#allocation2 + $0x49] sm:$0xff]
    %v595 = vld [vmem:[#allocation2 + $0x51] sm:$0xff]
    %v596 = vld [vmem:[#allocation2 + $0x61] sm:$0xff]
    %v597 = vld [vmem:[#allocation2 + $0x69] sm:$0xff]
    %v598 = vld [vmem:[#allocation2 + $0x79] sm:$0xff]
    %v599 = vld [vmem:[#allocation2 + $0x81] sm:$0xff]
    %v600 = vld [vmem:[#allocation2 + $0x91] sm:$0xff]
    %v601 = vld [vmem:[#allocation2 + $0x99] sm:$0xff]
    %v602 = vld [vmem:[#allocation2 + $0xa9] sm:$0xff]
    %v603 = vld [vmem:[#allocation2 + $0xb1] sm:$0xff]
    %v604 = vld [vmem:[#allocation2 + $0xc1] sm:$0xff]
    %v605 = vld [vmem:[#allocation2 + $0xc9] sm:$0xff]
    %v606 = vld [vmem:[#allocation2 + $0xd9] sm:$0xff]
    %v607 = vld [vmem:[#allocation2 + $0xe1] sm:$0xff]
    %v608 = vld [vmem:[#allocation2 + $0xf1] sm:$0xff]
    %v609 = vld [vmem:[#allocation2 + $0xf9] sm:$0xff]
    %v610 = vld [vmem:[#allocation2 + $0x109] sm:$0xff]
    %v611 = vld [vmem:[#allocation2 + $0x111] sm:$0xff]
    %v612 = vld [vmem:[#allocation2 + $0x121] sm:$0xff]
    %v613 = vld [vmem:[#allocation2 + $0x129] sm:$0xff]
    %v614 = vld [vmem:[#allocation2 + $0x139] sm:$0xff]
    %v615 = vld [vmem:[#allocation2 + $0x141] sm:$0xff]
    %v616 = vld [vmem:[#allocation2 + $0x151] sm:$0xff]
    %v617 = vld [vmem:[#allocation2 + $0x159] sm:$0xff]
    %v618 = vld [vmem:[#allocation2 + $0x169] sm:$0xff]
    %v619 = vld [vmem:[#allocation2 + $0x171] sm:$0xff]
    %v620 = vld [vmem:[#allocation2 + $0x1b1] sm:$0xff]
    %v621 = vld [vmem:[#allocation2 + $0x1b9] sm:$0xff]
    %v622 = vld [vmem:[#allocation2 + $0x1c9] sm:$0xff]
    %v623 = vld [vmem:[#allocation2 + $0x1d1] sm:$0xff]
    %v624 = vld [vmem:[#allocation2 + $0x1e1] sm:$0xff]
    %v625 = vld [vmem:[#allocation2 + $0x1e9] sm:$0xff]
    %v626 = vld [vmem:[#allocation2 + $0x1f9] sm:$0xff]
    %v627 = vld [vmem:[#allocation2 + $0x201] sm:$0xff]
    %v628 = vld [vmem:[#allocation2 + $0x211] sm:$0xff]
    %v629 = vld [vmem:[#allocation2 + $0x219] sm:$0xff]
    %v630 = vld [vmem:[#allocation2 + $0x229] sm:$0xff]
    %v631 = vld [vmem:[#allocation2 + $0x231] sm:$0xff]
    %v632 = vld [vmem:[#allocation2 + $0x241] sm:$0xff]
    %v633 = vld [vmem:[#allocation2 + $0x249] sm:$0xff]
    %v634 = vld [vmem:[#allocation2 + $0x259] sm:$0xff]
    %v635 = vld [vmem:[#allocation2 + $0x261] sm:$0xff]
    %v636 = vld [vmem:[#allocation2 + $0x271] sm:$0xff]
    %v637 = vld [vmem:[#allocation2 + $0x279] sm:$0xff]
    %v638 = vld [vmem:[#allocation2 + $0x289] sm:$0xff]
    %v639 = vld [vmem:[#allocation2 + $0x291] sm:$0xff]
    %v640 = vld [vmem:[#allocation2 + $0x2a1] sm:$0xff]
    %v641 = vld [vmem:[#allocation2 + $0x2a9] sm:$0xff]
    %v642 = vld [vmem:[#allocation2 + $0x2b9] sm:$0xff]
    %v643 = vld [vmem:[#allocation2 + $0x2c1] sm:$0xff]
    %v644 = vld [vmem:[#allocation2 + $0x2d1] sm:$0xff]
    %v645 = vld [vmem:[#allocation2 + $0x2d9] sm:$0xff]
    %v646 = vld [vmem:[#allocation2 + $0x2e9] sm:$0xff]
    %v647 = vld [vmem:[#allocation2 + $0x2f1] sm:$0xff]
    %v648 = vld [vmem:[#allocation2 + $0x301] sm:$0xff]
    %v649 = vld [vmem:[#allocation2 + $0x309] sm:$0xff]
    %v650 = vld [vmem:[#allocation2 + $0x319] sm:$0xff]
    %v651 = vld [vmem:[#allocation2 + $0x321] sm:$0xff]
    %v652 = vld [vmem:[#allocation2 + $0x2] sm:$0xff]
    %v653 = vld [vmem:[#allocation2 + $0xa] sm:$0xff]
    %v654 = vld [vmem:[#allocation2 + $0x1a] sm:$0xff]
    %v655 = vld [vmem:[#allocation2 + $0x22] sm:$0xff]
    %v656 = vld [vmem:[#allocation2 + $0x32] sm:$0xff]
    %v657 = vld [vmem:[#allocation2 + $0x3a] sm:$0xff]
    %v658 = vld [vmem:[#allocation2 + $0x4a] sm:$0xff]
    %v659 = vld [vmem:[#allocation2 + $0x52] sm:$0xff]
    %v660 = vld [vmem:[#allocation2 + $0x62] sm:$0xff]
    %v661 = vld [vmem:[#allocation2 + $0x6a] sm:$0xff]
    %v662 = vld [vmem:[#allocation2 + $0x7a] sm:$0xff]
    %v663 = vld [vmem:[#allocation2 + $0x82] sm:$0xff]
    %v664 = vld [vmem:[#allocation2 + $0x92] sm:$0xff]
    %v665 = vld [vmem:[#allocation2 + $0x9a] sm:$0xff]
    %v666 = vld [vmem:[#allocation2 + $0xaa] sm:$0xff]
    %v667 = vld [vmem:[#allocation2 + $0xb2] sm:$0xff]
    %v668 = vld [vmem:[#allocation2 + $0xc2] sm:$0xff]
    %v669 = vld [vmem:[#allocation2 + $0xca] sm:$0xff]
    %v670 = vld [vmem:[#allocation2 + $0xda] sm:$0xff]
    %v671 = vld [vmem:[#allocation2 + $0xe2] sm:$0xff]
    %v672 = vld [vmem:[#allocation2 + $0xf2] sm:$0xff]
    %v673 = vld [vmem:[#allocation2 + $0xfa] sm:$0xff]
    %v674 = vld [vmem:[#allocation2 + $0x10a] sm:$0xff]
    %v675 = vld [vmem:[#allocation2 + $0x112] sm:$0xff]
    %v676 = vld [vmem:[#allocation2 + $0x122] sm:$0xff]
    %v677 = vld [vmem:[#allocation2 + $0x12a] sm:$0xff]
    %v678 = vld [vmem:[#allocation2 + $0x13a] sm:$0xff]
    %v679 = vld [vmem:[#allocation2 + $0x142] sm:$0xff]
    %v680 = vld [vmem:[#allocation2 + $0x152] sm:$0xff]
    %v681 = vld [vmem:[#allocation2 + $0x15a] sm:$0xff]
    %v682 = vld [vmem:[#allocation2 + $0x16a] sm:$0xff]
    %v683 = vld [vmem:[#allocation2 + $0x172] sm:$0xff]
    %v684 = vld [vmem:[#allocation2 + $0x1b2] sm:$0xff]
    %v685 = vld [vmem:[#allocation2 + $0x1ba] sm:$0xff]
    %v686 = vld [vmem:[#allocation2 + $0x1ca] sm:$0xff]
    %v687 = vld [vmem:[#allocation2 + $0x1d2] sm:$0xff]
    %v688 = vld [vmem:[#allocation2 + $0x1e2] sm:$0xff]
    %v689 = vld [vmem:[#allocation2 + $0x1ea] sm:$0xff]
    %v690 = vld [vmem:[#allocation2 + $0x1fa] sm:$0xff]
    %v691 = vld [vmem:[#allocation2 + $0x202] sm:$0xff]
    %v692 = vld [vmem:[#allocation2 + $0x212] sm:$0xff]
    %v693 = vld [vmem:[#allocation2 + $0x21a] sm:$0xff]
    %v694 = vld [vmem:[#allocation2 + $0x22a] sm:$0xff]
    %v695 = vld [vmem:[#allocation2 + $0x232] sm:$0xff]
    %v696 = vld [vmem:[#allocation2 + $0x242] sm:$0xff]
    %v697 = vld [vmem:[#allocation2 + $0x24a] sm:$0xff]
    %v698 = vld [vmem:[#allocation2 + $0x25a] sm:$0xff]
    %v699 = vld [vmem:[#allocation2 + $0x262] sm:$0xff]
    %v700 = vld [vmem:[#allocation2 + $0x272] sm:$0xff]
    %v701 = vld [vmem:[#allocation2 + $0x27a] sm:$0xff]
    %v702 = vld [vmem:[#allocation2 + $0x28a] sm:$0xff]
    %v703 = vld [vmem:[#allocation2 + $0x292] sm:$0xff]
    %v704 = vld [vmem:[#allocation2 + $0x2a2] sm:$0xff]
    %v705 = vld [vmem:[#allocation2 + $0x2aa] sm:$0xff]
    %v706 = vld [vmem:[#allocation2 + $0x2ba] sm:$0xff]
    %v707 = vld [vmem:[#allocation2 + $0x2c2] sm:$0xff]
    %v708 = vld [vmem:[#allocation2 + $0x2d2] sm:$0xff]
    %v709 = vld [vmem:[#allocation2 + $0x2da] sm:$0xff]
    %v710 = vld [vmem:[#allocation2 + $0x2ea] sm:$0xff]
    %v711 = vld [vmem:[#allocation2 + $0x2f2] sm:$0xff]
    %v712 = vld [vmem:[#allocation2 + $0x302] sm:$0xff]
    %v713 = vld [vmem:[#allocation2 + $0x30a] sm:$0xff]
    %v714 = vld [vmem:[#allocation2 + $0x31a] sm:$0xff]
    %v715 = vld [vmem:[#allocation2 + $0x322] sm:$0xff]
    %v716 = vld [vmem:[%s222] sm:$0xff]
    %v717 = vld [vmem:[%s222 + $0x8] sm:$0xff]
    %v718 = vld [vmem:[%s222 + $0x18] sm:$0xff]
    %v719 = vld [vmem:[%s222 + $0x20] sm:$0xff]
    %v720 = vld [vmem:[%s222 + $0x30] sm:$0xff]
    %v721 = vld [vmem:[%s222 + $0x38] sm:$0xff]
    %v722 = vld [vmem:[%s222 + $0x48] sm:$0xff]
    %v723 = vld [vmem:[%s222 + $0x50] sm:$0xff]
    %v724 = vld [vmem:[%s222 + $0x60] sm:$0xff]
    %v725 = vld [vmem:[%s222 + $0x68] sm:$0xff]
    %v726 = vld [vmem:[%s222 + $0x78] sm:$0xff]
    %v727 = vld [vmem:[%s222 + $0x80] sm:$0xff]
    %v728 = vld [vmem:[%s222 + $0x90] sm:$0xff]
    %v729 = vld [vmem:[%s222 + $0x98] sm:$0xff]
    %v730 = vld [vmem:[%s222 + $0xa8] sm:$0xff]
    %v731 = vld [vmem:[%s222 + $0xb0] sm:$0xff]
    %v732 = vld [vmem:[%s222 + $0xc0] sm:$0xff]
    %v733 = vld [vmem:[%s222 + $0xc8] sm:$0xff]
    %v734 = vld [vmem:[%s222 + $0xd8] sm:$0xff]
    %v735 = vld [vmem:[%s222 + $0xe0] sm:$0xff]
    %v736 = vld [vmem:[%s222 + $0xf0] sm:$0xff]
    %v737 = vld [vmem:[%s222 + $0xf8] sm:$0xff]
    %v738 = vld [vmem:[%s222 + $0x108] sm:$0xff]
    %v739 = vld [vmem:[%s222 + $0x110] sm:$0xff]
    %v740 = vld [vmem:[%s222 + $0x120] sm:$0xff]
    %v741 = vld [vmem:[%s222 + $0x128] sm:$0xff]
    %v742 = vld [vmem:[%s222 + $0x138] sm:$0xff]
    %v743 = vld [vmem:[%s222 + $0x140] sm:$0xff]
    %v744 = vld [vmem:[%s222 + $0x150] sm:$0xff]
    %v745 = vld [vmem:[%s222 + $0x158] sm:$0xff]
    %v746 = vld [vmem:[%s222 + $0x168] sm:$0xff]
    %v747 = vld [vmem:[%s222 + $0x170] sm:$0xff]
    %v748 = vld [vmem:[%s222 + $0x1b0] sm:$0xff]
    %v749 = vld [vmem:[%s222 + $0x1b8] sm:$0xff]
    %v750 = vld [vmem:[%s222 + $0x1c8] sm:$0xff]
    %v751 = vld [vmem:[%s222 + $0x1d0] sm:$0xff]
    %v752 = vld [vmem:[%s222 + $0x1e0] sm:$0xff]
    %v753 = vld [vmem:[%s222 + $0x1e8] sm:$0xff]
    %v754 = vld [vmem:[%s222 + $0x1f8] sm:$0xff]
    %v755 = vld [vmem:[%s222 + $0x200] sm:$0xff]
    %v756 = vld [vmem:[%s222 + $0x210] sm:$0xff]
    %v757 = vld [vmem:[%s222 + $0x218] sm:$0xff]
    %v758 = vld [vmem:[%s222 + $0x228] sm:$0xff]
    %v759 = vld [vmem:[%s222 + $0x230] sm:$0xff]
    %v760 = vld [vmem:[%s222 + $0x240] sm:$0xff]
    %v761 = vld [vmem:[%s222 + $0x248] sm:$0xff]
    %v762 = vld [vmem:[%s222 + $0x258] sm:$0xff]
    %v763 = vld [vmem:[%s222 + $0x260] sm:$0xff]
    %v764 = vld [vmem:[%s222 + $0x270] sm:$0xff]
    %v765 = vld [vmem:[%s222 + $0x278] sm:$0xff]
    %v766 = vld [vmem:[%s222 + $0x288] sm:$0xff]
    %v767 = vld [vmem:[%s222 + $0x290] sm:$0xff]
    %v768 = vld [vmem:[%s222 + $0x2a0] sm:$0xff]
    %v769 = vld [vmem:[%s222 + $0x2a8] sm:$0xff]
    %v770 = vld [vmem:[%s222 + $0x2b8] sm:$0xff]
    %v771 = vld [vmem:[%s222 + $0x2c0] sm:$0xff]
    %v772 = vld [vmem:[%s222 + $0x2d0] sm:$0xff]
    %v773 = vld [vmem:[%s222 + $0x2d8] sm:$0xff]
    %v774 = vld [vmem:[%s222 + $0x2e8] sm:$0xff]
    %v775 = vld [vmem:[%s222 + $0x2f0] sm:$0xff]
    %v776 = vld [vmem:[%s222 + $0x300] sm:$0xff]
    %v777 = vld [vmem:[%s222 + $0x308] sm:$0xff]
    %v778 = vld [vmem:[%s222 + $0x318] sm:$0xff]
    %v779 = vld [vmem:[%s222 + $0x320] sm:$0xff]
    %v780 = vld [vmem:[%s222 + $0x1] sm:$0xff]
    %v781 = vld [vmem:[%s222 + $0x9] sm:$0xff]
    %v782 = vld [vmem:[%s222 + $0x19] sm:$0xff]
    %v783 = vld [vmem:[%s222 + $0x21] sm:$0xff]
    %v784 = vld [vmem:[%s222 + $0x31] sm:$0xff]
    %v785 = vld [vmem:[%s222 + $0x39] sm:$0xff]
    %v786 = vld [vmem:[%s222 + $0x49] sm:$0xff]
    %v787 = vld [vmem:[%s222 + $0x51] sm:$0xff]
    %v788 = vld [vmem:[%s222 + $0x61] sm:$0xff]
    %v789 = vld [vmem:[%s222 + $0x69] sm:$0xff]
    %v790 = vld [vmem:[%s222 + $0x79] sm:$0xff]
    %v791 = vld [vmem:[%s222 + $0x81] sm:$0xff]
    %v792 = vld [vmem:[%s222 + $0x91] sm:$0xff]
    %v793 = vld [vmem:[%s222 + $0x99] sm:$0xff]
    %v794 = vld [vmem:[%s222 + $0xa9] sm:$0xff]
    %v795 = vld [vmem:[%s222 + $0xb1] sm:$0xff]
    %v796 = vld [vmem:[%s222 + $0xc1] sm:$0xff]
    %v797 = vld [vmem:[%s222 + $0xc9] sm:$0xff]
    %v798 = vld [vmem:[%s222 + $0xd9] sm:$0xff]
    %v799 = vld [vmem:[%s222 + $0xe1] sm:$0xff]
    %v800 = vld [vmem:[%s222 + $0xf1] sm:$0xff]
    %v801 = vld [vmem:[%s222 + $0xf9] sm:$0xff]
    %v802 = vld [vmem:[%s222 + $0x109] sm:$0xff]
    %v803 = vld [vmem:[%s222 + $0x111] sm:$0xff]
    %v804 = vld [vmem:[%s222 + $0x121] sm:$0xff]
    %v805 = vld [vmem:[%s222 + $0x129] sm:$0xff]
    %v806 = vld [vmem:[%s222 + $0x139] sm:$0xff]
    %v807 = vld [vmem:[%s222 + $0x141] sm:$0xff]
    %v808 = vld [vmem:[%s222 + $0x151] sm:$0xff]
    %v809 = vld [vmem:[%s222 + $0x159] sm:$0xff]
    %v810 = vld [vmem:[%s222 + $0x169] sm:$0xff]
    %v811 = vld [vmem:[%s222 + $0x171] sm:$0xff]
    %v812 = vld [vmem:[%s222 + $0x1b1] sm:$0xff]
    %v813 = vld [vmem:[%s222 + $0x1b9] sm:$0xff]
    %v814 = vld [vmem:[%s222 + $0x1c9] sm:$0xff]
    %v815 = vld [vmem:[%s222 + $0x1d1] sm:$0xff]
    %v816 = vld [vmem:[%s222 + $0x1e1] sm:$0xff]
    %v817 = vld [vmem:[%s222 + $0x1e9] sm:$0xff]
    %v818 = vld [vmem:[%s222 + $0x1f9] sm:$0xff]
    %v819 = vld [vmem:[%s222 + $0x201] sm:$0xff]
    %v820 = vld [vmem:[%s222 + $0x211] sm:$0xff]
    %v821 = vld [vmem:[%s222 + $0x219] sm:$0xff]
    %v822 = vld [vmem:[%s222 + $0x229] sm:$0xff]
    %v823 = vld [vmem:[%s222 + $0x231] sm:$0xff]
    %v824 = vld [vmem:[%s222 + $0x241] sm:$0xff]
    %v825 = vld [vmem:[%s222 + $0x249] sm:$0xff]
    %v826 = vld [vmem:[%s222 + $0x259] sm:$0xff]
    %v827 = vld [vmem:[%s222 + $0x261] sm:$0xff]
    %v828 = vld [vmem:[%s222 + $0x271] sm:$0xff]
    %v829 = vld [vmem:[%s222 + $0x279] sm:$0xff]
    %v830 = vld [vmem:[%s222 + $0x289] sm:$0xff]
    %v831 = vld [vmem:[%s222 + $0x291] sm:$0xff]
    %v832 = vld [vmem:[%s222 + $0x2a1] sm:$0xff]
    %v833 = vld [vmem:[%s222 + $0x2a9] sm:$0xff]
    %v834 = vld [vmem:[%s222 + $0x2b9] sm:$0xff]
    %v835 = vld [vmem:[%s222 + $0x2c1] sm:$0xff]
    %v836 = vld [vmem:[%s222 + $0x2d1] sm:$0xff]
    %v837 = vld [vmem:[%s222 + $0x2d9] sm:$0xff]
    %v838 = vld [vmem:[%s222 + $0x2e9] sm:$0xff]
    %v839 = vld [vmem:[%s222 + $0x2f1] sm:$0xff]
    %v840 = vld [vmem:[%s222 + $0x301] sm:$0xff]
    %v841 = vld [vmem:[%s222 + $0x309] sm:$0xff]
    %v842 = vld [vmem:[%s222 + $0x319] sm:$0xff]
    %v843 = vld [vmem:[%s222 + $0x321] sm:$0xff]
    %v844 = vld [vmem:[%s222 + $0x2] sm:$0xff]
    %v845 = vld [vmem:[%s222 + $0xa] sm:$0xff]
    %v846 = vld [vmem:[%s222 + $0x1a] sm:$0xff]
    %v847 = vld [vmem:[%s222 + $0x22] sm:$0xff]
    %v848 = vld [vmem:[%s222 + $0x32] sm:$0xff]
    %v849 = vld [vmem:[%s222 + $0x3a] sm:$0xff]
    %v850 = vld [vmem:[%s222 + $0x4a] sm:$0xff]
    %v851 = vld [vmem:[%s222 + $0x52] sm:$0xff]
    %v852 = vld [vmem:[%s222 + $0x62] sm:$0xff]
    %v853 = vld [vmem:[%s222 + $0x6a] sm:$0xff]
    %v854 = vld [vmem:[%s222 + $0x7a] sm:$0xff]
    %v855 = vld [vmem:[%s222 + $0x82] sm:$0xff]
    %v856 = vld [vmem:[%s222 + $0x92] sm:$0xff]
    %v857 = vld [vmem:[%s222 + $0x9a] sm:$0xff]
    %v858 = vld [vmem:[%s222 + $0xaa] sm:$0xff]
    %v859 = vld [vmem:[%s222 + $0xb2] sm:$0xff]
    %v860 = vld [vmem:[%s222 + $0xc2] sm:$0xff]
    %v861 = vld [vmem:[%s222 + $0xca] sm:$0xff]
    %v862 = vld [vmem:[%s222 + $0xda] sm:$0xff]
    %v863 = vld [vmem:[%s222 + $0xe2] sm:$0xff]
    %v864 = vld [vmem:[%s222 + $0xf2] sm:$0xff]
    %v865 = vld [vmem:[%s222 + $0xfa] sm:$0xff]
    %v866 = vld [vmem:[%s222 + $0x10a] sm:$0xff]
    %v867 = vld [vmem:[%s222 + $0x112] sm:$0xff]
    %v868 = vld [vmem:[%s222 + $0x122] sm:$0xff]
    %v869 = vld [vmem:[%s222 + $0x12a] sm:$0xff]
    %v870 = vld [vmem:[%s222 + $0x13a] sm:$0xff]
    %v871 = vld [vmem:[%s222 + $0x142] sm:$0xff]
    %v872 = vld [vmem:[%s222 + $0x152] sm:$0xff]
    %v873 = vld [vmem:[%s222 + $0x15a] sm:$0xff]
    %v874 = vld [vmem:[%s222 + $0x16a] sm:$0xff]
    %v875 = vld [vmem:[%s222 + $0x172] sm:$0xff]
    %v876 = vld [vmem:[%s222 + $0x1b2] sm:$0xff]
    %v877 = vld [vmem:[%s222 + $0x1ba] sm:$0xff]
    %v878 = vld [vmem:[%s222 + $0x1ca] sm:$0xff]
    %v879 = vld [vmem:[%s222 + $0x1d2] sm:$0xff]
    %v880 = vld [vmem:[%s222 + $0x1e2] sm:$0xff]
    %v881 = vld [vmem:[%s222 + $0x1ea] sm:$0xff]
    %v882 = vld [vmem:[%s222 + $0x1fa] sm:$0xff]
    %v883 = vld [vmem:[%s222 + $0x202] sm:$0xff]
    %v884 = vld [vmem:[%s222 + $0x212] sm:$0xff]
    %v885 = vld [vmem:[%s222 + $0x21a] sm:$0xff]
    %v886 = vld [vmem:[%s222 + $0x22a] sm:$0xff]
    %v887 = vld [vmem:[%s222 + $0x232] sm:$0xff]
    %v888 = vld [vmem:[%s222 + $0x242] sm:$0xff]
    %v889 = vld [vmem:[%s222 + $0x24a] sm:$0xff]
    %v890 = vld [vmem:[%s222 + $0x25a] sm:$0xff]
    %v891 = vld [vmem:[%s222 + $0x262] sm:$0xff]
    %v892 = vld [vmem:[%s222 + $0x272] sm:$0xff]
    %v893 = vld [vmem:[%s222 + $0x27a] sm:$0xff]
    %v894 = vld [vmem:[%s222 + $0x28a] sm:$0xff]
    %v895 = vld [vmem:[%s222 + $0x292] sm:$0xff]
    %v896 = vld [vmem:[%s222 + $0x2a2] sm:$0xff]
    %v897 = vld [vmem:[%s222 + $0x2aa] sm:$0xff]
    %v898 = vld [vmem:[%s222 + $0x2ba] sm:$0xff]
    %v899 = vld [vmem:[%s222 + $0x2c2] sm:$0xff]
    %v900 = vld [vmem:[%s222 + $0x2d2] sm:$0xff]
    %v901 = vld [vmem:[%s222 + $0x2da] sm:$0xff]
    %v902 = vld [vmem:[%s222 + $0x2ea] sm:$0xff]
    %v903 = vld [vmem:[%s222 + $0x2f2] sm:$0xff]
    %v904 = vld [vmem:[%s222 + $0x302] sm:$0xff]
    %v905 = vld [vmem:[%s222 + $0x30a] sm:$0xff]
    %v906 = vld [vmem:[%s222 + $0x31a] sm:$0xff]
    %v907 = vld [vmem:[%s222 + $0x322] sm:$0xff]
    %s908 = scalar_lea.vmem [#allocation2], 48
    %v909 = vld [vmem:[%s908] sm:$0xff]
    %v910 = vld [vmem:[%s908 + $0x8] sm:$0xff]
    %v911 = vld [vmem:[%s908 + $0x18] sm:$0xff]
    %v912 = vld [vmem:[%s908 + $0x20] sm:$0xff]
    %v913 = vld [vmem:[%s908 + $0x30] sm:$0xff]
    %v914 = vld [vmem:[%s908 + $0x38] sm:$0xff]
    %v915 = vld [vmem:[%s908 + $0x48] sm:$0xff]
    %v916 = vld [vmem:[%s908 + $0x50] sm:$0xff]
    %v917 = vld [vmem:[%s908 + $0x60] sm:$0xff]
    %v918 = vld [vmem:[%s908 + $0x68] sm:$0xff]
    %v919 = vld [vmem:[%s908 + $0x78] sm:$0xff]
    %v920 = vld [vmem:[%s908 + $0x80] sm:$0xff]
    %v921 = vld [vmem:[%s908 + $0x90] sm:$0xff]
    %v922 = vld [vmem:[%s908 + $0x98] sm:$0xff]
    %v923 = vld [vmem:[%s908 + $0xa8] sm:$0xff]
    %v924 = vld [vmem:[%s908 + $0xb0] sm:$0xff]
    %v925 = vld [vmem:[%s908 + $0xc0] sm:$0xff]
    %v926 = vld [vmem:[%s908 + $0xc8] sm:$0xff]
    %v927 = vld [vmem:[%s908 + $0xd8] sm:$0xff]
    %v928 = vld [vmem:[%s908 + $0xe0] sm:$0xff]
    %v929 = vld [vmem:[%s908 + $0xf0] sm:$0xff]
    %v930 = vld [vmem:[%s908 + $0xf8] sm:$0xff]
    %v931 = vld [vmem:[%s908 + $0x108] sm:$0xff]
    %v932 = vld [vmem:[%s908 + $0x110] sm:$0xff]
    %v933 = vld [vmem:[%s908 + $0x120] sm:$0xff]
    %v934 = vld [vmem:[%s908 + $0x128] sm:$0xff]
    %v935 = vld [vmem:[%s908 + $0x138] sm:$0xff]
    %v936 = vld [vmem:[%s908 + $0x140] sm:$0xff]
    %v937 = vld [vmem:[%s908 + $0x150] sm:$0xff]
    %v938 = vld [vmem:[%s908 + $0x158] sm:$0xff]
    %v939 = vld [vmem:[%s908 + $0x168] sm:$0xff]
    %v940 = vld [vmem:[%s908 + $0x170] sm:$0xff]
    %v941 = vld [vmem:[%s908 + $0x1b0] sm:$0xff]
    %v942 = vld [vmem:[%s908 + $0x1b8] sm:$0xff]
    %v943 = vld [vmem:[%s908 + $0x1c8] sm:$0xff]
    %v944 = vld [vmem:[%s908 + $0x1d0] sm:$0xff]
    %v945 = vld [vmem:[%s908 + $0x1e0] sm:$0xff]
    %v946 = vld [vmem:[%s908 + $0x1e8] sm:$0xff]
    %v947 = vld [vmem:[%s908 + $0x1f8] sm:$0xff]
    %v948 = vld [vmem:[%s908 + $0x200] sm:$0xff]
    %v949 = vld [vmem:[%s908 + $0x210] sm:$0xff]
    %v950 = vld [vmem:[%s908 + $0x218] sm:$0xff]
    %v951 = vld [vmem:[%s908 + $0x228] sm:$0xff]
    %v952 = vld [vmem:[%s908 + $0x230] sm:$0xff]
    %v953 = vld [vmem:[%s908 + $0x240] sm:$0xff]
    %v954 = vld [vmem:[%s908 + $0x248] sm:$0xff]
    %v955 = vld [vmem:[%s908 + $0x258] sm:$0xff]
    %v956 = vld [vmem:[%s908 + $0x260] sm:$0xff]
    %v957 = vld [vmem:[%s908 + $0x270] sm:$0xff]
    %v958 = vld [vmem:[%s908 + $0x278] sm:$0xff]
    %v959 = vld [vmem:[%s908 + $0x288] sm:$0xff]
    %v960 = vld [vmem:[%s908 + $0x290] sm:$0xff]
    %v961 = vld [vmem:[%s908 + $0x2a0] sm:$0xff]
    %v962 = vld [vmem:[%s908 + $0x2a8] sm:$0xff]
    %v963 = vld [vmem:[%s908 + $0x2b8] sm:$0xff]
    %v964 = vld [vmem:[%s908 + $0x2c0] sm:$0xff]
    %v965 = vld [vmem:[%s908 + $0x2d0] sm:$0xff]
    %v966 = vld [vmem:[%s908 + $0x2d8] sm:$0xff]
    %v967 = vld [vmem:[%s908 + $0x2e8] sm:$0xff]
    %v968 = vld [vmem:[%s908 + $0x2f0] sm:$0xff]
    %v969 = vld [vmem:[%s908 + $0x300] sm:$0xff]
    %v970 = vld [vmem:[%s908 + $0x308] sm:$0xff]
    %v971 = vld [vmem:[%s908 + $0x318] sm:$0xff]
    %v972 = vld [vmem:[%s908 + $0x320] sm:$0xff]
    %v973 = vld [vmem:[%s908 + $0x1] sm:$0xff]
    %v974 = vld [vmem:[%s908 + $0x9] sm:$0xff]
    %v975 = vld [vmem:[%s908 + $0x19] sm:$0xff]
    %v976 = vld [vmem:[%s908 + $0x21] sm:$0xff]
    %v977 = vld [vmem:[%s908 + $0x31] sm:$0xff]
    %v978 = vld [vmem:[%s908 + $0x39] sm:$0xff]
    %v979 = vld [vmem:[%s908 + $0x49] sm:$0xff]
    %v980 = vld [vmem:[%s908 + $0x51] sm:$0xff]
    %v981 = vld [vmem:[%s908 + $0x61] sm:$0xff]
    %v982 = vld [vmem:[%s908 + $0x69] sm:$0xff]
    %v983 = vld [vmem:[%s908 + $0x79] sm:$0xff]
    %v984 = vld [vmem:[%s908 + $0x81] sm:$0xff]
    %v985 = vld [vmem:[%s908 + $0x91] sm:$0xff]
    %v986 = vld [vmem:[%s908 + $0x99] sm:$0xff]
    %v987 = vld [vmem:[%s908 + $0xa9] sm:$0xff]
    %v988 = vld [vmem:[%s908 + $0xb1] sm:$0xff]
    %v989 = vld [vmem:[%s908 + $0xc1] sm:$0xff]
    %v990 = vld [vmem:[%s908 + $0xc9] sm:$0xff]
    %v991 = vld [vmem:[%s908 + $0xd9] sm:$0xff]
    %v992 = vld [vmem:[%s908 + $0xe1] sm:$0xff]
    %v993 = vld [vmem:[%s908 + $0xf1] sm:$0xff]
    %v994 = vld [vmem:[%s908 + $0xf9] sm:$0xff]
    %v995 = vld [vmem:[%s908 + $0x109] sm:$0xff]
    %v996 = vld [vmem:[%s908 + $0x111] sm:$0xff]
    %v997 = vld [vmem:[%s908 + $0x121] sm:$0xff]
    %v998 = vld [vmem:[%s908 + $0x129] sm:$0xff]
    %v999 = vld [vmem:[%s908 + $0x139] sm:$0xff]
    %v1000 = vld [vmem:[%s908 + $0x141] sm:$0xff]
    %v1001 = vld [vmem:[%s908 + $0x151] sm:$0xff]
    %v1002 = vld [vmem:[%s908 + $0x159] sm:$0xff]
    %v1003 = vld [vmem:[%s908 + $0x169] sm:$0xff]
    %v1004 = vld [vmem:[%s908 + $0x171] sm:$0xff]
    %v1005 = vld [vmem:[%s908 + $0x1b1] sm:$0xff]
    %v1006 = vld [vmem:[%s908 + $0x1b9] sm:$0xff]
    %v1007 = vld [vmem:[%s908 + $0x1c9] sm:$0xff]
    %v1008 = vld [vmem:[%s908 + $0x1d1] sm:$0xff]
    %v1009 = vld [vmem:[%s908 + $0x1e1] sm:$0xff]
    %v1010 = vld [vmem:[%s908 + $0x1e9] sm:$0xff]
    %v1011 = vld [vmem:[%s908 + $0x1f9] sm:$0xff]
    %v1012 = vld [vmem:[%s908 + $0x201] sm:$0xff]
    %v1013 = vld [vmem:[%s908 + $0x211] sm:$0xff]
    %v1014 = vld [vmem:[%s908 + $0x219] sm:$0xff]
    %v1015 = vld [vmem:[%s908 + $0x229] sm:$0xff]
    %v1016 = vld [vmem:[%s908 + $0x231] sm:$0xff]
    %v1017 = vld [vmem:[%s908 + $0x241] sm:$0xff]
    %v1018 = vld [vmem:[%s908 + $0x249] sm:$0xff]
    %v1019 = vld [vmem:[%s908 + $0x259] sm:$0xff]
    %v1020 = vld [vmem:[%s908 + $0x261] sm:$0xff]
    %v1021 = vld [vmem:[%s908 + $0x271] sm:$0xff]
    %v1022 = vld [vmem:[%s908 + $0x279] sm:$0xff]
    %v1023 = vld [vmem:[%s908 + $0x289] sm:$0xff]
    %v1024 = vld [vmem:[%s908 + $0x291] sm:$0xff]
    %v1025 = vld [vmem:[%s908 + $0x2a1] sm:$0xff]
    %v1026 = vld [vmem:[%s908 + $0x2a9] sm:$0xff]
    %v1027 = vld [vmem:[%s908 + $0x2b9] sm:$0xff]
    %v1028 = vld [vmem:[%s908 + $0x2c1] sm:$0xff]
    %v1029 = vld [vmem:[%s908 + $0x2d1] sm:$0xff]
    %v1030 = vld [vmem:[%s908 + $0x2d9] sm:$0xff]
    %v1031 = vld [vmem:[%s908 + $0x2e9] sm:$0xff]
    %v1032 = vld [vmem:[%s908 + $0x2f1] sm:$0xff]
    %v1033 = vld [vmem:[%s908 + $0x301] sm:$0xff]
    %v1034 = vld [vmem:[%s908 + $0x309] sm:$0xff]
    %v1035 = vld [vmem:[%s908 + $0x319] sm:$0xff]
    %v1036 = vld [vmem:[%s908 + $0x321] sm:$0xff]
    %v1037 = vld [vmem:[%s908 + $0x2] sm:$0xff]
    %v1038 = vld [vmem:[%s908 + $0xa] sm:$0xff]
    %v1039 = vld [vmem:[%s908 + $0x1a] sm:$0xff]
    %v1040 = vld [vmem:[%s908 + $0x22] sm:$0xff]
    %v1041 = vld [vmem:[%s908 + $0x32] sm:$0xff]
    %v1042 = vld [vmem:[%s908 + $0x3a] sm:$0xff]
    %v1043 = vld [vmem:[%s908 + $0x4a] sm:$0xff]
    %v1044 = vld [vmem:[%s908 + $0x52] sm:$0xff]
    %v1045 = vld [vmem:[%s908 + $0x62] sm:$0xff]
    %v1046 = vld [vmem:[%s908 + $0x6a] sm:$0xff]
    %v1047 = vld [vmem:[%s908 + $0x7a] sm:$0xff]
    %v1048 = vld [vmem:[%s908 + $0x82] sm:$0xff]
    %v1049 = vld [vmem:[%s908 + $0x92] sm:$0xff]
    %v1050 = vld [vmem:[%s908 + $0x9a] sm:$0xff]
    %v1051 = vld [vmem:[%s908 + $0xaa] sm:$0xff]
    %v1052 = vld [vmem:[%s908 + $0xb2] sm:$0xff]
    %v1053 = vld [vmem:[%s908 + $0xc2] sm:$0xff]
    %v1054 = vld [vmem:[%s908 + $0xca] sm:$0xff]
    %v1055 = vld [vmem:[%s908 + $0xda] sm:$0xff]
    %v1056 = vld [vmem:[%s908 + $0xe2] sm:$0xff]
    %v1057 = vld [vmem:[%s908 + $0xf2] sm:$0xff]
    %v1058 = vld [vmem:[%s908 + $0xfa] sm:$0xff]
    %v1059 = vld [vmem:[%s908 + $0x10a] sm:$0xff]
    %v1060 = vld [vmem:[%s908 + $0x112] sm:$0xff]
    %v1061 = vld [vmem:[%s908 + $0x122] sm:$0xff]
    %v1062 = vld [vmem:[%s908 + $0x12a] sm:$0xff]
    %v1063 = vld [vmem:[%s908 + $0x13a] sm:$0xff]
    %v1064 = vld [vmem:[%s908 + $0x142] sm:$0xff]
    %v1065 = vld [vmem:[%s908 + $0x152] sm:$0xff]
    %v1066 = vld [vmem:[%s908 + $0x15a] sm:$0xff]
    %v1067 = vld [vmem:[%s908 + $0x16a] sm:$0xff]
    %v1068 = vld [vmem:[%s908 + $0x172] sm:$0xff]
    %v1069 = vld [vmem:[%s908 + $0x1b2] sm:$0xff]
    %v1070 = vld [vmem:[%s908 + $0x1ba] sm:$0xff]
    %v1071 = vld [vmem:[%s908 + $0x1ca] sm:$0xff]
    %v1072 = vld [vmem:[%s908 + $0x1d2] sm:$0xff]
    %v1073 = vld [vmem:[%s908 + $0x1e2] sm:$0xff]
    %v1074 = vld [vmem:[%s908 + $0x1ea] sm:$0xff]
    %v1075 = vld [vmem:[%s908 + $0x1fa] sm:$0xff]
    %v1076 = vld [vmem:[%s908 + $0x202] sm:$0xff]
    %v1077 = vld [vmem:[%s908 + $0x212] sm:$0xff]
    %v1078 = vld [vmem:[%s908 + $0x21a] sm:$0xff]
    %v1079 = vld [vmem:[%s908 + $0x22a] sm:$0xff]
    %v1080 = vld [vmem:[%s908 + $0x232] sm:$0xff]
    %v1081 = vld [vmem:[%s908 + $0x242] sm:$0xff]
    %v1082 = vld [vmem:[%s908 + $0x24a] sm:$0xff]
    %v1083 = vld [vmem:[%s908 + $0x25a] sm:$0xff]
    %v1084 = vld [vmem:[%s908 + $0x262] sm:$0xff]
    %v1085 = vld [vmem:[%s908 + $0x272] sm:$0xff]
    %v1086 = vld [vmem:[%s908 + $0x27a] sm:$0xff]
    %v1087 = vld [vmem:[%s908 + $0x28a] sm:$0xff]
    %v1088 = vld [vmem:[%s908 + $0x292] sm:$0xff]
    %v1089 = vld [vmem:[%s908 + $0x2a2] sm:$0xff]
    %v1090 = vld [vmem:[%s908 + $0x2aa] sm:$0xff]
    %v1091 = vld [vmem:[%s908 + $0x2ba] sm:$0xff]
    %v1092 = vld [vmem:[%s908 + $0x2c2] sm:$0xff]
    %v1093 = vld [vmem:[%s908 + $0x2d2] sm:$0xff]
    %v1094 = vld [vmem:[%s908 + $0x2da] sm:$0xff]
    %v1095 = vld [vmem:[%s908 + $0x2ea] sm:$0xff]
    %v1096 = vld [vmem:[%s908 + $0x2f2] sm:$0xff]
    %v1097 = vld [vmem:[%s908 + $0x302] sm:$0xff]
    %v1098 = vld [vmem:[%s908 + $0x30a] sm:$0xff]
    %v1099 = vld [vmem:[%s908 + $0x31a] sm:$0xff]
    %v1100 = vld [vmem:[%s908 + $0x322] sm:$0xff]
    %1165 = vrot.lane.b32.xlu0 %v588, 32
    %v1166 = vpop.permute.xlu0 %1165
    %1167 = vrot.lane.b32.xlu0 %v589, 32
    %v1168 = vpop.permute.xlu0 %1167
    %1169 = vrot.lane.b32.xlu0 %v590, 32
    %v1170 = vpop.permute.xlu0 %1169
    %1171 = vrot.lane.b32.xlu0 %v591, 32
    %v1172 = vpop.permute.xlu0 %1171
    %1173 = vrot.lane.b32.xlu0 %v592, 32
    %v1174 = vpop.permute.xlu0 %1173
    %1175 = vrot.lane.b32.xlu0 %v593, 32
    %v1176 = vpop.permute.xlu0 %1175
    %1177 = vrot.lane.b32.xlu0 %v594, 32
    %v1178 = vpop.permute.xlu0 %1177
    %1179 = vrot.lane.b32.xlu0 %v595, 32
    %v1180 = vpop.permute.xlu0 %1179
    %1181 = vrot.lane.b32.xlu0 %v596, 32
    %v1182 = vpop.permute.xlu0 %1181
    %1183 = vrot.lane.b32.xlu0 %v597, 32
    %v1184 = vpop.permute.xlu0 %1183
    %1185 = vrot.lane.b32.xlu0 %v598, 32
    %v1186 = vpop.permute.xlu0 %1185
    %1187 = vrot.lane.b32.xlu0 %v599, 32
    %v1188 = vpop.permute.xlu0 %1187
    %1189 = vrot.lane.b32.xlu0 %v600, 32
    %v1190 = vpop.permute.xlu0 %1189
    %1191 = vrot.lane.b32.xlu0 %v601, 32
    %v1192 = vpop.permute.xlu0 %1191
    %1193 = vrot.lane.b32.xlu0 %v602, 32
    %v1194 = vpop.permute.xlu0 %1193
    %1195 = vrot.lane.b32.xlu0 %v603, 32
    %v1196 = vpop.permute.xlu0 %1195
    %1197 = vrot.lane.b32.xlu0 %v604, 32
    %v1198 = vpop.permute.xlu0 %1197
    %1199 = vrot.lane.b32.xlu0 %v605, 32
    %v1200 = vpop.permute.xlu0 %1199
    %1201 = vrot.lane.b32.xlu0 %v606, 32
    %v1202 = vpop.permute.xlu0 %1201
    %1203 = vrot.lane.b32.xlu0 %v607, 32
    %v1204 = vpop.permute.xlu0 %1203
    %1205 = vrot.lane.b32.xlu0 %v608, 32
    %v1206 = vpop.permute.xlu0 %1205
    %1207 = vrot.lane.b32.xlu0 %v609, 32
    %v1208 = vpop.permute.xlu0 %1207
    %1209 = vrot.lane.b32.xlu0 %v610, 32
    %v1210 = vpop.permute.xlu0 %1209
    %1211 = vrot.lane.b32.xlu0 %v611, 32
    %v1212 = vpop.permute.xlu0 %1211
    %1213 = vrot.lane.b32.xlu0 %v612, 32
    %v1214 = vpop.permute.xlu0 %1213
    %1215 = vrot.lane.b32.xlu0 %v613, 32
    %v1216 = vpop.permute.xlu0 %1215
    %1217 = vrot.lane.b32.xlu0 %v614, 32
    %v1218 = vpop.permute.xlu0 %1217
    %1219 = vrot.lane.b32.xlu0 %v615, 32
    %v1220 = vpop.permute.xlu0 %1219
    %1221 = vrot.lane.b32.xlu0 %v616, 32
    %v1222 = vpop.permute.xlu0 %1221
    %1223 = vrot.lane.b32.xlu0 %v617, 32
    %v1224 = vpop.permute.xlu0 %1223
    %1225 = vrot.lane.b32.xlu0 %v618, 32
    %v1226 = vpop.permute.xlu0 %1225
    %1227 = vrot.lane.b32.xlu0 %v619, 32
    %v1228 = vpop.permute.xlu0 %1227
    %1229 = vrot.lane.b32.xlu0 %v620, 32
    %v1230 = vpop.permute.xlu0 %1229
    %1231 = vrot.lane.b32.xlu0 %v621, 32
    %v1232 = vpop.permute.xlu0 %1231
    %1233 = vrot.lane.b32.xlu0 %v622, 32
    %v1234 = vpop.permute.xlu0 %1233
    %1235 = vrot.lane.b32.xlu0 %v623, 32
    %v1236 = vpop.permute.xlu0 %1235
    %1237 = vrot.lane.b32.xlu0 %v624, 32
    %v1238 = vpop.permute.xlu0 %1237
    %1239 = vrot.lane.b32.xlu0 %v625, 32
    %v1240 = vpop.permute.xlu0 %1239
    %1241 = vrot.lane.b32.xlu0 %v626, 32
    %v1242 = vpop.permute.xlu0 %1241
    %1243 = vrot.lane.b32.xlu0 %v627, 32
    %v1244 = vpop.permute.xlu0 %1243
    %1245 = vrot.lane.b32.xlu0 %v628, 32
    %v1246 = vpop.permute.xlu0 %1245
    %1247 = vrot.lane.b32.xlu0 %v629, 32
    %v1248 = vpop.permute.xlu0 %1247
    %1249 = vrot.lane.b32.xlu0 %v630, 32
    %v1250 = vpop.permute.xlu0 %1249
    %1251 = vrot.lane.b32.xlu0 %v631, 32
    %v1252 = vpop.permute.xlu0 %1251
    %1253 = vrot.lane.b32.xlu0 %v632, 32
    %v1254 = vpop.permute.xlu0 %1253
    %1255 = vrot.lane.b32.xlu0 %v633, 32
    %v1256 = vpop.permute.xlu0 %1255
    %1257 = vrot.lane.b32.xlu0 %v634, 32
    %v1258 = vpop.permute.xlu0 %1257
    %1259 = vrot.lane.b32.xlu0 %v635, 32
    %v1260 = vpop.permute.xlu0 %1259
    %1261 = vrot.lane.b32.xlu0 %v636, 32
    %v1262 = vpop.permute.xlu0 %1261
    %1263 = vrot.lane.b32.xlu0 %v637, 32
    %v1264 = vpop.permute.xlu0 %1263
    %1265 = vrot.lane.b32.xlu0 %v638, 32
    %v1266 = vpop.permute.xlu0 %1265
    %1267 = vrot.lane.b32.xlu0 %v639, 32
    %v1268 = vpop.permute.xlu0 %1267
    %1269 = vrot.lane.b32.xlu0 %v640, 32
    %v1270 = vpop.permute.xlu0 %1269
    %1271 = vrot.lane.b32.xlu0 %v641, 32
    %v1272 = vpop.permute.xlu0 %1271
    %1273 = vrot.lane.b32.xlu0 %v642, 32
    %v1274 = vpop.permute.xlu0 %1273
    %1275 = vrot.lane.b32.xlu0 %v643, 32
    %v1276 = vpop.permute.xlu0 %1275
    %1277 = vrot.lane.b32.xlu0 %v644, 32
    %v1278 = vpop.permute.xlu0 %1277
    %1279 = vrot.lane.b32.xlu0 %v645, 32
    %v1280 = vpop.permute.xlu0 %1279
    %1281 = vrot.lane.b32.xlu0 %v646, 32
    %v1282 = vpop.permute.xlu0 %1281
    %1283 = vrot.lane.b32.xlu0 %v647, 32
    %v1284 = vpop.permute.xlu0 %1283
    %1285 = vrot.lane.b32.xlu0 %v648, 32
    %v1286 = vpop.permute.xlu0 %1285
    %1287 = vrot.lane.b32.xlu0 %v649, 32
    %v1288 = vpop.permute.xlu0 %1287
    %1289 = vrot.lane.b32.xlu0 %v650, 32
    %v1290 = vpop.permute.xlu0 %1289
    %1291 = vrot.lane.b32.xlu0 %v651, 32
    %v1292 = vpop.permute.xlu0 %1291
    %1421 = vrot.lane.b32.xlu0 %v652, 64
    %v1422 = vpop.permute.xlu0 %1421
    %1423 = vrot.lane.b32.xlu0 %v653, 64
    %v1424 = vpop.permute.xlu0 %1423
    %1425 = vrot.lane.b32.xlu0 %v654, 64
    %v1426 = vpop.permute.xlu0 %1425
    %1427 = vrot.lane.b32.xlu0 %v655, 64
    %v1428 = vpop.permute.xlu0 %1427
    %1429 = vrot.lane.b32.xlu0 %v656, 64
    %v1430 = vpop.permute.xlu0 %1429
    %1431 = vrot.lane.b32.xlu0 %v657, 64
    %v1432 = vpop.permute.xlu0 %1431
    %1433 = vrot.lane.b32.xlu0 %v658, 64
    %v1434 = vpop.permute.xlu0 %1433
    %1435 = vrot.lane.b32.xlu0 %v659, 64
    %v1436 = vpop.permute.xlu0 %1435
    %1437 = vrot.lane.b32.xlu0 %v660, 64
    %v1438 = vpop.permute.xlu0 %1437
    %1439 = vrot.lane.b32.xlu0 %v661, 64
    %v1440 = vpop.permute.xlu0 %1439
    %1441 = vrot.lane.b32.xlu0 %v662, 64
    %v1442 = vpop.permute.xlu0 %1441
    %1443 = vrot.lane.b32.xlu0 %v663, 64
    %v1444 = vpop.permute.xlu0 %1443
    %1445 = vrot.lane.b32.xlu0 %v664, 64
    %v1446 = vpop.permute.xlu0 %1445
    %1447 = vrot.lane.b32.xlu0 %v665, 64
    %v1448 = vpop.permute.xlu0 %1447
    %1449 = vrot.lane.b32.xlu0 %v666, 64
    %v1450 = vpop.permute.xlu0 %1449
    %1451 = vrot.lane.b32.xlu0 %v667, 64
    %v1452 = vpop.permute.xlu0 %1451
    %1453 = vrot.lane.b32.xlu0 %v668, 64
    %v1454 = vpop.permute.xlu0 %1453
    %1455 = vrot.lane.b32.xlu0 %v669, 64
    %v1456 = vpop.permute.xlu0 %1455
    %1457 = vrot.lane.b32.xlu0 %v670, 64
    %v1458 = vpop.permute.xlu0 %1457
    %1459 = vrot.lane.b32.xlu0 %v671, 64
    %v1460 = vpop.permute.xlu0 %1459
    %1461 = vrot.lane.b32.xlu0 %v672, 64
    %v1462 = vpop.permute.xlu0 %1461
    %1463 = vrot.lane.b32.xlu0 %v673, 64
    %v1464 = vpop.permute.xlu0 %1463
    %1465 = vrot.lane.b32.xlu0 %v674, 64
    %v1466 = vpop.permute.xlu0 %1465
    %1467 = vrot.lane.b32.xlu0 %v675, 64
    %v1468 = vpop.permute.xlu0 %1467
    %1469 = vrot.lane.b32.xlu0 %v676, 64
    %v1470 = vpop.permute.xlu0 %1469
    %1471 = vrot.lane.b32.xlu0 %v677, 64
    %v1472 = vpop.permute.xlu0 %1471
    %1473 = vrot.lane.b32.xlu0 %v678, 64
    %v1474 = vpop.permute.xlu0 %1473
    %1475 = vrot.lane.b32.xlu0 %v679, 64
    %v1476 = vpop.permute.xlu0 %1475
    %1477 = vrot.lane.b32.xlu0 %v680, 64
    %v1478 = vpop.permute.xlu0 %1477
    %1479 = vrot.lane.b32.xlu0 %v681, 64
    %v1480 = vpop.permute.xlu0 %1479
    %1481 = vrot.lane.b32.xlu0 %v682, 64
    %v1482 = vpop.permute.xlu0 %1481
    %1483 = vrot.lane.b32.xlu0 %v683, 64
    %v1484 = vpop.permute.xlu0 %1483
    %1485 = vrot.lane.b32.xlu0 %v684, 64
    %v1486 = vpop.permute.xlu0 %1485
    %1487 = vrot.lane.b32.xlu0 %v685, 64
    %v1488 = vpop.permute.xlu0 %1487
    %1489 = vrot.lane.b32.xlu0 %v686, 64
    %v1490 = vpop.permute.xlu0 %1489
    %1491 = vrot.lane.b32.xlu0 %v687, 64
    %v1492 = vpop.permute.xlu0 %1491
    %1493 = vrot.lane.b32.xlu0 %v688, 64
    %v1494 = vpop.permute.xlu0 %1493
    %1495 = vrot.lane.b32.xlu0 %v689, 64
    %v1496 = vpop.permute.xlu0 %1495
    %1497 = vrot.lane.b32.xlu0 %v690, 64
    %v1498 = vpop.permute.xlu0 %1497
    %1499 = vrot.lane.b32.xlu0 %v691, 64
    %v1500 = vpop.permute.xlu0 %1499
    %1501 = vrot.lane.b32.xlu0 %v692, 64
    %v1502 = vpop.permute.xlu0 %1501
    %1503 = vrot.lane.b32.xlu0 %v693, 64
    %v1504 = vpop.permute.xlu0 %1503
    %1505 = vrot.lane.b32.xlu0 %v694, 64
    %v1506 = vpop.permute.xlu0 %1505
    %1507 = vrot.lane.b32.xlu0 %v695, 64
    %v1508 = vpop.permute.xlu0 %1507
    %1509 = vrot.lane.b32.xlu0 %v696, 64
    %v1510 = vpop.permute.xlu0 %1509
    %1511 = vrot.lane.b32.xlu0 %v697, 64
    %v1512 = vpop.permute.xlu0 %1511
    %1513 = vrot.lane.b32.xlu0 %v698, 64
    %v1514 = vpop.permute.xlu0 %1513
    %1515 = vrot.lane.b32.xlu0 %v699, 64
    %v1516 = vpop.permute.xlu0 %1515
    %1517 = vrot.lane.b32.xlu0 %v700, 64
    %v1518 = vpop.permute.xlu0 %1517
    %1519 = vrot.lane.b32.xlu0 %v701, 64
    %v1520 = vpop.permute.xlu0 %1519
    %1521 = vrot.lane.b32.xlu0 %v702, 64
    %v1522 = vpop.permute.xlu0 %1521
    %1523 = vrot.lane.b32.xlu0 %v703, 64
    %v1524 = vpop.permute.xlu0 %1523
    %1525 = vrot.lane.b32.xlu0 %v704, 64
    %v1526 = vpop.permute.xlu0 %1525
    %1527 = vrot.lane.b32.xlu0 %v705, 64
    %v1528 = vpop.permute.xlu0 %1527
    %1529 = vrot.lane.b32.xlu0 %v706, 64
    %v1530 = vpop.permute.xlu0 %1529
    %1531 = vrot.lane.b32.xlu0 %v707, 64
    %v1532 = vpop.permute.xlu0 %1531
    %1533 = vrot.lane.b32.xlu0 %v708, 64
    %v1534 = vpop.permute.xlu0 %1533
    %1535 = vrot.lane.b32.xlu0 %v709, 64
    %v1536 = vpop.permute.xlu0 %1535
    %1537 = vrot.lane.b32.xlu0 %v710, 64
    %v1538 = vpop.permute.xlu0 %1537
    %1539 = vrot.lane.b32.xlu0 %v711, 64
    %v1540 = vpop.permute.xlu0 %1539
    %1541 = vrot.lane.b32.xlu0 %v712, 64
    %v1542 = vpop.permute.xlu0 %1541
    %1543 = vrot.lane.b32.xlu0 %v713, 64
    %v1544 = vpop.permute.xlu0 %1543
    %1545 = vrot.lane.b32.xlu0 %v714, 64
    %v1546 = vpop.permute.xlu0 %1545
    %1547 = vrot.lane.b32.xlu0 %v715, 64
    %v1548 = vpop.permute.xlu0 %1547
    %1677 = vrot.lane.b32.xlu0 %v716, 96
    %v1678 = vpop.permute.xlu0 %1677
    %1679 = vrot.lane.b32.xlu0 %v717, 96
    %v1680 = vpop.permute.xlu0 %1679
    %1681 = vrot.lane.b32.xlu0 %v718, 96
    %v1682 = vpop.permute.xlu0 %1681
    %1683 = vrot.lane.b32.xlu0 %v719, 96
    %v1684 = vpop.permute.xlu0 %1683
    %1685 = vrot.lane.b32.xlu0 %v720, 96
    %v1686 = vpop.permute.xlu0 %1685
    %1687 = vrot.lane.b32.xlu0 %v721, 96
    %v1688 = vpop.permute.xlu0 %1687
    %1689 = vrot.lane.b32.xlu0 %v722, 96
    %v1690 = vpop.permute.xlu0 %1689
    %1691 = vrot.lane.b32.xlu0 %v723, 96
    %v1692 = vpop.permute.xlu0 %1691
    %1693 = vrot.lane.b32.xlu0 %v724, 96
    %v1694 = vpop.permute.xlu0 %1693
    %1695 = vrot.lane.b32.xlu0 %v725, 96
    %v1696 = vpop.permute.xlu0 %1695
    %1697 = vrot.lane.b32.xlu0 %v726, 96
    %v1698 = vpop.permute.xlu0 %1697
    %1699 = vrot.lane.b32.xlu0 %v727, 96
    %v1700 = vpop.permute.xlu0 %1699
    %1701 = vrot.lane.b32.xlu0 %v728, 96
    %v1702 = vpop.permute.xlu0 %1701
    %1703 = vrot.lane.b32.xlu0 %v729, 96
    %v1704 = vpop.permute.xlu0 %1703
    %1705 = vrot.lane.b32.xlu0 %v730, 96
    %v1706 = vpop.permute.xlu0 %1705
    %1707 = vrot.lane.b32.xlu0 %v731, 96
    %v1708 = vpop.permute.xlu0 %1707
    %1709 = vrot.lane.b32.xlu0 %v732, 96
    %v1710 = vpop.permute.xlu0 %1709
    %1711 = vrot.lane.b32.xlu0 %v733, 96
    %v1712 = vpop.permute.xlu0 %1711
    %1713 = vrot.lane.b32.xlu0 %v734, 96
    %v1714 = vpop.permute.xlu0 %1713
    %1715 = vrot.lane.b32.xlu0 %v735, 96
    %v1716 = vpop.permute.xlu0 %1715
    %1717 = vrot.lane.b32.xlu0 %v736, 96
    %v1718 = vpop.permute.xlu0 %1717
    %1719 = vrot.lane.b32.xlu0 %v737, 96
    %v1720 = vpop.permute.xlu0 %1719
    %1721 = vrot.lane.b32.xlu0 %v738, 96
    %v1722 = vpop.permute.xlu0 %1721
    %1723 = vrot.lane.b32.xlu0 %v739, 96
    %v1724 = vpop.permute.xlu0 %1723
    %1725 = vrot.lane.b32.xlu0 %v740, 96
    %v1726 = vpop.permute.xlu0 %1725
    %1727 = vrot.lane.b32.xlu0 %v741, 96
    %v1728 = vpop.permute.xlu0 %1727
    %1729 = vrot.lane.b32.xlu0 %v742, 96
    %v1730 = vpop.permute.xlu0 %1729
    %1731 = vrot.lane.b32.xlu0 %v743, 96
    %v1732 = vpop.permute.xlu0 %1731
    %1733 = vrot.lane.b32.xlu0 %v744, 96
    %v1734 = vpop.permute.xlu0 %1733
    %1735 = vrot.lane.b32.xlu0 %v745, 96
    %v1736 = vpop.permute.xlu0 %1735
    %1737 = vrot.lane.b32.xlu0 %v746, 96
    %v1738 = vpop.permute.xlu0 %1737
    %1739 = vrot.lane.b32.xlu0 %v747, 96
    %v1740 = vpop.permute.xlu0 %1739
    %1741 = vrot.lane.b32.xlu0 %v748, 96
    %v1742 = vpop.permute.xlu0 %1741
    %1743 = vrot.lane.b32.xlu0 %v749, 96
    %v1744 = vpop.permute.xlu0 %1743
    %1745 = vrot.lane.b32.xlu0 %v750, 96
    %v1746 = vpop.permute.xlu0 %1745
    %1747 = vrot.lane.b32.xlu0 %v751, 96
    %v1748 = vpop.permute.xlu0 %1747
    %1749 = vrot.lane.b32.xlu0 %v752, 96
    %v1750 = vpop.permute.xlu0 %1749
    %1751 = vrot.lane.b32.xlu0 %v753, 96
    %v1752 = vpop.permute.xlu0 %1751
    %1753 = vrot.lane.b32.xlu0 %v754, 96
    %v1754 = vpop.permute.xlu0 %1753
    %1755 = vrot.lane.b32.xlu0 %v755, 96
    %v1756 = vpop.permute.xlu0 %1755
    %1757 = vrot.lane.b32.xlu0 %v756, 96
    %v1758 = vpop.permute.xlu0 %1757
    %1759 = vrot.lane.b32.xlu0 %v757, 96
    %v1760 = vpop.permute.xlu0 %1759
    %1761 = vrot.lane.b32.xlu0 %v758, 96
    %v1762 = vpop.permute.xlu0 %1761
    %1763 = vrot.lane.b32.xlu0 %v759, 96
    %v1764 = vpop.permute.xlu0 %1763
    %1765 = vrot.lane.b32.xlu0 %v760, 96
    %v1766 = vpop.permute.xlu0 %1765
    %1767 = vrot.lane.b32.xlu0 %v761, 96
    %v1768 = vpop.permute.xlu0 %1767
    %1769 = vrot.lane.b32.xlu0 %v762, 96
    %v1770 = vpop.permute.xlu0 %1769
    %1771 = vrot.lane.b32.xlu0 %v763, 96
    %v1772 = vpop.permute.xlu0 %1771
    %1773 = vrot.lane.b32.xlu0 %v764, 96
    %v1774 = vpop.permute.xlu0 %1773
    %1775 = vrot.lane.b32.xlu0 %v765, 96
    %v1776 = vpop.permute.xlu0 %1775
    %1777 = vrot.lane.b32.xlu0 %v766, 96
    %v1778 = vpop.permute.xlu0 %1777
    %1779 = vrot.lane.b32.xlu0 %v767, 96
    %v1780 = vpop.permute.xlu0 %1779
    %1781 = vrot.lane.b32.xlu0 %v768, 96
    %v1782 = vpop.permute.xlu0 %1781
    %1783 = vrot.lane.b32.xlu0 %v769, 96
    %v1784 = vpop.permute.xlu0 %1783
    %1785 = vrot.lane.b32.xlu0 %v770, 96
    %v1786 = vpop.permute.xlu0 %1785
    %1787 = vrot.lane.b32.xlu0 %v771, 96
    %v1788 = vpop.permute.xlu0 %1787
    %1789 = vrot.lane.b32.xlu0 %v772, 96
    %v1790 = vpop.permute.xlu0 %1789
    %1791 = vrot.lane.b32.xlu0 %v773, 96
    %v1792 = vpop.permute.xlu0 %1791
    %1793 = vrot.lane.b32.xlu0 %v774, 96
    %v1794 = vpop.permute.xlu0 %1793
    %1795 = vrot.lane.b32.xlu0 %v775, 96
    %v1796 = vpop.permute.xlu0 %1795
    %1797 = vrot.lane.b32.xlu0 %v776, 96
    %v1798 = vpop.permute.xlu0 %1797
    %1799 = vrot.lane.b32.xlu0 %v777, 96
    %v1800 = vpop.permute.xlu0 %1799
    %1801 = vrot.lane.b32.xlu0 %v778, 96
    %v1802 = vpop.permute.xlu0 %1801
    %1803 = vrot.lane.b32.xlu0 %v779, 96
    %v1804 = vpop.permute.xlu0 %1803
    %1933 = vrot.lane.b32.xlu0 %v844, 32
    %v1934 = vpop.permute.xlu0 %1933
    %1935 = vrot.lane.b32.xlu0 %v845, 32
    %v1936 = vpop.permute.xlu0 %1935
    %1937 = vrot.lane.b32.xlu0 %v846, 32
    %v1938 = vpop.permute.xlu0 %1937
    %1939 = vrot.lane.b32.xlu0 %v847, 32
    %v1940 = vpop.permute.xlu0 %1939
    %1941 = vrot.lane.b32.xlu0 %v848, 32
    %v1942 = vpop.permute.xlu0 %1941
    %1943 = vrot.lane.b32.xlu0 %v849, 32
    %v1944 = vpop.permute.xlu0 %1943
    %1945 = vrot.lane.b32.xlu0 %v850, 32
    %v1946 = vpop.permute.xlu0 %1945
    %1947 = vrot.lane.b32.xlu0 %v851, 32
    %v1948 = vpop.permute.xlu0 %1947
    %1949 = vrot.lane.b32.xlu0 %v852, 32
    %v1950 = vpop.permute.xlu0 %1949
    %1951 = vrot.lane.b32.xlu0 %v853, 32
    %v1952 = vpop.permute.xlu0 %1951
    %1953 = vrot.lane.b32.xlu0 %v854, 32
    %v1954 = vpop.permute.xlu0 %1953
    %1955 = vrot.lane.b32.xlu0 %v855, 32
    %v1956 = vpop.permute.xlu0 %1955
    %1957 = vrot.lane.b32.xlu0 %v856, 32
    %v1958 = vpop.permute.xlu0 %1957
    %1959 = vrot.lane.b32.xlu0 %v857, 32
    %v1960 = vpop.permute.xlu0 %1959
    %1961 = vrot.lane.b32.xlu0 %v858, 32
    %v1962 = vpop.permute.xlu0 %1961
    %1963 = vrot.lane.b32.xlu0 %v859, 32
    %v1964 = vpop.permute.xlu0 %1963
    %1965 = vrot.lane.b32.xlu0 %v860, 32
    %v1966 = vpop.permute.xlu0 %1965
    %1967 = vrot.lane.b32.xlu0 %v861, 32
    %v1968 = vpop.permute.xlu0 %1967
    %1969 = vrot.lane.b32.xlu0 %v862, 32
    %v1970 = vpop.permute.xlu0 %1969
    %1971 = vrot.lane.b32.xlu0 %v863, 32
    %v1972 = vpop.permute.xlu0 %1971
    %1973 = vrot.lane.b32.xlu0 %v864, 32
    %v1974 = vpop.permute.xlu0 %1973
    %1975 = vrot.lane.b32.xlu0 %v865, 32
    %v1976 = vpop.permute.xlu0 %1975
    %1977 = vrot.lane.b32.xlu0 %v866, 32
    %v1978 = vpop.permute.xlu0 %1977
    %1979 = vrot.lane.b32.xlu0 %v867, 32
    %v1980 = vpop.permute.xlu0 %1979
    %1981 = vrot.lane.b32.xlu0 %v868, 32
    %v1982 = vpop.permute.xlu0 %1981
    %1983 = vrot.lane.b32.xlu0 %v869, 32
    %v1984 = vpop.permute.xlu0 %1983
    %1985 = vrot.lane.b32.xlu0 %v870, 32
    %v1986 = vpop.permute.xlu0 %1985
    %1987 = vrot.lane.b32.xlu0 %v871, 32
    %v1988 = vpop.permute.xlu0 %1987
    %1989 = vrot.lane.b32.xlu0 %v872, 32
    %v1990 = vpop.permute.xlu0 %1989
    %1991 = vrot.lane.b32.xlu0 %v873, 32
    %v1992 = vpop.permute.xlu0 %1991
    %1993 = vrot.lane.b32.xlu0 %v874, 32
    %v1994 = vpop.permute.xlu0 %1993
    %1995 = vrot.lane.b32.xlu0 %v875, 32
    %v1996 = vpop.permute.xlu0 %1995
    %1997 = vrot.lane.b32.xlu0 %v876, 32
    %v1998 = vpop.permute.xlu0 %1997
    %1999 = vrot.lane.b32.xlu0 %v877, 32
    %v2000 = vpop.permute.xlu0 %1999
    %2001 = vrot.lane.b32.xlu0 %v878, 32
    %v2002 = vpop.permute.xlu0 %2001
    %2003 = vrot.lane.b32.xlu0 %v879, 32
    %v2004 = vpop.permute.xlu0 %2003
    %2005 = vrot.lane.b32.xlu0 %v880, 32
    %v2006 = vpop.permute.xlu0 %2005
    %2007 = vrot.lane.b32.xlu0 %v881, 32
    %v2008 = vpop.permute.xlu0 %2007
    %2009 = vrot.lane.b32.xlu0 %v882, 32
    %v2010 = vpop.permute.xlu0 %2009
    %2011 = vrot.lane.b32.xlu0 %v883, 32
    %v2012 = vpop.permute.xlu0 %2011
    %2013 = vrot.lane.b32.xlu0 %v884, 32
    %v2014 = vpop.permute.xlu0 %2013
    %2015 = vrot.lane.b32.xlu0 %v885, 32
    %v2016 = vpop.permute.xlu0 %2015
    %2017 = vrot.lane.b32.xlu0 %v886, 32
    %v2018 = vpop.permute.xlu0 %2017
    %2019 = vrot.lane.b32.xlu0 %v887, 32
    %v2020 = vpop.permute.xlu0 %2019
    %2021 = vrot.lane.b32.xlu0 %v888, 32
    %v2022 = vpop.permute.xlu0 %2021
    %2023 = vrot.lane.b32.xlu0 %v889, 32
    %v2024 = vpop.permute.xlu0 %2023
    %2025 = vrot.lane.b32.xlu0 %v890, 32
    %v2026 = vpop.permute.xlu0 %2025
    %2027 = vrot.lane.b32.xlu0 %v891, 32
    %v2028 = vpop.permute.xlu0 %2027
    %2029 = vrot.lane.b32.xlu0 %v892, 32
    %v2030 = vpop.permute.xlu0 %2029
    %2031 = vrot.lane.b32.xlu0 %v893, 32
    %v2032 = vpop.permute.xlu0 %2031
    %2033 = vrot.lane.b32.xlu0 %v894, 32
    %v2034 = vpop.permute.xlu0 %2033
    %2035 = vrot.lane.b32.xlu0 %v895, 32
    %v2036 = vpop.permute.xlu0 %2035
    %2037 = vrot.lane.b32.xlu0 %v896, 32
    %v2038 = vpop.permute.xlu0 %2037
    %2039 = vrot.lane.b32.xlu0 %v897, 32
    %v2040 = vpop.permute.xlu0 %2039
    %2041 = vrot.lane.b32.xlu0 %v898, 32
    %v2042 = vpop.permute.xlu0 %2041
    %2043 = vrot.lane.b32.xlu0 %v899, 32
    %v2044 = vpop.permute.xlu0 %2043
    %2045 = vrot.lane.b32.xlu0 %v900, 32
    %v2046 = vpop.permute.xlu0 %2045
    %2047 = vrot.lane.b32.xlu0 %v901, 32
    %v2048 = vpop.permute.xlu0 %2047
    %2049 = vrot.lane.b32.xlu0 %v902, 32
    %v2050 = vpop.permute.xlu0 %2049
    %2051 = vrot.lane.b32.xlu0 %v903, 32
    %v2052 = vpop.permute.xlu0 %2051
    %2053 = vrot.lane.b32.xlu0 %v904, 32
    %v2054 = vpop.permute.xlu0 %2053
    %2055 = vrot.lane.b32.xlu0 %v905, 32
    %v2056 = vpop.permute.xlu0 %2055
    %2057 = vrot.lane.b32.xlu0 %v906, 32
    %v2058 = vpop.permute.xlu0 %2057
    %2059 = vrot.lane.b32.xlu0 %v907, 32
    %v2060 = vpop.permute.xlu0 %2059
    %2189 = vrot.lane.b32.xlu0 %v909, 64
    %v2190 = vpop.permute.xlu0 %2189
    %2191 = vrot.lane.b32.xlu0 %v910, 64
    %v2192 = vpop.permute.xlu0 %2191
    %2193 = vrot.lane.b32.xlu0 %v911, 64
    %v2194 = vpop.permute.xlu0 %2193
    %2195 = vrot.lane.b32.xlu0 %v912, 64
    %v2196 = vpop.permute.xlu0 %2195
    %2197 = vrot.lane.b32.xlu0 %v913, 64
    %v2198 = vpop.permute.xlu0 %2197
    %2199 = vrot.lane.b32.xlu0 %v914, 64
    %v2200 = vpop.permute.xlu0 %2199
    %2201 = vrot.lane.b32.xlu0 %v915, 64
    %v2202 = vpop.permute.xlu0 %2201
    %2203 = vrot.lane.b32.xlu0 %v916, 64
    %v2204 = vpop.permute.xlu0 %2203
    %2205 = vrot.lane.b32.xlu0 %v917, 64
    %v2206 = vpop.permute.xlu0 %2205
    %2207 = vrot.lane.b32.xlu0 %v918, 64
    %v2208 = vpop.permute.xlu0 %2207
    %2209 = vrot.lane.b32.xlu0 %v919, 64
    %v2210 = vpop.permute.xlu0 %2209
    %2211 = vrot.lane.b32.xlu0 %v920, 64
    %v2212 = vpop.permute.xlu0 %2211
    %2213 = vrot.lane.b32.xlu0 %v921, 64
    %v2214 = vpop.permute.xlu0 %2213
    %2215 = vrot.lane.b32.xlu0 %v922, 64
    %v2216 = vpop.permute.xlu0 %2215
    %2217 = vrot.lane.b32.xlu0 %v923, 64
    %v2218 = vpop.permute.xlu0 %2217
    %2219 = vrot.lane.b32.xlu0 %v924, 64
    %v2220 = vpop.permute.xlu0 %2219
    %2221 = vrot.lane.b32.xlu0 %v925, 64
    %v2222 = vpop.permute.xlu0 %2221
    %2223 = vrot.lane.b32.xlu0 %v926, 64
    %v2224 = vpop.permute.xlu0 %2223
    %2225 = vrot.lane.b32.xlu0 %v927, 64
    %v2226 = vpop.permute.xlu0 %2225
    %2227 = vrot.lane.b32.xlu0 %v928, 64
    %v2228 = vpop.permute.xlu0 %2227
    %2229 = vrot.lane.b32.xlu0 %v929, 64
    %v2230 = vpop.permute.xlu0 %2229
    %2231 = vrot.lane.b32.xlu0 %v930, 64
    %v2232 = vpop.permute.xlu0 %2231
    %2233 = vrot.lane.b32.xlu0 %v931, 64
    %v2234 = vpop.permute.xlu0 %2233
    %2235 = vrot.lane.b32.xlu0 %v932, 64
    %v2236 = vpop.permute.xlu0 %2235
    %2237 = vrot.lane.b32.xlu0 %v933, 64
    %v2238 = vpop.permute.xlu0 %2237
    %2239 = vrot.lane.b32.xlu0 %v934, 64
    %v2240 = vpop.permute.xlu0 %2239
    %2241 = vrot.lane.b32.xlu0 %v935, 64
    %v2242 = vpop.permute.xlu0 %2241
    %2243 = vrot.lane.b32.xlu0 %v936, 64
    %v2244 = vpop.permute.xlu0 %2243
    %2245 = vrot.lane.b32.xlu0 %v937, 64
    %v2246 = vpop.permute.xlu0 %2245
    %2247 = vrot.lane.b32.xlu0 %v938, 64
    %v2248 = vpop.permute.xlu0 %2247
    %2249 = vrot.lane.b32.xlu0 %v939, 64
    %v2250 = vpop.permute.xlu0 %2249
    %2251 = vrot.lane.b32.xlu0 %v940, 64
    %v2252 = vpop.permute.xlu0 %2251
    %2253 = vrot.lane.b32.xlu0 %v941, 64
    %v2254 = vpop.permute.xlu0 %2253
    %2255 = vrot.lane.b32.xlu0 %v942, 64
    %v2256 = vpop.permute.xlu0 %2255
    %2257 = vrot.lane.b32.xlu0 %v943, 64
    %v2258 = vpop.permute.xlu0 %2257
    %2259 = vrot.lane.b32.xlu0 %v944, 64
    %v2260 = vpop.permute.xlu0 %2259
    %2261 = vrot.lane.b32.xlu0 %v945, 64
    %v2262 = vpop.permute.xlu0 %2261
    %2263 = vrot.lane.b32.xlu0 %v946, 64
    %v2264 = vpop.permute.xlu0 %2263
    %2265 = vrot.lane.b32.xlu0 %v947, 64
    %v2266 = vpop.permute.xlu0 %2265
    %2267 = vrot.lane.b32.xlu0 %v948, 64
    %v2268 = vpop.permute.xlu0 %2267
    %2269 = vrot.lane.b32.xlu0 %v949, 64
    %v2270 = vpop.permute.xlu0 %2269
    %2271 = vrot.lane.b32.xlu0 %v950, 64
    %v2272 = vpop.permute.xlu0 %2271
    %2273 = vrot.lane.b32.xlu0 %v951, 64
    %v2274 = vpop.permute.xlu0 %2273
    %2275 = vrot.lane.b32.xlu0 %v952, 64
    %v2276 = vpop.permute.xlu0 %2275
    %2277 = vrot.lane.b32.xlu0 %v953, 64
    %v2278 = vpop.permute.xlu0 %2277
    %2279 = vrot.lane.b32.xlu0 %v954, 64
    %v2280 = vpop.permute.xlu0 %2279
    %2281 = vrot.lane.b32.xlu0 %v955, 64
    %v2282 = vpop.permute.xlu0 %2281
    %2283 = vrot.lane.b32.xlu0 %v956, 64
    %v2284 = vpop.permute.xlu0 %2283
    %2285 = vrot.lane.b32.xlu0 %v957, 64
    %v2286 = vpop.permute.xlu0 %2285
    %2287 = vrot.lane.b32.xlu0 %v958, 64
    %v2288 = vpop.permute.xlu0 %2287
    %2289 = vrot.lane.b32.xlu0 %v959, 64
    %v2290 = vpop.permute.xlu0 %2289
    %2291 = vrot.lane.b32.xlu0 %v960, 64
    %v2292 = vpop.permute.xlu0 %2291
    %2293 = vrot.lane.b32.xlu0 %v961, 64
    %v2294 = vpop.permute.xlu0 %2293
    %2295 = vrot.lane.b32.xlu0 %v962, 64
    %v2296 = vpop.permute.xlu0 %2295
    %2297 = vrot.lane.b32.xlu0 %v963, 64
    %v2298 = vpop.permute.xlu0 %2297
    %2299 = vrot.lane.b32.xlu0 %v964, 64
    %v2300 = vpop.permute.xlu0 %2299
    %2301 = vrot.lane.b32.xlu0 %v965, 64
    %v2302 = vpop.permute.xlu0 %2301
    %2303 = vrot.lane.b32.xlu0 %v966, 64
    %v2304 = vpop.permute.xlu0 %2303
    %2305 = vrot.lane.b32.xlu0 %v967, 64
    %v2306 = vpop.permute.xlu0 %2305
    %2307 = vrot.lane.b32.xlu0 %v968, 64
    %v2308 = vpop.permute.xlu0 %2307
    %2309 = vrot.lane.b32.xlu0 %v969, 64
    %v2310 = vpop.permute.xlu0 %2309
    %2311 = vrot.lane.b32.xlu0 %v970, 64
    %v2312 = vpop.permute.xlu0 %2311
    %2313 = vrot.lane.b32.xlu0 %v971, 64
    %v2314 = vpop.permute.xlu0 %2313
    %2315 = vrot.lane.b32.xlu0 %v972, 64
    %v2316 = vpop.permute.xlu0 %2315
    %2445 = vrot.lane.b32.xlu0 %v973, 96
    %v2446 = vpop.permute.xlu0 %2445
    %2447 = vrot.lane.b32.xlu0 %v974, 96
    %v2448 = vpop.permute.xlu0 %2447
    %2449 = vrot.lane.b32.xlu0 %v975, 96
    %v2450 = vpop.permute.xlu0 %2449
    %2451 = vrot.lane.b32.xlu0 %v976, 96
    %v2452 = vpop.permute.xlu0 %2451
    %2453 = vrot.lane.b32.xlu0 %v977, 96
    %v2454 = vpop.permute.xlu0 %2453
    %2455 = vrot.lane.b32.xlu0 %v978, 96
    %v2456 = vpop.permute.xlu0 %2455
    %2457 = vrot.lane.b32.xlu0 %v979, 96
    %v2458 = vpop.permute.xlu0 %2457
    %2459 = vrot.lane.b32.xlu0 %v980, 96
    %v2460 = vpop.permute.xlu0 %2459
    %2461 = vrot.lane.b32.xlu0 %v981, 96
    %v2462 = vpop.permute.xlu0 %2461
    %2463 = vrot.lane.b32.xlu0 %v982, 96
    %v2464 = vpop.permute.xlu0 %2463
    %2465 = vrot.lane.b32.xlu0 %v983, 96
    %v2466 = vpop.permute.xlu0 %2465
    %2467 = vrot.lane.b32.xlu0 %v984, 96
    %v2468 = vpop.permute.xlu0 %2467
    %2469 = vrot.lane.b32.xlu0 %v985, 96
    %v2470 = vpop.permute.xlu0 %2469
    %2471 = vrot.lane.b32.xlu0 %v986, 96
    %v2472 = vpop.permute.xlu0 %2471
    %2473 = vrot.lane.b32.xlu0 %v987, 96
    %v2474 = vpop.permute.xlu0 %2473
    %2475 = vrot.lane.b32.xlu0 %v988, 96
    %v2476 = vpop.permute.xlu0 %2475
    %2477 = vrot.lane.b32.xlu0 %v989, 96
    %v2478 = vpop.permute.xlu0 %2477
    %2479 = vrot.lane.b32.xlu0 %v990, 96
    %v2480 = vpop.permute.xlu0 %2479
    %2481 = vrot.lane.b32.xlu0 %v991, 96
    %v2482 = vpop.permute.xlu0 %2481
    %2483 = vrot.lane.b32.xlu0 %v992, 96
    %v2484 = vpop.permute.xlu0 %2483
    %2485 = vrot.lane.b32.xlu0 %v993, 96
    %v2486 = vpop.permute.xlu0 %2485
    %2487 = vrot.lane.b32.xlu0 %v994, 96
    %v2488 = vpop.permute.xlu0 %2487
    %2489 = vrot.lane.b32.xlu0 %v995, 96
    %v2490 = vpop.permute.xlu0 %2489
    %2491 = vrot.lane.b32.xlu0 %v996, 96
    %v2492 = vpop.permute.xlu0 %2491
    %2493 = vrot.lane.b32.xlu0 %v997, 96
    %v2494 = vpop.permute.xlu0 %2493
    %2495 = vrot.lane.b32.xlu0 %v998, 96
    %v2496 = vpop.permute.xlu0 %2495
    %2497 = vrot.lane.b32.xlu0 %v999, 96
    %v2498 = vpop.permute.xlu0 %2497
    %2499 = vrot.lane.b32.xlu0 %v1000, 96
    %v2500 = vpop.permute.xlu0 %2499
    %2501 = vrot.lane.b32.xlu0 %v1001, 96
    %v2502 = vpop.permute.xlu0 %2501
    %2503 = vrot.lane.b32.xlu0 %v1002, 96
    %v2504 = vpop.permute.xlu0 %2503
    %2505 = vrot.lane.b32.xlu0 %v1003, 96
    %v2506 = vpop.permute.xlu0 %2505
    %2507 = vrot.lane.b32.xlu0 %v1004, 96
    %v2508 = vpop.permute.xlu0 %2507
    %2509 = vrot.lane.b32.xlu0 %v1005, 96
    %v2510 = vpop.permute.xlu0 %2509
    %2511 = vrot.lane.b32.xlu0 %v1006, 96
    %v2512 = vpop.permute.xlu0 %2511
    %2513 = vrot.lane.b32.xlu0 %v1007, 96
    %v2514 = vpop.permute.xlu0 %2513
    %2515 = vrot.lane.b32.xlu0 %v1008, 96
    %v2516 = vpop.permute.xlu0 %2515
    %2517 = vrot.lane.b32.xlu0 %v1009, 96
    %v2518 = vpop.permute.xlu0 %2517
    %2519 = vrot.lane.b32.xlu0 %v1010, 96
    %v2520 = vpop.permute.xlu0 %2519
    %2521 = vrot.lane.b32.xlu0 %v1011, 96
    %v2522 = vpop.permute.xlu0 %2521
    %2523 = vrot.lane.b32.xlu0 %v1012, 96
    %v2524 = vpop.permute.xlu0 %2523
    %2525 = vrot.lane.b32.xlu0 %v1013, 96
    %v2526 = vpop.permute.xlu0 %2525
    %2527 = vrot.lane.b32.xlu0 %v1014, 96
    %v2528 = vpop.permute.xlu0 %2527
    %2529 = vrot.lane.b32.xlu0 %v1015, 96
    %v2530 = vpop.permute.xlu0 %2529
    %2531 = vrot.lane.b32.xlu0 %v1016, 96
    %v2532 = vpop.permute.xlu0 %2531
    %2533 = vrot.lane.b32.xlu0 %v1017, 96
    %v2534 = vpop.permute.xlu0 %2533
    %2535 = vrot.lane.b32.xlu0 %v1018, 96
    %v2536 = vpop.permute.xlu0 %2535
    %2537 = vrot.lane.b32.xlu0 %v1019, 96
    %v2538 = vpop.permute.xlu0 %2537
    %2539 = vrot.lane.b32.xlu0 %v1020, 96
    %v2540 = vpop.permute.xlu0 %2539
    %2541 = vrot.lane.b32.xlu0 %v1021, 96
    %v2542 = vpop.permute.xlu0 %2541
    %2543 = vrot.lane.b32.xlu0 %v1022, 96
    %v2544 = vpop.permute.xlu0 %2543
    %2545 = vrot.lane.b32.xlu0 %v1023, 96
    %v2546 = vpop.permute.xlu0 %2545
    %2547 = vrot.lane.b32.xlu0 %v1024, 96
    %v2548 = vpop.permute.xlu0 %2547
    %2549 = vrot.lane.b32.xlu0 %v1025, 96
    %v2550 = vpop.permute.xlu0 %2549
    %2551 = vrot.lane.b32.xlu0 %v1026, 96
    %v2552 = vpop.permute.xlu0 %2551
    %2553 = vrot.lane.b32.xlu0 %v1027, 96
    %v2554 = vpop.permute.xlu0 %2553
    %2555 = vrot.lane.b32.xlu0 %v1028, 96
    %v2556 = vpop.permute.xlu0 %2555
    %2557 = vrot.lane.b32.xlu0 %v1029, 96
    %v2558 = vpop.permute.xlu0 %2557
    %2559 = vrot.lane.b32.xlu0 %v1030, 96
    %v2560 = vpop.permute.xlu0 %2559
    %2561 = vrot.lane.b32.xlu0 %v1031, 96
    %v2562 = vpop.permute.xlu0 %2561
    %2563 = vrot.lane.b32.xlu0 %v1032, 96
    %v2564 = vpop.permute.xlu0 %2563
    %2565 = vrot.lane.b32.xlu0 %v1033, 96
    %v2566 = vpop.permute.xlu0 %2565
    %2567 = vrot.lane.b32.xlu0 %v1034, 96
    %v2568 = vpop.permute.xlu0 %2567
    %2569 = vrot.lane.b32.xlu0 %v1035, 96
    %v2570 = vpop.permute.xlu0 %2569
    %2571 = vrot.lane.b32.xlu0 %v1036, 96
    %v2572 = vpop.permute.xlu0 %2571
    %v2637 = vsel %vm112, %v524, %v1166
    %v2638 = vsel %vm112, %v525, %v1168
    %v2639 = vsel %vm112, %v526, %v1170
    %v2640 = vsel %vm112, %v527, %v1172
    %v2641 = vsel %vm112, %v528, %v1174
    %v2642 = vsel %vm112, %v529, %v1176
    %v2643 = vsel %vm112, %v530, %v1178
    %v2644 = vsel %vm112, %v531, %v1180
    %v2645 = vsel %vm112, %v532, %v1182
    %v2646 = vsel %vm112, %v533, %v1184
    %v2647 = vsel %vm112, %v534, %v1186
    %v2648 = vsel %vm112, %v535, %v1188
    %v2649 = vsel %vm112, %v536, %v1190
    %v2650 = vsel %vm112, %v537, %v1192
    %v2651 = vsel %vm112, %v538, %v1194
    %v2652 = vsel %vm112, %v539, %v1196
    %v2653 = vsel %vm112, %v540, %v1198
    %v2654 = vsel %vm112, %v541, %v1200
    %v2655 = vsel %vm112, %v542, %v1202
    %v2656 = vsel %vm112, %v543, %v1204
    %v2657 = vsel %vm112, %v544, %v1206
    %v2658 = vsel %vm112, %v545, %v1208
    %v2659 = vsel %vm112, %v546, %v1210
    %v2660 = vsel %vm112, %v547, %v1212
    %v2661 = vsel %vm112, %v548, %v1214
    %v2662 = vsel %vm112, %v549, %v1216
    %v2663 = vsel %vm112, %v550, %v1218
    %v2664 = vsel %vm112, %v551, %v1220
    %v2665 = vsel %vm112, %v552, %v1222
    %v2666 = vsel %vm112, %v553, %v1224
    %v2667 = vsel %vm112, %v554, %v1226
    %v2668 = vsel %vm112, %v555, %v1228
    %v2669 = vsel %vm112, %v556, %v1230
    %v2670 = vsel %vm112, %v557, %v1232
    %v2671 = vsel %vm112, %v558, %v1234
    %v2672 = vsel %vm112, %v559, %v1236
    %v2673 = vsel %vm112, %v560, %v1238
    %v2674 = vsel %vm112, %v561, %v1240
    %v2675 = vsel %vm112, %v562, %v1242
    %v2676 = vsel %vm112, %v563, %v1244
    %v2677 = vsel %vm112, %v564, %v1246
    %v2678 = vsel %vm112, %v565, %v1248
    %v2679 = vsel %vm112, %v566, %v1250
    %v2680 = vsel %vm112, %v567, %v1252
    %v2681 = vsel %vm112, %v568, %v1254
    %v2682 = vsel %vm112, %v569, %v1256
    %v2683 = vsel %vm112, %v570, %v1258
    %v2684 = vsel %vm112, %v571, %v1260
    %v2685 = vsel %vm112, %v572, %v1262
    %v2686 = vsel %vm112, %v573, %v1264
    %v2687 = vsel %vm112, %v574, %v1266
    %v2688 = vsel %vm112, %v575, %v1268
    %v2689 = vsel %vm112, %v576, %v1270
    %v2690 = vsel %vm112, %v577, %v1272
    %v2691 = vsel %vm112, %v578, %v1274
    %v2692 = vsel %vm112, %v579, %v1276
    %v2693 = vsel %vm112, %v580, %v1278
    %v2694 = vsel %vm112, %v581, %v1280
    %v2695 = vsel %vm112, %v582, %v1282
    %v2696 = vsel %vm112, %v583, %v1284
    %v2697 = vsel %vm112, %v584, %v1286
    %v2698 = vsel %vm112, %v585, %v1288
    %v2699 = vsel %vm112, %v586, %v1290
    %v2700 = vsel %vm112, %v587, %v1292
    %vm2701 = vcmask 523264
    %v2702 = vsel %vm2701, %v2637, %v1422
    %v2703 = vsel %vm2701, %v2638, %v1424
    %v2704 = vsel %vm2701, %v2639, %v1426
    %v2705 = vsel %vm2701, %v2640, %v1428
    %v2706 = vsel %vm2701, %v2641, %v1430
    %v2707 = vsel %vm2701, %v2642, %v1432
    %v2708 = vsel %vm2701, %v2643, %v1434
    %v2709 = vsel %vm2701, %v2644, %v1436
    %v2710 = vsel %vm2701, %v2645, %v1438
    %v2711 = vsel %vm2701, %v2646, %v1440
    %v2712 = vsel %vm2701, %v2647, %v1442
    %v2713 = vsel %vm2701, %v2648, %v1444
    %v2714 = vsel %vm2701, %v2649, %v1446
    %v2715 = vsel %vm2701, %v2650, %v1448
    %v2716 = vsel %vm2701, %v2651, %v1450
    %v2717 = vsel %vm2701, %v2652, %v1452
    %v2718 = vsel %vm2701, %v2653, %v1454
    %v2719 = vsel %vm2701, %v2654, %v1456
    %v2720 = vsel %vm2701, %v2655, %v1458
    %v2721 = vsel %vm2701, %v2656, %v1460
    %v2722 = vsel %vm2701, %v2657, %v1462
    %v2723 = vsel %vm2701, %v2658, %v1464
    %v2724 = vsel %vm2701, %v2659, %v1466
    %v2725 = vsel %vm2701, %v2660, %v1468
    %v2726 = vsel %vm2701, %v2661, %v1470
    %v2727 = vsel %vm2701, %v2662, %v1472
    %v2728 = vsel %vm2701, %v2663, %v1474
    %v2729 = vsel %vm2701, %v2664, %v1476
    %v2730 = vsel %vm2701, %v2665, %v1478
    %v2731 = vsel %vm2701, %v2666, %v1480
    %v2732 = vsel %vm2701, %v2667, %v1482
    %v2733 = vsel %vm2701, %v2668, %v1484
    %v2734 = vsel %vm2701, %v2669, %v1486
    %v2735 = vsel %vm2701, %v2670, %v1488
    %v2736 = vsel %vm2701, %v2671, %v1490
    %v2737 = vsel %vm2701, %v2672, %v1492
    %v2738 = vsel %vm2701, %v2673, %v1494
    %v2739 = vsel %vm2701, %v2674, %v1496
    %v2740 = vsel %vm2701, %v2675, %v1498
    %v2741 = vsel %vm2701, %v2676, %v1500
    %v2742 = vsel %vm2701, %v2677, %v1502
    %v2743 = vsel %vm2701, %v2678, %v1504
    %v2744 = vsel %vm2701, %v2679, %v1506
    %v2745 = vsel %vm2701, %v2680, %v1508
    %v2746 = vsel %vm2701, %v2681, %v1510
    %v2747 = vsel %vm2701, %v2682, %v1512
    %v2748 = vsel %vm2701, %v2683, %v1514
    %v2749 = vsel %vm2701, %v2684, %v1516
    %v2750 = vsel %vm2701, %v2685, %v1518
    %v2751 = vsel %vm2701, %v2686, %v1520
    %v2752 = vsel %vm2701, %v2687, %v1522
    %v2753 = vsel %vm2701, %v2688, %v1524
    %v2754 = vsel %vm2701, %v2689, %v1526
    %v2755 = vsel %vm2701, %v2690, %v1528
    %v2756 = vsel %vm2701, %v2691, %v1530
    %v2757 = vsel %vm2701, %v2692, %v1532
    %v2758 = vsel %vm2701, %v2693, %v1534
    %v2759 = vsel %vm2701, %v2694, %v1536
    %v2760 = vsel %vm2701, %v2695, %v1538
    %v2761 = vsel %vm2701, %v2696, %v1540
    %v2762 = vsel %vm2701, %v2697, %v1542
    %v2763 = vsel %vm2701, %v2698, %v1544
    %v2764 = vsel %vm2701, %v2699, %v1546
    %v2765 = vsel %vm2701, %v2700, %v1548
    %vm2766 = vcmask 785408
    %v2767 = vsel %vm2766, %v2702, %v1678
    %v2768 = vsel %vm2766, %v2703, %v1680
    %v2769 = vsel %vm2766, %v2704, %v1682
    %v2770 = vsel %vm2766, %v2705, %v1684
    %v2771 = vsel %vm2766, %v2706, %v1686
    %v2772 = vsel %vm2766, %v2707, %v1688
    %v2773 = vsel %vm2766, %v2708, %v1690
    %v2774 = vsel %vm2766, %v2709, %v1692
    %v2775 = vsel %vm2766, %v2710, %v1694
    %v2776 = vsel %vm2766, %v2711, %v1696
    %v2777 = vsel %vm2766, %v2712, %v1698
    %v2778 = vsel %vm2766, %v2713, %v1700
    %v2779 = vsel %vm2766, %v2714, %v1702
    %v2780 = vsel %vm2766, %v2715, %v1704
    %v2781 = vsel %vm2766, %v2716, %v1706
    %v2782 = vsel %vm2766, %v2717, %v1708
    %v2783 = vsel %vm2766, %v2718, %v1710
    %v2784 = vsel %vm2766, %v2719, %v1712
    %v2785 = vsel %vm2766, %v2720, %v1714
    %v2786 = vsel %vm2766, %v2721, %v1716
    %v2787 = vsel %vm2766, %v2722, %v1718
    %v2788 = vsel %vm2766, %v2723, %v1720
    %v2789 = vsel %vm2766, %v2724, %v1722
    %v2790 = vsel %vm2766, %v2725, %v1724
    %v2791 = vsel %vm2766, %v2726, %v1726
    %v2792 = vsel %vm2766, %v2727, %v1728
    %v2793 = vsel %vm2766, %v2728, %v1730
    %v2794 = vsel %vm2766, %v2729, %v1732
    %v2795 = vsel %vm2766, %v2730, %v1734
    %v2796 = vsel %vm2766, %v2731, %v1736
    %v2797 = vsel %vm2766, %v2732, %v1738
    %v2798 = vsel %vm2766, %v2733, %v1740
    %v2799 = vsel %vm2766, %v2734, %v1742
    %v2800 = vsel %vm2766, %v2735, %v1744
    %v2801 = vsel %vm2766, %v2736, %v1746
    %v2802 = vsel %vm2766, %v2737, %v1748
    %v2803 = vsel %vm2766, %v2738, %v1750
    %v2804 = vsel %vm2766, %v2739, %v1752
    %v2805 = vsel %vm2766, %v2740, %v1754
    %v2806 = vsel %vm2766, %v2741, %v1756
    %v2807 = vsel %vm2766, %v2742, %v1758
    %v2808 = vsel %vm2766, %v2743, %v1760
    %v2809 = vsel %vm2766, %v2744, %v1762
    %v2810 = vsel %vm2766, %v2745, %v1764
    %v2811 = vsel %vm2766, %v2746, %v1766
    %v2812 = vsel %vm2766, %v2747, %v1768
    %v2813 = vsel %vm2766, %v2748, %v1770
    %v2814 = vsel %vm2766, %v2749, %v1772
    %v2815 = vsel %vm2766, %v2750, %v1774
    %v2816 = vsel %vm2766, %v2751, %v1776
    %v2817 = vsel %vm2766, %v2752, %v1778
    %v2818 = vsel %vm2766, %v2753, %v1780
    %v2819 = vsel %vm2766, %v2754, %v1782
    %v2820 = vsel %vm2766, %v2755, %v1784
    %v2821 = vsel %vm2766, %v2756, %v1786
    %v2822 = vsel %vm2766, %v2757, %v1788
    %v2823 = vsel %vm2766, %v2758, %v1790
    %v2824 = vsel %vm2766, %v2759, %v1792
    %v2825 = vsel %vm2766, %v2760, %v1794
    %v2826 = vsel %vm2766, %v2761, %v1796
    %v2827 = vsel %vm2766, %v2762, %v1798
    %v2828 = vsel %vm2766, %v2763, %v1800
    %v2829 = vsel %vm2766, %v2764, %v1802
    %v2830 = vsel %vm2766, %v2765, %v1804
    %v2831 = vsel %vm112, %v780, %v1934
    %v2832 = vsel %vm112, %v781, %v1936
    %v2833 = vsel %vm112, %v782, %v1938
    %v2834 = vsel %vm112, %v783, %v1940
    %v2835 = vsel %vm112, %v784, %v1942
    %v2836 = vsel %vm112, %v785, %v1944
    %v2837 = vsel %vm112, %v786, %v1946
    %v2838 = vsel %vm112, %v787, %v1948
    %v2839 = vsel %vm112, %v788, %v1950
    %v2840 = vsel %vm112, %v789, %v1952
    %v2841 = vsel %vm112, %v790, %v1954
    %v2842 = vsel %vm112, %v791, %v1956
    %v2843 = vsel %vm112, %v792, %v1958
    %v2844 = vsel %vm112, %v793, %v1960
    %v2845 = vsel %vm112, %v794, %v1962
    %v2846 = vsel %vm112, %v795, %v1964
    %v2847 = vsel %vm112, %v796, %v1966
    %v2848 = vsel %vm112, %v797, %v1968
    %v2849 = vsel %vm112, %v798, %v1970
    %v2850 = vsel %vm112, %v799, %v1972
    %v2851 = vsel %vm112, %v800, %v1974
    %v2852 = vsel %vm112, %v801, %v1976
    %v2853 = vsel %vm112, %v802, %v1978
    %v2854 = vsel %vm112, %v803, %v1980
    %v2855 = vsel %vm112, %v804, %v1982
    %v2856 = vsel %vm112, %v805, %v1984
    %v2857 = vsel %vm112, %v806, %v1986
    %v2858 = vsel %vm112, %v807, %v1988
    %v2859 = vsel %vm112, %v808, %v1990
    %v2860 = vsel %vm112, %v809, %v1992
    %v2861 = vsel %vm112, %v810, %v1994
    %v2862 = vsel %vm112, %v811, %v1996
    %v2863 = vsel %vm112, %v812, %v1998
    %v2864 = vsel %vm112, %v813, %v2000
    %v2865 = vsel %vm112, %v814, %v2002
    %v2866 = vsel %vm112, %v815, %v2004
    %v2867 = vsel %vm112, %v816, %v2006
    %v2868 = vsel %vm112, %v817, %v2008
    %v2869 = vsel %vm112, %v818, %v2010
    %v2870 = vsel %vm112, %v819, %v2012
    %v2871 = vsel %vm112, %v820, %v2014
    %v2872 = vsel %vm112, %v821, %v2016
    %v2873 = vsel %vm112, %v822, %v2018
    %v2874 = vsel %vm112, %v823, %v2020
    %v2875 = vsel %vm112, %v824, %v2022
    %v2876 = vsel %vm112, %v825, %v2024
    %v2877 = vsel %vm112, %v826, %v2026
    %v2878 = vsel %vm112, %v827, %v2028
    %v2879 = vsel %vm112, %v828, %v2030
    %v2880 = vsel %vm112, %v829, %v2032
    %v2881 = vsel %vm112, %v830, %v2034
    %v2882 = vsel %vm112, %v831, %v2036
    %v2883 = vsel %vm112, %v832, %v2038
    %v2884 = vsel %vm112, %v833, %v2040
    %v2885 = vsel %vm112, %v834, %v2042
    %v2886 = vsel %vm112, %v835, %v2044
    %v2887 = vsel %vm112, %v836, %v2046
    %v2888 = vsel %vm112, %v837, %v2048
    %v2889 = vsel %vm112, %v838, %v2050
    %v2890 = vsel %vm112, %v839, %v2052
    %v2891 = vsel %vm112, %v840, %v2054
    %v2892 = vsel %vm112, %v841, %v2056
    %v2893 = vsel %vm112, %v842, %v2058
    %v2894 = vsel %vm112, %v843, %v2060
    %v2895 = vsel %vm2701, %v2831, %v2190
    %v2896 = vsel %vm2701, %v2832, %v2192
    %v2897 = vsel %vm2701, %v2833, %v2194
    %v2898 = vsel %vm2701, %v2834, %v2196
    %v2899 = vsel %vm2701, %v2835, %v2198
    %v2900 = vsel %vm2701, %v2836, %v2200
    %v2901 = vsel %vm2701, %v2837, %v2202
    %v2902 = vsel %vm2701, %v2838, %v2204
    %v2903 = vsel %vm2701, %v2839, %v2206
    %v2904 = vsel %vm2701, %v2840, %v2208
    %v2905 = vsel %vm2701, %v2841, %v2210
    %v2906 = vsel %vm2701, %v2842, %v2212
    %v2907 = vsel %vm2701, %v2843, %v2214
    %v2908 = vsel %vm2701, %v2844, %v2216
    %v2909 = vsel %vm2701, %v2845, %v2218
    %v2910 = vsel %vm2701, %v2846, %v2220
    %v2911 = vsel %vm2701, %v2847, %v2222
    %v2912 = vsel %vm2701, %v2848, %v2224
    %v2913 = vsel %vm2701, %v2849, %v2226
    %v2914 = vsel %vm2701, %v2850, %v2228
    %v2915 = vsel %vm2701, %v2851, %v2230
    %v2916 = vsel %vm2701, %v2852, %v2232
    %v2917 = vsel %vm2701, %v2853, %v2234
    %v2918 = vsel %vm2701, %v2854, %v2236
    %v2919 = vsel %vm2701, %v2855, %v2238
    %v2920 = vsel %vm2701, %v2856, %v2240
    %v2921 = vsel %vm2701, %v2857, %v2242
    %v2922 = vsel %vm2701, %v2858, %v2244
    %v2923 = vsel %vm2701, %v2859, %v2246
    %v2924 = vsel %vm2701, %v2860, %v2248
    %v2925 = vsel %vm2701, %v2861, %v2250
    %v2926 = vsel %vm2701, %v2862, %v2252
    %v2927 = vsel %vm2701, %v2863, %v2254
    %v2928 = vsel %vm2701, %v2864, %v2256
    %v2929 = vsel %vm2701, %v2865, %v2258
    %v2930 = vsel %vm2701, %v2866, %v2260
    %v2931 = vsel %vm2701, %v2867, %v2262
    %v2932 = vsel %vm2701, %v2868, %v2264
    %v2933 = vsel %vm2701, %v2869, %v2266
    %v2934 = vsel %vm2701, %v2870, %v2268
    %v2935 = vsel %vm2701, %v2871, %v2270
    %v2936 = vsel %vm2701, %v2872, %v2272
    %v2937 = vsel %vm2701, %v2873, %v2274
    %v2938 = vsel %vm2701, %v2874, %v2276
    %v2939 = vsel %vm2701, %v2875, %v2278
    %v2940 = vsel %vm2701, %v2876, %v2280
    %v2941 = vsel %vm2701, %v2877, %v2282
    %v2942 = vsel %vm2701, %v2878, %v2284
    %v2943 = vsel %vm2701, %v2879, %v2286
    %v2944 = vsel %vm2701, %v2880, %v2288
    %v2945 = vsel %vm2701, %v2881, %v2290
    %v2946 = vsel %vm2701, %v2882, %v2292
    %v2947 = vsel %vm2701, %v2883, %v2294
    %v2948 = vsel %vm2701, %v2884, %v2296
    %v2949 = vsel %vm2701, %v2885, %v2298
    %v2950 = vsel %vm2701, %v2886, %v2300
    %v2951 = vsel %vm2701, %v2887, %v2302
    %v2952 = vsel %vm2701, %v2888, %v2304
    %v2953 = vsel %vm2701, %v2889, %v2306
    %v2954 = vsel %vm2701, %v2890, %v2308
    %v2955 = vsel %vm2701, %v2891, %v2310
    %v2956 = vsel %vm2701, %v2892, %v2312
    %v2957 = vsel %vm2701, %v2893, %v2314
    %v2958 = vsel %vm2701, %v2894, %v2316
    %v2959 = vsel %vm2766, %v2895, %v2446
    %v2960 = vsel %vm2766, %v2896, %v2448
    %v2961 = vsel %vm2766, %v2897, %v2450
    %v2962 = vsel %vm2766, %v2898, %v2452
    %v2963 = vsel %vm2766, %v2899, %v2454
    %v2964 = vsel %vm2766, %v2900, %v2456
    %v2965 = vsel %vm2766, %v2901, %v2458
    %v2966 = vsel %vm2766, %v2902, %v2460
    %v2967 = vsel %vm2766, %v2903, %v2462
    %v2968 = vsel %vm2766, %v2904, %v2464
    %v2969 = vsel %vm2766, %v2905, %v2466
    %v2970 = vsel %vm2766, %v2906, %v2468
    %v2971 = vsel %vm2766, %v2907, %v2470
    %v2972 = vsel %vm2766, %v2908, %v2472
    %v2973 = vsel %vm2766, %v2909, %v2474
    %v2974 = vsel %vm2766, %v2910, %v2476
    %v2975 = vsel %vm2766, %v2911, %v2478
    %v2976 = vsel %vm2766, %v2912, %v2480
    %v2977 = vsel %vm2766, %v2913, %v2482
    %v2978 = vsel %vm2766, %v2914, %v2484
    %v2979 = vsel %vm2766, %v2915, %v2486
    %v2980 = vsel %vm2766, %v2916, %v2488
    %v2981 = vsel %vm2766, %v2917, %v2490
    %v2982 = vsel %vm2766, %v2918, %v2492
    %v2983 = vsel %vm2766, %v2919, %v2494
    %v2984 = vsel %vm2766, %v2920, %v2496
    %v2985 = vsel %vm2766, %v2921, %v2498
    %v2986 = vsel %vm2766, %v2922, %v2500
    %v2987 = vsel %vm2766, %v2923, %v2502
    %v2988 = vsel %vm2766, %v2924, %v2504
    %v2989 = vsel %vm2766, %v2925, %v2506
    %v2990 = vsel %vm2766, %v2926, %v2508
    %v2991 = vsel %vm2766, %v2927, %v2510
    %v2992 = vsel %vm2766, %v2928, %v2512
    %v2993 = vsel %vm2766, %v2929, %v2514
    %v2994 = vsel %vm2766, %v2930, %v2516
    %v2995 = vsel %vm2766, %v2931, %v2518
    %v2996 = vsel %vm2766, %v2932, %v2520
    %v2997 = vsel %vm2766, %v2933, %v2522
    %v2998 = vsel %vm2766, %v2934, %v2524
    %v2999 = vsel %vm2766, %v2935, %v2526
    %v3000 = vsel %vm2766, %v2936, %v2528
    %v3001 = vsel %vm2766, %v2937, %v2530
    %v3002 = vsel %vm2766, %v2938, %v2532
    %v3003 = vsel %vm2766, %v2939, %v2534
    %v3004 = vsel %vm2766, %v2940, %v2536
    %v3005 = vsel %vm2766, %v2941, %v2538
    %v3006 = vsel %vm2766, %v2942, %v2540
    %v3007 = vsel %vm2766, %v2943, %v2542
    %v3008 = vsel %vm2766, %v2944, %v2544
    %v3009 = vsel %vm2766, %v2945, %v2546
    %v3010 = vsel %vm2766, %v2946, %v2548
    %v3011 = vsel %vm2766, %v2947, %v2550
    %v3012 = vsel %vm2766, %v2948, %v2552
    %v3013 = vsel %vm2766, %v2949, %v2554
    %v3014 = vsel %vm2766, %v2950, %v2556
    %v3015 = vsel %vm2766, %v2951, %v2558
    %v3016 = vsel %vm2766, %v2952, %v2560
    %v3017 = vsel %vm2766, %v2953, %v2562
    %v3018 = vsel %vm2766, %v2954, %v2564
    %v3019 = vsel %vm2766, %v2955, %v2566
    %v3020 = vsel %vm2766, %v2956, %v2568
    %v3021 = vsel %vm2766, %v2957, %v2570
    %v3022 = vsel %vm2766, %v2958, %v2572
    %v3023 = vpack.c.bf16 %v2768, %v2767
    %v3024 = vpack.c.bf16 %v2960, %v2959
    %v3025 = vpack.c.bf16 %v1038, %v1037
    %v3026 = vpack.c.bf16 %v2770, %v2769
    %v3027 = vpack.c.bf16 %v2962, %v2961
    %v3028 = vpack.c.bf16 %v1040, %v1039
    %v3029 = vpack.c.bf16 %v2772, %v2771
    %v3030 = vpack.c.bf16 %v2964, %v2963
    %v3031 = vpack.c.bf16 %v1042, %v1041
    %v3032 = vpack.c.bf16 %v2774, %v2773
    %v3033 = vpack.c.bf16 %v2966, %v2965
    %v3034 = vpack.c.bf16 %v1044, %v1043
    %v3035 = vpack.c.bf16 %v2776, %v2775
    %v3036 = vpack.c.bf16 %v2968, %v2967
    %v3037 = vpack.c.bf16 %v1046, %v1045
    %v3038 = vpack.c.bf16 %v2778, %v2777
    %v3039 = vpack.c.bf16 %v2970, %v2969
    %v3040 = vpack.c.bf16 %v1048, %v1047
    %v3041 = vpack.c.bf16 %v2780, %v2779
    %v3042 = vpack.c.bf16 %v2972, %v2971
    %v3043 = vpack.c.bf16 %v1050, %v1049
    %v3044 = vpack.c.bf16 %v2782, %v2781
    %v3045 = vpack.c.bf16 %v2974, %v2973
    %v3046 = vpack.c.bf16 %v1052, %v1051
    %v3047 = vpack.c.bf16 %v2784, %v2783
    %v3048 = vpack.c.bf16 %v2976, %v2975
    %v3049 = vpack.c.bf16 %v1054, %v1053
    %v3050 = vpack.c.bf16 %v2786, %v2785
    %v3051 = vpack.c.bf16 %v2978, %v2977
    %v3052 = vpack.c.bf16 %v1056, %v1055
    %v3053 = vpack.c.bf16 %v2788, %v2787
    %v3054 = vpack.c.bf16 %v2980, %v2979
    %v3055 = vpack.c.bf16 %v1058, %v1057
    %v3056 = vpack.c.bf16 %v2790, %v2789
    %v3057 = vpack.c.bf16 %v2982, %v2981
    %v3058 = vpack.c.bf16 %v1060, %v1059
    %v3059 = vpack.c.bf16 %v2792, %v2791
    %v3060 = vpack.c.bf16 %v2984, %v2983
    %v3061 = vpack.c.bf16 %v1062, %v1061
    %v3062 = vpack.c.bf16 %v2794, %v2793
    %v3063 = vpack.c.bf16 %v2986, %v2985
    %v3064 = vpack.c.bf16 %v1064, %v1063
    %v3065 = vpack.c.bf16 %v2796, %v2795
    %v3066 = vpack.c.bf16 %v2988, %v2987
    %v3067 = vpack.c.bf16 %v1066, %v1065
    %v3068 = vpack.c.bf16 %v2798, %v2797
    %v3069 = vpack.c.bf16 %v2990, %v2989
    %v3070 = vpack.c.bf16 %v1068, %v1067
    %v3071 = vpack.c.bf16 %v2800, %v2799
    %v3072 = vpack.c.bf16 %v2992, %v2991
    %v3073 = vpack.c.bf16 %v1070, %v1069
    %v3074 = vpack.c.bf16 %v2802, %v2801
    %v3075 = vpack.c.bf16 %v2994, %v2993
    %v3076 = vpack.c.bf16 %v1072, %v1071
    %v3077 = vpack.c.bf16 %v2804, %v2803
    %v3078 = vpack.c.bf16 %v2996, %v2995
    %v3079 = vpack.c.bf16 %v1074, %v1073
    %v3080 = vpack.c.bf16 %v2806, %v2805
    %v3081 = vpack.c.bf16 %v2998, %v2997
    %v3082 = vpack.c.bf16 %v1076, %v1075
    %v3083 = vpack.c.bf16 %v2808, %v2807
    %v3084 = vpack.c.bf16 %v3000, %v2999
    %v3085 = vpack.c.bf16 %v1078, %v1077
    %v3086 = vpack.c.bf16 %v2810, %v2809
    %v3087 = vpack.c.bf16 %v3002, %v3001
    %v3088 = vpack.c.bf16 %v1080, %v1079
    %v3089 = vpack.c.bf16 %v2812, %v2811
    %v3090 = vpack.c.bf16 %v3004, %v3003
    %v3091 = vpack.c.bf16 %v1082, %v1081
    %v3092 = vpack.c.bf16 %v2814, %v2813
    %v3093 = vpack.c.bf16 %v3006, %v3005
    %v3094 = vpack.c.bf16 %v1084, %v1083
    %v3095 = vpack.c.bf16 %v2816, %v2815
    %v3096 = vpack.c.bf16 %v3008, %v3007
    %v3097 = vpack.c.bf16 %v1086, %v1085
    %v3098 = vpack.c.bf16 %v2818, %v2817
    %v3099 = vpack.c.bf16 %v3010, %v3009
    %v3100 = vpack.c.bf16 %v1088, %v1087
    %v3101 = vpack.c.bf16 %v2820, %v2819
    %v3102 = vpack.c.bf16 %v3012, %v3011
    %v3103 = vpack.c.bf16 %v1090, %v1089
    %v3104 = vpack.c.bf16 %v2822, %v2821
    %v3105 = vpack.c.bf16 %v3014, %v3013
    %v3106 = vpack.c.bf16 %v1092, %v1091
    %v3107 = vpack.c.bf16 %v2824, %v2823
    %v3108 = vpack.c.bf16 %v3016, %v3015
    %v3109 = vpack.c.bf16 %v1094, %v1093
    %v3110 = vpack.c.bf16 %v2826, %v2825
    %v3111 = vpack.c.bf16 %v3018, %v3017
    %v3112 = vpack.c.bf16 %v1096, %v1095
    %v3113 = vpack.c.bf16 %v2828, %v2827
    %v3114 = vpack.c.bf16 %v3020, %v3019
    %v3115 = vpack.c.bf16 %v1098, %v1097
    %v3116 = vpack.c.bf16 %v2830, %v2829
    %v3117 = vpack.c.bf16 %v3022, %v3021
    %v3118 = vpack.c.bf16 %v1100, %v1099
    %v3119 = vld [vmem:[%s2] sm:$0xf]
    %v3120 = vld [vmem:[%s2 + $0x4] sm:$0xf]
    %v3121 = vld [vmem:[%s2 + $0x8] sm:$0xf]
    %v3122 = vld [vmem:[%s2 + $0xc] sm:$0xf]
    %v3123 = vld [vmem:[%s2 + $0x10] sm:$0xf]
    %v3124 = vld [vmem:[%s2 + $0x14] sm:$0xf]
    %v3125 = vld [vmem:[%s2 + $0x18] sm:$0xf]
    %v3126 = vld [vmem:[%s2 + $0x1c] sm:$0xf]
    %v3127 = vld [vmem:[%s2 + $0x20] sm:$0xf]
    %v3128 = vld [vmem:[%s2 + $0x24] sm:$0xf]
    %v3129 = vld [vmem:[%s2 + $0x28] sm:$0xf]
    %v3130 = vld [vmem:[%s2 + $0x2c] sm:$0xf]
    %v3131 = vld [vmem:[%s2 + $0x30] sm:$0xf]
    %v3132 = vld [vmem:[%s2 + $0x34] sm:$0xf]
    %v3133 = vld [vmem:[%s2 + $0x38] sm:$0xf]
    %v3134 = vld [vmem:[%s2 + $0x3c] sm:$0xf]
    %v3135 = vld [vmem:[%s2 + $0x40] sm:$0xf]
    %v3136 = vld [vmem:[%s2 + $0x44] sm:$0xf]
    %v3137 = vld [vmem:[%s2 + $0x48] sm:$0xf]
    %v3138 = vld [vmem:[%s2 + $0x4c] sm:$0xf]
    %v3139 = vld [vmem:[%s2 + $0x50] sm:$0xf]
    %v3140 = vld [vmem:[%s2 + $0x54] sm:$0xf]
    %v3141 = vld [vmem:[%s2 + $0x58] sm:$0xf]
    %v3142 = vld [vmem:[%s2 + $0x5c] sm:$0xf]
    %v3143 = vld [vmem:[%s2 + $0x60] sm:$0xf]
    %v3144 = vld [vmem:[%s2 + $0x64] sm:$0xf]
    %v3145 = vld [vmem:[%s2 + $0x68] sm:$0xf]
    %v3146 = vld [vmem:[%s2 + $0x6c] sm:$0xf]
    %v3147 = vld [vmem:[%s2 + $0x70] sm:$0xf]
    %v3148 = vld [vmem:[%s2 + $0x74] sm:$0xf]
    %v3149 = vld [vmem:[%s2 + $0x78] sm:$0xf]
    %v3150 = vld [vmem:[%s2 + $0x7c] sm:$0xf]
    %v3151 = vld [vmem:[%s2 + $0x80] sm:$0xf]
    %v3152 = vld [vmem:[%s2 + $0x84] sm:$0xf]
    %v3153 = vld [vmem:[%s2 + $0x88] sm:$0xf]
    %v3154 = vld [vmem:[%s2 + $0x8c] sm:$0xf]
    %v3155 = vld [vmem:[#allocation3] sm:$0xff]
    %v3156 = vld [vmem:[#allocation3 + $0x8] sm:$0xff]
    %v3157 = vld [vmem:[#allocation3 + $0x18] sm:$0xff]
    %v3158 = vld [vmem:[#allocation3 + $0x20] sm:$0xff]
    %v3159 = vld [vmem:[#allocation3 + $0x30] sm:$0xff]
    %v3160 = vld [vmem:[#allocation3 + $0x38] sm:$0xff]
    %v3161 = vld [vmem:[#allocation3 + $0x48] sm:$0xff]
    %v3162 = vld [vmem:[#allocation3 + $0x50] sm:$0xff]
    %v3163 = vld [vmem:[#allocation3 + $0x60] sm:$0xff]
    %v3164 = vld [vmem:[#allocation3 + $0x68] sm:$0xff]
    %v3165 = vld [vmem:[#allocation3 + $0x78] sm:$0xff]
    %v3166 = vld [vmem:[#allocation3 + $0x80] sm:$0xff]
    %v3167 = vld [vmem:[#allocation3 + $0x90] sm:$0xff]
    %v3168 = vld [vmem:[#allocation3 + $0x98] sm:$0xff]
    %v3169 = vld [vmem:[#allocation3 + $0xa8] sm:$0xff]
    %v3170 = vld [vmem:[#allocation3 + $0xb0] sm:$0xff]
    %v3171 = vld [vmem:[#allocation3 + $0xc0] sm:$0xff]
    %v3172 = vld [vmem:[#allocation3 + $0xc8] sm:$0xff]
    %v3173 = vld [vmem:[#allocation3 + $0xd8] sm:$0xff]
    %v3174 = vld [vmem:[#allocation3 + $0xe0] sm:$0xff]
    %v3175 = vld [vmem:[#allocation3 + $0xf0] sm:$0xff]
    %v3176 = vld [vmem:[#allocation3 + $0xf8] sm:$0xff]
    %v3177 = vld [vmem:[#allocation3 + $0x108] sm:$0xff]
    %v3178 = vld [vmem:[#allocation3 + $0x110] sm:$0xff]
    %v3179 = vld [vmem:[#allocation3 + $0x120] sm:$0xff]
    %v3180 = vld [vmem:[#allocation3 + $0x128] sm:$0xff]
    %v3181 = vld [vmem:[#allocation3 + $0x138] sm:$0xff]
    %v3182 = vld [vmem:[#allocation3 + $0x140] sm:$0xff]
    %v3183 = vld [vmem:[#allocation3 + $0x150] sm:$0xff]
    %v3184 = vld [vmem:[#allocation3 + $0x158] sm:$0xff]
    %v3185 = vld [vmem:[#allocation3 + $0x168] sm:$0xff]
    %v3186 = vld [vmem:[#allocation3 + $0x170] sm:$0xff]
    %v3187 = vld [vmem:[#allocation3 + $0x1b0] sm:$0xff]
    %v3188 = vld [vmem:[#allocation3 + $0x1b8] sm:$0xff]
    %v3189 = vld [vmem:[#allocation3 + $0x1c8] sm:$0xff]
    %v3190 = vld [vmem:[#allocation3 + $0x1d0] sm:$0xff]
    %v3191 = vld [vmem:[#allocation3 + $0x1e0] sm:$0xff]
    %v3192 = vld [vmem:[#allocation3 + $0x1e8] sm:$0xff]
    %v3193 = vld [vmem:[#allocation3 + $0x1f8] sm:$0xff]
    %v3194 = vld [vmem:[#allocation3 + $0x200] sm:$0xff]
    %v3195 = vld [vmem:[#allocation3 + $0x210] sm:$0xff]
    %v3196 = vld [vmem:[#allocation3 + $0x218] sm:$0xff]
    %v3197 = vld [vmem:[#allocation3 + $0x228] sm:$0xff]
    %v3198 = vld [vmem:[#allocation3 + $0x230] sm:$0xff]
    %v3199 = vld [vmem:[#allocation3 + $0x240] sm:$0xff]
    %v3200 = vld [vmem:[#allocation3 + $0x248] sm:$0xff]
    %v3201 = vld [vmem:[#allocation3 + $0x258] sm:$0xff]
    %v3202 = vld [vmem:[#allocation3 + $0x260] sm:$0xff]
    %v3203 = vld [vmem:[#allocation3 + $0x270] sm:$0xff]
    %v3204 = vld [vmem:[#allocation3 + $0x278] sm:$0xff]
    %v3205 = vld [vmem:[#allocation3 + $0x288] sm:$0xff]
    %v3206 = vld [vmem:[#allocation3 + $0x290] sm:$0xff]
    %v3207 = vld [vmem:[#allocation3 + $0x2a0] sm:$0xff]
    %v3208 = vld [vmem:[#allocation3 + $0x2a8] sm:$0xff]
    %v3209 = vld [vmem:[#allocation3 + $0x2b8] sm:$0xff]
    %v3210 = vld [vmem:[#allocation3 + $0x2c0] sm:$0xff]
    %v3211 = vld [vmem:[#allocation3 + $0x2d0] sm:$0xff]
    %v3212 = vld [vmem:[#allocation3 + $0x2d8] sm:$0xff]
    %v3213 = vld [vmem:[#allocation3 + $0x2e8] sm:$0xff]
    %v3214 = vld [vmem:[#allocation3 + $0x2f0] sm:$0xff]
    %v3215 = vld [vmem:[#allocation3 + $0x300] sm:$0xff]
    %v3216 = vld [vmem:[#allocation3 + $0x308] sm:$0xff]
    %v3217 = vld [vmem:[#allocation3 + $0x318] sm:$0xff]
    %v3218 = vld [vmem:[#allocation3 + $0x320] sm:$0xff]
    %v3219 = vld [vmem:[#allocation3 + $0x1] sm:$0xff]
    %v3220 = vld [vmem:[#allocation3 + $0x9] sm:$0xff]
    %v3221 = vld [vmem:[#allocation3 + $0x19] sm:$0xff]
    %v3222 = vld [vmem:[#allocation3 + $0x21] sm:$0xff]
    %v3223 = vld [vmem:[#allocation3 + $0x31] sm:$0xff]
    %v3224 = vld [vmem:[#allocation3 + $0x39] sm:$0xff]
    %v3225 = vld [vmem:[#allocation3 + $0x49] sm:$0xff]
    %v3226 = vld [vmem:[#allocation3 + $0x51] sm:$0xff]
    %v3227 = vld [vmem:[#allocation3 + $0x61] sm:$0xff]
    %v3228 = vld [vmem:[#allocation3 + $0x69] sm:$0xff]
    %v3229 = vld [vmem:[#allocation3 + $0x79] sm:$0xff]
    %v3230 = vld [vmem:[#allocation3 + $0x81] sm:$0xff]
    %v3231 = vld [vmem:[#allocation3 + $0x91] sm:$0xff]
    %v3232 = vld [vmem:[#allocation3 + $0x99] sm:$0xff]
    %v3233 = vld [vmem:[#allocation3 + $0xa9] sm:$0xff]
    %v3234 = vld [vmem:[#allocation3 + $0xb1] sm:$0xff]
    %v3235 = vld [vmem:[#allocation3 + $0xc1] sm:$0xff]
    %v3236 = vld [vmem:[#allocation3 + $0xc9] sm:$0xff]
    %v3237 = vld [vmem:[#allocation3 + $0xd9] sm:$0xff]
    %v3238 = vld [vmem:[#allocation3 + $0xe1] sm:$0xff]
    %v3239 = vld [vmem:[#allocation3 + $0xf1] sm:$0xff]
    %v3240 = vld [vmem:[#allocation3 + $0xf9] sm:$0xff]
    %v3241 = vld [vmem:[#allocation3 + $0x109] sm:$0xff]
    %v3242 = vld [vmem:[#allocation3 + $0x111] sm:$0xff]
    %v3243 = vld [vmem:[#allocation3 + $0x121] sm:$0xff]
    %v3244 = vld [vmem:[#allocation3 + $0x129] sm:$0xff]
    %v3245 = vld [vmem:[#allocation3 + $0x139] sm:$0xff]
    %v3246 = vld [vmem:[#allocation3 + $0x141] sm:$0xff]
    %v3247 = vld [vmem:[#allocation3 + $0x151] sm:$0xff]
    %v3248 = vld [vmem:[#allocation3 + $0x159] sm:$0xff]
    %v3249 = vld [vmem:[#allocation3 + $0x169] sm:$0xff]
    %v3250 = vld [vmem:[#allocation3 + $0x171] sm:$0xff]
    %v3251 = vld [vmem:[#allocation3 + $0x1b1] sm:$0xff]
    %v3252 = vld [vmem:[#allocation3 + $0x1b9] sm:$0xff]
    %v3253 = vld [vmem:[#allocation3 + $0x1c9] sm:$0xff]
    %v3254 = vld [vmem:[#allocation3 + $0x1d1] sm:$0xff]
    %v3255 = vld [vmem:[#allocation3 + $0x1e1] sm:$0xff]
    %v3256 = vld [vmem:[#allocation3 + $0x1e9] sm:$0xff]
    %v3257 = vld [vmem:[#allocation3 + $0x1f9] sm:$0xff]
    %v3258 = vld [vmem:[#allocation3 + $0x201] sm:$0xff]
    %v3259 = vld [vmem:[#allocation3 + $0x211] sm:$0xff]
    %v3260 = vld [vmem:[#allocation3 + $0x219] sm:$0xff]
    %v3261 = vld [vmem:[#allocation3 + $0x229] sm:$0xff]
    %v3262 = vld [vmem:[#allocation3 + $0x231] sm:$0xff]
    %v3263 = vld [vmem:[#allocation3 + $0x241] sm:$0xff]
    %v3264 = vld [vmem:[#allocation3 + $0x249] sm:$0xff]
    %v3265 = vld [vmem:[#allocation3 + $0x259] sm:$0xff]
    %v3266 = vld [vmem:[#allocation3 + $0x261] sm:$0xff]
    %v3267 = vld [vmem:[#allocation3 + $0x271] sm:$0xff]
    %v3268 = vld [vmem:[#allocation3 + $0x279] sm:$0xff]
    %v3269 = vld [vmem:[#allocation3 + $0x289] sm:$0xff]
    %v3270 = vld [vmem:[#allocation3 + $0x291] sm:$0xff]
    %v3271 = vld [vmem:[#allocation3 + $0x2a1] sm:$0xff]
    %v3272 = vld [vmem:[#allocation3 + $0x2a9] sm:$0xff]
    %v3273 = vld [vmem:[#allocation3 + $0x2b9] sm:$0xff]
    %v3274 = vld [vmem:[#allocation3 + $0x2c1] sm:$0xff]
    %v3275 = vld [vmem:[#allocation3 + $0x2d1] sm:$0xff]
    %v3276 = vld [vmem:[#allocation3 + $0x2d9] sm:$0xff]
    %v3277 = vld [vmem:[#allocation3 + $0x2e9] sm:$0xff]
    %v3278 = vld [vmem:[#allocation3 + $0x2f1] sm:$0xff]
    %v3279 = vld [vmem:[#allocation3 + $0x301] sm:$0xff]
    %v3280 = vld [vmem:[#allocation3 + $0x309] sm:$0xff]
    %v3281 = vld [vmem:[#allocation3 + $0x319] sm:$0xff]
    %v3282 = vld [vmem:[#allocation3 + $0x321] sm:$0xff]
    %v3283 = vld [vmem:[#allocation3 + $0x2] sm:$0xff]
    %v3284 = vld [vmem:[#allocation3 + $0xa] sm:$0xff]
    %v3285 = vld [vmem:[#allocation3 + $0x1a] sm:$0xff]
    %v3286 = vld [vmem:[#allocation3 + $0x22] sm:$0xff]
    %v3287 = vld [vmem:[#allocation3 + $0x32] sm:$0xff]
    %v3288 = vld [vmem:[#allocation3 + $0x3a] sm:$0xff]
    %v3289 = vld [vmem:[#allocation3 + $0x4a] sm:$0xff]
    %v3290 = vld [vmem:[#allocation3 + $0x52] sm:$0xff]
    %v3291 = vld [vmem:[#allocation3 + $0x62] sm:$0xff]
    %v3292 = vld [vmem:[#allocation3 + $0x6a] sm:$0xff]
    %v3293 = vld [vmem:[#allocation3 + $0x7a] sm:$0xff]
    %v3294 = vld [vmem:[#allocation3 + $0x82] sm:$0xff]
    %v3295 = vld [vmem:[#allocation3 + $0x92] sm:$0xff]
    %v3296 = vld [vmem:[#allocation3 + $0x9a] sm:$0xff]
    %v3297 = vld [vmem:[#allocation3 + $0xaa] sm:$0xff]
    %v3298 = vld [vmem:[#allocation3 + $0xb2] sm:$0xff]
    %v3299 = vld [vmem:[#allocation3 + $0xc2] sm:$0xff]
    %v3300 = vld [vmem:[#allocation3 + $0xca] sm:$0xff]
    %v3301 = vld [vmem:[#allocation3 + $0xda] sm:$0xff]
    %v3302 = vld [vmem:[#allocation3 + $0xe2] sm:$0xff]
    %v3303 = vld [vmem:[#allocation3 + $0xf2] sm:$0xff]
    %v3304 = vld [vmem:[#allocation3 + $0xfa] sm:$0xff]
    %v3305 = vld [vmem:[#allocation3 + $0x10a] sm:$0xff]
    %v3306 = vld [vmem:[#allocation3 + $0x112] sm:$0xff]
    %v3307 = vld [vmem:[#allocation3 + $0x122] sm:$0xff]
    %v3308 = vld [vmem:[#allocation3 + $0x12a] sm:$0xff]
    %v3309 = vld [vmem:[#allocation3 + $0x13a] sm:$0xff]
    %v3310 = vld [vmem:[#allocation3 + $0x142] sm:$0xff]
    %v3311 = vld [vmem:[#allocation3 + $0x152] sm:$0xff]
    %v3312 = vld [vmem:[#allocation3 + $0x15a] sm:$0xff]
    %v3313 = vld [vmem:[#allocation3 + $0x16a] sm:$0xff]
    %v3314 = vld [vmem:[#allocation3 + $0x172] sm:$0xff]
    %v3315 = vld [vmem:[#allocation3 + $0x1b2] sm:$0xff]
    %v3316 = vld [vmem:[#allocation3 + $0x1ba] sm:$0xff]
    %v3317 = vld [vmem:[#allocation3 + $0x1ca] sm:$0xff]
    %v3318 = vld [vmem:[#allocation3 + $0x1d2] sm:$0xff]
    %v3319 = vld [vmem:[#allocation3 + $0x1e2] sm:$0xff]
    %v3320 = vld [vmem:[#allocation3 + $0x1ea] sm:$0xff]
    %v3321 = vld [vmem:[#allocation3 + $0x1fa] sm:$0xff]
    %v3322 = vld [vmem:[#allocation3 + $0x202] sm:$0xff]
    %v3323 = vld [vmem:[#allocation3 + $0x212] sm:$0xff]
    %v3324 = vld [vmem:[#allocation3 + $0x21a] sm:$0xff]
    %v3325 = vld [vmem:[#allocation3 + $0x22a] sm:$0xff]
    %v3326 = vld [vmem:[#allocation3 + $0x232] sm:$0xff]
    %v3327 = vld [vmem:[#allocation3 + $0x242] sm:$0xff]
    %v3328 = vld [vmem:[#allocation3 + $0x24a] sm:$0xff]
    %v3329 = vld [vmem:[#allocation3 + $0x25a] sm:$0xff]
    %v3330 = vld [vmem:[#allocation3 + $0x262] sm:$0xff]
    %v3331 = vld [vmem:[#allocation3 + $0x272] sm:$0xff]
    %v3332 = vld [vmem:[#allocation3 + $0x27a] sm:$0xff]
    %v3333 = vld [vmem:[#allocation3 + $0x28a] sm:$0xff]
    %v3334 = vld [vmem:[#allocation3 + $0x292] sm:$0xff]
    %v3335 = vld [vmem:[#allocation3 + $0x2a2] sm:$0xff]
    %v3336 = vld [vmem:[#allocation3 + $0x2aa] sm:$0xff]
    %v3337 = vld [vmem:[#allocation3 + $0x2ba] sm:$0xff]
    %v3338 = vld [vmem:[#allocation3 + $0x2c2] sm:$0xff]
    %v3339 = vld [vmem:[#allocation3 + $0x2d2] sm:$0xff]
    %v3340 = vld [vmem:[#allocation3 + $0x2da] sm:$0xff]
    %v3341 = vld [vmem:[#allocation3 + $0x2ea] sm:$0xff]
    %v3342 = vld [vmem:[#allocation3 + $0x2f2] sm:$0xff]
    %v3343 = vld [vmem:[#allocation3 + $0x302] sm:$0xff]
    %v3344 = vld [vmem:[#allocation3 + $0x30a] sm:$0xff]
    %v3345 = vld [vmem:[#allocation3 + $0x31a] sm:$0xff]
    %v3346 = vld [vmem:[#allocation3 + $0x322] sm:$0xff]
    %v3347 = vld [vmem:[%s459] sm:$0xff]
    %v3348 = vld [vmem:[%s459 + $0x8] sm:$0xff]
    %v3349 = vld [vmem:[%s459 + $0x18] sm:$0xff]
    %v3350 = vld [vmem:[%s459 + $0x20] sm:$0xff]
    %v3351 = vld [vmem:[%s459 + $0x30] sm:$0xff]
    %v3352 = vld [vmem:[%s459 + $0x38] sm:$0xff]
    %v3353 = vld [vmem:[%s459 + $0x48] sm:$0xff]
    %v3354 = vld [vmem:[%s459 + $0x50] sm:$0xff]
    %v3355 = vld [vmem:[%s459 + $0x60] sm:$0xff]
    %v3356 = vld [vmem:[%s459 + $0x68] sm:$0xff]
    %v3357 = vld [vmem:[%s459 + $0x78] sm:$0xff]
    %v3358 = vld [vmem:[%s459 + $0x80] sm:$0xff]
    %v3359 = vld [vmem:[%s459 + $0x90] sm:$0xff]
    %v3360 = vld [vmem:[%s459 + $0x98] sm:$0xff]
    %v3361 = vld [vmem:[%s459 + $0xa8] sm:$0xff]
    %v3362 = vld [vmem:[%s459 + $0xb0] sm:$0xff]
    %v3363 = vld [vmem:[%s459 + $0xc0] sm:$0xff]
    %v3364 = vld [vmem:[%s459 + $0xc8] sm:$0xff]
    %v3365 = vld [vmem:[%s459 + $0xd8] sm:$0xff]
    %v3366 = vld [vmem:[%s459 + $0xe0] sm:$0xff]
    %v3367 = vld [vmem:[%s459 + $0xf0] sm:$0xff]
    %v3368 = vld [vmem:[%s459 + $0xf8] sm:$0xff]
    %v3369 = vld [vmem:[%s459 + $0x108] sm:$0xff]
    %v3370 = vld [vmem:[%s459 + $0x110] sm:$0xff]
    %v3371 = vld [vmem:[%s459 + $0x120] sm:$0xff]
    %v3372 = vld [vmem:[%s459 + $0x128] sm:$0xff]
    %v3373 = vld [vmem:[%s459 + $0x138] sm:$0xff]
    %v3374 = vld [vmem:[%s459 + $0x140] sm:$0xff]
    %v3375 = vld [vmem:[%s459 + $0x150] sm:$0xff]
    %v3376 = vld [vmem:[%s459 + $0x158] sm:$0xff]
    %v3377 = vld [vmem:[%s459 + $0x168] sm:$0xff]
    %v3378 = vld [vmem:[%s459 + $0x170] sm:$0xff]
    %v3379 = vld [vmem:[%s459 + $0x1b0] sm:$0xff]
    %v3380 = vld [vmem:[%s459 + $0x1b8] sm:$0xff]
    %v3381 = vld [vmem:[%s459 + $0x1c8] sm:$0xff]
    %v3382 = vld [vmem:[%s459 + $0x1d0] sm:$0xff]
    %v3383 = vld [vmem:[%s459 + $0x1e0] sm:$0xff]
    %v3384 = vld [vmem:[%s459 + $0x1e8] sm:$0xff]
    %v3385 = vld [vmem:[%s459 + $0x1f8] sm:$0xff]
    %v3386 = vld [vmem:[%s459 + $0x200] sm:$0xff]
    %v3387 = vld [vmem:[%s459 + $0x210] sm:$0xff]
    %v3388 = vld [vmem:[%s459 + $0x218] sm:$0xff]
    %v3389 = vld [vmem:[%s459 + $0x228] sm:$0xff]
    %v3390 = vld [vmem:[%s459 + $0x230] sm:$0xff]
    %v3391 = vld [vmem:[%s459 + $0x240] sm:$0xff]
    %v3392 = vld [vmem:[%s459 + $0x248] sm:$0xff]
    %v3393 = vld [vmem:[%s459 + $0x258] sm:$0xff]
    %v3394 = vld [vmem:[%s459 + $0x260] sm:$0xff]
    %v3395 = vld [vmem:[%s459 + $0x270] sm:$0xff]
    %v3396 = vld [vmem:[%s459 + $0x278] sm:$0xff]
    %v3397 = vld [vmem:[%s459 + $0x288] sm:$0xff]
    %v3398 = vld [vmem:[%s459 + $0x290] sm:$0xff]
    %v3399 = vld [vmem:[%s459 + $0x2a0] sm:$0xff]
    %v3400 = vld [vmem:[%s459 + $0x2a8] sm:$0xff]
    %v3401 = vld [vmem:[%s459 + $0x2b8] sm:$0xff]
    %v3402 = vld [vmem:[%s459 + $0x2c0] sm:$0xff]
    %v3403 = vld [vmem:[%s459 + $0x2d0] sm:$0xff]
    %v3404 = vld [vmem:[%s459 + $0x2d8] sm:$0xff]
    %v3405 = vld [vmem:[%s459 + $0x2e8] sm:$0xff]
    %v3406 = vld [vmem:[%s459 + $0x2f0] sm:$0xff]
    %v3407 = vld [vmem:[%s459 + $0x300] sm:$0xff]
    %v3408 = vld [vmem:[%s459 + $0x308] sm:$0xff]
    %v3409 = vld [vmem:[%s459 + $0x318] sm:$0xff]
    %v3410 = vld [vmem:[%s459 + $0x320] sm:$0xff]
    %v3411 = vld [vmem:[%s459 + $0x1] sm:$0xff]
    %v3412 = vld [vmem:[%s459 + $0x9] sm:$0xff]
    %v3413 = vld [vmem:[%s459 + $0x19] sm:$0xff]
    %v3414 = vld [vmem:[%s459 + $0x21] sm:$0xff]
    %v3415 = vld [vmem:[%s459 + $0x31] sm:$0xff]
    %v3416 = vld [vmem:[%s459 + $0x39] sm:$0xff]
    %v3417 = vld [vmem:[%s459 + $0x49] sm:$0xff]
    %v3418 = vld [vmem:[%s459 + $0x51] sm:$0xff]
    %v3419 = vld [vmem:[%s459 + $0x61] sm:$0xff]
    %v3420 = vld [vmem:[%s459 + $0x69] sm:$0xff]
    %v3421 = vld [vmem:[%s459 + $0x79] sm:$0xff]
    %v3422 = vld [vmem:[%s459 + $0x81] sm:$0xff]
    %v3423 = vld [vmem:[%s459 + $0x91] sm:$0xff]
    %v3424 = vld [vmem:[%s459 + $0x99] sm:$0xff]
    %v3425 = vld [vmem:[%s459 + $0xa9] sm:$0xff]
    %v3426 = vld [vmem:[%s459 + $0xb1] sm:$0xff]
    %v3427 = vld [vmem:[%s459 + $0xc1] sm:$0xff]
    %v3428 = vld [vmem:[%s459 + $0xc9] sm:$0xff]
    %v3429 = vld [vmem:[%s459 + $0xd9] sm:$0xff]
    %v3430 = vld [vmem:[%s459 + $0xe1] sm:$0xff]
    %v3431 = vld [vmem:[%s459 + $0xf1] sm:$0xff]
    %v3432 = vld [vmem:[%s459 + $0xf9] sm:$0xff]
    %v3433 = vld [vmem:[%s459 + $0x109] sm:$0xff]
    %v3434 = vld [vmem:[%s459 + $0x111] sm:$0xff]
    %v3435 = vld [vmem:[%s459 + $0x121] sm:$0xff]
    %v3436 = vld [vmem:[%s459 + $0x129] sm:$0xff]
    %v3437 = vld [vmem:[%s459 + $0x139] sm:$0xff]
    %v3438 = vld [vmem:[%s459 + $0x141] sm:$0xff]
    %v3439 = vld [vmem:[%s459 + $0x151] sm:$0xff]
    %v3440 = vld [vmem:[%s459 + $0x159] sm:$0xff]
    %v3441 = vld [vmem:[%s459 + $0x169] sm:$0xff]
    %v3442 = vld [vmem:[%s459 + $0x171] sm:$0xff]
    %v3443 = vld [vmem:[%s459 + $0x1b1] sm:$0xff]
    %v3444 = vld [vmem:[%s459 + $0x1b9] sm:$0xff]
    %v3445 = vld [vmem:[%s459 + $0x1c9] sm:$0xff]
    %v3446 = vld [vmem:[%s459 + $0x1d1] sm:$0xff]
    %v3447 = vld [vmem:[%s459 + $0x1e1] sm:$0xff]
    %v3448 = vld [vmem:[%s459 + $0x1e9] sm:$0xff]
    %v3449 = vld [vmem:[%s459 + $0x1f9] sm:$0xff]
    %v3450 = vld [vmem:[%s459 + $0x201] sm:$0xff]
    %v3451 = vld [vmem:[%s459 + $0x211] sm:$0xff]
    %v3452 = vld [vmem:[%s459 + $0x219] sm:$0xff]
    %v3453 = vld [vmem:[%s459 + $0x229] sm:$0xff]
    %v3454 = vld [vmem:[%s459 + $0x231] sm:$0xff]
    %v3455 = vld [vmem:[%s459 + $0x241] sm:$0xff]
    %v3456 = vld [vmem:[%s459 + $0x249] sm:$0xff]
    %v3457 = vld [vmem:[%s459 + $0x259] sm:$0xff]
    %v3458 = vld [vmem:[%s459 + $0x261] sm:$0xff]
    %v3459 = vld [vmem:[%s459 + $0x271] sm:$0xff]
    %v3460 = vld [vmem:[%s459 + $0x279] sm:$0xff]
    %v3461 = vld [vmem:[%s459 + $0x289] sm:$0xff]
    %v3462 = vld [vmem:[%s459 + $0x291] sm:$0xff]
    %v3463 = vld [vmem:[%s459 + $0x2a1] sm:$0xff]
    %v3464 = vld [vmem:[%s459 + $0x2a9] sm:$0xff]
    %v3465 = vld [vmem:[%s459 + $0x2b9] sm:$0xff]
    %v3466 = vld [vmem:[%s459 + $0x2c1] sm:$0xff]
    %v3467 = vld [vmem:[%s459 + $0x2d1] sm:$0xff]
    %v3468 = vld [vmem:[%s459 + $0x2d9] sm:$0xff]
    %v3469 = vld [vmem:[%s459 + $0x2e9] sm:$0xff]
    %v3470 = vld [vmem:[%s459 + $0x2f1] sm:$0xff]
    %v3471 = vld [vmem:[%s459 + $0x301] sm:$0xff]
    %v3472 = vld [vmem:[%s459 + $0x309] sm:$0xff]
    %v3473 = vld [vmem:[%s459 + $0x319] sm:$0xff]
    %v3474 = vld [vmem:[%s459 + $0x321] sm:$0xff]
    %v3475 = vld [vmem:[%s459 + $0x2] sm:$0xff]
    %v3476 = vld [vmem:[%s459 + $0xa] sm:$0xff]
    %v3477 = vld [vmem:[%s459 + $0x1a] sm:$0xff]
    %v3478 = vld [vmem:[%s459 + $0x22] sm:$0xff]
    %v3479 = vld [vmem:[%s459 + $0x32] sm:$0xff]
    %v3480 = vld [vmem:[%s459 + $0x3a] sm:$0xff]
    %v3481 = vld [vmem:[%s459 + $0x4a] sm:$0xff]
    %v3482 = vld [vmem:[%s459 + $0x52] sm:$0xff]
    %v3483 = vld [vmem:[%s459 + $0x62] sm:$0xff]
    %v3484 = vld [vmem:[%s459 + $0x6a] sm:$0xff]
    %v3485 = vld [vmem:[%s459 + $0x7a] sm:$0xff]
    %v3486 = vld [vmem:[%s459 + $0x82] sm:$0xff]
    %v3487 = vld [vmem:[%s459 + $0x92] sm:$0xff]
    %v3488 = vld [vmem:[%s459 + $0x9a] sm:$0xff]
    %v3489 = vld [vmem:[%s459 + $0xaa] sm:$0xff]
    %v3490 = vld [vmem:[%s459 + $0xb2] sm:$0xff]
    %v3491 = vld [vmem:[%s459 + $0xc2] sm:$0xff]
    %v3492 = vld [vmem:[%s459 + $0xca] sm:$0xff]
    %v3493 = vld [vmem:[%s459 + $0xda] sm:$0xff]
    %v3494 = vld [vmem:[%s459 + $0xe2] sm:$0xff]
    %v3495 = vld [vmem:[%s459 + $0xf2] sm:$0xff]
    %v3496 = vld [vmem:[%s459 + $0xfa] sm:$0xff]
    %v3497 = vld [vmem:[%s459 + $0x10a] sm:$0xff]
    %v3498 = vld [vmem:[%s459 + $0x112] sm:$0xff]
    %v3499 = vld [vmem:[%s459 + $0x122] sm:$0xff]
    %v3500 = vld [vmem:[%s459 + $0x12a] sm:$0xff]
    %v3501 = vld [vmem:[%s459 + $0x13a] sm:$0xff]
    %v3502 = vld [vmem:[%s459 + $0x142] sm:$0xff]
    %v3503 = vld [vmem:[%s459 + $0x152] sm:$0xff]
    %v3504 = vld [vmem:[%s459 + $0x15a] sm:$0xff]
    %v3505 = vld [vmem:[%s459 + $0x16a] sm:$0xff]
    %v3506 = vld [vmem:[%s459 + $0x172] sm:$0xff]
    %v3507 = vld [vmem:[%s459 + $0x1b2] sm:$0xff]
    %v3508 = vld [vmem:[%s459 + $0x1ba] sm:$0xff]
    %v3509 = vld [vmem:[%s459 + $0x1ca] sm:$0xff]
    %v3510 = vld [vmem:[%s459 + $0x1d2] sm:$0xff]
    %v3511 = vld [vmem:[%s459 + $0x1e2] sm:$0xff]
    %v3512 = vld [vmem:[%s459 + $0x1ea] sm:$0xff]
    %v3513 = vld [vmem:[%s459 + $0x1fa] sm:$0xff]
    %v3514 = vld [vmem:[%s459 + $0x202] sm:$0xff]
    %v3515 = vld [vmem:[%s459 + $0x212] sm:$0xff]
    %v3516 = vld [vmem:[%s459 + $0x21a] sm:$0xff]
    %v3517 = vld [vmem:[%s459 + $0x22a] sm:$0xff]
    %v3518 = vld [vmem:[%s459 + $0x232] sm:$0xff]
    %v3519 = vld [vmem:[%s459 + $0x242] sm:$0xff]
    %v3520 = vld [vmem:[%s459 + $0x24a] sm:$0xff]
    %v3521 = vld [vmem:[%s459 + $0x25a] sm:$0xff]
    %v3522 = vld [vmem:[%s459 + $0x262] sm:$0xff]
    %v3523 = vld [vmem:[%s459 + $0x272] sm:$0xff]
    %v3524 = vld [vmem:[%s459 + $0x27a] sm:$0xff]
    %v3525 = vld [vmem:[%s459 + $0x28a] sm:$0xff]
    %v3526 = vld [vmem:[%s459 + $0x292] sm:$0xff]
    %v3527 = vld [vmem:[%s459 + $0x2a2] sm:$0xff]
    %v3528 = vld [vmem:[%s459 + $0x2aa] sm:$0xff]
    %v3529 = vld [vmem:[%s459 + $0x2ba] sm:$0xff]
    %v3530 = vld [vmem:[%s459 + $0x2c2] sm:$0xff]
    %v3531 = vld [vmem:[%s459 + $0x2d2] sm:$0xff]
    %v3532 = vld [vmem:[%s459 + $0x2da] sm:$0xff]
    %v3533 = vld [vmem:[%s459 + $0x2ea] sm:$0xff]
    %v3534 = vld [vmem:[%s459 + $0x2f2] sm:$0xff]
    %v3535 = vld [vmem:[%s459 + $0x302] sm:$0xff]
    %v3536 = vld [vmem:[%s459 + $0x30a] sm:$0xff]
    %v3537 = vld [vmem:[%s459 + $0x31a] sm:$0xff]
    %v3538 = vld [vmem:[%s459 + $0x322] sm:$0xff]
    %s3539 = scalar_lea.vmem [#allocation3], 48
    %v3540 = vld [vmem:[%s3539] sm:$0xff]
    %v3541 = vld [vmem:[%s3539 + $0x8] sm:$0xff]
    %v3542 = vld [vmem:[%s3539 + $0x18] sm:$0xff]
    %v3543 = vld [vmem:[%s3539 + $0x20] sm:$0xff]
    %v3544 = vld [vmem:[%s3539 + $0x30] sm:$0xff]
    %v3545 = vld [vmem:[%s3539 + $0x38] sm:$0xff]
    %v3546 = vld [vmem:[%s3539 + $0x48] sm:$0xff]
    %v3547 = vld [vmem:[%s3539 + $0x50] sm:$0xff]
    %v3548 = vld [vmem:[%s3539 + $0x60] sm:$0xff]
    %v3549 = vld [vmem:[%s3539 + $0x68] sm:$0xff]
    %v3550 = vld [vmem:[%s3539 + $0x78] sm:$0xff]
    %v3551 = vld [vmem:[%s3539 + $0x80] sm:$0xff]
    %v3552 = vld [vmem:[%s3539 + $0x90] sm:$0xff]
    %v3553 = vld [vmem:[%s3539 + $0x98] sm:$0xff]
    %v3554 = vld [vmem:[%s3539 + $0xa8] sm:$0xff]
    %v3555 = vld [vmem:[%s3539 + $0xb0] sm:$0xff]
    %v3556 = vld [vmem:[%s3539 + $0xc0] sm:$0xff]
    %v3557 = vld [vmem:[%s3539 + $0xc8] sm:$0xff]
    %v3558 = vld [vmem:[%s3539 + $0xd8] sm:$0xff]
    %v3559 = vld [vmem:[%s3539 + $0xe0] sm:$0xff]
    %v3560 = vld [vmem:[%s3539 + $0xf0] sm:$0xff]
    %v3561 = vld [vmem:[%s3539 + $0xf8] sm:$0xff]
    %v3562 = vld [vmem:[%s3539 + $0x108] sm:$0xff]
    %v3563 = vld [vmem:[%s3539 + $0x110] sm:$0xff]
    %v3564 = vld [vmem:[%s3539 + $0x120] sm:$0xff]
    %v3565 = vld [vmem:[%s3539 + $0x128] sm:$0xff]
    %v3566 = vld [vmem:[%s3539 + $0x138] sm:$0xff]
    %v3567 = vld [vmem:[%s3539 + $0x140] sm:$0xff]
    %v3568 = vld [vmem:[%s3539 + $0x150] sm:$0xff]
    %v3569 = vld [vmem:[%s3539 + $0x158] sm:$0xff]
    %v3570 = vld [vmem:[%s3539 + $0x168] sm:$0xff]
    %v3571 = vld [vmem:[%s3539 + $0x170] sm:$0xff]
    %v3572 = vld [vmem:[%s3539 + $0x1b0] sm:$0xff]
    %v3573 = vld [vmem:[%s3539 + $0x1b8] sm:$0xff]
    %v3574 = vld [vmem:[%s3539 + $0x1c8] sm:$0xff]
    %v3575 = vld [vmem:[%s3539 + $0x1d0] sm:$0xff]
    %v3576 = vld [vmem:[%s3539 + $0x1e0] sm:$0xff]
    %v3577 = vld [vmem:[%s3539 + $0x1e8] sm:$0xff]
    %v3578 = vld [vmem:[%s3539 + $0x1f8] sm:$0xff]
    %v3579 = vld [vmem:[%s3539 + $0x200] sm:$0xff]
    %v3580 = vld [vmem:[%s3539 + $0x210] sm:$0xff]
    %v3581 = vld [vmem:[%s3539 + $0x218] sm:$0xff]
    %v3582 = vld [vmem:[%s3539 + $0x228] sm:$0xff]
    %v3583 = vld [vmem:[%s3539 + $0x230] sm:$0xff]
    %v3584 = vld [vmem:[%s3539 + $0x240] sm:$0xff]
    %v3585 = vld [vmem:[%s3539 + $0x248] sm:$0xff]
    %v3586 = vld [vmem:[%s3539 + $0x258] sm:$0xff]
    %v3587 = vld [vmem:[%s3539 + $0x260] sm:$0xff]
    %v3588 = vld [vmem:[%s3539 + $0x270] sm:$0xff]
    %v3589 = vld [vmem:[%s3539 + $0x278] sm:$0xff]
    %v3590 = vld [vmem:[%s3539 + $0x288] sm:$0xff]
    %v3591 = vld [vmem:[%s3539 + $0x290] sm:$0xff]
    %v3592 = vld [vmem:[%s3539 + $0x2a0] sm:$0xff]
    %v3593 = vld [vmem:[%s3539 + $0x2a8] sm:$0xff]
    %v3594 = vld [vmem:[%s3539 + $0x2b8] sm:$0xff]
    %v3595 = vld [vmem:[%s3539 + $0x2c0] sm:$0xff]
    %v3596 = vld [vmem:[%s3539 + $0x2d0] sm:$0xff]
    %v3597 = vld [vmem:[%s3539 + $0x2d8] sm:$0xff]
    %v3598 = vld [vmem:[%s3539 + $0x2e8] sm:$0xff]
    %v3599 = vld [vmem:[%s3539 + $0x2f0] sm:$0xff]
    %v3600 = vld [vmem:[%s3539 + $0x300] sm:$0xff]
    %v3601 = vld [vmem:[%s3539 + $0x308] sm:$0xff]
    %v3602 = vld [vmem:[%s3539 + $0x318] sm:$0xff]
    %v3603 = vld [vmem:[%s3539 + $0x320] sm:$0xff]
    %v3604 = vld [vmem:[%s3539 + $0x1] sm:$0xff]
    %v3605 = vld [vmem:[%s3539 + $0x9] sm:$0xff]
    %v3606 = vld [vmem:[%s3539 + $0x19] sm:$0xff]
    %v3607 = vld [vmem:[%s3539 + $0x21] sm:$0xff]
    %v3608 = vld [vmem:[%s3539 + $0x31] sm:$0xff]
    %v3609 = vld [vmem:[%s3539 + $0x39] sm:$0xff]
    %v3610 = vld [vmem:[%s3539 + $0x49] sm:$0xff]
    %v3611 = vld [vmem:[%s3539 + $0x51] sm:$0xff]
    %v3612 = vld [vmem:[%s3539 + $0x61] sm:$0xff]
    %v3613 = vld [vmem:[%s3539 + $0x69] sm:$0xff]
    %v3614 = vld [vmem:[%s3539 + $0x79] sm:$0xff]
    %v3615 = vld [vmem:[%s3539 + $0x81] sm:$0xff]
    %v3616 = vld [vmem:[%s3539 + $0x91] sm:$0xff]
    %v3617 = vld [vmem:[%s3539 + $0x99] sm:$0xff]
    %v3618 = vld [vmem:[%s3539 + $0xa9] sm:$0xff]
    %v3619 = vld [vmem:[%s3539 + $0xb1] sm:$0xff]
    %v3620 = vld [vmem:[%s3539 + $0xc1] sm:$0xff]
    %v3621 = vld [vmem:[%s3539 + $0xc9] sm:$0xff]
    %v3622 = vld [vmem:[%s3539 + $0xd9] sm:$0xff]
    %v3623 = vld [vmem:[%s3539 + $0xe1] sm:$0xff]
    %v3624 = vld [vmem:[%s3539 + $0xf1] sm:$0xff]
    %v3625 = vld [vmem:[%s3539 + $0xf9] sm:$0xff]
    %v3626 = vld [vmem:[%s3539 + $0x109] sm:$0xff]
    %v3627 = vld [vmem:[%s3539 + $0x111] sm:$0xff]
    %v3628 = vld [vmem:[%s3539 + $0x121] sm:$0xff]
    %v3629 = vld [vmem:[%s3539 + $0x129] sm:$0xff]
    %v3630 = vld [vmem:[%s3539 + $0x139] sm:$0xff]
    %v3631 = vld [vmem:[%s3539 + $0x141] sm:$0xff]
    %v3632 = vld [vmem:[%s3539 + $0x151] sm:$0xff]
    %v3633 = vld [vmem:[%s3539 + $0x159] sm:$0xff]
    %v3634 = vld [vmem:[%s3539 + $0x169] sm:$0xff]
    %v3635 = vld [vmem:[%s3539 + $0x171] sm:$0xff]
    %v3636 = vld [vmem:[%s3539 + $0x1b1] sm:$0xff]
    %v3637 = vld [vmem:[%s3539 + $0x1b9] sm:$0xff]
    %v3638 = vld [vmem:[%s3539 + $0x1c9] sm:$0xff]
    %v3639 = vld [vmem:[%s3539 + $0x1d1] sm:$0xff]
    %v3640 = vld [vmem:[%s3539 + $0x1e1] sm:$0xff]
    %v3641 = vld [vmem:[%s3539 + $0x1e9] sm:$0xff]
    %v3642 = vld [vmem:[%s3539 + $0x1f9] sm:$0xff]
    %v3643 = vld [vmem:[%s3539 + $0x201] sm:$0xff]
    %v3644 = vld [vmem:[%s3539 + $0x211] sm:$0xff]
    %v3645 = vld [vmem:[%s3539 + $0x219] sm:$0xff]
    %v3646 = vld [vmem:[%s3539 + $0x229] sm:$0xff]
    %v3647 = vld [vmem:[%s3539 + $0x231] sm:$0xff]
    %v3648 = vld [vmem:[%s3539 + $0x241] sm:$0xff]
    %v3649 = vld [vmem:[%s3539 + $0x249] sm:$0xff]
    %v3650 = vld [vmem:[%s3539 + $0x259] sm:$0xff]
    %v3651 = vld [vmem:[%s3539 + $0x261] sm:$0xff]
    %v3652 = vld [vmem:[%s3539 + $0x271] sm:$0xff]
    %v3653 = vld [vmem:[%s3539 + $0x279] sm:$0xff]
    %v3654 = vld [vmem:[%s3539 + $0x289] sm:$0xff]
    %v3655 = vld [vmem:[%s3539 + $0x291] sm:$0xff]
    %v3656 = vld [vmem:[%s3539 + $0x2a1] sm:$0xff]
    %v3657 = vld [vmem:[%s3539 + $0x2a9] sm:$0xff]
    %v3658 = vld [vmem:[%s3539 + $0x2b9] sm:$0xff]
    %v3659 = vld [vmem:[%s3539 + $0x2c1] sm:$0xff]
    %v3660 = vld [vmem:[%s3539 + $0x2d1] sm:$0xff]
    %v3661 = vld [vmem:[%s3539 + $0x2d9] sm:$0xff]
    %v3662 = vld [vmem:[%s3539 + $0x2e9] sm:$0xff]
    %v3663 = vld [vmem:[%s3539 + $0x2f1] sm:$0xff]
    %v3664 = vld [vmem:[%s3539 + $0x301] sm:$0xff]
    %v3665 = vld [vmem:[%s3539 + $0x309] sm:$0xff]
    %v3666 = vld [vmem:[%s3539 + $0x319] sm:$0xff]
    %v3667 = vld [vmem:[%s3539 + $0x321] sm:$0xff]
    %v3668 = vld [vmem:[%s3539 + $0x2] sm:$0xff]
    %v3669 = vld [vmem:[%s3539 + $0xa] sm:$0xff]
    %v3670 = vld [vmem:[%s3539 + $0x1a] sm:$0xff]
    %v3671 = vld [vmem:[%s3539 + $0x22] sm:$0xff]
    %v3672 = vld [vmem:[%s3539 + $0x32] sm:$0xff]
    %v3673 = vld [vmem:[%s3539 + $0x3a] sm:$0xff]
    %v3674 = vld [vmem:[%s3539 + $0x4a] sm:$0xff]
    %v3675 = vld [vmem:[%s3539 + $0x52] sm:$0xff]
    %v3676 = vld [vmem:[%s3539 + $0x62] sm:$0xff]
    %v3677 = vld [vmem:[%s3539 + $0x6a] sm:$0xff]
    %v3678 = vld [vmem:[%s3539 + $0x7a] sm:$0xff]
    %v3679 = vld [vmem:[%s3539 + $0x82] sm:$0xff]
    %v3680 = vld [vmem:[%s3539 + $0x92] sm:$0xff]
    %v3681 = vld [vmem:[%s3539 + $0x9a] sm:$0xff]
    %v3682 = vld [vmem:[%s3539 + $0xaa] sm:$0xff]
    %v3683 = vld [vmem:[%s3539 + $0xb2] sm:$0xff]
    %v3684 = vld [vmem:[%s3539 + $0xc2] sm:$0xff]
    %v3685 = vld [vmem:[%s3539 + $0xca] sm:$0xff]
    %v3686 = vld [vmem:[%s3539 + $0xda] sm:$0xff]
    %v3687 = vld [vmem:[%s3539 + $0xe2] sm:$0xff]
    %v3688 = vld [vmem:[%s3539 + $0xf2] sm:$0xff]
    %v3689 = vld [vmem:[%s3539 + $0xfa] sm:$0xff]
    %v3690 = vld [vmem:[%s3539 + $0x10a] sm:$0xff]
    %v3691 = vld [vmem:[%s3539 + $0x112] sm:$0xff]
    %v3692 = vld [vmem:[%s3539 + $0x122] sm:$0xff]
    %v3693 = vld [vmem:[%s3539 + $0x12a] sm:$0xff]
    %v3694 = vld [vmem:[%s3539 + $0x13a] sm:$0xff]
    %v3695 = vld [vmem:[%s3539 + $0x142] sm:$0xff]
    %v3696 = vld [vmem:[%s3539 + $0x152] sm:$0xff]
    %v3697 = vld [vmem:[%s3539 + $0x15a] sm:$0xff]
    %v3698 = vld [vmem:[%s3539 + $0x16a] sm:$0xff]
    %v3699 = vld [vmem:[%s3539 + $0x172] sm:$0xff]
    %v3700 = vld [vmem:[%s3539 + $0x1b2] sm:$0xff]
    %v3701 = vld [vmem:[%s3539 + $0x1ba] sm:$0xff]
    %v3702 = vld [vmem:[%s3539 + $0x1ca] sm:$0xff]
    %v3703 = vld [vmem:[%s3539 + $0x1d2] sm:$0xff]
    %v3704 = vld [vmem:[%s3539 + $0x1e2] sm:$0xff]
    %v3705 = vld [vmem:[%s3539 + $0x1ea] sm:$0xff]
    %v3706 = vld [vmem:[%s3539 + $0x1fa] sm:$0xff]
    %v3707 = vld [vmem:[%s3539 + $0x202] sm:$0xff]
    %v3708 = vld [vmem:[%s3539 + $0x212] sm:$0xff]
    %v3709 = vld [vmem:[%s3539 + $0x21a] sm:$0xff]
    %v3710 = vld [vmem:[%s3539 + $0x22a] sm:$0xff]
    %v3711 = vld [vmem:[%s3539 + $0x232] sm:$0xff]
    %v3712 = vld [vmem:[%s3539 + $0x242] sm:$0xff]
    %v3713 = vld [vmem:[%s3539 + $0x24a] sm:$0xff]
    %v3714 = vld [vmem:[%s3539 + $0x25a] sm:$0xff]
    %v3715 = vld [vmem:[%s3539 + $0x262] sm:$0xff]
    %v3716 = vld [vmem:[%s3539 + $0x272] sm:$0xff]
    %v3717 = vld [vmem:[%s3539 + $0x27a] sm:$0xff]
    %v3718 = vld [vmem:[%s3539 + $0x28a] sm:$0xff]
    %v3719 = vld [vmem:[%s3539 + $0x292] sm:$0xff]
    %v3720 = vld [vmem:[%s3539 + $0x2a2] sm:$0xff]
    %v3721 = vld [vmem:[%s3539 + $0x2aa] sm:$0xff]
    %v3722 = vld [vmem:[%s3539 + $0x2ba] sm:$0xff]
    %v3723 = vld [vmem:[%s3539 + $0x2c2] sm:$0xff]
    %v3724 = vld [vmem:[%s3539 + $0x2d2] sm:$0xff]
    %v3725 = vld [vmem:[%s3539 + $0x2da] sm:$0xff]
    %v3726 = vld [vmem:[%s3539 + $0x2ea] sm:$0xff]
    %v3727 = vld [vmem:[%s3539 + $0x2f2] sm:$0xff]
    %v3728 = vld [vmem:[%s3539 + $0x302] sm:$0xff]
    %v3729 = vld [vmem:[%s3539 + $0x30a] sm:$0xff]
    %v3730 = vld [vmem:[%s3539 + $0x31a] sm:$0xff]
    %v3731 = vld [vmem:[%s3539 + $0x322] sm:$0xff]
    %3796 = vrot.lane.b32.xlu0 %v3219, 32
    %v3797 = vpop.permute.xlu0 %3796
    %3798 = vrot.lane.b32.xlu0 %v3220, 32
    %v3799 = vpop.permute.xlu0 %3798
    %3800 = vrot.lane.b32.xlu0 %v3221, 32
    %v3801 = vpop.permute.xlu0 %3800
    %3802 = vrot.lane.b32.xlu0 %v3222, 32
    %v3803 = vpop.permute.xlu0 %3802
    %3804 = vrot.lane.b32.xlu0 %v3223, 32
    %v3805 = vpop.permute.xlu0 %3804
    %3806 = vrot.lane.b32.xlu0 %v3224, 32
    %v3807 = vpop.permute.xlu0 %3806
    %3808 = vrot.lane.b32.xlu0 %v3225, 32
    %v3809 = vpop.permute.xlu0 %3808
    %3810 = vrot.lane.b32.xlu0 %v3226, 32
    %v3811 = vpop.permute.xlu0 %3810
    %3812 = vrot.lane.b32.xlu0 %v3227, 32
    %v3813 = vpop.permute.xlu0 %3812
    %3814 = vrot.lane.b32.xlu0 %v3228, 32
    %v3815 = vpop.permute.xlu0 %3814
    %3816 = vrot.lane.b32.xlu0 %v3229, 32
    %v3817 = vpop.permute.xlu0 %3816
    %3818 = vrot.lane.b32.xlu0 %v3230, 32
    %v3819 = vpop.permute.xlu0 %3818
    %3820 = vrot.lane.b32.xlu0 %v3231, 32
    %v3821 = vpop.permute.xlu0 %3820
    %3822 = vrot.lane.b32.xlu0 %v3232, 32
    %v3823 = vpop.permute.xlu0 %3822
    %3824 = vrot.lane.b32.xlu0 %v3233, 32
    %v3825 = vpop.permute.xlu0 %3824
    %3826 = vrot.lane.b32.xlu0 %v3234, 32
    %v3827 = vpop.permute.xlu0 %3826
    %3828 = vrot.lane.b32.xlu0 %v3235, 32
    %v3829 = vpop.permute.xlu0 %3828
    %3830 = vrot.lane.b32.xlu0 %v3236, 32
    %v3831 = vpop.permute.xlu0 %3830
    %3832 = vrot.lane.b32.xlu0 %v3237, 32
    %v3833 = vpop.permute.xlu0 %3832
    %3834 = vrot.lane.b32.xlu0 %v3238, 32
    %v3835 = vpop.permute.xlu0 %3834
    %3836 = vrot.lane.b32.xlu0 %v3239, 32
    %v3837 = vpop.permute.xlu0 %3836
    %3838 = vrot.lane.b32.xlu0 %v3240, 32
    %v3839 = vpop.permute.xlu0 %3838
    %3840 = vrot.lane.b32.xlu0 %v3241, 32
    %v3841 = vpop.permute.xlu0 %3840
    %3842 = vrot.lane.b32.xlu0 %v3242, 32
    %v3843 = vpop.permute.xlu0 %3842
    %3844 = vrot.lane.b32.xlu0 %v3243, 32
    %v3845 = vpop.permute.xlu0 %3844
    %3846 = vrot.lane.b32.xlu0 %v3244, 32
    %v3847 = vpop.permute.xlu0 %3846
    %3848 = vrot.lane.b32.xlu0 %v3245, 32
    %v3849 = vpop.permute.xlu0 %3848
    %3850 = vrot.lane.b32.xlu0 %v3246, 32
    %v3851 = vpop.permute.xlu0 %3850
    %3852 = vrot.lane.b32.xlu0 %v3247, 32
    %v3853 = vpop.permute.xlu0 %3852
    %3854 = vrot.lane.b32.xlu0 %v3248, 32
    %v3855 = vpop.permute.xlu0 %3854
    %3856 = vrot.lane.b32.xlu0 %v3249, 32
    %v3857 = vpop.permute.xlu0 %3856
    %3858 = vrot.lane.b32.xlu0 %v3250, 32
    %v3859 = vpop.permute.xlu0 %3858
    %3860 = vrot.lane.b32.xlu0 %v3251, 32
    %v3861 = vpop.permute.xlu0 %3860
    %3862 = vrot.lane.b32.xlu0 %v3252, 32
    %v3863 = vpop.permute.xlu0 %3862
    %3864 = vrot.lane.b32.xlu0 %v3253, 32
    %v3865 = vpop.permute.xlu0 %3864
    %3866 = vrot.lane.b32.xlu0 %v3254, 32
    %v3867 = vpop.permute.xlu0 %3866
    %3868 = vrot.lane.b32.xlu0 %v3255, 32
    %v3869 = vpop.permute.xlu0 %3868
    %3870 = vrot.lane.b32.xlu0 %v3256, 32
    %v3871 = vpop.permute.xlu0 %3870
    %3872 = vrot.lane.b32.xlu0 %v3257, 32
    %v3873 = vpop.permute.xlu0 %3872
    %3874 = vrot.lane.b32.xlu0 %v3258, 32
    %v3875 = vpop.permute.xlu0 %3874
    %3876 = vrot.lane.b32.xlu0 %v3259, 32
    %v3877 = vpop.permute.xlu0 %3876
    %3878 = vrot.lane.b32.xlu0 %v3260, 32
    %v3879 = vpop.permute.xlu0 %3878
    %3880 = vrot.lane.b32.xlu0 %v3261, 32
    %v3881 = vpop.permute.xlu0 %3880
    %3882 = vrot.lane.b32.xlu0 %v3262, 32
    %v3883 = vpop.permute.xlu0 %3882
    %3884 = vrot.lane.b32.xlu0 %v3263, 32
    %v3885 = vpop.permute.xlu0 %3884
    %3886 = vrot.lane.b32.xlu0 %v3264, 32
    %v3887 = vpop.permute.xlu0 %3886
    %3888 = vrot.lane.b32.xlu0 %v3265, 32
    %v3889 = vpop.permute.xlu0 %3888
    %3890 = vrot.lane.b32.xlu0 %v3266, 32
    %v3891 = vpop.permute.xlu0 %3890
    %3892 = vrot.lane.b32.xlu0 %v3267, 32
    %v3893 = vpop.permute.xlu0 %3892
    %3894 = vrot.lane.b32.xlu0 %v3268, 32
    %v3895 = vpop.permute.xlu0 %3894
    %3896 = vrot.lane.b32.xlu0 %v3269, 32
    %v3897 = vpop.permute.xlu0 %3896
    %3898 = vrot.lane.b32.xlu0 %v3270, 32
    %v3899 = vpop.permute.xlu0 %3898
    %3900 = vrot.lane.b32.xlu0 %v3271, 32
    %v3901 = vpop.permute.xlu0 %3900
    %3902 = vrot.lane.b32.xlu0 %v3272, 32
    %v3903 = vpop.permute.xlu0 %3902
    %3904 = vrot.lane.b32.xlu0 %v3273, 32
    %v3905 = vpop.permute.xlu0 %3904
    %3906 = vrot.lane.b32.xlu0 %v3274, 32
    %v3907 = vpop.permute.xlu0 %3906
    %3908 = vrot.lane.b32.xlu0 %v3275, 32
    %v3909 = vpop.permute.xlu0 %3908
    %3910 = vrot.lane.b32.xlu0 %v3276, 32
    %v3911 = vpop.permute.xlu0 %3910
    %3912 = vrot.lane.b32.xlu0 %v3277, 32
    %v3913 = vpop.permute.xlu0 %3912
    %3914 = vrot.lane.b32.xlu0 %v3278, 32
    %v3915 = vpop.permute.xlu0 %3914
    %3916 = vrot.lane.b32.xlu0 %v3279, 32
    %v3917 = vpop.permute.xlu0 %3916
    %3918 = vrot.lane.b32.xlu0 %v3280, 32
    %v3919 = vpop.permute.xlu0 %3918
    %3920 = vrot.lane.b32.xlu0 %v3281, 32
    %v3921 = vpop.permute.xlu0 %3920
    %3922 = vrot.lane.b32.xlu0 %v3282, 32
    %v3923 = vpop.permute.xlu0 %3922
    %4052 = vrot.lane.b32.xlu0 %v3283, 64
    %v4053 = vpop.permute.xlu0 %4052
    %4054 = vrot.lane.b32.xlu0 %v3284, 64
    %v4055 = vpop.permute.xlu0 %4054
    %4056 = vrot.lane.b32.xlu0 %v3285, 64
    %v4057 = vpop.permute.xlu0 %4056
    %4058 = vrot.lane.b32.xlu0 %v3286, 64
    %v4059 = vpop.permute.xlu0 %4058
    %4060 = vrot.lane.b32.xlu0 %v3287, 64
    %v4061 = vpop.permute.xlu0 %4060
    %4062 = vrot.lane.b32.xlu0 %v3288, 64
    %v4063 = vpop.permute.xlu0 %4062
    %4064 = vrot.lane.b32.xlu0 %v3289, 64
    %v4065 = vpop.permute.xlu0 %4064
    %4066 = vrot.lane.b32.xlu0 %v3290, 64
    %v4067 = vpop.permute.xlu0 %4066
    %4068 = vrot.lane.b32.xlu0 %v3291, 64
    %v4069 = vpop.permute.xlu0 %4068
    %4070 = vrot.lane.b32.xlu0 %v3292, 64
    %v4071 = vpop.permute.xlu0 %4070
    %4072 = vrot.lane.b32.xlu0 %v3293, 64
    %v4073 = vpop.permute.xlu0 %4072
    %4074 = vrot.lane.b32.xlu0 %v3294, 64
    %v4075 = vpop.permute.xlu0 %4074
    %4076 = vrot.lane.b32.xlu0 %v3295, 64
    %v4077 = vpop.permute.xlu0 %4076
    %4078 = vrot.lane.b32.xlu0 %v3296, 64
    %v4079 = vpop.permute.xlu0 %4078
    %4080 = vrot.lane.b32.xlu0 %v3297, 64
    %v4081 = vpop.permute.xlu0 %4080
    %4082 = vrot.lane.b32.xlu0 %v3298, 64
    %v4083 = vpop.permute.xlu0 %4082
    %4084 = vrot.lane.b32.xlu0 %v3299, 64
    %v4085 = vpop.permute.xlu0 %4084
    %4086 = vrot.lane.b32.xlu0 %v3300, 64
    %v4087 = vpop.permute.xlu0 %4086
    %4088 = vrot.lane.b32.xlu0 %v3301, 64
    %v4089 = vpop.permute.xlu0 %4088
    %4090 = vrot.lane.b32.xlu0 %v3302, 64
    %v4091 = vpop.permute.xlu0 %4090
    %4092 = vrot.lane.b32.xlu0 %v3303, 64
    %v4093 = vpop.permute.xlu0 %4092
    %4094 = vrot.lane.b32.xlu0 %v3304, 64
    %v4095 = vpop.permute.xlu0 %4094
    %4096 = vrot.lane.b32.xlu0 %v3305, 64
    %v4097 = vpop.permute.xlu0 %4096
    %4098 = vrot.lane.b32.xlu0 %v3306, 64
    %v4099 = vpop.permute.xlu0 %4098
    %4100 = vrot.lane.b32.xlu0 %v3307, 64
    %v4101 = vpop.permute.xlu0 %4100
    %4102 = vrot.lane.b32.xlu0 %v3308, 64
    %v4103 = vpop.permute.xlu0 %4102
    %4104 = vrot.lane.b32.xlu0 %v3309, 64
    %v4105 = vpop.permute.xlu0 %4104
    %4106 = vrot.lane.b32.xlu0 %v3310, 64
    %v4107 = vpop.permute.xlu0 %4106
    %4108 = vrot.lane.b32.xlu0 %v3311, 64
    %v4109 = vpop.permute.xlu0 %4108
    %4110 = vrot.lane.b32.xlu0 %v3312, 64
    %v4111 = vpop.permute.xlu0 %4110
    %4112 = vrot.lane.b32.xlu0 %v3313, 64
    %v4113 = vpop.permute.xlu0 %4112
    %4114 = vrot.lane.b32.xlu0 %v3314, 64
    %v4115 = vpop.permute.xlu0 %4114
    %4116 = vrot.lane.b32.xlu0 %v3315, 64
    %v4117 = vpop.permute.xlu0 %4116
    %4118 = vrot.lane.b32.xlu0 %v3316, 64
    %v4119 = vpop.permute.xlu0 %4118
    %4120 = vrot.lane.b32.xlu0 %v3317, 64
    %v4121 = vpop.permute.xlu0 %4120
    %4122 = vrot.lane.b32.xlu0 %v3318, 64
    %v4123 = vpop.permute.xlu0 %4122
    %4124 = vrot.lane.b32.xlu0 %v3319, 64
    %v4125 = vpop.permute.xlu0 %4124
    %4126 = vrot.lane.b32.xlu0 %v3320, 64
    %v4127 = vpop.permute.xlu0 %4126
    %4128 = vrot.lane.b32.xlu0 %v3321, 64
    %v4129 = vpop.permute.xlu0 %4128
    %4130 = vrot.lane.b32.xlu0 %v3322, 64
    %v4131 = vpop.permute.xlu0 %4130
    %4132 = vrot.lane.b32.xlu0 %v3323, 64
    %v4133 = vpop.permute.xlu0 %4132
    %4134 = vrot.lane.b32.xlu0 %v3324, 64
    %v4135 = vpop.permute.xlu0 %4134
    %4136 = vrot.lane.b32.xlu0 %v3325, 64
    %v4137 = vpop.permute.xlu0 %4136
    %4138 = vrot.lane.b32.xlu0 %v3326, 64
    %v4139 = vpop.permute.xlu0 %4138
    %4140 = vrot.lane.b32.xlu0 %v3327, 64
    %v4141 = vpop.permute.xlu0 %4140
    %4142 = vrot.lane.b32.xlu0 %v3328, 64
    %v4143 = vpop.permute.xlu0 %4142
    %4144 = vrot.lane.b32.xlu0 %v3329, 64
    %v4145 = vpop.permute.xlu0 %4144
    %4146 = vrot.lane.b32.xlu0 %v3330, 64
    %v4147 = vpop.permute.xlu0 %4146
    %4148 = vrot.lane.b32.xlu0 %v3331, 64
    %v4149 = vpop.permute.xlu0 %4148
    %4150 = vrot.lane.b32.xlu0 %v3332, 64
    %v4151 = vpop.permute.xlu0 %4150
    %4152 = vrot.lane.b32.xlu0 %v3333, 64
    %v4153 = vpop.permute.xlu0 %4152
    %4154 = vrot.lane.b32.xlu0 %v3334, 64
    %v4155 = vpop.permute.xlu0 %4154
    %4156 = vrot.lane.b32.xlu0 %v3335, 64
    %v4157 = vpop.permute.xlu0 %4156
    %4158 = vrot.lane.b32.xlu0 %v3336, 64
    %v4159 = vpop.permute.xlu0 %4158
    %4160 = vrot.lane.b32.xlu0 %v3337, 64
    %v4161 = vpop.permute.xlu0 %4160
    %4162 = vrot.lane.b32.xlu0 %v3338, 64
    %v4163 = vpop.permute.xlu0 %4162
    %4164 = vrot.lane.b32.xlu0 %v3339, 64
    %v4165 = vpop.permute.xlu0 %4164
    %4166 = vrot.lane.b32.xlu0 %v3340, 64
    %v4167 = vpop.permute.xlu0 %4166
    %4168 = vrot.lane.b32.xlu0 %v3341, 64
    %v4169 = vpop.permute.xlu0 %4168
    %4170 = vrot.lane.b32.xlu0 %v3342, 64
    %v4171 = vpop.permute.xlu0 %4170
    %4172 = vrot.lane.b32.xlu0 %v3343, 64
    %v4173 = vpop.permute.xlu0 %4172
    %4174 = vrot.lane.b32.xlu0 %v3344, 64
    %v4175 = vpop.permute.xlu0 %4174
    %4176 = vrot.lane.b32.xlu0 %v3345, 64
    %v4177 = vpop.permute.xlu0 %4176
    %4178 = vrot.lane.b32.xlu0 %v3346, 64
    %v4179 = vpop.permute.xlu0 %4178
    %4308 = vrot.lane.b32.xlu0 %v3347, 96
    %v4309 = vpop.permute.xlu0 %4308
    %4310 = vrot.lane.b32.xlu0 %v3348, 96
    %v4311 = vpop.permute.xlu0 %4310
    %4312 = vrot.lane.b32.xlu0 %v3349, 96
    %v4313 = vpop.permute.xlu0 %4312
    %4314 = vrot.lane.b32.xlu0 %v3350, 96
    %v4315 = vpop.permute.xlu0 %4314
    %4316 = vrot.lane.b32.xlu0 %v3351, 96
    %v4317 = vpop.permute.xlu0 %4316
    %4318 = vrot.lane.b32.xlu0 %v3352, 96
    %v4319 = vpop.permute.xlu0 %4318
    %4320 = vrot.lane.b32.xlu0 %v3353, 96
    %v4321 = vpop.permute.xlu0 %4320
    %4322 = vrot.lane.b32.xlu0 %v3354, 96
    %v4323 = vpop.permute.xlu0 %4322
    %4324 = vrot.lane.b32.xlu0 %v3355, 96
    %v4325 = vpop.permute.xlu0 %4324
    %4326 = vrot.lane.b32.xlu0 %v3356, 96
    %v4327 = vpop.permute.xlu0 %4326
    %4328 = vrot.lane.b32.xlu0 %v3357, 96
    %v4329 = vpop.permute.xlu0 %4328
    %4330 = vrot.lane.b32.xlu0 %v3358, 96
    %v4331 = vpop.permute.xlu0 %4330
    %4332 = vrot.lane.b32.xlu0 %v3359, 96
    %v4333 = vpop.permute.xlu0 %4332
    %4334 = vrot.lane.b32.xlu0 %v3360, 96
    %v4335 = vpop.permute.xlu0 %4334
    %4336 = vrot.lane.b32.xlu0 %v3361, 96
    %v4337 = vpop.permute.xlu0 %4336
    %4338 = vrot.lane.b32.xlu0 %v3362, 96
    %v4339 = vpop.permute.xlu0 %4338
    %4340 = vrot.lane.b32.xlu0 %v3363, 96
    %v4341 = vpop.permute.xlu0 %4340
    %4342 = vrot.lane.b32.xlu0 %v3364, 96
    %v4343 = vpop.permute.xlu0 %4342
    %4344 = vrot.lane.b32.xlu0 %v3365, 96
    %v4345 = vpop.permute.xlu0 %4344
    %4346 = vrot.lane.b32.xlu0 %v3366, 96
    %v4347 = vpop.permute.xlu0 %4346
    %4348 = vrot.lane.b32.xlu0 %v3367, 96
    %v4349 = vpop.permute.xlu0 %4348
    %4350 = vrot.lane.b32.xlu0 %v3368, 96
    %v4351 = vpop.permute.xlu0 %4350
    %4352 = vrot.lane.b32.xlu0 %v3369, 96
    %v4353 = vpop.permute.xlu0 %4352
    %4354 = vrot.lane.b32.xlu0 %v3370, 96
    %v4355 = vpop.permute.xlu0 %4354
    %4356 = vrot.lane.b32.xlu0 %v3371, 96
    %v4357 = vpop.permute.xlu0 %4356
    %4358 = vrot.lane.b32.xlu0 %v3372, 96
    %v4359 = vpop.permute.xlu0 %4358
    %4360 = vrot.lane.b32.xlu0 %v3373, 96
    %v4361 = vpop.permute.xlu0 %4360
    %4362 = vrot.lane.b32.xlu0 %v3374, 96
    %v4363 = vpop.permute.xlu0 %4362
    %4364 = vrot.lane.b32.xlu0 %v3375, 96
    %v4365 = vpop.permute.xlu0 %4364
    %4366 = vrot.lane.b32.xlu0 %v3376, 96
    %v4367 = vpop.permute.xlu0 %4366
    %4368 = vrot.lane.b32.xlu0 %v3377, 96
    %v4369 = vpop.permute.xlu0 %4368
    %4370 = vrot.lane.b32.xlu0 %v3378, 96
    %v4371 = vpop.permute.xlu0 %4370
    %4372 = vrot.lane.b32.xlu0 %v3379, 96
    %v4373 = vpop.permute.xlu0 %4372
    %4374 = vrot.lane.b32.xlu0 %v3380, 96
    %v4375 = vpop.permute.xlu0 %4374
    %4376 = vrot.lane.b32.xlu0 %v3381, 96
    %v4377 = vpop.permute.xlu0 %4376
    %4378 = vrot.lane.b32.xlu0 %v3382, 96
    %v4379 = vpop.permute.xlu0 %4378
    %4380 = vrot.lane.b32.xlu0 %v3383, 96
    %v4381 = vpop.permute.xlu0 %4380
    %4382 = vrot.lane.b32.xlu0 %v3384, 96
    %v4383 = vpop.permute.xlu0 %4382
    %4384 = vrot.lane.b32.xlu0 %v3385, 96
    %v4385 = vpop.permute.xlu0 %4384
    %4386 = vrot.lane.b32.xlu0 %v3386, 96
    %v4387 = vpop.permute.xlu0 %4386
    %4388 = vrot.lane.b32.xlu0 %v3387, 96
    %v4389 = vpop.permute.xlu0 %4388
    %4390 = vrot.lane.b32.xlu0 %v3388, 96
    %v4391 = vpop.permute.xlu0 %4390
    %4392 = vrot.lane.b32.xlu0 %v3389, 96
    %v4393 = vpop.permute.xlu0 %4392
    %4394 = vrot.lane.b32.xlu0 %v3390, 96
    %v4395 = vpop.permute.xlu0 %4394
    %4396 = vrot.lane.b32.xlu0 %v3391, 96
    %v4397 = vpop.permute.xlu0 %4396
    %4398 = vrot.lane.b32.xlu0 %v3392, 96
    %v4399 = vpop.permute.xlu0 %4398
    %4400 = vrot.lane.b32.xlu0 %v3393, 96
    %v4401 = vpop.permute.xlu0 %4400
    %4402 = vrot.lane.b32.xlu0 %v3394, 96
    %v4403 = vpop.permute.xlu0 %4402
    %4404 = vrot.lane.b32.xlu0 %v3395, 96
    %v4405 = vpop.permute.xlu0 %4404
    %4406 = vrot.lane.b32.xlu0 %v3396, 96
    %v4407 = vpop.permute.xlu0 %4406
    %4408 = vrot.lane.b32.xlu0 %v3397, 96
    %v4409 = vpop.permute.xlu0 %4408
    %4410 = vrot.lane.b32.xlu0 %v3398, 96
    %v4411 = vpop.permute.xlu0 %4410
    %4412 = vrot.lane.b32.xlu0 %v3399, 96
    %v4413 = vpop.permute.xlu0 %4412
    %4414 = vrot.lane.b32.xlu0 %v3400, 96
    %v4415 = vpop.permute.xlu0 %4414
    %4416 = vrot.lane.b32.xlu0 %v3401, 96
    %v4417 = vpop.permute.xlu0 %4416
    %4418 = vrot.lane.b32.xlu0 %v3402, 96
    %v4419 = vpop.permute.xlu0 %4418
    %4420 = vrot.lane.b32.xlu0 %v3403, 96
    %v4421 = vpop.permute.xlu0 %4420
    %4422 = vrot.lane.b32.xlu0 %v3404, 96
    %v4423 = vpop.permute.xlu0 %4422
    %4424 = vrot.lane.b32.xlu0 %v3405, 96
    %v4425 = vpop.permute.xlu0 %4424
    %4426 = vrot.lane.b32.xlu0 %v3406, 96
    %v4427 = vpop.permute.xlu0 %4426
    %4428 = vrot.lane.b32.xlu0 %v3407, 96
    %v4429 = vpop.permute.xlu0 %4428
    %4430 = vrot.lane.b32.xlu0 %v3408, 96
    %v4431 = vpop.permute.xlu0 %4430
    %4432 = vrot.lane.b32.xlu0 %v3409, 96
    %v4433 = vpop.permute.xlu0 %4432
    %4434 = vrot.lane.b32.xlu0 %v3410, 96
    %v4435 = vpop.permute.xlu0 %4434
    %4564 = vrot.lane.b32.xlu0 %v3475, 32
    %v4565 = vpop.permute.xlu0 %4564
    %4566 = vrot.lane.b32.xlu0 %v3476, 32
    %v4567 = vpop.permute.xlu0 %4566
    %4568 = vrot.lane.b32.xlu0 %v3477, 32
    %v4569 = vpop.permute.xlu0 %4568
    %4570 = vrot.lane.b32.xlu0 %v3478, 32
    %v4571 = vpop.permute.xlu0 %4570
    %4572 = vrot.lane.b32.xlu0 %v3479, 32
    %v4573 = vpop.permute.xlu0 %4572
    %4574 = vrot.lane.b32.xlu0 %v3480, 32
    %v4575 = vpop.permute.xlu0 %4574
    %4576 = vrot.lane.b32.xlu0 %v3481, 32
    %v4577 = vpop.permute.xlu0 %4576
    %4578 = vrot.lane.b32.xlu0 %v3482, 32
    %v4579 = vpop.permute.xlu0 %4578
    %4580 = vrot.lane.b32.xlu0 %v3483, 32
    %v4581 = vpop.permute.xlu0 %4580
    %4582 = vrot.lane.b32.xlu0 %v3484, 32
    %v4583 = vpop.permute.xlu0 %4582
    %4584 = vrot.lane.b32.xlu0 %v3485, 32
    %v4585 = vpop.permute.xlu0 %4584
    %4586 = vrot.lane.b32.xlu0 %v3486, 32
    %v4587 = vpop.permute.xlu0 %4586
    %4588 = vrot.lane.b32.xlu0 %v3487, 32
    %v4589 = vpop.permute.xlu0 %4588
    %4590 = vrot.lane.b32.xlu0 %v3488, 32
    %v4591 = vpop.permute.xlu0 %4590
    %4592 = vrot.lane.b32.xlu0 %v3489, 32
    %v4593 = vpop.permute.xlu0 %4592
    %4594 = vrot.lane.b32.xlu0 %v3490, 32
    %v4595 = vpop.permute.xlu0 %4594
    %4596 = vrot.lane.b32.xlu0 %v3491, 32
    %v4597 = vpop.permute.xlu0 %4596
    %4598 = vrot.lane.b32.xlu0 %v3492, 32
    %v4599 = vpop.permute.xlu0 %4598
    %4600 = vrot.lane.b32.xlu0 %v3493, 32
    %v4601 = vpop.permute.xlu0 %4600
    %4602 = vrot.lane.b32.xlu0 %v3494, 32
    %v4603 = vpop.permute.xlu0 %4602
    %4604 = vrot.lane.b32.xlu0 %v3495, 32
    %v4605 = vpop.permute.xlu0 %4604
    %4606 = vrot.lane.b32.xlu0 %v3496, 32
    %v4607 = vpop.permute.xlu0 %4606
    %4608 = vrot.lane.b32.xlu0 %v3497, 32
    %v4609 = vpop.permute.xlu0 %4608
    %4610 = vrot.lane.b32.xlu0 %v3498, 32
    %v4611 = vpop.permute.xlu0 %4610
    %4612 = vrot.lane.b32.xlu0 %v3499, 32
    %v4613 = vpop.permute.xlu0 %4612
    %4614 = vrot.lane.b32.xlu0 %v3500, 32
    %v4615 = vpop.permute.xlu0 %4614
    %4616 = vrot.lane.b32.xlu0 %v3501, 32
    %v4617 = vpop.permute.xlu0 %4616
    %4618 = vrot.lane.b32.xlu0 %v3502, 32
    %v4619 = vpop.permute.xlu0 %4618
    %4620 = vrot.lane.b32.xlu0 %v3503, 32
    %v4621 = vpop.permute.xlu0 %4620
    %4622 = vrot.lane.b32.xlu0 %v3504, 32
    %v4623 = vpop.permute.xlu0 %4622
    %4624 = vrot.lane.b32.xlu0 %v3505, 32
    %v4625 = vpop.permute.xlu0 %4624
    %4626 = vrot.lane.b32.xlu0 %v3506, 32
    %v4627 = vpop.permute.xlu0 %4626
    %4628 = vrot.lane.b32.xlu0 %v3507, 32
    %v4629 = vpop.permute.xlu0 %4628
    %4630 = vrot.lane.b32.xlu0 %v3508, 32
    %v4631 = vpop.permute.xlu0 %4630
    %4632 = vrot.lane.b32.xlu0 %v3509, 32
    %v4633 = vpop.permute.xlu0 %4632
    %4634 = vrot.lane.b32.xlu0 %v3510, 32
    %v4635 = vpop.permute.xlu0 %4634
    %4636 = vrot.lane.b32.xlu0 %v3511, 32
    %v4637 = vpop.permute.xlu0 %4636
    %4638 = vrot.lane.b32.xlu0 %v3512, 32
    %v4639 = vpop.permute.xlu0 %4638
    %4640 = vrot.lane.b32.xlu0 %v3513, 32
    %v4641 = vpop.permute.xlu0 %4640
    %4642 = vrot.lane.b32.xlu0 %v3514, 32
    %v4643 = vpop.permute.xlu0 %4642
    %4644 = vrot.lane.b32.xlu0 %v3515, 32
    %v4645 = vpop.permute.xlu0 %4644
    %4646 = vrot.lane.b32.xlu0 %v3516, 32
    %v4647 = vpop.permute.xlu0 %4646
    %4648 = vrot.lane.b32.xlu0 %v3517, 32
    %v4649 = vpop.permute.xlu0 %4648
    %4650 = vrot.lane.b32.xlu0 %v3518, 32
    %v4651 = vpop.permute.xlu0 %4650
    %4652 = vrot.lane.b32.xlu0 %v3519, 32
    %v4653 = vpop.permute.xlu0 %4652
    %4654 = vrot.lane.b32.xlu0 %v3520, 32
    %v4655 = vpop.permute.xlu0 %4654
    %4656 = vrot.lane.b32.xlu0 %v3521, 32
    %v4657 = vpop.permute.xlu0 %4656
    %4658 = vrot.lane.b32.xlu0 %v3522, 32
    %v4659 = vpop.permute.xlu0 %4658
    %4660 = vrot.lane.b32.xlu0 %v3523, 32
    %v4661 = vpop.permute.xlu0 %4660
    %4662 = vrot.lane.b32.xlu0 %v3524, 32
    %v4663 = vpop.permute.xlu0 %4662
    %4664 = vrot.lane.b32.xlu0 %v3525, 32
    %v4665 = vpop.permute.xlu0 %4664
    %4666 = vrot.lane.b32.xlu0 %v3526, 32
    %v4667 = vpop.permute.xlu0 %4666
    %4668 = vrot.lane.b32.xlu0 %v3527, 32
    %v4669 = vpop.permute.xlu0 %4668
    %4670 = vrot.lane.b32.xlu0 %v3528, 32
    %v4671 = vpop.permute.xlu0 %4670
    %4672 = vrot.lane.b32.xlu0 %v3529, 32
    %v4673 = vpop.permute.xlu0 %4672
    %4674 = vrot.lane.b32.xlu0 %v3530, 32
    %v4675 = vpop.permute.xlu0 %4674
    %4676 = vrot.lane.b32.xlu0 %v3531, 32
    %v4677 = vpop.permute.xlu0 %4676
    %4678 = vrot.lane.b32.xlu0 %v3532, 32
    %v4679 = vpop.permute.xlu0 %4678
    %4680 = vrot.lane.b32.xlu0 %v3533, 32
    %v4681 = vpop.permute.xlu0 %4680
    %4682 = vrot.lane.b32.xlu0 %v3534, 32
    %v4683 = vpop.permute.xlu0 %4682
    %4684 = vrot.lane.b32.xlu0 %v3535, 32
    %v4685 = vpop.permute.xlu0 %4684
    %4686 = vrot.lane.b32.xlu0 %v3536, 32
    %v4687 = vpop.permute.xlu0 %4686
    %4688 = vrot.lane.b32.xlu0 %v3537, 32
    %v4689 = vpop.permute.xlu0 %4688
    %4690 = vrot.lane.b32.xlu0 %v3538, 32
    %v4691 = vpop.permute.xlu0 %4690
    %4820 = vrot.lane.b32.xlu0 %v3540, 64
    %v4821 = vpop.permute.xlu0 %4820
    %4822 = vrot.lane.b32.xlu0 %v3541, 64
    %v4823 = vpop.permute.xlu0 %4822
    %4824 = vrot.lane.b32.xlu0 %v3542, 64
    %v4825 = vpop.permute.xlu0 %4824
    %4826 = vrot.lane.b32.xlu0 %v3543, 64
    %v4827 = vpop.permute.xlu0 %4826
    %4828 = vrot.lane.b32.xlu0 %v3544, 64
    %v4829 = vpop.permute.xlu0 %4828
    %4830 = vrot.lane.b32.xlu0 %v3545, 64
    %v4831 = vpop.permute.xlu0 %4830
    %4832 = vrot.lane.b32.xlu0 %v3546, 64
    %v4833 = vpop.permute.xlu0 %4832
    %4834 = vrot.lane.b32.xlu0 %v3547, 64
    %v4835 = vpop.permute.xlu0 %4834
    %4836 = vrot.lane.b32.xlu0 %v3548, 64
    %v4837 = vpop.permute.xlu0 %4836
    %4838 = vrot.lane.b32.xlu0 %v3549, 64
    %v4839 = vpop.permute.xlu0 %4838
    %4840 = vrot.lane.b32.xlu0 %v3550, 64
    %v4841 = vpop.permute.xlu0 %4840
    %4842 = vrot.lane.b32.xlu0 %v3551, 64
    %v4843 = vpop.permute.xlu0 %4842
    %4844 = vrot.lane.b32.xlu0 %v3552, 64
    %v4845 = vpop.permute.xlu0 %4844
    %4846 = vrot.lane.b32.xlu0 %v3553, 64
    %v4847 = vpop.permute.xlu0 %4846
    %4848 = vrot.lane.b32.xlu0 %v3554, 64
    %v4849 = vpop.permute.xlu0 %4848
    %4850 = vrot.lane.b32.xlu0 %v3555, 64
    %v4851 = vpop.permute.xlu0 %4850
    %4852 = vrot.lane.b32.xlu0 %v3556, 64
    %v4853 = vpop.permute.xlu0 %4852
    %4854 = vrot.lane.b32.xlu0 %v3557, 64
    %v4855 = vpop.permute.xlu0 %4854
    %4856 = vrot.lane.b32.xlu0 %v3558, 64
    %v4857 = vpop.permute.xlu0 %4856
    %4858 = vrot.lane.b32.xlu0 %v3559, 64
    %v4859 = vpop.permute.xlu0 %4858
    %4860 = vrot.lane.b32.xlu0 %v3560, 64
    %v4861 = vpop.permute.xlu0 %4860
    %4862 = vrot.lane.b32.xlu0 %v3561, 64
    %v4863 = vpop.permute.xlu0 %4862
    %4864 = vrot.lane.b32.xlu0 %v3562, 64
    %v4865 = vpop.permute.xlu0 %4864
    %4866 = vrot.lane.b32.xlu0 %v3563, 64
    %v4867 = vpop.permute.xlu0 %4866
    %4868 = vrot.lane.b32.xlu0 %v3564, 64
    %v4869 = vpop.permute.xlu0 %4868
    %4870 = vrot.lane.b32.xlu0 %v3565, 64
    %v4871 = vpop.permute.xlu0 %4870
    %4872 = vrot.lane.b32.xlu0 %v3566, 64
    %v4873 = vpop.permute.xlu0 %4872
    %4874 = vrot.lane.b32.xlu0 %v3567, 64
    %v4875 = vpop.permute.xlu0 %4874
    %4876 = vrot.lane.b32.xlu0 %v3568, 64
    %v4877 = vpop.permute.xlu0 %4876
    %4878 = vrot.lane.b32.xlu0 %v3569, 64
    %v4879 = vpop.permute.xlu0 %4878
    %4880 = vrot.lane.b32.xlu0 %v3570, 64
    %v4881 = vpop.permute.xlu0 %4880
    %4882 = vrot.lane.b32.xlu0 %v3571, 64
    %v4883 = vpop.permute.xlu0 %4882
    %4884 = vrot.lane.b32.xlu0 %v3572, 64
    %v4885 = vpop.permute.xlu0 %4884
    %4886 = vrot.lane.b32.xlu0 %v3573, 64
    %v4887 = vpop.permute.xlu0 %4886
    %4888 = vrot.lane.b32.xlu0 %v3574, 64
    %v4889 = vpop.permute.xlu0 %4888
    %4890 = vrot.lane.b32.xlu0 %v3575, 64
    %v4891 = vpop.permute.xlu0 %4890
    %4892 = vrot.lane.b32.xlu0 %v3576, 64
    %v4893 = vpop.permute.xlu0 %4892
    %4894 = vrot.lane.b32.xlu0 %v3577, 64
    %v4895 = vpop.permute.xlu0 %4894
    %4896 = vrot.lane.b32.xlu0 %v3578, 64
    %v4897 = vpop.permute.xlu0 %4896
    %4898 = vrot.lane.b32.xlu0 %v3579, 64
    %v4899 = vpop.permute.xlu0 %4898
    %4900 = vrot.lane.b32.xlu0 %v3580, 64
    %v4901 = vpop.permute.xlu0 %4900
    %4902 = vrot.lane.b32.xlu0 %v3581, 64
    %v4903 = vpop.permute.xlu0 %4902
    %4904 = vrot.lane.b32.xlu0 %v3582, 64
    %v4905 = vpop.permute.xlu0 %4904
    %4906 = vrot.lane.b32.xlu0 %v3583, 64
    %v4907 = vpop.permute.xlu0 %4906
    %4908 = vrot.lane.b32.xlu0 %v3584, 64
    %v4909 = vpop.permute.xlu0 %4908
    %4910 = vrot.lane.b32.xlu0 %v3585, 64
    %v4911 = vpop.permute.xlu0 %4910
    %4912 = vrot.lane.b32.xlu0 %v3586, 64
    %v4913 = vpop.permute.xlu0 %4912
    %4914 = vrot.lane.b32.xlu0 %v3587, 64
    %v4915 = vpop.permute.xlu0 %4914
    %4916 = vrot.lane.b32.xlu0 %v3588, 64
    %v4917 = vpop.permute.xlu0 %4916
    %4918 = vrot.lane.b32.xlu0 %v3589, 64
    %v4919 = vpop.permute.xlu0 %4918
    %4920 = vrot.lane.b32.xlu0 %v3590, 64
    %v4921 = vpop.permute.xlu0 %4920
    %4922 = vrot.lane.b32.xlu0 %v3591, 64
    %v4923 = vpop.permute.xlu0 %4922
    %4924 = vrot.lane.b32.xlu0 %v3592, 64
    %v4925 = vpop.permute.xlu0 %4924
    %4926 = vrot.lane.b32.xlu0 %v3593, 64
    %v4927 = vpop.permute.xlu0 %4926
    %4928 = vrot.lane.b32.xlu0 %v3594, 64
    %v4929 = vpop.permute.xlu0 %4928
    %4930 = vrot.lane.b32.xlu0 %v3595, 64
    %v4931 = vpop.permute.xlu0 %4930
    %4932 = vrot.lane.b32.xlu0 %v3596, 64
    %v4933 = vpop.permute.xlu0 %4932
    %4934 = vrot.lane.b32.xlu0 %v3597, 64
    %v4935 = vpop.permute.xlu0 %4934
    %4936 = vrot.lane.b32.xlu0 %v3598, 64
    %v4937 = vpop.permute.xlu0 %4936
    %4938 = vrot.lane.b32.xlu0 %v3599, 64
    %v4939 = vpop.permute.xlu0 %4938
    %4940 = vrot.lane.b32.xlu0 %v3600, 64
    %v4941 = vpop.permute.xlu0 %4940
    %4942 = vrot.lane.b32.xlu0 %v3601, 64
    %v4943 = vpop.permute.xlu0 %4942
    %4944 = vrot.lane.b32.xlu0 %v3602, 64
    %v4945 = vpop.permute.xlu0 %4944
    %4946 = vrot.lane.b32.xlu0 %v3603, 64
    %v4947 = vpop.permute.xlu0 %4946
    %5076 = vrot.lane.b32.xlu0 %v3604, 96
    %v5077 = vpop.permute.xlu0 %5076
    %5078 = vrot.lane.b32.xlu0 %v3605, 96
    %v5079 = vpop.permute.xlu0 %5078
    %5080 = vrot.lane.b32.xlu0 %v3606, 96
    %v5081 = vpop.permute.xlu0 %5080
    %5082 = vrot.lane.b32.xlu0 %v3607, 96
    %v5083 = vpop.permute.xlu0 %5082
    %5084 = vrot.lane.b32.xlu0 %v3608, 96
    %v5085 = vpop.permute.xlu0 %5084
    %5086 = vrot.lane.b32.xlu0 %v3609, 96
    %v5087 = vpop.permute.xlu0 %5086
    %5088 = vrot.lane.b32.xlu0 %v3610, 96
    %v5089 = vpop.permute.xlu0 %5088
    %5090 = vrot.lane.b32.xlu0 %v3611, 96
    %v5091 = vpop.permute.xlu0 %5090
    %5092 = vrot.lane.b32.xlu0 %v3612, 96
    %v5093 = vpop.permute.xlu0 %5092
    %5094 = vrot.lane.b32.xlu0 %v3613, 96
    %v5095 = vpop.permute.xlu0 %5094
    %5096 = vrot.lane.b32.xlu0 %v3614, 96
    %v5097 = vpop.permute.xlu0 %5096
    %5098 = vrot.lane.b32.xlu0 %v3615, 96
    %v5099 = vpop.permute.xlu0 %5098
    %5100 = vrot.lane.b32.xlu0 %v3616, 96
    %v5101 = vpop.permute.xlu0 %5100
    %5102 = vrot.lane.b32.xlu0 %v3617, 96
    %v5103 = vpop.permute.xlu0 %5102
    %5104 = vrot.lane.b32.xlu0 %v3618, 96
    %v5105 = vpop.permute.xlu0 %5104
    %5106 = vrot.lane.b32.xlu0 %v3619, 96
    %v5107 = vpop.permute.xlu0 %5106
    %5108 = vrot.lane.b32.xlu0 %v3620, 96
    %v5109 = vpop.permute.xlu0 %5108
    %5110 = vrot.lane.b32.xlu0 %v3621, 96
    %v5111 = vpop.permute.xlu0 %5110
    %5112 = vrot.lane.b32.xlu0 %v3622, 96
    %v5113 = vpop.permute.xlu0 %5112
    %5114 = vrot.lane.b32.xlu0 %v3623, 96
    %v5115 = vpop.permute.xlu0 %5114
    %5116 = vrot.lane.b32.xlu0 %v3624, 96
    %v5117 = vpop.permute.xlu0 %5116
    %5118 = vrot.lane.b32.xlu0 %v3625, 96
    %v5119 = vpop.permute.xlu0 %5118
    %5120 = vrot.lane.b32.xlu0 %v3626, 96
    %v5121 = vpop.permute.xlu0 %5120
    %5122 = vrot.lane.b32.xlu0 %v3627, 96
    %v5123 = vpop.permute.xlu0 %5122
    %5124 = vrot.lane.b32.xlu0 %v3628, 96
    %v5125 = vpop.permute.xlu0 %5124
    %5126 = vrot.lane.b32.xlu0 %v3629, 96
    %v5127 = vpop.permute.xlu0 %5126
    %5128 = vrot.lane.b32.xlu0 %v3630, 96
    %v5129 = vpop.permute.xlu0 %5128
    %5130 = vrot.lane.b32.xlu0 %v3631, 96
    %v5131 = vpop.permute.xlu0 %5130
    %5132 = vrot.lane.b32.xlu0 %v3632, 96
    %v5133 = vpop.permute.xlu0 %5132
    %5134 = vrot.lane.b32.xlu0 %v3633, 96
    %v5135 = vpop.permute.xlu0 %5134
    %5136 = vrot.lane.b32.xlu0 %v3634, 96
    %v5137 = vpop.permute.xlu0 %5136
    %5138 = vrot.lane.b32.xlu0 %v3635, 96
    %v5139 = vpop.permute.xlu0 %5138
    %5140 = vrot.lane.b32.xlu0 %v3636, 96
    %v5141 = vpop.permute.xlu0 %5140
    %5142 = vrot.lane.b32.xlu0 %v3637, 96
    %v5143 = vpop.permute.xlu0 %5142
    %5144 = vrot.lane.b32.xlu0 %v3638, 96
    %v5145 = vpop.permute.xlu0 %5144
    %5146 = vrot.lane.b32.xlu0 %v3639, 96
    %v5147 = vpop.permute.xlu0 %5146
    %5148 = vrot.lane.b32.xlu0 %v3640, 96
    %v5149 = vpop.permute.xlu0 %5148
    %5150 = vrot.lane.b32.xlu0 %v3641, 96
    %v5151 = vpop.permute.xlu0 %5150
    %5152 = vrot.lane.b32.xlu0 %v3642, 96
    %v5153 = vpop.permute.xlu0 %5152
    %5154 = vrot.lane.b32.xlu0 %v3643, 96
    %v5155 = vpop.permute.xlu0 %5154
    %5156 = vrot.lane.b32.xlu0 %v3644, 96
    %v5157 = vpop.permute.xlu0 %5156
    %5158 = vrot.lane.b32.xlu0 %v3645, 96
    %v5159 = vpop.permute.xlu0 %5158
    %5160 = vrot.lane.b32.xlu0 %v3646, 96
    %v5161 = vpop.permute.xlu0 %5160
    %5162 = vrot.lane.b32.xlu0 %v3647, 96
    %v5163 = vpop.permute.xlu0 %5162
    %5164 = vrot.lane.b32.xlu0 %v3648, 96
    %v5165 = vpop.permute.xlu0 %5164
    %5166 = vrot.lane.b32.xlu0 %v3649, 96
    %v5167 = vpop.permute.xlu0 %5166
    %5168 = vrot.lane.b32.xlu0 %v3650, 96
    %v5169 = vpop.permute.xlu0 %5168
    %5170 = vrot.lane.b32.xlu0 %v3651, 96
    %v5171 = vpop.permute.xlu0 %5170
    %5172 = vrot.lane.b32.xlu0 %v3652, 96
    %v5173 = vpop.permute.xlu0 %5172
    %5174 = vrot.lane.b32.xlu0 %v3653, 96
    %v5175 = vpop.permute.xlu0 %5174
    %5176 = vrot.lane.b32.xlu0 %v3654, 96
    %v5177 = vpop.permute.xlu0 %5176
    %5178 = vrot.lane.b32.xlu0 %v3655, 96
    %v5179 = vpop.permute.xlu0 %5178
    %5180 = vrot.lane.b32.xlu0 %v3656, 96
    %v5181 = vpop.permute.xlu0 %5180
    %5182 = vrot.lane.b32.xlu0 %v3657, 96
    %v5183 = vpop.permute.xlu0 %5182
    %5184 = vrot.lane.b32.xlu0 %v3658, 96
    %v5185 = vpop.permute.xlu0 %5184
    %5186 = vrot.lane.b32.xlu0 %v3659, 96
    %v5187 = vpop.permute.xlu0 %5186
    %5188 = vrot.lane.b32.xlu0 %v3660, 96
    %v5189 = vpop.permute.xlu0 %5188
    %5190 = vrot.lane.b32.xlu0 %v3661, 96
    %v5191 = vpop.permute.xlu0 %5190
    %5192 = vrot.lane.b32.xlu0 %v3662, 96
    %v5193 = vpop.permute.xlu0 %5192
    %5194 = vrot.lane.b32.xlu0 %v3663, 96
    %v5195 = vpop.permute.xlu0 %5194
    %5196 = vrot.lane.b32.xlu0 %v3664, 96
    %v5197 = vpop.permute.xlu0 %5196
    %5198 = vrot.lane.b32.xlu0 %v3665, 96
    %v5199 = vpop.permute.xlu0 %5198
    %5200 = vrot.lane.b32.xlu0 %v3666, 96
    %v5201 = vpop.permute.xlu0 %5200
    %5202 = vrot.lane.b32.xlu0 %v3667, 96
    %v5203 = vpop.permute.xlu0 %5202
    %v5268 = vsel %vm112, %v3155, %v3797
    %v5269 = vsel %vm112, %v3156, %v3799
    %v5270 = vsel %vm112, %v3157, %v3801
    %v5271 = vsel %vm112, %v3158, %v3803
    %v5272 = vsel %vm112, %v3159, %v3805
    %v5273 = vsel %vm112, %v3160, %v3807
    %v5274 = vsel %vm112, %v3161, %v3809
    %v5275 = vsel %vm112, %v3162, %v3811
    %v5276 = vsel %vm112, %v3163, %v3813
    %v5277 = vsel %vm112, %v3164, %v3815
    %v5278 = vsel %vm112, %v3165, %v3817
    %v5279 = vsel %vm112, %v3166, %v3819
    %v5280 = vsel %vm112, %v3167, %v3821
    %v5281 = vsel %vm112, %v3168, %v3823
    %v5282 = vsel %vm112, %v3169, %v3825
    %v5283 = vsel %vm112, %v3170, %v3827
    %v5284 = vsel %vm112, %v3171, %v3829
    %v5285 = vsel %vm112, %v3172, %v3831
    %v5286 = vsel %vm112, %v3173, %v3833
    %v5287 = vsel %vm112, %v3174, %v3835
    %v5288 = vsel %vm112, %v3175, %v3837
    %v5289 = vsel %vm112, %v3176, %v3839
    %v5290 = vsel %vm112, %v3177, %v3841
    %v5291 = vsel %vm112, %v3178, %v3843
    %v5292 = vsel %vm112, %v3179, %v3845
    %v5293 = vsel %vm112, %v3180, %v3847
    %v5294 = vsel %vm112, %v3181, %v3849
    %v5295 = vsel %vm112, %v3182, %v3851
    %v5296 = vsel %vm112, %v3183, %v3853
    %v5297 = vsel %vm112, %v3184, %v3855
    %v5298 = vsel %vm112, %v3185, %v3857
    %v5299 = vsel %vm112, %v3186, %v3859
    %v5300 = vsel %vm112, %v3187, %v3861
    %v5301 = vsel %vm112, %v3188, %v3863
    %v5302 = vsel %vm112, %v3189, %v3865
    %v5303 = vsel %vm112, %v3190, %v3867
    %v5304 = vsel %vm112, %v3191, %v3869
    %v5305 = vsel %vm112, %v3192, %v3871
    %v5306 = vsel %vm112, %v3193, %v3873
    %v5307 = vsel %vm112, %v3194, %v3875
    %v5308 = vsel %vm112, %v3195, %v3877
    %v5309 = vsel %vm112, %v3196, %v3879
    %v5310 = vsel %vm112, %v3197, %v3881
    %v5311 = vsel %vm112, %v3198, %v3883
    %v5312 = vsel %vm112, %v3199, %v3885
    %v5313 = vsel %vm112, %v3200, %v3887
    %v5314 = vsel %vm112, %v3201, %v3889
    %v5315 = vsel %vm112, %v3202, %v3891
    %v5316 = vsel %vm112, %v3203, %v3893
    %v5317 = vsel %vm112, %v3204, %v3895
    %v5318 = vsel %vm112, %v3205, %v3897
    %v5319 = vsel %vm112, %v3206, %v3899
    %v5320 = vsel %vm112, %v3207, %v3901
    %v5321 = vsel %vm112, %v3208, %v3903
    %v5322 = vsel %vm112, %v3209, %v3905
    %v5323 = vsel %vm112, %v3210, %v3907
    %v5324 = vsel %vm112, %v3211, %v3909
    %v5325 = vsel %vm112, %v3212, %v3911
    %v5326 = vsel %vm112, %v3213, %v3913
    %v5327 = vsel %vm112, %v3214, %v3915
    %v5328 = vsel %vm112, %v3215, %v3917
    %v5329 = vsel %vm112, %v3216, %v3919
    %v5330 = vsel %vm112, %v3217, %v3921
    %v5331 = vsel %vm112, %v3218, %v3923
    %v5332 = vsel %vm2701, %v5268, %v4053
    %v5333 = vsel %vm2701, %v5269, %v4055
    %v5334 = vsel %vm2701, %v5270, %v4057
    %v5335 = vsel %vm2701, %v5271, %v4059
    %v5336 = vsel %vm2701, %v5272, %v4061
    %v5337 = vsel %vm2701, %v5273, %v4063
    %v5338 = vsel %vm2701, %v5274, %v4065
    %v5339 = vsel %vm2701, %v5275, %v4067
    %v5340 = vsel %vm2701, %v5276, %v4069
    %v5341 = vsel %vm2701, %v5277, %v4071
    %v5342 = vsel %vm2701, %v5278, %v4073
    %v5343 = vsel %vm2701, %v5279, %v4075
    %v5344 = vsel %vm2701, %v5280, %v4077
    %v5345 = vsel %vm2701, %v5281, %v4079
    %v5346 = vsel %vm2701, %v5282, %v4081
    %v5347 = vsel %vm2701, %v5283, %v4083
    %v5348 = vsel %vm2701, %v5284, %v4085
    %v5349 = vsel %vm2701, %v5285, %v4087
    %v5350 = vsel %vm2701, %v5286, %v4089
    %v5351 = vsel %vm2701, %v5287, %v4091
    %v5352 = vsel %vm2701, %v5288, %v4093
    %v5353 = vsel %vm2701, %v5289, %v4095
    %v5354 = vsel %vm2701, %v5290, %v4097
    %v5355 = vsel %vm2701, %v5291, %v4099
    %v5356 = vsel %vm2701, %v5292, %v4101
    %v5357 = vsel %vm2701, %v5293, %v4103
    %v5358 = vsel %vm2701, %v5294, %v4105
    %v5359 = vsel %vm2701, %v5295, %v4107
    %v5360 = vsel %vm2701, %v5296, %v4109
    %v5361 = vsel %vm2701, %v5297, %v4111
    %v5362 = vsel %vm2701, %v5298, %v4113
    %v5363 = vsel %vm2701, %v5299, %v4115
    %v5364 = vsel %vm2701, %v5300, %v4117
    %v5365 = vsel %vm2701, %v5301, %v4119
    %v5366 = vsel %vm2701, %v5302, %v4121
    %v5367 = vsel %vm2701, %v5303, %v4123
    %v5368 = vsel %vm2701, %v5304, %v4125
    %v5369 = vsel %vm2701, %v5305, %v4127
    %v5370 = vsel %vm2701, %v5306, %v4129
    %v5371 = vsel %vm2701, %v5307, %v4131
    %v5372 = vsel %vm2701, %v5308, %v4133
    %v5373 = vsel %vm2701, %v5309, %v4135
    %v5374 = vsel %vm2701, %v5310, %v4137
    %v5375 = vsel %vm2701, %v5311, %v4139
    %v5376 = vsel %vm2701, %v5312, %v4141
    %v5377 = vsel %vm2701, %v5313, %v4143
    %v5378 = vsel %vm2701, %v5314, %v4145
    %v5379 = vsel %vm2701, %v5315, %v4147
    %v5380 = vsel %vm2701, %v5316, %v4149
    %v5381 = vsel %vm2701, %v5317, %v4151
    %v5382 = vsel %vm2701, %v5318, %v4153
    %v5383 = vsel %vm2701, %v5319, %v4155
    %v5384 = vsel %vm2701, %v5320, %v4157
    %v5385 = vsel %vm2701, %v5321, %v4159
    %v5386 = vsel %vm2701, %v5322, %v4161
    %v5387 = vsel %vm2701, %v5323, %v4163
    %v5388 = vsel %vm2701, %v5324, %v4165
    %v5389 = vsel %vm2701, %v5325, %v4167
    %v5390 = vsel %vm2701, %v5326, %v4169
    %v5391 = vsel %vm2701, %v5327, %v4171
    %v5392 = vsel %vm2701, %v5328, %v4173
    %v5393 = vsel %vm2701, %v5329, %v4175
    %v5394 = vsel %vm2701, %v5330, %v4177
    %v5395 = vsel %vm2701, %v5331, %v4179
    %v5396 = vsel %vm2766, %v5332, %v4309
    %v5397 = vsel %vm2766, %v5333, %v4311
    %v5398 = vsel %vm2766, %v5334, %v4313
    %v5399 = vsel %vm2766, %v5335, %v4315
    %v5400 = vsel %vm2766, %v5336, %v4317
    %v5401 = vsel %vm2766, %v5337, %v4319
    %v5402 = vsel %vm2766, %v5338, %v4321
    %v5403 = vsel %vm2766, %v5339, %v4323
    %v5404 = vsel %vm2766, %v5340, %v4325
    %v5405 = vsel %vm2766, %v5341, %v4327
    %v5406 = vsel %vm2766, %v5342, %v4329
    %v5407 = vsel %vm2766, %v5343, %v4331
    %v5408 = vsel %vm2766, %v5344, %v4333
    %v5409 = vsel %vm2766, %v5345, %v4335
    %v5410 = vsel %vm2766, %v5346, %v4337
    %v5411 = vsel %vm2766, %v5347, %v4339
    %v5412 = vsel %vm2766, %v5348, %v4341
    %v5413 = vsel %vm2766, %v5349, %v4343
    %v5414 = vsel %vm2766, %v5350, %v4345
    %v5415 = vsel %vm2766, %v5351, %v4347
    %v5416 = vsel %vm2766, %v5352, %v4349
    %v5417 = vsel %vm2766, %v5353, %v4351
    %v5418 = vsel %vm2766, %v5354, %v4353
    %v5419 = vsel %vm2766, %v5355, %v4355
    %v5420 = vsel %vm2766, %v5356, %v4357
    %v5421 = vsel %vm2766, %v5357, %v4359
    %v5422 = vsel %vm2766, %v5358, %v4361
    %v5423 = vsel %vm2766, %v5359, %v4363
    %v5424 = vsel %vm2766, %v5360, %v4365
    %v5425 = vsel %vm2766, %v5361, %v4367
    %v5426 = vsel %vm2766, %v5362, %v4369
    %v5427 = vsel %vm2766, %v5363, %v4371
    %v5428 = vsel %vm2766, %v5364, %v4373
    %v5429 = vsel %vm2766, %v5365, %v4375
    %v5430 = vsel %vm2766, %v5366, %v4377
    %v5431 = vsel %vm2766, %v5367, %v4379
    %v5432 = vsel %vm2766, %v5368, %v4381
    %v5433 = vsel %vm2766, %v5369, %v4383
    %v5434 = vsel %vm2766, %v5370, %v4385
    %v5435 = vsel %vm2766, %v5371, %v4387
    %v5436 = vsel %vm2766, %v5372, %v4389
    %v5437 = vsel %vm2766, %v5373, %v4391
    %v5438 = vsel %vm2766, %v5374, %v4393
    %v5439 = vsel %vm2766, %v5375, %v4395
    %v5440 = vsel %vm2766, %v5376, %v4397
    %v5441 = vsel %vm2766, %v5377, %v4399
    %v5442 = vsel %vm2766, %v5378, %v4401
    %v5443 = vsel %vm2766, %v5379, %v4403
    %v5444 = vsel %vm2766, %v5380, %v4405
    %v5445 = vsel %vm2766, %v5381, %v4407
    %v5446 = vsel %vm2766, %v5382, %v4409
    %v5447 = vsel %vm2766, %v5383, %v4411
    %v5448 = vsel %vm2766, %v5384, %v4413
    %v5449 = vsel %vm2766, %v5385, %v4415
    %v5450 = vsel %vm2766, %v5386, %v4417
    %v5451 = vsel %vm2766, %v5387, %v4419
    %v5452 = vsel %vm2766, %v5388, %v4421
    %v5453 = vsel %vm2766, %v5389, %v4423
    %v5454 = vsel %vm2766, %v5390, %v4425
    %v5455 = vsel %vm2766, %v5391, %v4427
    %v5456 = vsel %vm2766, %v5392, %v4429
    %v5457 = vsel %vm2766, %v5393, %v4431
    %v5458 = vsel %vm2766, %v5394, %v4433
    %v5459 = vsel %vm2766, %v5395, %v4435
    %v5460 = vsel %vm112, %v3411, %v4565
    %v5461 = vsel %vm112, %v3412, %v4567
    %v5462 = vsel %vm112, %v3413, %v4569
    %v5463 = vsel %vm112, %v3414, %v4571
    %v5464 = vsel %vm112, %v3415, %v4573
    %v5465 = vsel %vm112, %v3416, %v4575
    %v5466 = vsel %vm112, %v3417, %v4577
    %v5467 = vsel %vm112, %v3418, %v4579
    %v5468 = vsel %vm112, %v3419, %v4581
    %v5469 = vsel %vm112, %v3420, %v4583
    %v5470 = vsel %vm112, %v3421, %v4585
    %v5471 = vsel %vm112, %v3422, %v4587
    %v5472 = vsel %vm112, %v3423, %v4589
    %v5473 = vsel %vm112, %v3424, %v4591
    %v5474 = vsel %vm112, %v3425, %v4593
    %v5475 = vsel %vm112, %v3426, %v4595
    %v5476 = vsel %vm112, %v3427, %v4597
    %v5477 = vsel %vm112, %v3428, %v4599
    %v5478 = vsel %vm112, %v3429, %v4601
    %v5479 = vsel %vm112, %v3430, %v4603
    %v5480 = vsel %vm112, %v3431, %v4605
    %v5481 = vsel %vm112, %v3432, %v4607
    %v5482 = vsel %vm112, %v3433, %v4609
    %v5483 = vsel %vm112, %v3434, %v4611
    %v5484 = vsel %vm112, %v3435, %v4613
    %v5485 = vsel %vm112, %v3436, %v4615
    %v5486 = vsel %vm112, %v3437, %v4617
    %v5487 = vsel %vm112, %v3438, %v4619
    %v5488 = vsel %vm112, %v3439, %v4621
    %v5489 = vsel %vm112, %v3440, %v4623
    %v5490 = vsel %vm112, %v3441, %v4625
    %v5491 = vsel %vm112, %v3442, %v4627
    %v5492 = vsel %vm112, %v3443, %v4629
    %v5493 = vsel %vm112, %v3444, %v4631
    %v5494 = vsel %vm112, %v3445, %v4633
    %v5495 = vsel %vm112, %v3446, %v4635
    %v5496 = vsel %vm112, %v3447, %v4637
    %v5497 = vsel %vm112, %v3448, %v4639
    %v5498 = vsel %vm112, %v3449, %v4641
    %v5499 = vsel %vm112, %v3450, %v4643
    %v5500 = vsel %vm112, %v3451, %v4645
    %v5501 = vsel %vm112, %v3452, %v4647
    %v5502 = vsel %vm112, %v3453, %v4649
    %v5503 = vsel %vm112, %v3454, %v4651
    %v5504 = vsel %vm112, %v3455, %v4653
    %v5505 = vsel %vm112, %v3456, %v4655
    %v5506 = vsel %vm112, %v3457, %v4657
    %v5507 = vsel %vm112, %v3458, %v4659
    %v5508 = vsel %vm112, %v3459, %v4661
    %v5509 = vsel %vm112, %v3460, %v4663
    %v5510 = vsel %vm112, %v3461, %v4665
    %v5511 = vsel %vm112, %v3462, %v4667
    %v5512 = vsel %vm112, %v3463, %v4669
    %v5513 = vsel %vm112, %v3464, %v4671
    %v5514 = vsel %vm112, %v3465, %v4673
    %v5515 = vsel %vm112, %v3466, %v4675
    %v5516 = vsel %vm112, %v3467, %v4677
    %v5517 = vsel %vm112, %v3468, %v4679
    %v5518 = vsel %vm112, %v3469, %v4681
    %v5519 = vsel %vm112, %v3470, %v4683
    %v5520 = vsel %vm112, %v3471, %v4685
    %v5521 = vsel %vm112, %v3472, %v4687
    %v5522 = vsel %vm112, %v3473, %v4689
    %v5523 = vsel %vm112, %v3474, %v4691
    %v5524 = vsel %vm2701, %v5460, %v4821
    %v5525 = vsel %vm2701, %v5461, %v4823
    %v5526 = vsel %vm2701, %v5462, %v4825
    %v5527 = vsel %vm2701, %v5463, %v4827
    %v5528 = vsel %vm2701, %v5464, %v4829
    %v5529 = vsel %vm2701, %v5465, %v4831
    %v5530 = vsel %vm2701, %v5466, %v4833
    %v5531 = vsel %vm2701, %v5467, %v4835
    %v5532 = vsel %vm2701, %v5468, %v4837
    %v5533 = vsel %vm2701, %v5469, %v4839
    %v5534 = vsel %vm2701, %v5470, %v4841
    %v5535 = vsel %vm2701, %v5471, %v4843
    %v5536 = vsel %vm2701, %v5472, %v4845
    %v5537 = vsel %vm2701, %v5473, %v4847
    %v5538 = vsel %vm2701, %v5474, %v4849
    %v5539 = vsel %vm2701, %v5475, %v4851
    %v5540 = vsel %vm2701, %v5476, %v4853
    %v5541 = vsel %vm2701, %v5477, %v4855
    %v5542 = vsel %vm2701, %v5478, %v4857
    %v5543 = vsel %vm2701, %v5479, %v4859
    %v5544 = vsel %vm2701, %v5480, %v4861
    %v5545 = vsel %vm2701, %v5481, %v4863
    %v5546 = vsel %vm2701, %v5482, %v4865
    %v5547 = vsel %vm2701, %v5483, %v4867
    %v5548 = vsel %vm2701, %v5484, %v4869
    %v5549 = vsel %vm2701, %v5485, %v4871
    %v5550 = vsel %vm2701, %v5486, %v4873
    %v5551 = vsel %vm2701, %v5487, %v4875
    %v5552 = vsel %vm2701, %v5488, %v4877
    %v5553 = vsel %vm2701, %v5489, %v4879
    %v5554 = vsel %vm2701, %v5490, %v4881
    %v5555 = vsel %vm2701, %v5491, %v4883
    %v5556 = vsel %vm2701, %v5492, %v4885
    %v5557 = vsel %vm2701, %v5493, %v4887
    %v5558 = vsel %vm2701, %v5494, %v4889
    %v5559 = vsel %vm2701, %v5495, %v4891
    %v5560 = vsel %vm2701, %v5496, %v4893
    %v5561 = vsel %vm2701, %v5497, %v4895
    %v5562 = vsel %vm2701, %v5498, %v4897
    %v5563 = vsel %vm2701, %v5499, %v4899
    %v5564 = vsel %vm2701, %v5500, %v4901
    %v5565 = vsel %vm2701, %v5501, %v4903
    %v5566 = vsel %vm2701, %v5502, %v4905
    %v5567 = vsel %vm2701, %v5503, %v4907
    %v5568 = vsel %vm2701, %v5504, %v4909
    %v5569 = vsel %vm2701, %v5505, %v4911
    %v5570 = vsel %vm2701, %v5506, %v4913
    %v5571 = vsel %vm2701, %v5507, %v4915
    %v5572 = vsel %vm2701, %v5508, %v4917
    %v5573 = vsel %vm2701, %v5509, %v4919
    %v5574 = vsel %vm2701, %v5510, %v4921
    %v5575 = vsel %vm2701, %v5511, %v4923
    %v5576 = vsel %vm2701, %v5512, %v4925
    %v5577 = vsel %vm2701, %v5513, %v4927
    %v5578 = vsel %vm2701, %v5514, %v4929
    %v5579 = vsel %vm2701, %v5515, %v4931
    %v5580 = vsel %vm2701, %v5516, %v4933
    %v5581 = vsel %vm2701, %v5517, %v4935
    %v5582 = vsel %vm2701, %v5518, %v4937
    %v5583 = vsel %vm2701, %v5519, %v4939
    %v5584 = vsel %vm2701, %v5520, %v4941
    %v5585 = vsel %vm2701, %v5521, %v4943
    %v5586 = vsel %vm2701, %v5522, %v4945
    %v5587 = vsel %vm2701, %v5523, %v4947
    %v5588 = vsel %vm2766, %v5524, %v5077
    %v5589 = vsel %vm2766, %v5525, %v5079
    %v5590 = vsel %vm2766, %v5526, %v5081
    %v5591 = vsel %vm2766, %v5527, %v5083
    %v5592 = vsel %vm2766, %v5528, %v5085
    %v5593 = vsel %vm2766, %v5529, %v5087
    %v5594 = vsel %vm2766, %v5530, %v5089
    %v5595 = vsel %vm2766, %v5531, %v5091
    %v5596 = vsel %vm2766, %v5532, %v5093
    %v5597 = vsel %vm2766, %v5533, %v5095
    %v5598 = vsel %vm2766, %v5534, %v5097
    %v5599 = vsel %vm2766, %v5535, %v5099
    %v5600 = vsel %vm2766, %v5536, %v5101
    %v5601 = vsel %vm2766, %v5537, %v5103
    %v5602 = vsel %vm2766, %v5538, %v5105
    %v5603 = vsel %vm2766, %v5539, %v5107
    %v5604 = vsel %vm2766, %v5540, %v5109
    %v5605 = vsel %vm2766, %v5541, %v5111
    %v5606 = vsel %vm2766, %v5542, %v5113
    %v5607 = vsel %vm2766, %v5543, %v5115
    %v5608 = vsel %vm2766, %v5544, %v5117
    %v5609 = vsel %vm2766, %v5545, %v5119
    %v5610 = vsel %vm2766, %v5546, %v5121
    %v5611 = vsel %vm2766, %v5547, %v5123
    %v5612 = vsel %vm2766, %v5548, %v5125
    %v5613 = vsel %vm2766, %v5549, %v5127
    %v5614 = vsel %vm2766, %v5550, %v5129
    %v5615 = vsel %vm2766, %v5551, %v5131
    %v5616 = vsel %vm2766, %v5552, %v5133
    %v5617 = vsel %vm2766, %v5553, %v5135
    %v5618 = vsel %vm2766, %v5554, %v5137
    %v5619 = vsel %vm2766, %v5555, %v5139
    %v5620 = vsel %vm2766, %v5556, %v5141
    %v5621 = vsel %vm2766, %v5557, %v5143
    %v5622 = vsel %vm2766, %v5558, %v5145
    %v5623 = vsel %vm2766, %v5559, %v5147
    %v5624 = vsel %vm2766, %v5560, %v5149
    %v5625 = vsel %vm2766, %v5561, %v5151
    %v5626 = vsel %vm2766, %v5562, %v5153
    %v5627 = vsel %vm2766, %v5563, %v5155
    %v5628 = vsel %vm2766, %v5564, %v5157
    %v5629 = vsel %vm2766, %v5565, %v5159
    %v5630 = vsel %vm2766, %v5566, %v5161
    %v5631 = vsel %vm2766, %v5567, %v5163
    %v5632 = vsel %vm2766, %v5568, %v5165
    %v5633 = vsel %vm2766, %v5569, %v5167
    %v5634 = vsel %vm2766, %v5570, %v5169
    %v5635 = vsel %vm2766, %v5571, %v5171
    %v5636 = vsel %vm2766, %v5572, %v5173
    %v5637 = vsel %vm2766, %v5573, %v5175
    %v5638 = vsel %vm2766, %v5574, %v5177
    %v5639 = vsel %vm2766, %v5575, %v5179
    %v5640 = vsel %vm2766, %v5576, %v5181
    %v5641 = vsel %vm2766, %v5577, %v5183
    %v5642 = vsel %vm2766, %v5578, %v5185
    %v5643 = vsel %vm2766, %v5579, %v5187
    %v5644 = vsel %vm2766, %v5580, %v5189
    %v5645 = vsel %vm2766, %v5581, %v5191
    %v5646 = vsel %vm2766, %v5582, %v5193
    %v5647 = vsel %vm2766, %v5583, %v5195
    %v5648 = vsel %vm2766, %v5584, %v5197
    %v5649 = vsel %vm2766, %v5585, %v5199
    %v5650 = vsel %vm2766, %v5586, %v5201
    %v5651 = vsel %vm2766, %v5587, %v5203
    %v5652 = vpack.c.bf16 %v5397, %v5396
    %v5653 = vpack.c.bf16 %v5589, %v5588
    %v5654 = vpack.c.bf16 %v3669, %v3668
    %v5655 = vpack.c.bf16 %v5399, %v5398
    %v5656 = vpack.c.bf16 %v5591, %v5590
    %v5657 = vpack.c.bf16 %v3671, %v3670
    %v5658 = vpack.c.bf16 %v5401, %v5400
    %v5659 = vpack.c.bf16 %v5593, %v5592
    %v5660 = vpack.c.bf16 %v3673, %v3672
    %v5661 = vpack.c.bf16 %v5403, %v5402
    %v5662 = vpack.c.bf16 %v5595, %v5594
    %v5663 = vpack.c.bf16 %v3675, %v3674
    %v5664 = vpack.c.bf16 %v5405, %v5404
    %v5665 = vpack.c.bf16 %v5597, %v5596
    %v5666 = vpack.c.bf16 %v3677, %v3676
    %v5667 = vpack.c.bf16 %v5407, %v5406
    %v5668 = vpack.c.bf16 %v5599, %v5598
    %v5669 = vpack.c.bf16 %v3679, %v3678
    %v5670 = vpack.c.bf16 %v5409, %v5408
    %v5671 = vpack.c.bf16 %v5601, %v5600
    %v5672 = vpack.c.bf16 %v3681, %v3680
    %v5673 = vpack.c.bf16 %v5411, %v5410
    %v5674 = vpack.c.bf16 %v5603, %v5602
    %v5675 = vpack.c.bf16 %v3683, %v3682
    %v5676 = vpack.c.bf16 %v5413, %v5412
    %v5677 = vpack.c.bf16 %v5605, %v5604
    %v5678 = vpack.c.bf16 %v3685, %v3684
    %v5679 = vpack.c.bf16 %v5415, %v5414
    %v5680 = vpack.c.bf16 %v5607, %v5606
    %v5681 = vpack.c.bf16 %v3687, %v3686
    %v5682 = vpack.c.bf16 %v5417, %v5416
    %v5683 = vpack.c.bf16 %v5609, %v5608
    %v5684 = vpack.c.bf16 %v3689, %v3688
    %v5685 = vpack.c.bf16 %v5419, %v5418
    %v5686 = vpack.c.bf16 %v5611, %v5610
    %v5687 = vpack.c.bf16 %v3691, %v3690
    %v5688 = vpack.c.bf16 %v5421, %v5420
    %v5689 = vpack.c.bf16 %v5613, %v5612
    %v5690 = vpack.c.bf16 %v3693, %v3692
    %v5691 = vpack.c.bf16 %v5423, %v5422
    %v5692 = vpack.c.bf16 %v5615, %v5614
    %v5693 = vpack.c.bf16 %v3695, %v3694
    %v5694 = vpack.c.bf16 %v5425, %v5424
    %v5695 = vpack.c.bf16 %v5617, %v5616
    %v5696 = vpack.c.bf16 %v3697, %v3696
    %v5697 = vpack.c.bf16 %v5427, %v5426
    %v5698 = vpack.c.bf16 %v5619, %v5618
    %v5699 = vpack.c.bf16 %v3699, %v3698
    %v5700 = vpack.c.bf16 %v5429, %v5428
    %v5701 = vpack.c.bf16 %v5621, %v5620
    %v5702 = vpack.c.bf16 %v3701, %v3700
    %v5703 = vpack.c.bf16 %v5431, %v5430
    %v5704 = vpack.c.bf16 %v5623, %v5622
    %v5705 = vpack.c.bf16 %v3703, %v3702
    %v5706 = vpack.c.bf16 %v5433, %v5432
    %v5707 = vpack.c.bf16 %v5625, %v5624
    %v5708 = vpack.c.bf16 %v3705, %v3704
    %v5709 = vpack.c.bf16 %v5435, %v5434
    %v5710 = vpack.c.bf16 %v5627, %v5626
    %v5711 = vpack.c.bf16 %v3707, %v3706
    %v5712 = vpack.c.bf16 %v5437, %v5436
    %v5713 = vpack.c.bf16 %v5629, %v5628
    %v5714 = vpack.c.bf16 %v3709, %v3708
    %v5715 = vpack.c.bf16 %v5439, %v5438
    %v5716 = vpack.c.bf16 %v5631, %v5630
    %v5717 = vpack.c.bf16 %v3711, %v3710
    %v5718 = vpack.c.bf16 %v5441, %v5440
    %v5719 = vpack.c.bf16 %v5633, %v5632
    %v5720 = vpack.c.bf16 %v3713, %v3712
    %v5721 = vpack.c.bf16 %v5443, %v5442
    %v5722 = vpack.c.bf16 %v5635, %v5634
    %v5723 = vpack.c.bf16 %v3715, %v3714
    %v5724 = vpack.c.bf16 %v5445, %v5444
    %v5725 = vpack.c.bf16 %v5637, %v5636
    %v5726 = vpack.c.bf16 %v3717, %v3716
    %v5727 = vpack.c.bf16 %v5447, %v5446
    %v5728 = vpack.c.bf16 %v5639, %v5638
    %v5729 = vpack.c.bf16 %v3719, %v3718
    %v5730 = vpack.c.bf16 %v5449, %v5448
    %v5731 = vpack.c.bf16 %v5641, %v5640
    %v5732 = vpack.c.bf16 %v3721, %v3720
    %v5733 = vpack.c.bf16 %v5451, %v5450
    %v5734 = vpack.c.bf16 %v5643, %v5642
    %v5735 = vpack.c.bf16 %v3723, %v3722
    %v5736 = vpack.c.bf16 %v5453, %v5452
    %v5737 = vpack.c.bf16 %v5645, %v5644
    %v5738 = vpack.c.bf16 %v3725, %v3724
    %v5739 = vpack.c.bf16 %v5455, %v5454
    %v5740 = vpack.c.bf16 %v5647, %v5646
    %v5741 = vpack.c.bf16 %v3727, %v3726
    %v5742 = vpack.c.bf16 %v5457, %v5456
    %v5743 = vpack.c.bf16 %v5649, %v5648
    %v5744 = vpack.c.bf16 %v3729, %v3728
    %v5745 = vpack.c.bf16 %v5459, %v5458
    %v5746 = vpack.c.bf16 %v5651, %v5650
    %v5747 = vpack.c.bf16 %v3731, %v3730
    %v5748 = vld [vmem:[%s3] sm:$0xf]
    %v5749 = vld [vmem:[%s3 + $0x4] sm:$0xf]
    %v5750 = vld [vmem:[%s3 + $0x8] sm:$0xf]
    %v5751 = vld [vmem:[%s3 + $0xc] sm:$0xf]
    %v5752 = vld [vmem:[%s3 + $0x10] sm:$0xf]
    %v5753 = vld [vmem:[%s3 + $0x14] sm:$0xf]
    %v5754 = vld [vmem:[%s3 + $0x18] sm:$0xf]
    %v5755 = vld [vmem:[%s3 + $0x1c] sm:$0xf]
    %v5756 = vld [vmem:[%s3 + $0x20] sm:$0xf]
    %v5757 = vld [vmem:[%s3 + $0x24] sm:$0xf]
    %v5758 = vld [vmem:[%s3 + $0x28] sm:$0xf]
    %v5759 = vld [vmem:[%s3 + $0x2c] sm:$0xf]
    %v5760 = vld [vmem:[%s3 + $0x30] sm:$0xf]
    %v5761 = vld [vmem:[%s3 + $0x34] sm:$0xf]
    %v5762 = vld [vmem:[%s3 + $0x38] sm:$0xf]
    %v5763 = vld [vmem:[%s3 + $0x3c] sm:$0xf]
    %v5764 = vld [vmem:[%s3 + $0x40] sm:$0xf]
    %v5765 = vld [vmem:[%s3 + $0x44] sm:$0xf]
    %v5766 = vld [vmem:[%s3 + $0x48] sm:$0xf]
    %v5767 = vld [vmem:[%s3 + $0x4c] sm:$0xf]
    %v5768 = vld [vmem:[%s3 + $0x50] sm:$0xf]
    %v5769 = vld [vmem:[%s3 + $0x54] sm:$0xf]
    %v5770 = vld [vmem:[%s3 + $0x58] sm:$0xf]
    %v5771 = vld [vmem:[%s3 + $0x5c] sm:$0xf]
    %v5772 = vld [vmem:[%s3 + $0x60] sm:$0xf]
    %v5773 = vld [vmem:[%s3 + $0x64] sm:$0xf]
    %v5774 = vld [vmem:[%s3 + $0x68] sm:$0xf]
    %v5775 = vld [vmem:[%s3 + $0x6c] sm:$0xf]
    %v5776 = vld [vmem:[%s3 + $0x70] sm:$0xf]
    %v5777 = vld [vmem:[%s3 + $0x74] sm:$0xf]
    %v5778 = vld [vmem:[%s3 + $0x78] sm:$0xf]
    %v5779 = vld [vmem:[%s3 + $0x7c] sm:$0xf]
    %v5780 = vld [vmem:[%s3 + $0x80] sm:$0xf]
    %v5781 = vld [vmem:[%s3 + $0x84] sm:$0xf]
    %v5782 = vld [vmem:[%s3 + $0x88] sm:$0xf]
    %v5783 = vld [vmem:[%s3 + $0x8c] sm:$0xf]
    %v5820 = vunpack.c.l.b16 %v5748
    %v5821 = vunpack.c.l.b16 %v5749
    %v5822 = vunpack.c.l.b16 %v5750
    %v5823 = vunpack.c.l.b16 %v5751
    %v5824 = vunpack.c.l.b16 %v5752
    %v5825 = vunpack.c.l.b16 %v5753
    %v5826 = vunpack.c.l.b16 %v5754
    %v5827 = vunpack.c.l.b16 %v5755
    %v5828 = vunpack.c.l.b16 %v5756
    %v5829 = vunpack.c.l.b16 %v5757
    %v5830 = vunpack.c.l.b16 %v5758
    %v5831 = vunpack.c.l.b16 %v5759
    %v5832 = vunpack.c.l.b16 %v5760
    %v5833 = vunpack.c.l.b16 %v5761
    %v5834 = vunpack.c.l.b16 %v5762
    %v5835 = vunpack.c.l.b16 %v5763
    %v5836 = vunpack.c.l.b16 %v5764
    %v5837 = vunpack.c.l.b16 %v5765
    %v5838 = vunpack.c.l.b16 %v5766
    %v5839 = vunpack.c.l.b16 %v5767
    %v5840 = vunpack.c.l.b16 %v5768
    %v5841 = vunpack.c.l.b16 %v5769
    %v5842 = vunpack.c.l.b16 %v5770
    %v5843 = vunpack.c.l.b16 %v5771
    %v5844 = vunpack.c.l.b16 %v5772
    %v5845 = vunpack.c.l.b16 %v5773
    %v5846 = vunpack.c.l.b16 %v5774
    %v5847 = vunpack.c.l.b16 %v5775
    %v5848 = vunpack.c.l.b16 %v5776
    %v5849 = vunpack.c.l.b16 %v5777
    %v5850 = vunpack.c.l.b16 %v5778
    %v5851 = vunpack.c.l.b16 %v5779
    %v5852 = vunpack.c.l.b16 %v5780
    %v5853 = vunpack.c.l.b16 %v5781
    %v5854 = vunpack.c.l.b16 %v5782
    %v5855 = vunpack.c.l.b16 %v5783
    %v5856 = vpack.c.b16 %v5821, %v5820
    %v5857 = vpack.c.b16 %v5823, %v5822
    %v5858 = vpack.c.b16 %v5825, %v5824
    %v5859 = vpack.c.b16 %v5827, %v5826
    %v5860 = vpack.c.b16 %v5829, %v5828
    %v5861 = vpack.c.b16 %v5831, %v5830
    %v5862 = vpack.c.b16 %v5833, %v5832
    %v5863 = vpack.c.b16 %v5835, %v5834
    %v5864 = vpack.c.b16 %v5837, %v5836
    %v5865 = vpack.c.b16 %v5839, %v5838
    %v5866 = vpack.c.b16 %v5841, %v5840
    %v5867 = vpack.c.b16 %v5843, %v5842
    %v5868 = vpack.c.b16 %v5845, %v5844
    %v5869 = vpack.c.b16 %v5847, %v5846
    %v5870 = vpack.c.b16 %v5849, %v5848
    %v5871 = vpack.c.b16 %v5851, %v5850
    %v5872 = vpack.c.b16 %v5853, %v5852
    %v5873 = vpack.c.b16 %v5855, %v5854
    %v5893 = vsel %vm112, %v5654, 0
    %v5896 = vsel %vm112, %v5657, 0
    %v5899 = vsel %vm112, %v5660, 0
    %v5902 = vsel %vm112, %v5663, 0
    %v5905 = vsel %vm112, %v5666, 0
    %v5908 = vsel %vm112, %v5669, 0
    %v5911 = vsel %vm112, %v5672, 0
    %v5914 = vsel %vm112, %v5675, 0
    %v5917 = vsel %vm112, %v5678, 0
    %v5920 = vsel %vm112, %v5681, 0
    %v5923 = vsel %vm112, %v5684, 0
    %v5926 = vsel %vm112, %v5687, 0
    %v5929 = vsel %vm112, %v5690, 0
    %v5932 = vsel %vm112, %v5693, 0
    %v5935 = vsel %vm112, %v5696, 0
    %v5938 = vsel %vm112, %v5699, 0
    %v5941 = vsel %vm112, %v5702, 0
    %v5944 = vsel %vm112, %v5705, 0
    %v5947 = vsel %vm112, %v5708, 0
    %v5950 = vsel %vm112, %v5711, 0
    %v5953 = vsel %vm112, %v5714, 0
    %v5956 = vsel %vm112, %v5717, 0
    %v5959 = vsel %vm112, %v5720, 0
    %v5962 = vsel %vm112, %v5723, 0
    %v5965 = vsel %vm112, %v5726, 0
    %v5968 = vsel %vm112, %v5729, 0
    %v5971 = vsel %vm112, %v5732, 0
    %v5974 = vsel %vm112, %v5735, 0
    %v5977 = vsel %vm112, %v5738, 0
    %v5980 = vsel %vm112, %v5741, 0
    %v5983 = vsel %vm112, %v5744, 0
    %v5986 = vsel %vm112, %v5747, 0
    %5988 = vmatprep.subr.bf16.mxu0 0
    %5989 = vmatpush1.bf16.msra.mxu0 %v5856
    %5990 = vmatprep.subr.bf16.mxu0 0
    %5991 = vmatpush1.bf16.msra.mxu0 %v5857
    %5992 = vmatprep.subr.bf16.mxu0 0
    %5993 = vmatpush1.bf16.msra.mxu0 %v5858
    %5994 = vmatprep.subr.bf16.mxu0 0
    %5995 = vmatpush1.bf16.msra.mxu0 %v5859
    %5996 = vmatprep.subr.bf16.mxu0 0
    %5997 = vmatpush1.bf16.msra.mxu0 %v5860
    %5998 = vmatprep.subr.bf16.mxu0 0
    %5999 = vmatpush1.bf16.msra.mxu0 %v5861
    %6000 = vmatprep.subr.bf16.mxu0 0
    %6001 = vmatpush1.bf16.msra.mxu0 %v5862
    %6002 = vmatprep.subr.bf16.mxu0 0
    %6003 = vmatpush1.bf16.msra.mxu0 %v5863
    %6004 = vmatprep.subr.bf16.mxu0 0
    %6005 = vmatpush1.bf16.msra.mxu0 %v5864
    %6006 = vmatprep.subr.bf16.mxu0 0
    %6007 = vmatpush1.bf16.msra.mxu0 %v5865
    %6008 = vmatprep.subr.bf16.mxu0 0
    %6009 = vmatpush1.bf16.msra.mxu0 %v5866
    %6010 = vmatprep.subr.bf16.mxu0 0
    %6011 = vmatpush1.bf16.msra.mxu0 %v5867
    %6012 = vmatprep.subr.bf16.mxu0 0
    %6013 = vmatpush1.bf16.msra.mxu0 %v5868
    %6014 = vmatprep.subr.bf16.mxu0 0
    %6015 = vmatpush1.bf16.msra.mxu0 %v5869
    %6016 = vmatprep.subr.bf16.mxu0 0
    %6017 = vmatpush1.bf16.msra.mxu0 %v5870
    %6018 = vmatprep.subr.bf16.mxu0 0
    %6019 = vmatpush1.bf16.msra.mxu0 %v5871
    %6020 = vmatprep.mubr.bf16.mxu0 %v5653
    %6021 = vmatmul.mubr.bf16.gmra.mrb[0].mxu0 %v5652
    %v6022 = vpop.f32.mrb[0].mxu0
    %v6023 = vadd.f32 0.0, %v6022
    %v6024 = vpop.f32.mrb[0].mxu0
    %v6025 = vpop.f32.mrb[0].mxu0
    %v6026 = vadd.f32 0.0, %v6025
    %v6027 = vpop.f32.mrb[0].mxu0
    %6028 = vmatprep.mubr.bf16.mxu0 %v5656
    %6029 = vmatmul.mubr.bf16.gmra.mrb[0].mxu0 %v5655
    %v6030 = vpop.f32.mrb[0].mxu0
    %v6031 = vadd.f32 0.0, %v6030
    %v6032 = vpop.f32.mrb[0].mxu0
    %v6033 = vpop.f32.mrb[0].mxu0
    %v6034 = vadd.f32 0.0, %v6033
    %v6035 = vpop.f32.mrb[0].mxu0
    %6036 = vmatprep.mubr.bf16.mxu0 %v5659
    %6037 = vmatmul.mubr.bf16.gmra.mrb[0].mxu0 %v5658
    %v6038 = vpop.f32.mrb[0].mxu0
    %v6039 = vadd.f32 0.0, %v6038
    %v6040 = vpop.f32.mrb[0].mxu0
    %v6041 = vpop.f32.mrb[0].mxu0
    %v6042 = vadd.f32 0.0, %v6041
    %v6043 = vpop.f32.mrb[0].mxu0
    %6044 = vmatprep.mubr.bf16.mxu0 %v5662
    %6045 = vmatmul.mubr.bf16.gmra.mrb[0].mxu0 %v5661
    %v6046 = vpop.f32.mrb[0].mxu0
    %v6047 = vadd.f32 0.0, %v6046
    %v6048 = vpop.f32.mrb[0].mxu0
    %v6049 = vpop.f32.mrb[0].mxu0
    %v6050 = vadd.f32 0.0, %v6049
    %v6051 = vpop.f32.mrb[0].mxu0
    %6052 = vmatprep.mubr.bf16.mxu0 %v5665
    %6053 = vmatmul.mubr.bf16.gmra.mrb[0].mxu0 %v5664
    %v6054 = vpop.f32.mrb[0].mxu0
    %v6055 = vadd.f32 0.0, %v6054
    %v6056 = vpop.f32.mrb[0].mxu0
    %v6057 = vpop.f32.mrb[0].mxu0
    %v6058 = vadd.f32 0.0, %v6057
    %v6059 = vpop.f32.mrb[0].mxu0
    %6060 = vmatprep.mubr.bf16.mxu0 %v5668
    %6061 = vmatmul.mubr.bf16.gmra.mrb[0].mxu0 %v5667
    %v6062 = vpop.f32.mrb[0].mxu0
    %v6063 = vadd.f32 0.0, %v6062
    %v6064 = vpop.f32.mrb[0].mxu0
    %v6065 = vpop.f32.mrb[0].mxu0
    %v6066 = vadd.f32 0.0, %v6065
    %v6067 = vpop.f32.mrb[0].mxu0
    %6068 = vmatprep.mubr.bf16.mxu0 %v5671
    %6069 = vmatmul.mubr.bf16.gmra.mrb[0].mxu0 %v5670
    %v6070 = vpop.f32.mrb[0].mxu0
    %v6071 = vadd.f32 0.0, %v6070
    %v6072 = vpop.f32.mrb[0].mxu0
    %v6073 = vpop.f32.mrb[0].mxu0
    %v6074 = vadd.f32 0.0, %v6073
    %v6075 = vpop.f32.mrb[0].mxu0
    %6076 = vmatprep.mubr.bf16.mxu0 %v5674
    %6077 = vmatmul.mubr.bf16.gmra.mrb[0].mxu0 %v5673
    %v6078 = vpop.f32.mrb[0].mxu0
    %v6079 = vadd.f32 0.0, %v6078
    %v6080 = vpop.f32.mrb[0].mxu0
    %v6081 = vpop.f32.mrb[0].mxu0
    %v6082 = vadd.f32 0.0, %v6081
    %v6083 = vpop.f32.mrb[0].mxu0
    %6084 = vmatprep.mubr.bf16.mxu0 %v5677
    %6085 = vmatmul.mubr.bf16.gmra.mrb[0].mxu0 %v5676
    %v6086 = vpop.f32.mrb[0].mxu0
    %v6087 = vadd.f32 0.0, %v6086
    %v6088 = vpop.f32.mrb[0].mxu0
    %v6089 = vpop.f32.mrb[0].mxu0
    %v6090 = vadd.f32 0.0, %v6089
    %v6091 = vpop.f32.mrb[0].mxu0
    %6092 = vmatprep.mubr.bf16.mxu0 %v5680
    %6093 = vmatmul.mubr.bf16.gmra.mrb[0].mxu0 %v5679
    %v6094 = vpop.f32.mrb[0].mxu0
    %v6095 = vadd.f32 0.0, %v6094
    %v6096 = vpop.f32.mrb[0].mxu0
    %v6097 = vpop.f32.mrb[0].mxu0
    %v6098 = vadd.f32 0.0, %v6097
    %v6099 = vpop.f32.mrb[0].mxu0
    %6100 = vmatprep.mubr.bf16.mxu0 %v5683
    %6101 = vmatmul.mubr.bf16.gmra.mrb[0].mxu0 %v5682
    %v6102 = vpop.f32.mrb[0].mxu0
    %v6103 = vadd.f32 0.0, %v6102
    %v6104 = vpop.f32.mrb[0].mxu0
    %v6105 = vpop.f32.mrb[0].mxu0
    %v6106 = vadd.f32 0.0, %v6105
    %v6107 = vpop.f32.mrb[0].mxu0
    %6108 = vmatprep.mubr.bf16.mxu0 %v5686
    %6109 = vmatmul.mubr.bf16.gmra.mrb[0].mxu0 %v5685
    %v6110 = vpop.f32.mrb[0].mxu0
    %v6111 = vadd.f32 0.0, %v6110
    %v6112 = vpop.f32.mrb[0].mxu0
    %v6113 = vpop.f32.mrb[0].mxu0
    %v6114 = vadd.f32 0.0, %v6113
    %v6115 = vpop.f32.mrb[0].mxu0
    %6116 = vmatprep.mubr.bf16.mxu0 %v5689
    %6117 = vmatmul.mubr.bf16.gmra.mrb[0].mxu0 %v5688
    %v6118 = vpop.f32.mrb[0].mxu0
    %v6119 = vadd.f32 0.0, %v6118
    %v6120 = vpop.f32.mrb[0].mxu0
    %v6121 = vpop.f32.mrb[0].mxu0
    %v6122 = vadd.f32 0.0, %v6121
    %v6123 = vpop.f32.mrb[0].mxu0
    %6124 = vmatprep.mubr.bf16.mxu0 %v5692
    %6125 = vmatmul.mubr.bf16.gmra.mrb[0].mxu0 %v5691
    %v6126 = vpop.f32.mrb[0].mxu0
    %v6127 = vadd.f32 0.0, %v6126
    %v6128 = vpop.f32.mrb[0].mxu0
    %v6129 = vpop.f32.mrb[0].mxu0
    %v6130 = vadd.f32 0.0, %v6129
    %v6131 = vpop.f32.mrb[0].mxu0
    %6132 = vmatprep.mubr.bf16.mxu0 %v5695
    %6133 = vmatmul.mubr.bf16.gmra.mrb[0].mxu0 %v5694
    %v6134 = vpop.f32.mrb[0].mxu0
    %v6135 = vadd.f32 0.0, %v6134
    %v6136 = vpop.f32.mrb[0].mxu0
    %v6137 = vpop.f32.mrb[0].mxu0
    %v6138 = vadd.f32 0.0, %v6137
    %v6139 = vpop.f32.mrb[0].mxu0
    %6140 = vmatprep.mubr.bf16.mxu0 %v5698
    %6141 = vmatmul.mubr.bf16.gmra.mrb[0].mxu0 %v5697
    %v6142 = vpop.f32.mrb[0].mxu0
    %v6143 = vadd.f32 0.0, %v6142
    %v6144 = vpop.f32.mrb[0].mxu0
    %v6145 = vpop.f32.mrb[0].mxu0
    %v6146 = vadd.f32 0.0, %v6145
    %v6147 = vpop.f32.mrb[0].mxu0
    %6148 = vmatprep.mubr.bf16.mxu0 %v5701
    %6149 = vmatmul.mubr.bf16.gmra.mrb[0].mxu0 %v5700
    %v6150 = vpop.f32.mrb[0].mxu0
    %v6151 = vadd.f32 0.0, %v6150
    %v6152 = vpop.f32.mrb[0].mxu0
    %v6153 = vpop.f32.mrb[0].mxu0
    %v6154 = vadd.f32 0.0, %v6153
    %v6155 = vpop.f32.mrb[0].mxu0
    %6156 = vmatprep.mubr.bf16.mxu0 %v5704
    %6157 = vmatmul.mubr.bf16.gmra.mrb[0].mxu0 %v5703
    %v6158 = vpop.f32.mrb[0].mxu0
    %v6159 = vadd.f32 0.0, %v6158
    %v6160 = vpop.f32.mrb[0].mxu0
    %v6161 = vpop.f32.mrb[0].mxu0
    %v6162 = vadd.f32 0.0, %v6161
    %v6163 = vpop.f32.mrb[0].mxu0
    %6164 = vmatprep.mubr.bf16.mxu0 %v5707
    %6165 = vmatmul.mubr.bf16.gmra.mrb[0].mxu0 %v5706
    %v6166 = vpop.f32.mrb[0].mxu0
    %v6167 = vadd.f32 0.0, %v6166
    %v6168 = vpop.f32.mrb[0].mxu0
    %v6169 = vpop.f32.mrb[0].mxu0
    %v6170 = vadd.f32 0.0, %v6169
    %v6171 = vpop.f32.mrb[0].mxu0
    %6172 = vmatprep.mubr.bf16.mxu0 %v5710
    %6173 = vmatmul.mubr.bf16.gmra.mrb[0].mxu0 %v5709
    %v6174 = vpop.f32.mrb[0].mxu0
    %v6175 = vadd.f32 0.0, %v6174
    %v6176 = vpop.f32.mrb[0].mxu0
    %v6177 = vpop.f32.mrb[0].mxu0
    %v6178 = vadd.f32 0.0, %v6177
    %v6179 = vpop.f32.mrb[0].mxu0
    %6180 = vmatprep.mubr.bf16.mxu0 %v5713
    %6181 = vmatmul.mubr.bf16.gmra.mrb[0].mxu0 %v5712
    %v6182 = vpop.f32.mrb[0].mxu0
    %v6183 = vadd.f32 0.0, %v6182
    %v6184 = vpop.f32.mrb[0].mxu0
    %v6185 = vpop.f32.mrb[0].mxu0
    %v6186 = vadd.f32 0.0, %v6185
    %v6187 = vpop.f32.mrb[0].mxu0
    %6188 = vmatprep.mubr.bf16.mxu0 %v5716
    %6189 = vmatmul.mubr.bf16.gmra.mrb[0].mxu0 %v5715
    %v6190 = vpop.f32.mrb[0].mxu0
    %v6191 = vadd.f32 0.0, %v6190
    %v6192 = vpop.f32.mrb[0].mxu0
    %v6193 = vpop.f32.mrb[0].mxu0
    %v6194 = vadd.f32 0.0, %v6193
    %v6195 = vpop.f32.mrb[0].mxu0
    %6196 = vmatprep.mubr.bf16.mxu0 %v5719
    %6197 = vmatmul.mubr.bf16.gmra.mrb[0].mxu0 %v5718
    %v6198 = vpop.f32.mrb[0].mxu0
    %v6199 = vadd.f32 0.0, %v6198
    %v6200 = vpop.f32.mrb[0].mxu0
    %v6201 = vpop.f32.mrb[0].mxu0
    %v6202 = vadd.f32 0.0, %v6201
    %v6203 = vpop.f32.mrb[0].mxu0
    %6204 = vmatprep.mubr.bf16.mxu0 %v5722
    %6205 = vmatmul.mubr.bf16.gmra.mrb[0].mxu0 %v5721
    %v6206 = vpop.f32.mrb[0].mxu0
    %v6207 = vadd.f32 0.0, %v6206
    %v6208 = vpop.f32.mrb[0].mxu0
    %v6209 = vpop.f32.mrb[0].mxu0
    %v6210 = vadd.f32 0.0, %v6209
    %v6211 = vpop.f32.mrb[0].mxu0
    %6212 = vmatprep.mubr.bf16.mxu0 %v5725
    %6213 = vmatmul.mubr.bf16.gmra.mrb[0].mxu0 %v5724
    %v6214 = vpop.f32.mrb[0].mxu0
    %v6215 = vadd.f32 0.0, %v6214
    %v6216 = vpop.f32.mrb[0].mxu0
    %v6217 = vpop.f32.mrb[0].mxu0
    %v6218 = vadd.f32 0.0, %v6217
    %v6219 = vpop.f32.mrb[0].mxu0
    %6220 = vmatprep.mubr.bf16.mxu0 %v5728
    %6221 = vmatmul.mubr.bf16.gmra.mrb[0].mxu0 %v5727
    %v6222 = vpop.f32.mrb[0].mxu0
    %v6223 = vadd.f32 0.0, %v6222
    %v6224 = vpop.f32.mrb[0].mxu0
    %v6225 = vpop.f32.mrb[0].mxu0
    %v6226 = vadd.f32 0.0, %v6225
    %v6227 = vpop.f32.mrb[0].mxu0
    %6228 = vmatprep.mubr.bf16.mxu0 %v5731
    %6229 = vmatmul.mubr.bf16.gmra.mrb[0].mxu0 %v5730
    %v6230 = vpop.f32.mrb[0].mxu0
    %v6231 = vadd.f32 0.0, %v6230
    %v6232 = vpop.f32.mrb[0].mxu0
    %v6233 = vpop.f32.mrb[0].mxu0
    %v6234 = vadd.f32 0.0, %v6233
    %v6235 = vpop.f32.mrb[0].mxu0
    %6236 = vmatprep.mubr.bf16.mxu0 %v5734
    %6237 = vmatmul.mubr.bf16.gmra.mrb[0].mxu0 %v5733
    %v6238 = vpop.f32.mrb[0].mxu0
    %v6239 = vadd.f32 0.0, %v6238
    %v6240 = vpop.f32.mrb[0].mxu0
    %v6241 = vpop.f32.mrb[0].mxu0
    %v6242 = vadd.f32 0.0, %v6241
    %v6243 = vpop.f32.mrb[0].mxu0
    %6244 = vmatprep.mubr.bf16.mxu0 %v5737
    %6245 = vmatmul.mubr.bf16.gmra.mrb[0].mxu0 %v5736
    %v6246 = vpop.f32.mrb[0].mxu0
    %v6247 = vadd.f32 0.0, %v6246
    %v6248 = vpop.f32.mrb[0].mxu0
    %v6249 = vpop.f32.mrb[0].mxu0
    %v6250 = vadd.f32 0.0, %v6249
    %v6251 = vpop.f32.mrb[0].mxu0
    %6252 = vmatprep.mubr.bf16.mxu0 %v5740
    %6253 = vmatmul.mubr.bf16.gmra.mrb[0].mxu0 %v5739
    %v6254 = vpop.f32.mrb[0].mxu0
    %v6255 = vadd.f32 0.0, %v6254
    %v6256 = vpop.f32.mrb[0].mxu0
    %v6257 = vpop.f32.mrb[0].mxu0
    %v6258 = vadd.f32 0.0, %v6257
    %v6259 = vpop.f32.mrb[0].mxu0
    %6260 = vmatprep.mubr.bf16.mxu0 %v5743
    %6261 = vmatmul.mubr.bf16.gmra.mrb[0].mxu0 %v5742
    %v6262 = vpop.f32.mrb[0].mxu0
    %v6263 = vadd.f32 0.0, %v6262
    %v6264 = vpop.f32.mrb[0].mxu0
    %v6265 = vpop.f32.mrb[0].mxu0
    %v6266 = vadd.f32 0.0, %v6265
    %v6267 = vpop.f32.mrb[0].mxu0
    %6268 = vmatprep.mubr.bf16.mxu0 %v5746
    %6269 = vmatmul.mubr.bf16.gmra.mrb[0].mxu0 %v5745
    %v6270 = vpop.f32.mrb[0].mxu0
    %v6271 = vadd.f32 0.0, %v6270
    %v6272 = vpop.f32.mrb[0].mxu0
    %v6273 = vpop.f32.mrb[0].mxu0
    %v6274 = vadd.f32 0.0, %v6273
    %v6275 = vpop.f32.mrb[0].mxu0
    %6276 = vdwg.mxu0
    %6277 = vmatprep.subr.bf16.mxu0 0
    %6278 = vmatpush1.bf16.msra.mxu0 %v5872
    %6279 = vmatprep.subr.bf16.mxu0 0
    %6280 = vmatpush1.bf16.msra.mxu0 %v5873
    %6281 = vmatprep.subr.bf16.mxu0 0
    %6282 = vmatpush1.bf16.msra.mxu0 0
    %6283 = vmatprep.subr.bf16.mxu0 0
    %6284 = vmatpush1.bf16.msra.mxu0 0
    %6285 = vmatprep.subr.bf16.mxu0 0
    %6286 = vmatpush1.bf16.msra.mxu0 0
    %6287 = vmatprep.subr.bf16.mxu0 0
    %6288 = vmatpush1.bf16.msra.mxu0 0
    %6289 = vmatprep.subr.bf16.mxu0 0
    %6290 = vmatpush1.bf16.msra.mxu0 0
    %6291 = vmatprep.subr.bf16.mxu0 0
    %6292 = vmatpush1.bf16.msra.mxu0 0
    %6293 = vmatprep.subr.bf16.mxu0 0
    %6294 = vmatpush1.bf16.msra.mxu0 0
    %6295 = vmatprep.subr.bf16.mxu0 0
    %6296 = vmatpush1.bf16.msra.mxu0 0
    %6297 = vmatprep.subr.bf16.mxu0 0
    %6298 = vmatpush1.bf16.msra.mxu0 0
    %6299 = vmatprep.subr.bf16.mxu0 0
    %6300 = vmatpush1.bf16.msra.mxu0 0
    %6301 = vmatprep.subr.bf16.mxu0 0
    %6302 = vmatpush1.bf16.msra.mxu0 0
    %6303 = vmatprep.subr.bf16.mxu0 0
    %6304 = vmatpush1.bf16.msra.mxu0 0
    %6305 = vmatprep.subr.bf16.mxu0 0
    %6306 = vmatpush1.bf16.msra.mxu0 0
    %6307 = vmatprep.subr.bf16.mxu0 0
    %6308 = vmatpush1.bf16.msra.mxu0 0
    %6309 = vmatprep.mubr.bf16.mxu0 0
    %6310 = vmatmul.mubr.bf16.gmra.mrb[0].mxu0 %v5893
    %v6311 = vpop.f32.mrb[0].mxu0
    %v6312 = vadd.f32 %v6023, %v6311
    %v6313 = vpop.f32.mrb[0].mxu0
    %v6314 = vpop.f32.mrb[0].mxu0
    %v6315 = vadd.f32 %v6026, %v6314
    %v6316 = vpop.f32.mrb[0].mxu0
    %6317 = vmatprep.mubr.bf16.mxu0 0
    %6318 = vmatmul.mubr.bf16.gmra.mrb[0].mxu0 %v5896
    %v6319 = vpop.f32.mrb[0].mxu0
    %v6320 = vadd.f32 %v6031, %v6319
    %v6321 = vpop.f32.mrb[0].mxu0
    %v6322 = vpop.f32.mrb[0].mxu0
    %v6323 = vadd.f32 %v6034, %v6322
    %v6324 = vpop.f32.mrb[0].mxu0
    %6325 = vmatprep.mubr.bf16.mxu0 0
    %6326 = vmatmul.mubr.bf16.gmra.mrb[0].mxu0 %v5899
    %v6327 = vpop.f32.mrb[0].mxu0
    %v6328 = vadd.f32 %v6039, %v6327
    %v6329 = vpop.f32.mrb[0].mxu0
    %v6330 = vpop.f32.mrb[0].mxu0
    %v6331 = vadd.f32 %v6042, %v6330
    %v6332 = vpop.f32.mrb[0].mxu0
    %6333 = vmatprep.mubr.bf16.mxu0 0
    %6334 = vmatmul.mubr.bf16.gmra.mrb[0].mxu0 %v5902
    %v6335 = vpop.f32.mrb[0].mxu0
    %v6336 = vadd.f32 %v6047, %v6335
    %v6337 = vpop.f32.mrb[0].mxu0
    %v6338 = vpop.f32.mrb[0].mxu0
    %v6339 = vadd.f32 %v6050, %v6338
    %v6340 = vpop.f32.mrb[0].mxu0
    %6341 = vmatprep.mubr.bf16.mxu0 0
    %6342 = vmatmul.mubr.bf16.gmra.mrb[0].mxu0 %v5905
    %v6343 = vpop.f32.mrb[0].mxu0
    %v6344 = vadd.f32 %v6055, %v6343
    %v6345 = vpop.f32.mrb[0].mxu0
    %v6346 = vpop.f32.mrb[0].mxu0
    %v6347 = vadd.f32 %v6058, %v6346
    %v6348 = vpop.f32.mrb[0].mxu0
    %6349 = vmatprep.mubr.bf16.mxu0 0
    %6350 = vmatmul.mubr.bf16.gmra.mrb[0].mxu0 %v5908
    %v6351 = vpop.f32.mrb[0].mxu0
    %v6352 = vadd.f32 %v6063, %v6351
    %v6353 = vpop.f32.mrb[0].mxu0
    %v6354 = vpop.f32.mrb[0].mxu0
    %v6355 = vadd.f32 %v6066, %v6354
    %v6356 = vpop.f32.mrb[0].mxu0
    %6357 = vmatprep.mubr.bf16.mxu0 0
    %6358 = vmatmul.mubr.bf16.gmra.mrb[0].mxu0 %v5911
    %v6359 = vpop.f32.mrb[0].mxu0
    %v6360 = vadd.f32 %v6071, %v6359
    %v6361 = vpop.f32.mrb[0].mxu0
    %v6362 = vpop.f32.mrb[0].mxu0
    %v6363 = vadd.f32 %v6074, %v6362
    %v6364 = vpop.f32.mrb[0].mxu0
    %6365 = vmatprep.mubr.bf16.mxu0 0
    %6366 = vmatmul.mubr.bf16.gmra.mrb[0].mxu0 %v5914
    %v6367 = vpop.f32.mrb[0].mxu0
    %v6368 = vadd.f32 %v6079, %v6367
    %v6369 = vpop.f32.mrb[0].mxu0
    %v6370 = vpop.f32.mrb[0].mxu0
    %v6371 = vadd.f32 %v6082, %v6370
    %v6372 = vpop.f32.mrb[0].mxu0
    %6373 = vmatprep.mubr.bf16.mxu0 0
    %6374 = vmatmul.mubr.bf16.gmra.mrb[0].mxu0 %v5917
    %v6375 = vpop.f32.mrb[0].mxu0
    %v6376 = vadd.f32 %v6087, %v6375
    %v6377 = vpop.f32.mrb[0].mxu0
    %v6378 = vpop.f32.mrb[0].mxu0
    %v6379 = vadd.f32 %v6090, %v6378
    %v6380 = vpop.f32.mrb[0].mxu0
    %6381 = vmatprep.mubr.bf16.mxu0 0
    %6382 = vmatmul.mubr.bf16.gmra.mrb[0].mxu0 %v5920
    %v6383 = vpop.f32.mrb[0].mxu0
    %v6384 = vadd.f32 %v6095, %v6383
    %v6385 = vpop.f32.mrb[0].mxu0
    %v6386 = vpop.f32.mrb[0].mxu0
    %v6387 = vadd.f32 %v6098, %v6386
    %v6388 = vpop.f32.mrb[0].mxu0
    %6389 = vmatprep.mubr.bf16.mxu0 0
    %6390 = vmatmul.mubr.bf16.gmra.mrb[0].mxu0 %v5923
    %v6391 = vpop.f32.mrb[0].mxu0
    %v6392 = vadd.f32 %v6103, %v6391
    %v6393 = vpop.f32.mrb[0].mxu0
    %v6394 = vpop.f32.mrb[0].mxu0
    %v6395 = vadd.f32 %v6106, %v6394
    %v6396 = vpop.f32.mrb[0].mxu0
    %6397 = vmatprep.mubr.bf16.mxu0 0
    %6398 = vmatmul.mubr.bf16.gmra.mrb[0].mxu0 %v5926
    %v6399 = vpop.f32.mrb[0].mxu0
    %v6400 = vadd.f32 %v6111, %v6399
    %v6401 = vpop.f32.mrb[0].mxu0
    %v6402 = vpop.f32.mrb[0].mxu0
    %v6403 = vadd.f32 %v6114, %v6402
    %v6404 = vpop.f32.mrb[0].mxu0
    %6405 = vmatprep.mubr.bf16.mxu0 0
    %6406 = vmatmul.mubr.bf16.gmra.mrb[0].mxu0 %v5929
    %v6407 = vpop.f32.mrb[0].mxu0
    %v6408 = vadd.f32 %v6119, %v6407
    %v6409 = vpop.f32.mrb[0].mxu0
    %v6410 = vpop.f32.mrb[0].mxu0
    %v6411 = vadd.f32 %v6122, %v6410
    %v6412 = vpop.f32.mrb[0].mxu0
    %6413 = vmatprep.mubr.bf16.mxu0 0
    %6414 = vmatmul.mubr.bf16.gmra.mrb[0].mxu0 %v5932
    %v6415 = vpop.f32.mrb[0].mxu0
    %v6416 = vadd.f32 %v6127, %v6415
    %v6417 = vpop.f32.mrb[0].mxu0
    %v6418 = vpop.f32.mrb[0].mxu0
    %v6419 = vadd.f32 %v6130, %v6418
    %v6420 = vpop.f32.mrb[0].mxu0
    %6421 = vmatprep.mubr.bf16.mxu0 0
    %6422 = vmatmul.mubr.bf16.gmra.mrb[0].mxu0 %v5935
    %v6423 = vpop.f32.mrb[0].mxu0
    %v6424 = vadd.f32 %v6135, %v6423
    %v6425 = vpop.f32.mrb[0].mxu0
    %v6426 = vpop.f32.mrb[0].mxu0
    %v6427 = vadd.f32 %v6138, %v6426
    %v6428 = vpop.f32.mrb[0].mxu0
    %6429 = vmatprep.mubr.bf16.mxu0 0
    %6430 = vmatmul.mubr.bf16.gmra.mrb[0].mxu0 %v5938
    %v6431 = vpop.f32.mrb[0].mxu0
    %v6432 = vadd.f32 %v6143, %v6431
    %v6433 = vpop.f32.mrb[0].mxu0
    %v6434 = vpop.f32.mrb[0].mxu0
    %v6435 = vadd.f32 %v6146, %v6434
    %v6436 = vpop.f32.mrb[0].mxu0
    %6437 = vmatprep.mubr.bf16.mxu0 0
    %6438 = vmatmul.mubr.bf16.gmra.mrb[0].mxu0 %v5941
    %v6439 = vpop.f32.mrb[0].mxu0
    %v6440 = vadd.f32 %v6151, %v6439
    %v6441 = vpop.f32.mrb[0].mxu0
    %v6442 = vpop.f32.mrb[0].mxu0
    %v6443 = vadd.f32 %v6154, %v6442
    %v6444 = vpop.f32.mrb[0].mxu0
    %6445 = vmatprep.mubr.bf16.mxu0 0
    %6446 = vmatmul.mubr.bf16.gmra.mrb[0].mxu0 %v5944
    %v6447 = vpop.f32.mrb[0].mxu0
    %v6448 = vadd.f32 %v6159, %v6447
    %v6449 = vpop.f32.mrb[0].mxu0
    %v6450 = vpop.f32.mrb[0].mxu0
    %v6451 = vadd.f32 %v6162, %v6450
    %v6452 = vpop.f32.mrb[0].mxu0
    %6453 = vmatprep.mubr.bf16.mxu0 0
    %6454 = vmatmul.mubr.bf16.gmra.mrb[0].mxu0 %v5947
    %v6455 = vpop.f32.mrb[0].mxu0
    %v6456 = vadd.f32 %v6167, %v6455
    %v6457 = vpop.f32.mrb[0].mxu0
    %v6458 = vpop.f32.mrb[0].mxu0
    %v6459 = vadd.f32 %v6170, %v6458
    %v6460 = vpop.f32.mrb[0].mxu0
    %6461 = vmatprep.mubr.bf16.mxu0 0
    %6462 = vmatmul.mubr.bf16.gmra.mrb[0].mxu0 %v5950
    %v6463 = vpop.f32.mrb[0].mxu0
    %v6464 = vadd.f32 %v6175, %v6463
    %v6465 = vpop.f32.mrb[0].mxu0
    %v6466 = vpop.f32.mrb[0].mxu0
    %v6467 = vadd.f32 %v6178, %v6466
    %v6468 = vpop.f32.mrb[0].mxu0
    %6469 = vmatprep.mubr.bf16.mxu0 0
    %6470 = vmatmul.mubr.bf16.gmra.mrb[0].mxu0 %v5953
    %v6471 = vpop.f32.mrb[0].mxu0
    %v6472 = vadd.f32 %v6183, %v6471
    %v6473 = vpop.f32.mrb[0].mxu0
    %v6474 = vpop.f32.mrb[0].mxu0
    %v6475 = vadd.f32 %v6186, %v6474
    %v6476 = vpop.f32.mrb[0].mxu0
    %6477 = vmatprep.mubr.bf16.mxu0 0
    %6478 = vmatmul.mubr.bf16.gmra.mrb[0].mxu0 %v5956
    %v6479 = vpop.f32.mrb[0].mxu0
    %v6480 = vadd.f32 %v6191, %v6479
    %v6481 = vpop.f32.mrb[0].mxu0
    %v6482 = vpop.f32.mrb[0].mxu0
    %v6483 = vadd.f32 %v6194, %v6482
    %v6484 = vpop.f32.mrb[0].mxu0
    %6485 = vmatprep.mubr.bf16.mxu0 0
    %6486 = vmatmul.mubr.bf16.gmra.mrb[0].mxu0 %v5959
    %v6487 = vpop.f32.mrb[0].mxu0
    %v6488 = vadd.f32 %v6199, %v6487
    %v6489 = vpop.f32.mrb[0].mxu0
    %v6490 = vpop.f32.mrb[0].mxu0
    %v6491 = vadd.f32 %v6202, %v6490
    %v6492 = vpop.f32.mrb[0].mxu0
    %6493 = vmatprep.mubr.bf16.mxu0 0
    %6494 = vmatmul.mubr.bf16.gmra.mrb[0].mxu0 %v5962
    %v6495 = vpop.f32.mrb[0].mxu0
    %v6496 = vadd.f32 %v6207, %v6495
    %v6497 = vpop.f32.mrb[0].mxu0
    %v6498 = vpop.f32.mrb[0].mxu0
    %v6499 = vadd.f32 %v6210, %v6498
    %v6500 = vpop.f32.mrb[0].mxu0
    %6501 = vmatprep.mubr.bf16.mxu0 0
    %6502 = vmatmul.mubr.bf16.gmra.mrb[0].mxu0 %v5965
    %v6503 = vpop.f32.mrb[0].mxu0
    %v6504 = vadd.f32 %v6215, %v6503
    %v6505 = vpop.f32.mrb[0].mxu0
    %v6506 = vpop.f32.mrb[0].mxu0
    %v6507 = vadd.f32 %v6218, %v6506
    %v6508 = vpop.f32.mrb[0].mxu0
    %6509 = vmatprep.mubr.bf16.mxu0 0
    %6510 = vmatmul.mubr.bf16.gmra.mrb[0].mxu0 %v5968
    %v6511 = vpop.f32.mrb[0].mxu0
    %v6512 = vadd.f32 %v6223, %v6511
    %v6513 = vpop.f32.mrb[0].mxu0
    %v6514 = vpop.f32.mrb[0].mxu0
    %v6515 = vadd.f32 %v6226, %v6514
    %v6516 = vpop.f32.mrb[0].mxu0
    %6517 = vmatprep.mubr.bf16.mxu0 0
    %6518 = vmatmul.mubr.bf16.gmra.mrb[0].mxu0 %v5971
    %v6519 = vpop.f32.mrb[0].mxu0
    %v6520 = vadd.f32 %v6231, %v6519
    %v6521 = vpop.f32.mrb[0].mxu0
    %v6522 = vpop.f32.mrb[0].mxu0
    %v6523 = vadd.f32 %v6234, %v6522
    %v6524 = vpop.f32.mrb[0].mxu0
    %6525 = vmatprep.mubr.bf16.mxu0 0
    %6526 = vmatmul.mubr.bf16.gmra.mrb[0].mxu0 %v5974
    %v6527 = vpop.f32.mrb[0].mxu0
    %v6528 = vadd.f32 %v6239, %v6527
    %v6529 = vpop.f32.mrb[0].mxu0
    %v6530 = vpop.f32.mrb[0].mxu0
    %v6531 = vadd.f32 %v6242, %v6530
    %v6532 = vpop.f32.mrb[0].mxu0
    %6533 = vmatprep.mubr.bf16.mxu0 0
    %6534 = vmatmul.mubr.bf16.gmra.mrb[0].mxu0 %v5977
    %v6535 = vpop.f32.mrb[0].mxu0
    %v6536 = vadd.f32 %v6247, %v6535
    %v6537 = vpop.f32.mrb[0].mxu0
    %v6538 = vpop.f32.mrb[0].mxu0
    %v6539 = vadd.f32 %v6250, %v6538
    %v6540 = vpop.f32.mrb[0].mxu0
    %6541 = vmatprep.mubr.bf16.mxu0 0
    %6542 = vmatmul.mubr.bf16.gmra.mrb[0].mxu0 %v5980
    %v6543 = vpop.f32.mrb[0].mxu0
    %v6544 = vadd.f32 %v6255, %v6543
    %v6545 = vpop.f32.mrb[0].mxu0
    %v6546 = vpop.f32.mrb[0].mxu0
    %v6547 = vadd.f32 %v6258, %v6546
    %v6548 = vpop.f32.mrb[0].mxu0
    %6549 = vmatprep.mubr.bf16.mxu0 0
    %6550 = vmatmul.mubr.bf16.gmra.mrb[0].mxu0 %v5983
    %v6551 = vpop.f32.mrb[0].mxu0
    %v6552 = vadd.f32 %v6263, %v6551
    %v6553 = vpop.f32.mrb[0].mxu0
    %v6554 = vpop.f32.mrb[0].mxu0
    %v6555 = vadd.f32 %v6266, %v6554
    %v6556 = vpop.f32.mrb[0].mxu0
    %6557 = vmatprep.mubr.bf16.mxu0 0
    %6558 = vmatmul.mubr.bf16.gmra.mrb[0].mxu0 %v5986
    %v6559 = vpop.f32.mrb[0].mxu0
    %v6560 = vadd.f32 %v6271, %v6559
    %v6561 = vpop.f32.mrb[0].mxu0
    %v6562 = vpop.f32.mrb[0].mxu0
    %v6563 = vadd.f32 %v6274, %v6562
    %v6564 = vpop.f32.mrb[0].mxu0
    %6565 = vdwg.mxu0
    %v6602 = vunpack.c.l.b16 %v3119
    %v6603 = vunpack.c.l.b16 %v3120
    %v6604 = vunpack.c.l.b16 %v3121
    %v6605 = vunpack.c.l.b16 %v3122
    %v6606 = vunpack.c.l.b16 %v3123
    %v6607 = vunpack.c.l.b16 %v3124
    %v6608 = vunpack.c.l.b16 %v3125
    %v6609 = vunpack.c.l.b16 %v3126
    %v6610 = vunpack.c.l.b16 %v3127
    %v6611 = vunpack.c.l.b16 %v3128
    %v6612 = vunpack.c.l.b16 %v3129
    %v6613 = vunpack.c.l.b16 %v3130
    %v6614 = vunpack.c.l.b16 %v3131
    %v6615 = vunpack.c.l.b16 %v3132
    %v6616 = vunpack.c.l.b16 %v3133
    %v6617 = vunpack.c.l.b16 %v3134
    %v6618 = vunpack.c.l.b16 %v3135
    %v6619 = vunpack.c.l.b16 %v3136
    %v6620 = vunpack.c.l.b16 %v3137
    %v6621 = vunpack.c.l.b16 %v3138
    %v6622 = vunpack.c.l.b16 %v3139
    %v6623 = vunpack.c.l.b16 %v3140
    %v6624 = vunpack.c.l.b16 %v3141
    %v6625 = vunpack.c.l.b16 %v3142
    %v6626 = vunpack.c.l.b16 %v3143
    %v6627 = vunpack.c.l.b16 %v3144
    %v6628 = vunpack.c.l.b16 %v3145
    %v6629 = vunpack.c.l.b16 %v3146
    %v6630 = vunpack.c.l.b16 %v3147
    %v6631 = vunpack.c.l.b16 %v3148
    %v6632 = vunpack.c.l.b16 %v3149
    %v6633 = vunpack.c.l.b16 %v3150
    %v6634 = vunpack.c.l.b16 %v3151
    %v6635 = vunpack.c.l.b16 %v3152
    %v6636 = vunpack.c.l.b16 %v3153
    %v6637 = vunpack.c.l.b16 %v3154
    %v6638 = vpack.c.b16 %v6603, %v6602
    %v6639 = vpack.c.b16 %v6605, %v6604
    %v6640 = vpack.c.b16 %v6607, %v6606
    %v6641 = vpack.c.b16 %v6609, %v6608
    %v6642 = vpack.c.b16 %v6611, %v6610
    %v6643 = vpack.c.b16 %v6613, %v6612
    %v6644 = vpack.c.b16 %v6615, %v6614
    %v6645 = vpack.c.b16 %v6617, %v6616
    %v6646 = vpack.c.b16 %v6619, %v6618
    %v6647 = vpack.c.b16 %v6621, %v6620
    %v6648 = vpack.c.b16 %v6623, %v6622
    %v6649 = vpack.c.b16 %v6625, %v6624
    %v6650 = vpack.c.b16 %v6627, %v6626
    %v6651 = vpack.c.b16 %v6629, %v6628
    %v6652 = vpack.c.b16 %v6631, %v6630
    %v6653 = vpack.c.b16 %v6633, %v6632
    %v6654 = vpack.c.b16 %v6635, %v6634
    %v6655 = vpack.c.b16 %v6637, %v6636
    %v6675 = vsel %vm112, %v3025, 0
    %v6678 = vsel %vm112, %v3028, 0
    %v6681 = vsel %vm112, %v3031, 0
    %v6684 = vsel %vm112, %v3034, 0
    %v6687 = vsel %vm112, %v3037, 0
    %v6690 = vsel %vm112, %v3040, 0
    %v6693 = vsel %vm112, %v3043, 0
    %v6696 = vsel %vm112, %v3046, 0
    %v6699 = vsel %vm112, %v3049, 0
    %v6702 = vsel %vm112, %v3052, 0
    %v6705 = vsel %vm112, %v3055, 0
    %v6708 = vsel %vm112, %v3058, 0
    %v6711 = vsel %vm112, %v3061, 0
    %v6714 = vsel %vm112, %v3064, 0
    %v6717 = vsel %vm112, %v3067, 0
    %v6720 = vsel %vm112, %v3070, 0
    %v6723 = vsel %vm112, %v3073, 0
    %v6726 = vsel %vm112, %v3076, 0
    %v6729 = vsel %vm112, %v3079, 0
    %v6732 = vsel %vm112, %v3082, 0
    %v6735 = vsel %vm112, %v3085, 0
    %v6738 = vsel %vm112, %v3088, 0
    %v6741 = vsel %vm112, %v3091, 0
    %v6744 = vsel %vm112, %v3094, 0
    %v6747 = vsel %vm112, %v3097, 0
    %v6750 = vsel %vm112, %v3100, 0
    %v6753 = vsel %vm112, %v3103, 0
    %v6756 = vsel %vm112, %v3106, 0
    %v6759 = vsel %vm112, %v3109, 0
    %v6762 = vsel %vm112, %v3112, 0
    %v6765 = vsel %vm112, %v3115, 0
    %v6768 = vsel %vm112, %v3118, 0
    %6770 = vmatprep.subr.bf16.mxu0 0
    %6771 = vmatpush1.bf16.msra.mxu0 %v6638
    %6772 = vmatprep.subr.bf16.mxu0 0
    %6773 = vmatpush1.bf16.msra.mxu0 %v6639
    %6774 = vmatprep.subr.bf16.mxu0 0
    %6775 = vmatpush1.bf16.msra.mxu0 %v6640
    %6776 = vmatprep.subr.bf16.mxu0 0
    %6777 = vmatpush1.bf16.msra.mxu0 %v6641
    %6778 = vmatprep.subr.bf16.mxu0 0
    %6779 = vmatpush1.bf16.msra.mxu0 %v6642
    %6780 = vmatprep.subr.bf16.mxu0 0
    %6781 = vmatpush1.bf16.msra.mxu0 %v6643
    %6782 = vmatprep.subr.bf16.mxu0 0
    %6783 = vmatpush1.bf16.msra.mxu0 %v6644
    %6784 = vmatprep.subr.bf16.mxu0 0
    %6785 = vmatpush1.bf16.msra.mxu0 %v6645
    %6786 = vmatprep.subr.bf16.mxu0 0
    %6787 = vmatpush1.bf16.msra.mxu0 %v6646
    %6788 = vmatprep.subr.bf16.mxu0 0
    %6789 = vmatpush1.bf16.msra.mxu0 %v6647
    %6790 = vmatprep.subr.bf16.mxu0 0
    %6791 = vmatpush1.bf16.msra.mxu0 %v6648
    %6792 = vmatprep.subr.bf16.mxu0 0
    %6793 = vmatpush1.bf16.msra.mxu0 %v6649
    %6794 = vmatprep.subr.bf16.mxu0 0
    %6795 = vmatpush1.bf16.msra.mxu0 %v6650
    %6796 = vmatprep.subr.bf16.mxu0 0
    %6797 = vmatpush1.bf16.msra.mxu0 %v6651
    %6798 = vmatprep.subr.bf16.mxu0 0
    %6799 = vmatpush1.bf16.msra.mxu0 %v6652
    %6800 = vmatprep.subr.bf16.mxu0 0
    %6801 = vmatpush1.bf16.msra.mxu0 %v6653
    %6802 = vmatprep.mubr.bf16.mxu0 %v3024
    %6803 = vmatmul.mubr.bf16.gmra.mrb[0].mxu0 %v3023
    %v6804 = vpop.f32.mrb[0].mxu0
    %v6805 = vadd.f32 %v6312, %v6804
    %v6806 = vpop.f32.mrb[0].mxu0
    %v6807 = vpop.f32.mrb[0].mxu0
    %v6808 = vadd.f32 %v6315, %v6807
    %v6809 = vpop.f32.mrb[0].mxu0
    %6810 = vmatprep.mubr.bf16.mxu0 %v3027
    %6811 = vmatmul.mubr.bf16.gmra.mrb[0].mxu0 %v3026
    %v6812 = vpop.f32.mrb[0].mxu0
    %v6813 = vadd.f32 %v6320, %v6812
    %v6814 = vpop.f32.mrb[0].mxu0
    %v6815 = vpop.f32.mrb[0].mxu0
    %v6816 = vadd.f32 %v6323, %v6815
    %v6817 = vpop.f32.mrb[0].mxu0
    %6818 = vmatprep.mubr.bf16.mxu0 %v3030
    %6819 = vmatmul.mubr.bf16.gmra.mrb[0].mxu0 %v3029
    %v6820 = vpop.f32.mrb[0].mxu0
    %v6821 = vadd.f32 %v6328, %v6820
    %v6822 = vpop.f32.mrb[0].mxu0
    %v6823 = vpop.f32.mrb[0].mxu0
    %v6824 = vadd.f32 %v6331, %v6823
    %v6825 = vpop.f32.mrb[0].mxu0
    %6826 = vmatprep.mubr.bf16.mxu0 %v3033
    %6827 = vmatmul.mubr.bf16.gmra.mrb[0].mxu0 %v3032
    %v6828 = vpop.f32.mrb[0].mxu0
    %v6829 = vadd.f32 %v6336, %v6828
    %v6830 = vpop.f32.mrb[0].mxu0
    %v6831 = vpop.f32.mrb[0].mxu0
    %v6832 = vadd.f32 %v6339, %v6831
    %v6833 = vpop.f32.mrb[0].mxu0
    %6834 = vmatprep.mubr.bf16.mxu0 %v3036
    %6835 = vmatmul.mubr.bf16.gmra.mrb[0].mxu0 %v3035
    %v6836 = vpop.f32.mrb[0].mxu0
    %v6837 = vadd.f32 %v6344, %v6836
    %v6838 = vpop.f32.mrb[0].mxu0
    %v6839 = vpop.f32.mrb[0].mxu0
    %v6840 = vadd.f32 %v6347, %v6839
    %v6841 = vpop.f32.mrb[0].mxu0
    %6842 = vmatprep.mubr.bf16.mxu0 %v3039
    %6843 = vmatmul.mubr.bf16.gmra.mrb[0].mxu0 %v3038
    %v6844 = vpop.f32.mrb[0].mxu0
    %v6845 = vadd.f32 %v6352, %v6844
    %v6846 = vpop.f32.mrb[0].mxu0
    %v6847 = vpop.f32.mrb[0].mxu0
    %v6848 = vadd.f32 %v6355, %v6847
    %v6849 = vpop.f32.mrb[0].mxu0
    %6850 = vmatprep.mubr.bf16.mxu0 %v3042
    %6851 = vmatmul.mubr.bf16.gmra.mrb[0].mxu0 %v3041
    %v6852 = vpop.f32.mrb[0].mxu0
    %v6853 = vadd.f32 %v6360, %v6852
    %v6854 = vpop.f32.mrb[0].mxu0
    %v6855 = vpop.f32.mrb[0].mxu0
    %v6856 = vadd.f32 %v6363, %v6855
    %v6857 = vpop.f32.mrb[0].mxu0
    %6858 = vmatprep.mubr.bf16.mxu0 %v3045
    %6859 = vmatmul.mubr.bf16.gmra.mrb[0].mxu0 %v3044
    %v6860 = vpop.f32.mrb[0].mxu0
    %v6861 = vadd.f32 %v6368, %v6860
    %v6862 = vpop.f32.mrb[0].mxu0
    %v6863 = vpop.f32.mrb[0].mxu0
    %v6864 = vadd.f32 %v6371, %v6863
    %v6865 = vpop.f32.mrb[0].mxu0
    %6866 = vmatprep.mubr.bf16.mxu0 %v3048
    %6867 = vmatmul.mubr.bf16.gmra.mrb[0].mxu0 %v3047
    %v6868 = vpop.f32.mrb[0].mxu0
    %v6869 = vadd.f32 %v6376, %v6868
    %v6870 = vpop.f32.mrb[0].mxu0
    %v6871 = vpop.f32.mrb[0].mxu0
    %v6872 = vadd.f32 %v6379, %v6871
    %v6873 = vpop.f32.mrb[0].mxu0
    %6874 = vmatprep.mubr.bf16.mxu0 %v3051
    %6875 = vmatmul.mubr.bf16.gmra.mrb[0].mxu0 %v3050
    %v6876 = vpop.f32.mrb[0].mxu0
    %v6877 = vadd.f32 %v6384, %v6876
    %v6878 = vpop.f32.mrb[0].mxu0
    %v6879 = vpop.f32.mrb[0].mxu0
    %v6880 = vadd.f32 %v6387, %v6879
    %v6881 = vpop.f32.mrb[0].mxu0
    %6882 = vmatprep.mubr.bf16.mxu0 %v3054
    %6883 = vmatmul.mubr.bf16.gmra.mrb[0].mxu0 %v3053
    %v6884 = vpop.f32.mrb[0].mxu0
    %v6885 = vadd.f32 %v6392, %v6884
    %v6886 = vpop.f32.mrb[0].mxu0
    %v6887 = vpop.f32.mrb[0].mxu0
    %v6888 = vadd.f32 %v6395, %v6887
    %v6889 = vpop.f32.mrb[0].mxu0
    %6890 = vmatprep.mubr.bf16.mxu0 %v3057
    %6891 = vmatmul.mubr.bf16.gmra.mrb[0].mxu0 %v3056
    %v6892 = vpop.f32.mrb[0].mxu0
    %v6893 = vadd.f32 %v6400, %v6892
    %v6894 = vpop.f32.mrb[0].mxu0
    %v6895 = vpop.f32.mrb[0].mxu0
    %v6896 = vadd.f32 %v6403, %v6895
    %v6897 = vpop.f32.mrb[0].mxu0
    %6898 = vmatprep.mubr.bf16.mxu0 %v3060
    %6899 = vmatmul.mubr.bf16.gmra.mrb[0].mxu0 %v3059
    %v6900 = vpop.f32.mrb[0].mxu0
    %v6901 = vadd.f32 %v6408, %v6900
    %v6902 = vpop.f32.mrb[0].mxu0
    %v6903 = vpop.f32.mrb[0].mxu0
    %v6904 = vadd.f32 %v6411, %v6903
    %v6905 = vpop.f32.mrb[0].mxu0
    %6906 = vmatprep.mubr.bf16.mxu0 %v3063
    %6907 = vmatmul.mubr.bf16.gmra.mrb[0].mxu0 %v3062
    %v6908 = vpop.f32.mrb[0].mxu0
    %v6909 = vadd.f32 %v6416, %v6908
    %v6910 = vpop.f32.mrb[0].mxu0
    %v6911 = vpop.f32.mrb[0].mxu0
    %v6912 = vadd.f32 %v6419, %v6911
    %v6913 = vpop.f32.mrb[0].mxu0
    %6914 = vmatprep.mubr.bf16.mxu0 %v3066
    %6915 = vmatmul.mubr.bf16.gmra.mrb[0].mxu0 %v3065
    %v6916 = vpop.f32.mrb[0].mxu0
    %v6917 = vadd.f32 %v6424, %v6916
    %v6918 = vpop.f32.mrb[0].mxu0
    %v6919 = vpop.f32.mrb[0].mxu0
    %v6920 = vadd.f32 %v6427, %v6919
    %v6921 = vpop.f32.mrb[0].mxu0
    %6922 = vmatprep.mubr.bf16.mxu0 %v3069
    %6923 = vmatmul.mubr.bf16.gmra.mrb[0].mxu0 %v3068
    %v6924 = vpop.f32.mrb[0].mxu0
    %v6925 = vadd.f32 %v6432, %v6924
    %v6926 = vpop.f32.mrb[0].mxu0
    %v6927 = vpop.f32.mrb[0].mxu0
    %v6928 = vadd.f32 %v6435, %v6927
    %v6929 = vpop.f32.mrb[0].mxu0
    %6930 = vmatprep.mubr.bf16.mxu0 %v3072
    %6931 = vmatmul.mubr.bf16.gmra.mrb[0].mxu0 %v3071
    %v6932 = vpop.f32.mrb[0].mxu0
    %v6933 = vadd.f32 %v6440, %v6932
    %v6934 = vpop.f32.mrb[0].mxu0
    %v6935 = vpop.f32.mrb[0].mxu0
    %v6936 = vadd.f32 %v6443, %v6935
    %v6937 = vpop.f32.mrb[0].mxu0
    %6938 = vmatprep.mubr.bf16.mxu0 %v3075
    %6939 = vmatmul.mubr.bf16.gmra.mrb[0].mxu0 %v3074
    %v6940 = vpop.f32.mrb[0].mxu0
    %v6941 = vadd.f32 %v6448, %v6940
    %v6942 = vpop.f32.mrb[0].mxu0
    %v6943 = vpop.f32.mrb[0].mxu0
    %v6944 = vadd.f32 %v6451, %v6943
    %v6945 = vpop.f32.mrb[0].mxu0
    %6946 = vmatprep.mubr.bf16.mxu0 %v3078
    %6947 = vmatmul.mubr.bf16.gmra.mrb[0].mxu0 %v3077
    %v6948 = vpop.f32.mrb[0].mxu0
    %v6949 = vadd.f32 %v6456, %v6948
    %v6950 = vpop.f32.mrb[0].mxu0
    %v6951 = vpop.f32.mrb[0].mxu0
    %v6952 = vadd.f32 %v6459, %v6951
    %v6953 = vpop.f32.mrb[0].mxu0
    %6954 = vmatprep.mubr.bf16.mxu0 %v3081
    %6955 = vmatmul.mubr.bf16.gmra.mrb[0].mxu0 %v3080
    %v6956 = vpop.f32.mrb[0].mxu0
    %v6957 = vadd.f32 %v6464, %v6956
    %v6958 = vpop.f32.mrb[0].mxu0
    %v6959 = vpop.f32.mrb[0].mxu0
    %v6960 = vadd.f32 %v6467, %v6959
    %v6961 = vpop.f32.mrb[0].mxu0
    %6962 = vmatprep.mubr.bf16.mxu0 %v3084
    %6963 = vmatmul.mubr.bf16.gmra.mrb[0].mxu0 %v3083
    %v6964 = vpop.f32.mrb[0].mxu0
    %v6965 = vadd.f32 %v6472, %v6964
    %v6966 = vpop.f32.mrb[0].mxu0
    %v6967 = vpop.f32.mrb[0].mxu0
    %v6968 = vadd.f32 %v6475, %v6967
    %v6969 = vpop.f32.mrb[0].mxu0
    %6970 = vmatprep.mubr.bf16.mxu0 %v3087
    %6971 = vmatmul.mubr.bf16.gmra.mrb[0].mxu0 %v3086
    %v6972 = vpop.f32.mrb[0].mxu0
    %v6973 = vadd.f32 %v6480, %v6972
    %v6974 = vpop.f32.mrb[0].mxu0
    %v6975 = vpop.f32.mrb[0].mxu0
    %v6976 = vadd.f32 %v6483, %v6975
    %v6977 = vpop.f32.mrb[0].mxu0
    %6978 = vmatprep.mubr.bf16.mxu0 %v3090
    %6979 = vmatmul.mubr.bf16.gmra.mrb[0].mxu0 %v3089
    %v6980 = vpop.f32.mrb[0].mxu0
    %v6981 = vadd.f32 %v6488, %v6980
    %v6982 = vpop.f32.mrb[0].mxu0
    %v6983 = vpop.f32.mrb[0].mxu0
    %v6984 = vadd.f32 %v6491, %v6983
    %v6985 = vpop.f32.mrb[0].mxu0
    %6986 = vmatprep.mubr.bf16.mxu0 %v3093
    %6987 = vmatmul.mubr.bf16.gmra.mrb[0].mxu0 %v3092
    %v6988 = vpop.f32.mrb[0].mxu0
    %v6989 = vadd.f32 %v6496, %v6988
    %v6990 = vpop.f32.mrb[0].mxu0
    %v6991 = vpop.f32.mrb[0].mxu0
    %v6992 = vadd.f32 %v6499, %v6991
    %v6993 = vpop.f32.mrb[0].mxu0
    %6994 = vmatprep.mubr.bf16.mxu0 %v3096
    %6995 = vmatmul.mubr.bf16.gmra.mrb[0].mxu0 %v3095
    %v6996 = vpop.f32.mrb[0].mxu0
    %v6997 = vadd.f32 %v6504, %v6996
    %v6998 = vpop.f32.mrb[0].mxu0
    %v6999 = vpop.f32.mrb[0].mxu0
    %v7000 = vadd.f32 %v6507, %v6999
    %v7001 = vpop.f32.mrb[0].mxu0
    %7002 = vmatprep.mubr.bf16.mxu0 %v3099
    %7003 = vmatmul.mubr.bf16.gmra.mrb[0].mxu0 %v3098
    %v7004 = vpop.f32.mrb[0].mxu0
    %v7005 = vadd.f32 %v6512, %v7004
    %v7006 = vpop.f32.mrb[0].mxu0
    %v7007 = vpop.f32.mrb[0].mxu0
    %v7008 = vadd.f32 %v6515, %v7007
    %v7009 = vpop.f32.mrb[0].mxu0
    %7010 = vmatprep.mubr.bf16.mxu0 %v3102
    %7011 = vmatmul.mubr.bf16.gmra.mrb[0].mxu0 %v3101
    %v7012 = vpop.f32.mrb[0].mxu0
    %v7013 = vadd.f32 %v6520, %v7012
    %v7014 = vpop.f32.mrb[0].mxu0
    %v7015 = vpop.f32.mrb[0].mxu0
    %v7016 = vadd.f32 %v6523, %v7015
    %v7017 = vpop.f32.mrb[0].mxu0
    %7018 = vmatprep.mubr.bf16.mxu0 %v3105
    %7019 = vmatmul.mubr.bf16.gmra.mrb[0].mxu0 %v3104
    %v7020 = vpop.f32.mrb[0].mxu0
    %v7021 = vadd.f32 %v6528, %v7020
    %v7022 = vpop.f32.mrb[0].mxu0
    %v7023 = vpop.f32.mrb[0].mxu0
    %v7024 = vadd.f32 %v6531, %v7023
    %v7025 = vpop.f32.mrb[0].mxu0
    %7026 = vmatprep.mubr.bf16.mxu0 %v3108
    %7027 = vmatmul.mubr.bf16.gmra.mrb[0].mxu0 %v3107
    %v7028 = vpop.f32.mrb[0].mxu0
    %v7029 = vadd.f32 %v6536, %v7028
    %v7030 = vpop.f32.mrb[0].mxu0
    %v7031 = vpop.f32.mrb[0].mxu0
    %v7032 = vadd.f32 %v6539, %v7031
    %v7033 = vpop.f32.mrb[0].mxu0
    %7034 = vmatprep.mubr.bf16.mxu0 %v3111
    %7035 = vmatmul.mubr.bf16.gmra.mrb[0].mxu0 %v3110
    %v7036 = vpop.f32.mrb[0].mxu0
    %v7037 = vadd.f32 %v6544, %v7036
    %v7038 = vpop.f32.mrb[0].mxu0
    %v7039 = vpop.f32.mrb[0].mxu0
    %v7040 = vadd.f32 %v6547, %v7039
    %v7041 = vpop.f32.mrb[0].mxu0
    %7042 = vmatprep.mubr.bf16.mxu0 %v3114
    %7043 = vmatmul.mubr.bf16.gmra.mrb[0].mxu0 %v3113
    %v7044 = vpop.f32.mrb[0].mxu0
    %v7045 = vadd.f32 %v6552, %v7044
    %v7046 = vpop.f32.mrb[0].mxu0
    %v7047 = vpop.f32.mrb[0].mxu0
    %v7048 = vadd.f32 %v6555, %v7047
    %v7049 = vpop.f32.mrb[0].mxu0
    %7050 = vmatprep.mubr.bf16.mxu0 %v3117
    %7051 = vmatmul.mubr.bf16.gmra.mrb[0].mxu0 %v3116
    %v7052 = vpop.f32.mrb[0].mxu0
    %v7053 = vadd.f32 %v6560, %v7052
    %v7054 = vpop.f32.mrb[0].mxu0
    %v7055 = vpop.f32.mrb[0].mxu0
    %v7056 = vadd.f32 %v6563, %v7055
    %v7057 = vpop.f32.mrb[0].mxu0
    %7058 = vdwg.mxu0
    %7059 = vmatprep.subr.bf16.mxu0 0
    %7060 = vmatpush1.bf16.msra.mxu0 %v6654
    %7061 = vmatprep.subr.bf16.mxu0 0
    %7062 = vmatpush1.bf16.msra.mxu0 %v6655
    %7063 = vmatprep.subr.bf16.mxu0 0
    %7064 = vmatpush1.bf16.msra.mxu0 0
    %7065 = vmatprep.subr.bf16.mxu0 0
    %7066 = vmatpush1.bf16.msra.mxu0 0
    %7067 = vmatprep.subr.bf16.mxu0 0
    %7068 = vmatpush1.bf16.msra.mxu0 0
    %7069 = vmatprep.subr.bf16.mxu0 0
    %7070 = vmatpush1.bf16.msra.mxu0 0
    %7071 = vmatprep.subr.bf16.mxu0 0
    %7072 = vmatpush1.bf16.msra.mxu0 0
    %7073 = vmatprep.subr.bf16.mxu0 0
    %7074 = vmatpush1.bf16.msra.mxu0 0
    %7075 = vmatprep.subr.bf16.mxu0 0
    %7076 = vmatpush1.bf16.msra.mxu0 0
    %7077 = vmatprep.subr.bf16.mxu0 0
    %7078 = vmatpush1.bf16.msra.mxu0 0
    %7079 = vmatprep.subr.bf16.mxu0 0
    %7080 = vmatpush1.bf16.msra.mxu0 0
    %7081 = vmatprep.subr.bf16.mxu0 0
    %7082 = vmatpush1.bf16.msra.mxu0 0
    %7083 = vmatprep.subr.bf16.mxu0 0
    %7084 = vmatpush1.bf16.msra.mxu0 0
    %7085 = vmatprep.subr.bf16.mxu0 0
    %7086 = vmatpush1.bf16.msra.mxu0 0
    %7087 = vmatprep.subr.bf16.mxu0 0
    %7088 = vmatpush1.bf16.msra.mxu0 0
    %7089 = vmatprep.subr.bf16.mxu0 0
    %7090 = vmatpush1.bf16.msra.mxu0 0
    %7091 = vmatprep.mubr.bf16.mxu0 0
    %7092 = vmatmul.mubr.bf16.gmra.mrb[0].mxu0 %v6675
    %v7093 = vpop.f32.mrb[0].mxu0
    %v7094 = vadd.f32 %v6805, %v7093
    %v7095 = vpop.f32.mrb[0].mxu0
    %v7096 = vpop.f32.mrb[0].mxu0
    %v7097 = vadd.f32 %v6808, %v7096
    %v7098 = vpop.f32.mrb[0].mxu0
    %7099 = vmatprep.mubr.bf16.mxu0 0
    %7100 = vmatmul.mubr.bf16.gmra.mrb[0].mxu0 %v6678
    %v7101 = vpop.f32.mrb[0].mxu0
    %v7102 = vadd.f32 %v6813, %v7101
    %v7103 = vpop.f32.mrb[0].mxu0
    %v7104 = vpop.f32.mrb[0].mxu0
    %v7105 = vadd.f32 %v6816, %v7104
    %v7106 = vpop.f32.mrb[0].mxu0
    %7107 = vmatprep.mubr.bf16.mxu0 0
    %7108 = vmatmul.mubr.bf16.gmra.mrb[0].mxu0 %v6681
    %v7109 = vpop.f32.mrb[0].mxu0
    %v7110 = vadd.f32 %v6821, %v7109
    %v7111 = vpop.f32.mrb[0].mxu0
    %v7112 = vpop.f32.mrb[0].mxu0
    %v7113 = vadd.f32 %v6824, %v7112
    %v7114 = vpop.f32.mrb[0].mxu0
    %7115 = vmatprep.mubr.bf16.mxu0 0
    %7116 = vmatmul.mubr.bf16.gmra.mrb[0].mxu0 %v6684
    %v7117 = vpop.f32.mrb[0].mxu0
    %v7118 = vadd.f32 %v6829, %v7117
    %v7119 = vpop.f32.mrb[0].mxu0
    %v7120 = vpop.f32.mrb[0].mxu0
    %v7121 = vadd.f32 %v6832, %v7120
    %v7122 = vpop.f32.mrb[0].mxu0
    %7123 = vmatprep.mubr.bf16.mxu0 0
    %7124 = vmatmul.mubr.bf16.gmra.mrb[0].mxu0 %v6687
    %v7125 = vpop.f32.mrb[0].mxu0
    %v7126 = vadd.f32 %v6837, %v7125
    %v7127 = vpop.f32.mrb[0].mxu0
    %v7128 = vpop.f32.mrb[0].mxu0
    %v7129 = vadd.f32 %v6840, %v7128
    %v7130 = vpop.f32.mrb[0].mxu0
    %7131 = vmatprep.mubr.bf16.mxu0 0
    %7132 = vmatmul.mubr.bf16.gmra.mrb[0].mxu0 %v6690
    %v7133 = vpop.f32.mrb[0].mxu0
    %v7134 = vadd.f32 %v6845, %v7133
    %v7135 = vpop.f32.mrb[0].mxu0
    %v7136 = vpop.f32.mrb[0].mxu0
    %v7137 = vadd.f32 %v6848, %v7136
    %v7138 = vpop.f32.mrb[0].mxu0
    %7139 = vmatprep.mubr.bf16.mxu0 0
    %7140 = vmatmul.mubr.bf16.gmra.mrb[0].mxu0 %v6693
    %v7141 = vpop.f32.mrb[0].mxu0
    %v7142 = vadd.f32 %v6853, %v7141
    %v7143 = vpop.f32.mrb[0].mxu0
    %v7144 = vpop.f32.mrb[0].mxu0
    %v7145 = vadd.f32 %v6856, %v7144
    %v7146 = vpop.f32.mrb[0].mxu0
    %7147 = vmatprep.mubr.bf16.mxu0 0
    %7148 = vmatmul.mubr.bf16.gmra.mrb[0].mxu0 %v6696
    %v7149 = vpop.f32.mrb[0].mxu0
    %v7150 = vadd.f32 %v6861, %v7149
    %v7151 = vpop.f32.mrb[0].mxu0
    %v7152 = vpop.f32.mrb[0].mxu0
    %v7153 = vadd.f32 %v6864, %v7152
    %v7154 = vpop.f32.mrb[0].mxu0
    %7155 = vmatprep.mubr.bf16.mxu0 0
    %7156 = vmatmul.mubr.bf16.gmra.mrb[0].mxu0 %v6699
    %v7157 = vpop.f32.mrb[0].mxu0
    %v7158 = vadd.f32 %v6869, %v7157
    %v7159 = vpop.f32.mrb[0].mxu0
    %v7160 = vpop.f32.mrb[0].mxu0
    %v7161 = vadd.f32 %v6872, %v7160
    %v7162 = vpop.f32.mrb[0].mxu0
    %7163 = vmatprep.mubr.bf16.mxu0 0
    %7164 = vmatmul.mubr.bf16.gmra.mrb[0].mxu0 %v6702
    %v7165 = vpop.f32.mrb[0].mxu0
    %v7166 = vadd.f32 %v6877, %v7165
    %v7167 = vpop.f32.mrb[0].mxu0
    %v7168 = vpop.f32.mrb[0].mxu0
    %v7169 = vadd.f32 %v6880, %v7168
    %v7170 = vpop.f32.mrb[0].mxu0
    %7171 = vmatprep.mubr.bf16.mxu0 0
    %7172 = vmatmul.mubr.bf16.gmra.mrb[0].mxu0 %v6705
    %v7173 = vpop.f32.mrb[0].mxu0
    %v7174 = vadd.f32 %v6885, %v7173
    %v7175 = vpop.f32.mrb[0].mxu0
    %v7176 = vpop.f32.mrb[0].mxu0
    %v7177 = vadd.f32 %v6888, %v7176
    %v7178 = vpop.f32.mrb[0].mxu0
    %7179 = vmatprep.mubr.bf16.mxu0 0
    %7180 = vmatmul.mubr.bf16.gmra.mrb[0].mxu0 %v6708
    %v7181 = vpop.f32.mrb[0].mxu0
    %v7182 = vadd.f32 %v6893, %v7181
    %v7183 = vpop.f32.mrb[0].mxu0
    %v7184 = vpop.f32.mrb[0].mxu0
    %v7185 = vadd.f32 %v6896, %v7184
    %v7186 = vpop.f32.mrb[0].mxu0
    %7187 = vmatprep.mubr.bf16.mxu0 0
    %7188 = vmatmul.mubr.bf16.gmra.mrb[0].mxu0 %v6711
    %v7189 = vpop.f32.mrb[0].mxu0
    %v7190 = vadd.f32 %v6901, %v7189
    %v7191 = vpop.f32.mrb[0].mxu0
    %v7192 = vpop.f32.mrb[0].mxu0
    %v7193 = vadd.f32 %v6904, %v7192
    %v7194 = vpop.f32.mrb[0].mxu0
    %7195 = vmatprep.mubr.bf16.mxu0 0
    %7196 = vmatmul.mubr.bf16.gmra.mrb[0].mxu0 %v6714
    %v7197 = vpop.f32.mrb[0].mxu0
    %v7198 = vadd.f32 %v6909, %v7197
    %v7199 = vpop.f32.mrb[0].mxu0
    %v7200 = vpop.f32.mrb[0].mxu0
    %v7201 = vadd.f32 %v6912, %v7200
    %v7202 = vpop.f32.mrb[0].mxu0
    %7203 = vmatprep.mubr.bf16.mxu0 0
    %7204 = vmatmul.mubr.bf16.gmra.mrb[0].mxu0 %v6717
    %v7205 = vpop.f32.mrb[0].mxu0
    %v7206 = vadd.f32 %v6917, %v7205
    %v7207 = vpop.f32.mrb[0].mxu0
    %v7208 = vpop.f32.mrb[0].mxu0
    %v7209 = vadd.f32 %v6920, %v7208
    %v7210 = vpop.f32.mrb[0].mxu0
    %7211 = vmatprep.mubr.bf16.mxu0 0
    %7212 = vmatmul.mubr.bf16.gmra.mrb[0].mxu0 %v6720
    %v7213 = vpop.f32.mrb[0].mxu0
    %v7214 = vadd.f32 %v6925, %v7213
    %v7215 = vpop.f32.mrb[0].mxu0
    %v7216 = vpop.f32.mrb[0].mxu0
    %v7217 = vadd.f32 %v6928, %v7216
    %v7218 = vpop.f32.mrb[0].mxu0
    %7219 = vmatprep.mubr.bf16.mxu0 0
    %7220 = vmatmul.mubr.bf16.gmra.mrb[0].mxu0 %v6723
    %v7221 = vpop.f32.mrb[0].mxu0
    %v7222 = vadd.f32 %v6933, %v7221
    %v7223 = vpop.f32.mrb[0].mxu0
    %v7224 = vpop.f32.mrb[0].mxu0
    %v7225 = vadd.f32 %v6936, %v7224
    %v7226 = vpop.f32.mrb[0].mxu0
    %7227 = vmatprep.mubr.bf16.mxu0 0
    %7228 = vmatmul.mubr.bf16.gmra.mrb[0].mxu0 %v6726
    %v7229 = vpop.f32.mrb[0].mxu0
    %v7230 = vadd.f32 %v6941, %v7229
    %v7231 = vpop.f32.mrb[0].mxu0
    %v7232 = vpop.f32.mrb[0].mxu0
    %v7233 = vadd.f32 %v6944, %v7232
    %v7234 = vpop.f32.mrb[0].mxu0
    %7235 = vmatprep.mubr.bf16.mxu0 0
    %7236 = vmatmul.mubr.bf16.gmra.mrb[0].mxu0 %v6729
    %v7237 = vpop.f32.mrb[0].mxu0
    %v7238 = vadd.f32 %v6949, %v7237
    %v7239 = vpop.f32.mrb[0].mxu0
    %v7240 = vpop.f32.mrb[0].mxu0
    %v7241 = vadd.f32 %v6952, %v7240
    %v7242 = vpop.f32.mrb[0].mxu0
    %7243 = vmatprep.mubr.bf16.mxu0 0
    %7244 = vmatmul.mubr.bf16.gmra.mrb[0].mxu0 %v6732
    %v7245 = vpop.f32.mrb[0].mxu0
    %v7246 = vadd.f32 %v6957, %v7245
    %v7247 = vpop.f32.mrb[0].mxu0
    %v7248 = vpop.f32.mrb[0].mxu0
    %v7249 = vadd.f32 %v6960, %v7248
    %v7250 = vpop.f32.mrb[0].mxu0
    %7251 = vmatprep.mubr.bf16.mxu0 0
    %7252 = vmatmul.mubr.bf16.gmra.mrb[0].mxu0 %v6735
    %v7253 = vpop.f32.mrb[0].mxu0
    %v7254 = vadd.f32 %v6965, %v7253
    %v7255 = vpop.f32.mrb[0].mxu0
    %v7256 = vpop.f32.mrb[0].mxu0
    %v7257 = vadd.f32 %v6968, %v7256
    %v7258 = vpop.f32.mrb[0].mxu0
    %7259 = vmatprep.mubr.bf16.mxu0 0
    %7260 = vmatmul.mubr.bf16.gmra.mrb[0].mxu0 %v6738
    %v7261 = vpop.f32.mrb[0].mxu0
    %v7262 = vadd.f32 %v6973, %v7261
    %v7263 = vpop.f32.mrb[0].mxu0
    %v7264 = vpop.f32.mrb[0].mxu0
    %v7265 = vadd.f32 %v6976, %v7264
    %v7266 = vpop.f32.mrb[0].mxu0
    %7267 = vmatprep.mubr.bf16.mxu0 0
    %7268 = vmatmul.mubr.bf16.gmra.mrb[0].mxu0 %v6741
    %v7269 = vpop.f32.mrb[0].mxu0
    %v7270 = vadd.f32 %v6981, %v7269
    %v7271 = vpop.f32.mrb[0].mxu0
    %v7272 = vpop.f32.mrb[0].mxu0
    %v7273 = vadd.f32 %v6984, %v7272
    %v7274 = vpop.f32.mrb[0].mxu0
    %7275 = vmatprep.mubr.bf16.mxu0 0
    %7276 = vmatmul.mubr.bf16.gmra.mrb[0].mxu0 %v6744
    %v7277 = vpop.f32.mrb[0].mxu0
    %v7278 = vadd.f32 %v6989, %v7277
    %v7279 = vpop.f32.mrb[0].mxu0
    %v7280 = vpop.f32.mrb[0].mxu0
    %v7281 = vadd.f32 %v6992, %v7280
    %v7282 = vpop.f32.mrb[0].mxu0
    %7283 = vmatprep.mubr.bf16.mxu0 0
    %7284 = vmatmul.mubr.bf16.gmra.mrb[0].mxu0 %v6747
    %v7285 = vpop.f32.mrb[0].mxu0
    %v7286 = vadd.f32 %v6997, %v7285
    %v7287 = vpop.f32.mrb[0].mxu0
    %v7288 = vpop.f32.mrb[0].mxu0
    %v7289 = vadd.f32 %v7000, %v7288
    %v7290 = vpop.f32.mrb[0].mxu0
    %7291 = vmatprep.mubr.bf16.mxu0 0
    %7292 = vmatmul.mubr.bf16.gmra.mrb[0].mxu0 %v6750
    %v7293 = vpop.f32.mrb[0].mxu0
    %v7294 = vadd.f32 %v7005, %v7293
    %v7295 = vpop.f32.mrb[0].mxu0
    %v7296 = vpop.f32.mrb[0].mxu0
    %v7297 = vadd.f32 %v7008, %v7296
    %v7298 = vpop.f32.mrb[0].mxu0
    %7299 = vmatprep.mubr.bf16.mxu0 0
    %7300 = vmatmul.mubr.bf16.gmra.mrb[0].mxu0 %v6753
    %v7301 = vpop.f32.mrb[0].mxu0
    %v7302 = vadd.f32 %v7013, %v7301
    %v7303 = vpop.f32.mrb[0].mxu0
    %v7304 = vpop.f32.mrb[0].mxu0
    %v7305 = vadd.f32 %v7016, %v7304
    %v7306 = vpop.f32.mrb[0].mxu0
    %7307 = vmatprep.mubr.bf16.mxu0 0
    %7308 = vmatmul.mubr.bf16.gmra.mrb[0].mxu0 %v6756
    %v7309 = vpop.f32.mrb[0].mxu0
    %v7310 = vadd.f32 %v7021, %v7309
    %v7311 = vpop.f32.mrb[0].mxu0
    %v7312 = vpop.f32.mrb[0].mxu0
    %v7313 = vadd.f32 %v7024, %v7312
    %v7314 = vpop.f32.mrb[0].mxu0
    %7315 = vmatprep.mubr.bf16.mxu0 0
    %7316 = vmatmul.mubr.bf16.gmra.mrb[0].mxu0 %v6759
    %v7317 = vpop.f32.mrb[0].mxu0
    %v7318 = vadd.f32 %v7029, %v7317
    %v7319 = vpop.f32.mrb[0].mxu0
    %v7320 = vpop.f32.mrb[0].mxu0
    %v7321 = vadd.f32 %v7032, %v7320
    %v7322 = vpop.f32.mrb[0].mxu0
    %7323 = vmatprep.mubr.bf16.mxu0 0
    %7324 = vmatmul.mubr.bf16.gmra.mrb[0].mxu0 %v6762
    %v7325 = vpop.f32.mrb[0].mxu0
    %v7326 = vadd.f32 %v7037, %v7325
    %v7327 = vpop.f32.mrb[0].mxu0
    %v7328 = vpop.f32.mrb[0].mxu0
    %v7329 = vadd.f32 %v7040, %v7328
    %v7330 = vpop.f32.mrb[0].mxu0
    %7331 = vmatprep.mubr.bf16.mxu0 0
    %7332 = vmatmul.mubr.bf16.gmra.mrb[0].mxu0 %v6765
    %v7333 = vpop.f32.mrb[0].mxu0
    %v7334 = vadd.f32 %v7045, %v7333
    %v7335 = vpop.f32.mrb[0].mxu0
    %v7336 = vpop.f32.mrb[0].mxu0
    %v7337 = vadd.f32 %v7048, %v7336
    %v7338 = vpop.f32.mrb[0].mxu0
    %7339 = vmatprep.mubr.bf16.mxu0 0
    %7340 = vmatmul.mubr.bf16.gmra.mrb[0].mxu0 %v6768
    %v7341 = vpop.f32.mrb[0].mxu0
    %v7342 = vadd.f32 %v7053, %v7341
    %v7343 = vpop.f32.mrb[0].mxu0
    %v7344 = vpop.f32.mrb[0].mxu0
    %v7345 = vadd.f32 %v7056, %v7344
    %v7346 = vpop.f32.mrb[0].mxu0
    %7347 = vdwg.mxu0
    %v7348 = vld [vmem:[%s4] sm:$0x1]
    %v7349 = vld [vmem:[%s5] sm:$0x1]
    %v7350 = vsel %vm112, %v7094, 0.0
    %v7351 = vsel %vm112, %v7097, 0.0
    %v7352 = vadd.f32 %v7350, %v7351
    %v7353 = vsel %vm112, %v7102, 0.0
    %v7354 = vadd.f32 %v7352, %v7353
    %v7355 = vsel %vm112, %v7105, 0.0
    %v7356 = vadd.f32 %v7354, %v7355
    %v7357 = vsel %vm112, %v7110, 0.0
    %v7358 = vadd.f32 %v7356, %v7357
    %v7359 = vsel %vm112, %v7113, 0.0
    %v7360 = vadd.f32 %v7358, %v7359
    %v7361 = vsel %vm112, %v7118, 0.0
    %v7362 = vadd.f32 %v7360, %v7361
    %v7363 = vsel %vm112, %v7121, 0.0
    %v7364 = vadd.f32 %v7362, %v7363
    %v7365 = vsel %vm112, %v7126, 0.0
    %v7366 = vadd.f32 %v7364, %v7365
    %v7367 = vsel %vm112, %v7129, 0.0
    %v7368 = vadd.f32 %v7366, %v7367
    %v7369 = vsel %vm112, %v7134, 0.0
    %v7370 = vadd.f32 %v7368, %v7369
    %v7371 = vsel %vm112, %v7137, 0.0
    %v7372 = vadd.f32 %v7370, %v7371
    %v7373 = vsel %vm112, %v7142, 0.0
    %v7374 = vadd.f32 %v7372, %v7373
    %v7375 = vsel %vm112, %v7145, 0.0
    %v7376 = vadd.f32 %v7374, %v7375
    %v7377 = vsel %vm112, %v7150, 0.0
    %v7378 = vadd.f32 %v7376, %v7377
    %v7379 = vsel %vm112, %v7153, 0.0
    %v7380 = vadd.f32 %v7378, %v7379
    %v7381 = vsel %vm112, %v7158, 0.0
    %v7382 = vadd.f32 %v7380, %v7381
    %v7383 = vsel %vm112, %v7161, 0.0
    %v7384 = vadd.f32 %v7382, %v7383
    %v7385 = vsel %vm112, %v7166, 0.0
    %v7386 = vadd.f32 %v7384, %v7385
    %v7387 = vsel %vm112, %v7169, 0.0
    %v7388 = vadd.f32 %v7386, %v7387
    %v7389 = vsel %vm112, %v7174, 0.0
    %v7390 = vadd.f32 %v7388, %v7389
    %v7391 = vsel %vm112, %v7177, 0.0
    %v7392 = vadd.f32 %v7390, %v7391
    %v7393 = vsel %vm112, %v7182, 0.0
    %v7394 = vadd.f32 %v7392, %v7393
    %v7395 = vsel %vm112, %v7185, 0.0
    %v7396 = vadd.f32 %v7394, %v7395
    %v7397 = vsel %vm112, %v7190, 0.0
    %v7398 = vadd.f32 %v7396, %v7397
    %v7399 = vsel %vm112, %v7193, 0.0
    %v7400 = vadd.f32 %v7398, %v7399
    %v7401 = vsel %vm112, %v7198, 0.0
    %v7402 = vadd.f32 %v7400, %v7401
    %v7403 = vsel %vm112, %v7201, 0.0
    %v7404 = vadd.f32 %v7402, %v7403
    %v7405 = vsel %vm112, %v7206, 0.0
    %v7406 = vadd.f32 %v7404, %v7405
    %v7407 = vsel %vm112, %v7209, 0.0
    %v7408 = vadd.f32 %v7406, %v7407
    %v7409 = vsel %vm112, %v7214, 0.0
    %v7410 = vadd.f32 %v7408, %v7409
    %v7411 = vsel %vm112, %v7217, 0.0
    %v7412 = vadd.f32 %v7410, %v7411
    %v7413 = vsel %vm112, %v7222, 0.0
    %v7414 = vadd.f32 %v7412, %v7413
    %v7415 = vsel %vm112, %v7225, 0.0
    %v7416 = vadd.f32 %v7414, %v7415
    %v7417 = vsel %vm112, %v7230, 0.0
    %v7418 = vadd.f32 %v7416, %v7417
    %v7419 = vsel %vm112, %v7233, 0.0
    %v7420 = vadd.f32 %v7418, %v7419
    %v7421 = vsel %vm112, %v7238, 0.0
    %v7422 = vadd.f32 %v7420, %v7421
    %v7423 = vsel %vm112, %v7241, 0.0
    %v7424 = vadd.f32 %v7422, %v7423
    %v7425 = vsel %vm112, %v7246, 0.0
    %v7426 = vadd.f32 %v7424, %v7425
    %v7427 = vsel %vm112, %v7249, 0.0
    %v7428 = vadd.f32 %v7426, %v7427
    %v7429 = vsel %vm112, %v7254, 0.0
    %v7430 = vadd.f32 %v7428, %v7429
    %v7431 = vsel %vm112, %v7257, 0.0
    %v7432 = vadd.f32 %v7430, %v7431
    %v7433 = vsel %vm112, %v7262, 0.0
    %v7434 = vadd.f32 %v7432, %v7433
    %v7435 = vsel %vm112, %v7265, 0.0
    %v7436 = vadd.f32 %v7434, %v7435
    %v7437 = vsel %vm112, %v7270, 0.0
    %v7438 = vadd.f32 %v7436, %v7437
    %v7439 = vsel %vm112, %v7273, 0.0
    %v7440 = vadd.f32 %v7438, %v7439
    %v7441 = vsel %vm112, %v7278, 0.0
    %v7442 = vadd.f32 %v7440, %v7441
    %v7443 = vsel %vm112, %v7281, 0.0
    %v7444 = vadd.f32 %v7442, %v7443
    %v7445 = vsel %vm112, %v7286, 0.0
    %v7446 = vadd.f32 %v7444, %v7445
    %v7447 = vsel %vm112, %v7289, 0.0
    %v7448 = vadd.f32 %v7446, %v7447
    %v7449 = vsel %vm112, %v7294, 0.0
    %v7450 = vadd.f32 %v7448, %v7449
    %v7451 = vsel %vm112, %v7297, 0.0
    %v7452 = vadd.f32 %v7450, %v7451
    %v7453 = vsel %vm112, %v7302, 0.0
    %v7454 = vadd.f32 %v7452, %v7453
    %v7455 = vsel %vm112, %v7305, 0.0
    %v7456 = vadd.f32 %v7454, %v7455
    %v7457 = vsel %vm112, %v7310, 0.0
    %v7458 = vadd.f32 %v7456, %v7457
    %v7459 = vsel %vm112, %v7313, 0.0
    %v7460 = vadd.f32 %v7458, %v7459
    %v7461 = vsel %vm112, %v7318, 0.0
    %v7462 = vadd.f32 %v7460, %v7461
    %v7463 = vsel %vm112, %v7321, 0.0
    %v7464 = vadd.f32 %v7462, %v7463
    %v7465 = vsel %vm112, %v7326, 0.0
    %v7466 = vadd.f32 %v7464, %v7465
    %v7467 = vsel %vm112, %v7329, 0.0
    %v7468 = vadd.f32 %v7466, %v7467
    %v7469 = vsel %vm112, %v7334, 0.0
    %v7470 = vadd.f32 %v7468, %v7469
    %v7471 = vsel %vm112, %v7337, 0.0
    %v7472 = vadd.f32 %v7470, %v7471
    %v7473 = vsel %vm112, %v7342, 0.0
    %v7474 = vadd.f32 %v7472, %v7473
    %v7475 = vsel %vm112, %v7345, 0.0
    %v7476 = vadd.f32 %v7474, %v7475
    %v7477 = vrot.slane %v7476, 4
    %v7478 = vadd.f32 %v7476, %v7477
    %v7479 = vrot.slane %v7478, 2
    %v7480 = vadd.f32 %v7478, %v7479
    %v7481 = vrot.slane %v7480, 1
    %v7482 = vadd.f32 %v7480, %v7481
    %v7483 = vmul.f32 %v7482, 0.001953125
    %v7484 = vmul.f32 %v7094, %v7094
    %v7485 = vmul.f32 %v7097, %v7097
    %v7486 = vmul.f32 %v7102, %v7102
    %v7487 = vmul.f32 %v7105, %v7105
    %v7488 = vmul.f32 %v7110, %v7110
    %v7489 = vmul.f32 %v7113, %v7113
    %v7490 = vmul.f32 %v7118, %v7118
    %v7491 = vmul.f32 %v7121, %v7121
    %v7492 = vmul.f32 %v7126, %v7126
    %v7493 = vmul.f32 %v7129, %v7129
    %v7494 = vmul.f32 %v7134, %v7134
    %v7495 = vmul.f32 %v7137, %v7137
    %v7496 = vmul.f32 %v7142, %v7142
    %v7497 = vmul.f32 %v7145, %v7145
    %v7498 = vmul.f32 %v7150, %v7150
    %v7499 = vmul.f32 %v7153, %v7153
    %v7500 = vmul.f32 %v7158, %v7158
    %v7501 = vmul.f32 %v7161, %v7161
    %v7502 = vmul.f32 %v7166, %v7166
    %v7503 = vmul.f32 %v7169, %v7169
    %v7504 = vmul.f32 %v7174, %v7174
    %v7505 = vmul.f32 %v7177, %v7177
    %v7506 = vmul.f32 %v7182, %v7182
    %v7507 = vmul.f32 %v7185, %v7185
    %v7508 = vmul.f32 %v7190, %v7190
    %v7509 = vmul.f32 %v7193, %v7193
    %v7510 = vmul.f32 %v7198, %v7198
    %v7511 = vmul.f32 %v7201, %v7201
    %v7512 = vmul.f32 %v7206, %v7206
    %v7513 = vmul.f32 %v7209, %v7209
    %v7514 = vmul.f32 %v7214, %v7214
    %v7515 = vmul.f32 %v7217, %v7217
    %v7516 = vmul.f32 %v7222, %v7222
    %v7517 = vmul.f32 %v7225, %v7225
    %v7518 = vmul.f32 %v7230, %v7230
    %v7519 = vmul.f32 %v7233, %v7233
    %v7520 = vmul.f32 %v7238, %v7238
    %v7521 = vmul.f32 %v7241, %v7241
    %v7522 = vmul.f32 %v7246, %v7246
    %v7523 = vmul.f32 %v7249, %v7249
    %v7524 = vmul.f32 %v7254, %v7254
    %v7525 = vmul.f32 %v7257, %v7257
    %v7526 = vmul.f32 %v7262, %v7262
    %v7527 = vmul.f32 %v7265, %v7265
    %v7528 = vmul.f32 %v7270, %v7270
    %v7529 = vmul.f32 %v7273, %v7273
    %v7530 = vmul.f32 %v7278, %v7278
    %v7531 = vmul.f32 %v7281, %v7281
    %v7532 = vmul.f32 %v7286, %v7286
    %v7533 = vmul.f32 %v7289, %v7289
    %v7534 = vmul.f32 %v7294, %v7294
    %v7535 = vmul.f32 %v7297, %v7297
    %v7536 = vmul.f32 %v7302, %v7302
    %v7537 = vmul.f32 %v7305, %v7305
    %v7538 = vmul.f32 %v7310, %v7310
    %v7539 = vmul.f32 %v7313, %v7313
    %v7540 = vmul.f32 %v7318, %v7318
    %v7541 = vmul.f32 %v7321, %v7321
    %v7542 = vmul.f32 %v7326, %v7326
    %v7543 = vmul.f32 %v7329, %v7329
    %v7544 = vmul.f32 %v7334, %v7334
    %v7545 = vmul.f32 %v7337, %v7337
    %v7546 = vmul.f32 %v7342, %v7342
    %v7547 = vmul.f32 %v7345, %v7345
    %v7548 = vsel %vm112, %v7484, 0.0
    %v7549 = vsel %vm112, %v7485, 0.0
    %v7550 = vadd.f32 %v7548, %v7549
    %v7551 = vsel %vm112, %v7486, 0.0
    %v7552 = vadd.f32 %v7550, %v7551
    %v7553 = vsel %vm112, %v7487, 0.0
    %v7554 = vadd.f32 %v7552, %v7553
    %v7555 = vsel %vm112, %v7488, 0.0
    %v7556 = vadd.f32 %v7554, %v7555
    %v7557 = vsel %vm112, %v7489, 0.0
    %v7558 = vadd.f32 %v7556, %v7557
    %v7559 = vsel %vm112, %v7490, 0.0
    %v7560 = vadd.f32 %v7558, %v7559
    %v7561 = vsel %vm112, %v7491, 0.0
    %v7562 = vadd.f32 %v7560, %v7561
    %v7563 = vsel %vm112, %v7492, 0.0
    %v7564 = vadd.f32 %v7562, %v7563
    %v7565 = vsel %vm112, %v7493, 0.0
    %v7566 = vadd.f32 %v7564, %v7565
    %v7567 = vsel %vm112, %v7494, 0.0
    %v7568 = vadd.f32 %v7566, %v7567
    %v7569 = vsel %vm112, %v7495, 0.0
    %v7570 = vadd.f32 %v7568, %v7569
    %v7571 = vsel %vm112, %v7496, 0.0
    %v7572 = vadd.f32 %v7570, %v7571
    %v7573 = vsel %vm112, %v7497, 0.0
    %v7574 = vadd.f32 %v7572, %v7573
    %v7575 = vsel %vm112, %v7498, 0.0
    %v7576 = vadd.f32 %v7574, %v7575
    %v7577 = vsel %vm112, %v7499, 0.0
    %v7578 = vadd.f32 %v7576, %v7577
    %v7579 = vsel %vm112, %v7500, 0.0
    %v7580 = vadd.f32 %v7578, %v7579
    %v7581 = vsel %vm112, %v7501, 0.0
    %v7582 = vadd.f32 %v7580, %v7581
    %v7583 = vsel %vm112, %v7502, 0.0
    %v7584 = vadd.f32 %v7582, %v7583
    %v7585 = vsel %vm112, %v7503, 0.0
    %v7586 = vadd.f32 %v7584, %v7585
    %v7587 = vsel %vm112, %v7504, 0.0
    %v7588 = vadd.f32 %v7586, %v7587
    %v7589 = vsel %vm112, %v7505, 0.0
    %v7590 = vadd.f32 %v7588, %v7589
    %v7591 = vsel %vm112, %v7506, 0.0
    %v7592 = vadd.f32 %v7590, %v7591
    %v7593 = vsel %vm112, %v7507, 0.0
    %v7594 = vadd.f32 %v7592, %v7593
    %v7595 = vsel %vm112, %v7508, 0.0
    %v7596 = vadd.f32 %v7594, %v7595
    %v7597 = vsel %vm112, %v7509, 0.0
    %v7598 = vadd.f32 %v7596, %v7597
    %v7599 = vsel %vm112, %v7510, 0.0
    %v7600 = vadd.f32 %v7598, %v7599
    %v7601 = vsel %vm112, %v7511, 0.0
    %v7602 = vadd.f32 %v7600, %v7601
    %v7603 = vsel %vm112, %v7512, 0.0
    %v7604 = vadd.f32 %v7602, %v7603
    %v7605 = vsel %vm112, %v7513, 0.0
    %v7606 = vadd.f32 %v7604, %v7605
    %v7607 = vsel %vm112, %v7514, 0.0
    %v7608 = vadd.f32 %v7606, %v7607
    %v7609 = vsel %vm112, %v7515, 0.0
    %v7610 = vadd.f32 %v7608, %v7609
    %v7611 = vsel %vm112, %v7516, 0.0
    %v7612 = vadd.f32 %v7610, %v7611
    %v7613 = vsel %vm112, %v7517, 0.0
    %v7614 = vadd.f32 %v7612, %v7613
    %v7615 = vsel %vm112, %v7518, 0.0
    %v7616 = vadd.f32 %v7614, %v7615
    %v7617 = vsel %vm112, %v7519, 0.0
    %v7618 = vadd.f32 %v7616, %v7617
    %v7619 = vsel %vm112, %v7520, 0.0
    %v7620 = vadd.f32 %v7618, %v7619
    %v7621 = vsel %vm112, %v7521, 0.0
    %v7622 = vadd.f32 %v7620, %v7621
    %v7623 = vsel %vm112, %v7522, 0.0
    %v7624 = vadd.f32 %v7622, %v7623
    %v7625 = vsel %vm112, %v7523, 0.0
    %v7626 = vadd.f32 %v7624, %v7625
    %v7627 = vsel %vm112, %v7524, 0.0
    %v7628 = vadd.f32 %v7626, %v7627
    %v7629 = vsel %vm112, %v7525, 0.0
    %v7630 = vadd.f32 %v7628, %v7629
    %v7631 = vsel %vm112, %v7526, 0.0
    %v7632 = vadd.f32 %v7630, %v7631
    %v7633 = vsel %vm112, %v7527, 0.0
    %v7634 = vadd.f32 %v7632, %v7633
    %v7635 = vsel %vm112, %v7528, 0.0
    %v7636 = vadd.f32 %v7634, %v7635
    %v7637 = vsel %vm112, %v7529, 0.0
    %v7638 = vadd.f32 %v7636, %v7637
    %v7639 = vsel %vm112, %v7530, 0.0
    %v7640 = vadd.f32 %v7638, %v7639
    %v7641 = vsel %vm112, %v7531, 0.0
    %v7642 = vadd.f32 %v7640, %v7641
    %v7643 = vsel %vm112, %v7532, 0.0
    %v7644 = vadd.f32 %v7642, %v7643
    %v7645 = vsel %vm112, %v7533, 0.0
    %v7646 = vadd.f32 %v7644, %v7645
    %v7647 = vsel %vm112, %v7534, 0.0
    %v7648 = vadd.f32 %v7646, %v7647
    %v7649 = vsel %vm112, %v7535, 0.0
    %v7650 = vadd.f32 %v7648, %v7649
    %v7651 = vsel %vm112, %v7536, 0.0
    %v7652 = vadd.f32 %v7650, %v7651
    %v7653 = vsel %vm112, %v7537, 0.0
    %v7654 = vadd.f32 %v7652, %v7653
    %v7655 = vsel %vm112, %v7538, 0.0
    %v7656 = vadd.f32 %v7654, %v7655
    %v7657 = vsel %vm112, %v7539, 0.0
    %v7658 = vadd.f32 %v7656, %v7657
    %v7659 = vsel %vm112, %v7540, 0.0
    %v7660 = vadd.f32 %v7658, %v7659
    %v7661 = vsel %vm112, %v7541, 0.0
    %v7662 = vadd.f32 %v7660, %v7661
    %v7663 = vsel %vm112, %v7542, 0.0
    %v7664 = vadd.f32 %v7662, %v7663
    %v7665 = vsel %vm112, %v7543, 0.0
    %v7666 = vadd.f32 %v7664, %v7665
    %v7667 = vsel %vm112, %v7544, 0.0
    %v7668 = vadd.f32 %v7666, %v7667
    %v7669 = vsel %vm112, %v7545, 0.0
    %v7670 = vadd.f32 %v7668, %v7669
    %v7671 = vsel %vm112, %v7546, 0.0
    %v7672 = vadd.f32 %v7670, %v7671
    %v7673 = vsel %vm112, %v7547, 0.0
    %v7674 = vadd.f32 %v7672, %v7673
    %v7675 = vrot.slane %v7674, 4
    %v7676 = vadd.f32 %v7674, %v7675
    %v7677 = vrot.slane %v7676, 2
    %v7678 = vadd.f32 %v7676, %v7677
    %v7679 = vrot.slane %v7678, 1
    %v7680 = vadd.f32 %v7678, %v7679
    %v7681 = vmul.f32 %v7680, 0.001953125
    %v7682 = vmul.f32 %v7483, %v7483
    %v7683 = vsub.f32 %v7681, %v7682
    %v7684 = vadd.f32 %v7683, 1e-05
    %v7685 = vrsqrt.pop %v7684
    %v7686 = vmul.f32 %v7348, %v7685
    %v7687 = vmul.f32 %v7483, %v7686
    %v7688 = vsub.f32 %v7349, %v7687
    %v7690 = vlaneseq
    %v7691 = vshrl.u32 %v7690, 7
    %v7692 = vsub.s32 0, %v7691
    %v7693 = vrot.slane %v7686, %v7692
    %v7695 = vmul.f32 %v7094, %v7693
    %v7696 = vmul.f32 %v7097, %v7693
    %v7697 = vmul.f32 %v7102, %v7693
    %v7698 = vmul.f32 %v7105, %v7693
    %v7699 = vmul.f32 %v7110, %v7693
    %v7700 = vmul.f32 %v7113, %v7693
    %v7701 = vmul.f32 %v7118, %v7693
    %v7702 = vmul.f32 %v7121, %v7693
    %v7703 = vmul.f32 %v7126, %v7693
    %v7704 = vmul.f32 %v7129, %v7693
    %v7705 = vmul.f32 %v7134, %v7693
    %v7706 = vmul.f32 %v7137, %v7693
    %v7707 = vmul.f32 %v7142, %v7693
    %v7708 = vmul.f32 %v7145, %v7693
    %v7709 = vmul.f32 %v7150, %v7693
    %v7710 = vmul.f32 %v7153, %v7693
    %v7711 = vmul.f32 %v7158, %v7693
    %v7712 = vmul.f32 %v7161, %v7693
    %v7713 = vmul.f32 %v7166, %v7693
    %v7714 = vmul.f32 %v7169, %v7693
    %v7715 = vmul.f32 %v7174, %v7693
    %v7716 = vmul.f32 %v7177, %v7693
    %v7717 = vmul.f32 %v7182, %v7693
    %v7718 = vmul.f32 %v7185, %v7693
    %v7719 = vmul.f32 %v7190, %v7693
    %v7720 = vmul.f32 %v7193, %v7693
    %v7721 = vmul.f32 %v7198, %v7693
    %v7722 = vmul.f32 %v7201, %v7693
    %v7723 = vmul.f32 %v7206, %v7693
    %v7724 = vmul.f32 %v7209, %v7693
    %v7725 = vmul.f32 %v7214, %v7693
    %v7726 = vmul.f32 %v7217, %v7693
    %v7727 = vmul.f32 %v7222, %v7693
    %v7728 = vmul.f32 %v7225, %v7693
    %v7729 = vmul.f32 %v7230, %v7693
    %v7730 = vmul.f32 %v7233, %v7693
    %v7731 = vmul.f32 %v7238, %v7693
    %v7732 = vmul.f32 %v7241, %v7693
    %v7733 = vmul.f32 %v7246, %v7693
    %v7734 = vmul.f32 %v7249, %v7693
    %v7735 = vmul.f32 %v7254, %v7693
    %v7736 = vmul.f32 %v7257, %v7693
    %v7737 = vmul.f32 %v7262, %v7693
    %v7738 = vmul.f32 %v7265, %v7693
    %v7739 = vmul.f32 %v7270, %v7693
    %v7740 = vmul.f32 %v7273, %v7693
    %v7741 = vmul.f32 %v7278, %v7693
    %v7742 = vmul.f32 %v7281, %v7693
    %v7743 = vmul.f32 %v7286, %v7693
    %v7744 = vmul.f32 %v7289, %v7693
    %v7745 = vmul.f32 %v7294, %v7693
    %v7746 = vmul.f32 %v7297, %v7693
    %v7747 = vmul.f32 %v7302, %v7693
    %v7748 = vmul.f32 %v7305, %v7693
    %v7749 = vmul.f32 %v7310, %v7693
    %v7750 = vmul.f32 %v7313, %v7693
    %v7751 = vmul.f32 %v7318, %v7693
    %v7752 = vmul.f32 %v7321, %v7693
    %v7753 = vmul.f32 %v7326, %v7693
    %v7754 = vmul.f32 %v7329, %v7693
    %v7755 = vmul.f32 %v7334, %v7693
    %v7756 = vmul.f32 %v7337, %v7693
    %v7757 = vmul.f32 %v7342, %v7693
    %v7758 = vmul.f32 %v7345, %v7693
    %v7760 = vlaneseq
    %v7761 = vshrl.u32 %v7760, 7
    %v7762 = vsub.s32 0, %v7761
    %v7763 = vrot.slane %v7688, %v7762
    %v7765 = vadd.f32 %v7695, %v7763
    %v7766 = vadd.f32 %v7696, %v7763
    %v7767 = vadd.f32 %v7697, %v7763
    %v7768 = vadd.f32 %v7698, %v7763
    %v7769 = vadd.f32 %v7699, %v7763
    %v7770 = vadd.f32 %v7700, %v7763
    %v7771 = vadd.f32 %v7701, %v7763
    %v7772 = vadd.f32 %v7702, %v7763
    %v7773 = vadd.f32 %v7703, %v7763
    %v7774 = vadd.f32 %v7704, %v7763
    %v7775 = vadd.f32 %v7705, %v7763
    %v7776 = vadd.f32 %v7706, %v7763
    %v7777 = vadd.f32 %v7707, %v7763
    %v7778 = vadd.f32 %v7708, %v7763
    %v7779 = vadd.f32 %v7709, %v7763
    %v7780 = vadd.f32 %v7710, %v7763
    %v7781 = vadd.f32 %v7711, %v7763
    %v7782 = vadd.f32 %v7712, %v7763
    %v7783 = vadd.f32 %v7713, %v7763
    %v7784 = vadd.f32 %v7714, %v7763
    %v7785 = vadd.f32 %v7715, %v7763
    %v7786 = vadd.f32 %v7716, %v7763
    %v7787 = vadd.f32 %v7717, %v7763
    %v7788 = vadd.f32 %v7718, %v7763
    %v7789 = vadd.f32 %v7719, %v7763
    %v7790 = vadd.f32 %v7720, %v7763
    %v7791 = vadd.f32 %v7721, %v7763
    %v7792 = vadd.f32 %v7722, %v7763
    %v7793 = vadd.f32 %v7723, %v7763
    %v7794 = vadd.f32 %v7724, %v7763
    %v7795 = vadd.f32 %v7725, %v7763
    %v7796 = vadd.f32 %v7726, %v7763
    %v7797 = vadd.f32 %v7727, %v7763
    %v7798 = vadd.f32 %v7728, %v7763
    %v7799 = vadd.f32 %v7729, %v7763
    %v7800 = vadd.f32 %v7730, %v7763
    %v7801 = vadd.f32 %v7731, %v7763
    %v7802 = vadd.f32 %v7732, %v7763
    %v7803 = vadd.f32 %v7733, %v7763
    %v7804 = vadd.f32 %v7734, %v7763
    %v7805 = vadd.f32 %v7735, %v7763
    %v7806 = vadd.f32 %v7736, %v7763
    %v7807 = vadd.f32 %v7737, %v7763
    %v7808 = vadd.f32 %v7738, %v7763
    %v7809 = vadd.f32 %v7739, %v7763
    %v7810 = vadd.f32 %v7740, %v7763
    %v7811 = vadd.f32 %v7741, %v7763
    %v7812 = vadd.f32 %v7742, %v7763
    %v7813 = vadd.f32 %v7743, %v7763
    %v7814 = vadd.f32 %v7744, %v7763
    %v7815 = vadd.f32 %v7745, %v7763
    %v7816 = vadd.f32 %v7746, %v7763
    %v7817 = vadd.f32 %v7747, %v7763
    %v7818 = vadd.f32 %v7748, %v7763
    %v7819 = vadd.f32 %v7749, %v7763
    %v7820 = vadd.f32 %v7750, %v7763
    %v7821 = vadd.f32 %v7751, %v7763
    %v7822 = vadd.f32 %v7752, %v7763
    %v7823 = vadd.f32 %v7753, %v7763
    %v7824 = vadd.f32 %v7754, %v7763
    %v7825 = vadd.f32 %v7755, %v7763
    %v7826 = vadd.f32 %v7756, %v7763
    %v7827 = vadd.f32 %v7757, %v7763
    %v7828 = vadd.f32 %v7758, %v7763
    %v7829 = vmax.f32 %v7765, 0.0
    %v7830 = vmax.f32 %v7766, 0.0
    %v7831 = vmax.f32 %v7767, 0.0
    %v7832 = vmax.f32 %v7768, 0.0
    %v7833 = vmax.f32 %v7769, 0.0
    %v7834 = vmax.f32 %v7770, 0.0
    %v7835 = vmax.f32 %v7771, 0.0
    %v7836 = vmax.f32 %v7772, 0.0
    %v7837 = vmax.f32 %v7773, 0.0
    %v7838 = vmax.f32 %v7774, 0.0
    %v7839 = vmax.f32 %v7775, 0.0
    %v7840 = vmax.f32 %v7776, 0.0
    %v7841 = vmax.f32 %v7777, 0.0
    %v7842 = vmax.f32 %v7778, 0.0
    %v7843 = vmax.f32 %v7779, 0.0
    %v7844 = vmax.f32 %v7780, 0.0
    %v7845 = vmax.f32 %v7781, 0.0
    %v7846 = vmax.f32 %v7782, 0.0
    %v7847 = vmax.f32 %v7783, 0.0
    %v7848 = vmax.f32 %v7784, 0.0
    %v7849 = vmax.f32 %v7785, 0.0
    %v7850 = vmax.f32 %v7786, 0.0
    %v7851 = vmax.f32 %v7787, 0.0
    %v7852 = vmax.f32 %v7788, 0.0
    %v7853 = vmax.f32 %v7789, 0.0
    %v7854 = vmax.f32 %v7790, 0.0
    %v7855 = vmax.f32 %v7791, 0.0
    %v7856 = vmax.f32 %v7792, 0.0
    %v7857 = vmax.f32 %v7793, 0.0
    %v7858 = vmax.f32 %v7794, 0.0
    %v7859 = vmax.f32 %v7795, 0.0
    %v7860 = vmax.f32 %v7796, 0.0
    %v7861 = vmax.f32 %v7797, 0.0
    %v7862 = vmax.f32 %v7798, 0.0
    %v7863 = vmax.f32 %v7799, 0.0
    %v7864 = vmax.f32 %v7800, 0.0
    %v7865 = vmax.f32 %v7801, 0.0
    %v7866 = vmax.f32 %v7802, 0.0
    %v7867 = vmax.f32 %v7803, 0.0
    %v7868 = vmax.f32 %v7804, 0.0
    %v7869 = vmax.f32 %v7805, 0.0
    %v7870 = vmax.f32 %v7806, 0.0
    %v7871 = vmax.f32 %v7807, 0.0
    %v7872 = vmax.f32 %v7808, 0.0
    %v7873 = vmax.f32 %v7809, 0.0
    %v7874 = vmax.f32 %v7810, 0.0
    %v7875 = vmax.f32 %v7811, 0.0
    %v7876 = vmax.f32 %v7812, 0.0
    %v7877 = vmax.f32 %v7813, 0.0
    %v7878 = vmax.f32 %v7814, 0.0
    %v7879 = vmax.f32 %v7815, 0.0
    %v7880 = vmax.f32 %v7816, 0.0
    %v7881 = vmax.f32 %v7817, 0.0
    %v7882 = vmax.f32 %v7818, 0.0
    %v7883 = vmax.f32 %v7819, 0.0
    %v7884 = vmax.f32 %v7820, 0.0
    %v7885 = vmax.f32 %v7821, 0.0
    %v7886 = vmax.f32 %v7822, 0.0
    %v7887 = vmax.f32 %v7823, 0.0
    %v7888 = vmax.f32 %v7824, 0.0
    %v7889 = vmax.f32 %v7825, 0.0
    %v7890 = vmax.f32 %v7826, 0.0
    %v7891 = vmax.f32 %v7827, 0.0
    %v7892 = vmax.f32 %v7828, 0.0
    %7893 = vst.msk [vmem:[#allocation4] sm:$0xff] %vm112, 0.0
    %7894 = vst.msk [vmem:[#allocation4 + $0x8] sm:$0xff] %vm112, 0.0
    %7895 = vst.msk [vmem:[#allocation4 + $0x10] sm:$0x3] %vm115, 0.0
    %7896 = vst.msk [vmem:[#allocation4 + $0x18] sm:$0xff] %vm112, 0.0
    %7897 = vst.msk [vmem:[#allocation4 + $0x20] sm:$0xff] %vm112, 0.0
    %7898 = vst.msk [vmem:[#allocation4 + $0x28] sm:$0x3] %vm115, 0.0
    %7899 = vst.msk [vmem:[#allocation4 + $0x30] sm:$0xff] %vm112, 0.0
    %7900 = vst.msk [vmem:[#allocation4 + $0x38] sm:$0xff] %vm112, 0.0
    %7901 = vst.msk [vmem:[#allocation4 + $0x40] sm:$0x3] %vm115, 0.0
    %7902 = vst.msk [vmem:[#allocation4 + $0x48] sm:$0xff] %vm112, 0.0
    %7903 = vst.msk [vmem:[#allocation4 + $0x50] sm:$0xff] %vm112, 0.0
    %7904 = vst.msk [vmem:[#allocation4 + $0x58] sm:$0x3] %vm115, 0.0
    %7905 = vst.msk [vmem:[#allocation4 + $0x60] sm:$0xff] %vm112, 0.0
    %7906 = vst.msk [vmem:[#allocation4 + $0x68] sm:$0xff] %vm112, 0.0
    %7907 = vst.msk [vmem:[#allocation4 + $0x70] sm:$0x3] %vm115, 0.0
    %7908 = vst.msk [vmem:[#allocation4 + $0x78] sm:$0xff] %vm112, 0.0
    %7909 = vst.msk [vmem:[#allocation4 + $0x80] sm:$0xff] %vm112, 0.0
    %7910 = vst.msk [vmem:[#allocation4 + $0x88] sm:$0x3] %vm115, 0.0
    %7911 = vst.msk [vmem:[#allocation4 + $0x90] sm:$0xff] %vm112, 0.0
    %7912 = vst.msk [vmem:[#allocation4 + $0x98] sm:$0xff] %vm112, 0.0
    %7913 = vst.msk [vmem:[#allocation4 + $0xa0] sm:$0x3] %vm115, 0.0
    %7914 = vst.msk [vmem:[#allocation4 + $0xa8] sm:$0xff] %vm112, 0.0
    %7915 = vst.msk [vmem:[#allocation4 + $0xb0] sm:$0xff] %vm112, 0.0
    %7916 = vst.msk [vmem:[#allocation4 + $0xb8] sm:$0x3] %vm115, 0.0
    %7917 = vst.msk [vmem:[#allocation4 + $0xc0] sm:$0xff] %vm112, 0.0
    %7918 = vst.msk [vmem:[#allocation4 + $0xc8] sm:$0xff] %vm112, 0.0
    %7919 = vst.msk [vmem:[#allocation4 + $0xd0] sm:$0x3] %vm115, 0.0
    %7920 = vst.msk [vmem:[#allocation4 + $0xd8] sm:$0xff] %vm112, 0.0
    %7921 = vst.msk [vmem:[#allocation4 + $0xe0] sm:$0xff] %vm112, 0.0
    %7922 = vst.msk [vmem:[#allocation4 + $0xe8] sm:$0x3] %vm115, 0.0
    %7923 = vst.msk [vmem:[#allocation4 + $0xf0] sm:$0xff] %vm112, 0.0
    %7924 = vst.msk [vmem:[#allocation4 + $0xf8] sm:$0xff] %vm112, 0.0
    %7925 = vst.msk [vmem:[#allocation4 + $0x100] sm:$0x3] %vm115, 0.0
    %7926 = vst.msk [vmem:[#allocation4 + $0x108] sm:$0xff] %vm112, 0.0
    %7927 = vst.msk [vmem:[#allocation4 + $0x110] sm:$0xff] %vm112, 0.0
    %7928 = vst.msk [vmem:[#allocation4 + $0x118] sm:$0x3] %vm115, 0.0
    %7929 = vst.msk [vmem:[#allocation4 + $0x120] sm:$0xff] %vm112, 0.0
    %7930 = vst.msk [vmem:[#allocation4 + $0x128] sm:$0xff] %vm112, 0.0
    %7931 = vst.msk [vmem:[#allocation4 + $0x130] sm:$0x3] %vm115, 0.0
    %7932 = vst.msk [vmem:[#allocation4 + $0x138] sm:$0xff] %vm112, 0.0
    %7933 = vst.msk [vmem:[#allocation4 + $0x140] sm:$0xff] %vm112, 0.0
    %7934 = vst.msk [vmem:[#allocation4 + $0x148] sm:$0x3] %vm115, 0.0
    %7935 = vst.msk [vmem:[#allocation4 + $0x150] sm:$0xff] %vm112, 0.0
    %7936 = vst.msk [vmem:[#allocation4 + $0x158] sm:$0xff] %vm112, 0.0
    %7937 = vst.msk [vmem:[#allocation4 + $0x160] sm:$0x3] %vm115, 0.0
    %7938 = vst.msk [vmem:[#allocation4 + $0x168] sm:$0xff] %vm112, 0.0
    %7939 = vst.msk [vmem:[#allocation4 + $0x170] sm:$0xff] %vm112, 0.0
    %7940 = vst.msk [vmem:[#allocation4 + $0x178] sm:$0x3] %vm115, 0.0
    %7941 = vst.msk [vmem:[#allocation4 + $0x180] sm:$0xff] %vm112, 0.0
    %7942 = vst.msk [vmem:[#allocation4 + $0x188] sm:$0xff] %vm112, 0.0
    %7943 = vst.msk [vmem:[#allocation4 + $0x190] sm:$0x3] %vm115, 0.0
    %7944 = vst.msk [vmem:[#allocation4 + $0x198] sm:$0xff] %vm112, 0.0
    %7945 = vst.msk [vmem:[#allocation4 + $0x1a0] sm:$0xff] %vm112, 0.0
    %7946 = vst.msk [vmem:[#allocation4 + $0x1a8] sm:$0x3] %vm115, 0.0
    %7947 = vst.msk [vmem:[#allocation4 + $0x1b0] sm:$0xff] %vm112, 0.0
    %7948 = vst.msk [vmem:[#allocation4 + $0x1b8] sm:$0xff] %vm112, 0.0
    %7949 = vst.msk [vmem:[#allocation4 + $0x1c0] sm:$0x3] %vm115, 0.0
    %7950 = vst.msk [vmem:[#allocation4 + $0x1c8] sm:$0xff] %vm112, 0.0
    %7951 = vst.msk [vmem:[#allocation4 + $0x1d0] sm:$0xff] %vm112, 0.0
    %7952 = vst.msk [vmem:[#allocation4 + $0x1d8] sm:$0x3] %vm115, 0.0
    %7953 = vst.msk [vmem:[#allocation4 + $0x1e0] sm:$0xff] %vm112, 0.0
    %7954 = vst.msk [vmem:[#allocation4 + $0x1e8] sm:$0xff] %vm112, 0.0
    %7955 = vst.msk [vmem:[#allocation4 + $0x1f0] sm:$0x3] %vm115, 0.0
    %7956 = vst.msk [vmem:[#allocation4 + $0x1f8] sm:$0xff] %vm112, 0.0
    %7957 = vst.msk [vmem:[#allocation4 + $0x200] sm:$0xff] %vm112, 0.0
    %7958 = vst.msk [vmem:[#allocation4 + $0x208] sm:$0x3] %vm115, 0.0
    %7959 = vst.msk [vmem:[#allocation4 + $0x210] sm:$0xff] %vm112, 0.0
    %7960 = vst.msk [vmem:[#allocation4 + $0x218] sm:$0xff] %vm112, 0.0
    %7961 = vst.msk [vmem:[#allocation4 + $0x220] sm:$0x3] %vm115, 0.0
    %7962 = vst.msk [vmem:[#allocation4 + $0x228] sm:$0xff] %vm112, 0.0
    %7963 = vst.msk [vmem:[#allocation4 + $0x230] sm:$0xff] %vm112, 0.0
    %7964 = vst.msk [vmem:[#allocation4 + $0x238] sm:$0x3] %vm115, 0.0
    %7965 = vst.msk [vmem:[#allocation4 + $0x240] sm:$0xff] %vm112, 0.0
    %7966 = vst.msk [vmem:[#allocation4 + $0x248] sm:$0xff] %vm112, 0.0
    %7967 = vst.msk [vmem:[#allocation4 + $0x250] sm:$0x3] %vm115, 0.0
    %7968 = vst.msk [vmem:[#allocation4 + $0x258] sm:$0xff] %vm112, 0.0
    %7969 = vst.msk [vmem:[#allocation4 + $0x260] sm:$0xff] %vm112, 0.0
    %7970 = vst.msk [vmem:[#allocation4 + $0x268] sm:$0x3] %vm115, 0.0
    %7971 = vst.msk [vmem:[#allocation4 + $0x270] sm:$0xff] %vm112, 0.0
    %7972 = vst.msk [vmem:[#allocation4 + $0x278] sm:$0xff] %vm112, 0.0
    %7973 = vst.msk [vmem:[#allocation4 + $0x280] sm:$0x3] %vm115, 0.0
    %7974 = vst.msk [vmem:[#allocation4 + $0x288] sm:$0xff] %vm112, 0.0
    %7975 = vst.msk [vmem:[#allocation4 + $0x290] sm:$0xff] %vm112, 0.0
    %7976 = vst.msk [vmem:[#allocation4 + $0x298] sm:$0x3] %vm115, 0.0
    %7977 = vst.msk [vmem:[#allocation4 + $0x2a0] sm:$0xff] %vm112, 0.0
    %7978 = vst.msk [vmem:[#allocation4 + $0x2a8] sm:$0xff] %vm112, 0.0
    %7979 = vst.msk [vmem:[#allocation4 + $0x2b0] sm:$0x3] %vm115, 0.0
    %7980 = vst.msk [vmem:[#allocation4 + $0x2b8] sm:$0xff] %vm112, 0.0
    %7981 = vst.msk [vmem:[#allocation4 + $0x2c0] sm:$0xff] %vm112, 0.0
    %7982 = vst.msk [vmem:[#allocation4 + $0x2c8] sm:$0x3] %vm115, 0.0
    %7983 = vst.msk [vmem:[#allocation4 + $0x2d0] sm:$0xff] %vm112, 0.0
    %7984 = vst.msk [vmem:[#allocation4 + $0x2d8] sm:$0xff] %vm112, 0.0
    %7985 = vst.msk [vmem:[#allocation4 + $0x2e0] sm:$0x3] %vm115, 0.0
    %7986 = vst.msk [vmem:[#allocation4 + $0x2e8] sm:$0xff] %vm112, 0.0
    %7987 = vst.msk [vmem:[#allocation4 + $0x2f0] sm:$0xff] %vm112, 0.0
    %7988 = vst.msk [vmem:[#allocation4 + $0x2f8] sm:$0x3] %vm115, 0.0
    %7989 = vst.msk [vmem:[#allocation4 + $0x300] sm:$0xff] %vm112, 0.0
    %7990 = vst.msk [vmem:[#allocation4 + $0x308] sm:$0xff] %vm112, 0.0
    %7991 = vst.msk [vmem:[#allocation4 + $0x310] sm:$0x3] %vm115, 0.0
    %7992 = vst.msk [vmem:[#allocation4 + $0x318] sm:$0xff] %vm112, 0.0
    %7993 = vst.msk [vmem:[#allocation4 + $0x320] sm:$0xff] %vm112, 0.0
    %7994 = vst.msk [vmem:[#allocation4 + $0x328] sm:$0x3] %vm115, 0.0
    %7995 = vst.msk [vmem:[#allocation4 + $0x330] sm:$0xff] %vm112, 0.0
    %7996 = vst.msk [vmem:[#allocation4 + $0x338] sm:$0xff] %vm112, 0.0
    %7997 = vst.msk [vmem:[#allocation4 + $0x340] sm:$0x3] %vm115, 0.0
    %7998 = vst.msk [vmem:[#allocation4 + $0x348] sm:$0xff] %vm112, 0.0
    %7999 = vst.msk [vmem:[#allocation4 + $0x350] sm:$0xff] %vm112, 0.0
    %8000 = vst.msk [vmem:[#allocation4 + $0x358] sm:$0x3] %vm115, 0.0
    %s8001 = scalar_lea.vmem [#allocation4], 24
    %8002 = vst.msk [vmem:[%s8001 + $0x1] sm:$0xff] %vm112, %v7829
    %8003 = vst.msk [vmem:[%s8001 + $0x9] sm:$0xff] %vm112, %v7830
    %8004 = vst.msk [vmem:[%s8001 + $0x19] sm:$0xff] %vm112, %v7831
    %8005 = vst.msk [vmem:[%s8001 + $0x21] sm:$0xff] %vm112, %v7832
    %8006 = vst.msk [vmem:[%s8001 + $0x31] sm:$0xff] %vm112, %v7833
    %8007 = vst.msk [vmem:[%s8001 + $0x39] sm:$0xff] %vm112, %v7834
    %8008 = vst.msk [vmem:[%s8001 + $0x49] sm:$0xff] %vm112, %v7835
    %8009 = vst.msk [vmem:[%s8001 + $0x51] sm:$0xff] %vm112, %v7836
    %8010 = vst.msk [vmem:[%s8001 + $0x61] sm:$0xff] %vm112, %v7837
    %8011 = vst.msk [vmem:[%s8001 + $0x69] sm:$0xff] %vm112, %v7838
    %8012 = vst.msk [vmem:[%s8001 + $0x79] sm:$0xff] %vm112, %v7839
    %8013 = vst.msk [vmem:[%s8001 + $0x81] sm:$0xff] %vm112, %v7840
    %8014 = vst.msk [vmem:[%s8001 + $0x91] sm:$0xff] %vm112, %v7841
    %8015 = vst.msk [vmem:[%s8001 + $0x99] sm:$0xff] %vm112, %v7842
    %8016 = vst.msk [vmem:[%s8001 + $0xa9] sm:$0xff] %vm112, %v7843
    %8017 = vst.msk [vmem:[%s8001 + $0xb1] sm:$0xff] %vm112, %v7844
    %8018 = vst.msk [vmem:[%s8001 + $0xc1] sm:$0xff] %vm112, %v7845
    %8019 = vst.msk [vmem:[%s8001 + $0xc9] sm:$0xff] %vm112, %v7846
    %8020 = vst.msk [vmem:[%s8001 + $0xd9] sm:$0xff] %vm112, %v7847
    %8021 = vst.msk [vmem:[%s8001 + $0xe1] sm:$0xff] %vm112, %v7848
    %8022 = vst.msk [vmem:[%s8001 + $0xf1] sm:$0xff] %vm112, %v7849
    %8023 = vst.msk [vmem:[%s8001 + $0xf9] sm:$0xff] %vm112, %v7850
    %8024 = vst.msk [vmem:[%s8001 + $0x109] sm:$0xff] %vm112, %v7851
    %8025 = vst.msk [vmem:[%s8001 + $0x111] sm:$0xff] %vm112, %v7852
    %8026 = vst.msk [vmem:[%s8001 + $0x121] sm:$0xff] %vm112, %v7853
    %8027 = vst.msk [vmem:[%s8001 + $0x129] sm:$0xff] %vm112, %v7854
    %8028 = vst.msk [vmem:[%s8001 + $0x139] sm:$0xff] %vm112, %v7855
    %8029 = vst.msk [vmem:[%s8001 + $0x141] sm:$0xff] %vm112, %v7856
    %8030 = vst.msk [vmem:[%s8001 + $0x151] sm:$0xff] %vm112, %v7857
    %8031 = vst.msk [vmem:[%s8001 + $0x159] sm:$0xff] %vm112, %v7858
    %8032 = vst.msk [vmem:[%s8001 + $0x169] sm:$0xff] %vm112, %v7859
    %8033 = vst.msk [vmem:[%s8001 + $0x171] sm:$0xff] %vm112, %v7860
    %8034 = vst.msk [vmem:[%s8001 + $0x1b1] sm:$0xff] %vm112, %v7861
    %8035 = vst.msk [vmem:[%s8001 + $0x1b9] sm:$0xff] %vm112, %v7862
    %8036 = vst.msk [vmem:[%s8001 + $0x1c9] sm:$0xff] %vm112, %v7863
    %8037 = vst.msk [vmem:[%s8001 + $0x1d1] sm:$0xff] %vm112, %v7864
    %8038 = vst.msk [vmem:[%s8001 + $0x1e1] sm:$0xff] %vm112, %v7865
    %8039 = vst.msk [vmem:[%s8001 + $0x1e9] sm:$0xff] %vm112, %v7866
    %8040 = vst.msk [vmem:[%s8001 + $0x1f9] sm:$0xff] %vm112, %v7867
    %8041 = vst.msk [vmem:[%s8001 + $0x201] sm:$0xff] %vm112, %v7868
    %8042 = vst.msk [vmem:[%s8001 + $0x211] sm:$0xff] %vm112, %v7869
    %8043 = vst.msk [vmem:[%s8001 + $0x219] sm:$0xff] %vm112, %v7870
    %8044 = vst.msk [vmem:[%s8001 + $0x229] sm:$0xff] %vm112, %v7871
    %8045 = vst.msk [vmem:[%s8001 + $0x231] sm:$0xff] %vm112, %v7872
    %8046 = vst.msk [vmem:[%s8001 + $0x241] sm:$0xff] %vm112, %v7873
    %8047 = vst.msk [vmem:[%s8001 + $0x249] sm:$0xff] %vm112, %v7874
    %8048 = vst.msk [vmem:[%s8001 + $0x259] sm:$0xff] %vm112, %v7875
    %8049 = vst.msk [vmem:[%s8001 + $0x261] sm:$0xff] %vm112, %v7876
    %8050 = vst.msk [vmem:[%s8001 + $0x271] sm:$0xff] %vm112, %v7877
    %8051 = vst.msk [vmem:[%s8001 + $0x279] sm:$0xff] %vm112, %v7878
    %8052 = vst.msk [vmem:[%s8001 + $0x289] sm:$0xff] %vm112, %v7879
    %8053 = vst.msk [vmem:[%s8001 + $0x291] sm:$0xff] %vm112, %v7880
    %8054 = vst.msk [vmem:[%s8001 + $0x2a1] sm:$0xff] %vm112, %v7881
    %8055 = vst.msk [vmem:[%s8001 + $0x2a9] sm:$0xff] %vm112, %v7882
    %8056 = vst.msk [vmem:[%s8001 + $0x2b9] sm:$0xff] %vm112, %v7883
    %8057 = vst.msk [vmem:[%s8001 + $0x2c1] sm:$0xff] %vm112, %v7884
    %8058 = vst.msk [vmem:[%s8001 + $0x2d1] sm:$0xff] %vm112, %v7885
    %8059 = vst.msk [vmem:[%s8001 + $0x2d9] sm:$0xff] %vm112, %v7886
    %8060 = vst.msk [vmem:[%s8001 + $0x2e9] sm:$0xff] %vm112, %v7887
    %8061 = vst.msk [vmem:[%s8001 + $0x2f1] sm:$0xff] %vm112, %v7888
    %8062 = vst.msk [vmem:[%s8001 + $0x301] sm:$0xff] %vm112, %v7889
    %8063 = vst.msk [vmem:[%s8001 + $0x309] sm:$0xff] %vm112, %v7890
    %8064 = vst.msk [vmem:[%s8001 + $0x319] sm:$0xff] %vm112, %v7891
    %8065 = vst.msk [vmem:[%s8001 + $0x321] sm:$0xff] %vm112, %v7892
    %v8066 = vld [vmem:[#allocation4] sm:$0xff]
    %v8067 = vld [vmem:[#allocation4 + $0x8] sm:$0xff]
    %v8068 = vld [vmem:[#allocation4 + $0x18] sm:$0xff]
    %v8069 = vld [vmem:[#allocation4 + $0x20] sm:$0xff]
    %v8070 = vld [vmem:[#allocation4 + $0x30] sm:$0xff]
    %v8071 = vld [vmem:[#allocation4 + $0x38] sm:$0xff]
    %v8072 = vld [vmem:[#allocation4 + $0x48] sm:$0xff]
    %v8073 = vld [vmem:[#allocation4 + $0x50] sm:$0xff]
    %v8074 = vld [vmem:[#allocation4 + $0x60] sm:$0xff]
    %v8075 = vld [vmem:[#allocation4 + $0x68] sm:$0xff]
    %v8076 = vld [vmem:[#allocation4 + $0x78] sm:$0xff]
    %v8077 = vld [vmem:[#allocation4 + $0x80] sm:$0xff]
    %v8078 = vld [vmem:[#allocation4 + $0x90] sm:$0xff]
    %v8079 = vld [vmem:[#allocation4 + $0x98] sm:$0xff]
    %v8080 = vld [vmem:[#allocation4 + $0xa8] sm:$0xff]
    %v8081 = vld [vmem:[#allocation4 + $0xb0] sm:$0xff]
    %v8082 = vld [vmem:[#allocation4 + $0xc0] sm:$0xff]
    %v8083 = vld [vmem:[#allocation4 + $0xc8] sm:$0xff]
    %v8084 = vld [vmem:[#allocation4 + $0xd8] sm:$0xff]
    %v8085 = vld [vmem:[#allocation4 + $0xe0] sm:$0xff]
    %v8086 = vld [vmem:[#allocation4 + $0xf0] sm:$0xff]
    %v8087 = vld [vmem:[#allocation4 + $0xf8] sm:$0xff]
    %v8088 = vld [vmem:[#allocation4 + $0x108] sm:$0xff]
    %v8089 = vld [vmem:[#allocation4 + $0x110] sm:$0xff]
    %v8090 = vld [vmem:[#allocation4 + $0x120] sm:$0xff]
    %v8091 = vld [vmem:[#allocation4 + $0x128] sm:$0xff]
    %v8092 = vld [vmem:[#allocation4 + $0x138] sm:$0xff]
    %v8093 = vld [vmem:[#allocation4 + $0x140] sm:$0xff]
    %v8094 = vld [vmem:[#allocation4 + $0x150] sm:$0xff]
    %v8095 = vld [vmem:[#allocation4 + $0x158] sm:$0xff]
    %v8096 = vld [vmem:[#allocation4 + $0x168] sm:$0xff]
    %v8097 = vld [vmem:[#allocation4 + $0x170] sm:$0xff]
    %v8098 = vld [vmem:[#allocation4 + $0x1b0] sm:$0xff]
    %v8099 = vld [vmem:[#allocation4 + $0x1b8] sm:$0xff]
    %v8100 = vld [vmem:[#allocation4 + $0x1c8] sm:$0xff]
    %v8101 = vld [vmem:[#allocation4 + $0x1d0] sm:$0xff]
    %v8102 = vld [vmem:[#allocation4 + $0x1e0] sm:$0xff]
    %v8103 = vld [vmem:[#allocation4 + $0x1e8] sm:$0xff]
    %v8104 = vld [vmem:[#allocation4 + $0x1f8] sm:$0xff]
    %v8105 = vld [vmem:[#allocation4 + $0x200] sm:$0xff]
    %v8106 = vld [vmem:[#allocation4 + $0x210] sm:$0xff]
    %v8107 = vld [vmem:[#allocation4 + $0x218] sm:$0xff]
    %v8108 = vld [vmem:[#allocation4 + $0x228] sm:$0xff]
    %v8109 = vld [vmem:[#allocation4 + $0x230] sm:$0xff]
    %v8110 = vld [vmem:[#allocation4 + $0x240] sm:$0xff]
    %v8111 = vld [vmem:[#allocation4 + $0x248] sm:$0xff]
    %v8112 = vld [vmem:[#allocation4 + $0x258] sm:$0xff]
    %v8113 = vld [vmem:[#allocation4 + $0x260] sm:$0xff]
    %v8114 = vld [vmem:[#allocation4 + $0x270] sm:$0xff]
    %v8115 = vld [vmem:[#allocation4 + $0x278] sm:$0xff]
    %v8116 = vld [vmem:[#allocation4 + $0x288] sm:$0xff]
    %v8117 = vld [vmem:[#allocation4 + $0x290] sm:$0xff]
    %v8118 = vld [vmem:[#allocation4 + $0x2a0] sm:$0xff]
    %v8119 = vld [vmem:[#allocation4 + $0x2a8] sm:$0xff]
    %v8120 = vld [vmem:[#allocation4 + $0x2b8] sm:$0xff]
    %v8121 = vld [vmem:[#allocation4 + $0x2c0] sm:$0xff]
    %v8122 = vld [vmem:[#allocation4 + $0x2d0] sm:$0xff]
    %v8123 = vld [vmem:[#allocation4 + $0x2d8] sm:$0xff]
    %v8124 = vld [vmem:[#allocation4 + $0x2e8] sm:$0xff]
    %v8125 = vld [vmem:[#allocation4 + $0x2f0] sm:$0xff]
    %v8126 = vld [vmem:[#allocation4 + $0x300] sm:$0xff]
    %v8127 = vld [vmem:[#allocation4 + $0x308] sm:$0xff]
    %v8128 = vld [vmem:[#allocation4 + $0x318] sm:$0xff]
    %v8129 = vld [vmem:[#allocation4 + $0x320] sm:$0xff]
    %v8130 = vld [vmem:[#allocation4 + $0x1] sm:$0xff]
    %v8131 = vld [vmem:[#allocation4 + $0x9] sm:$0xff]
    %v8132 = vld [vmem:[#allocation4 + $0x19] sm:$0xff]
    %v8133 = vld [vmem:[#allocation4 + $0x21] sm:$0xff]
    %v8134 = vld [vmem:[#allocation4 + $0x31] sm:$0xff]
    %v8135 = vld [vmem:[#allocation4 + $0x39] sm:$0xff]
    %v8136 = vld [vmem:[#allocation4 + $0x49] sm:$0xff]
    %v8137 = vld [vmem:[#allocation4 + $0x51] sm:$0xff]
    %v8138 = vld [vmem:[#allocation4 + $0x61] sm:$0xff]
    %v8139 = vld [vmem:[#allocation4 + $0x69] sm:$0xff]
    %v8140 = vld [vmem:[#allocation4 + $0x79] sm:$0xff]
    %v8141 = vld [vmem:[#allocation4 + $0x81] sm:$0xff]
    %v8142 = vld [vmem:[#allocation4 + $0x91] sm:$0xff]
    %v8143 = vld [vmem:[#allocation4 + $0x99] sm:$0xff]
    %v8144 = vld [vmem:[#allocation4 + $0xa9] sm:$0xff]
    %v8145 = vld [vmem:[#allocation4 + $0xb1] sm:$0xff]
    %v8146 = vld [vmem:[#allocation4 + $0xc1] sm:$0xff]
    %v8147 = vld [vmem:[#allocation4 + $0xc9] sm:$0xff]
    %v8148 = vld [vmem:[#allocation4 + $0xd9] sm:$0xff]
    %v8149 = vld [vmem:[#allocation4 + $0xe1] sm:$0xff]
    %v8150 = vld [vmem:[#allocation4 + $0xf1] sm:$0xff]
    %v8151 = vld [vmem:[#allocation4 + $0xf9] sm:$0xff]
    %v8152 = vld [vmem:[#allocation4 + $0x109] sm:$0xff]
    %v8153 = vld [vmem:[#allocation4 + $0x111] sm:$0xff]
    %v8154 = vld [vmem:[#allocation4 + $0x121] sm:$0xff]
    %v8155 = vld [vmem:[#allocation4 + $0x129] sm:$0xff]
    %v8156 = vld [vmem:[#allocation4 + $0x139] sm:$0xff]
    %v8157 = vld [vmem:[#allocation4 + $0x141] sm:$0xff]
    %v8158 = vld [vmem:[#allocation4 + $0x151] sm:$0xff]
    %v8159 = vld [vmem:[#allocation4 + $0x159] sm:$0xff]
    %v8160 = vld [vmem:[#allocation4 + $0x169] sm:$0xff]
    %v8161 = vld [vmem:[#allocation4 + $0x171] sm:$0xff]
    %v8162 = vld [vmem:[#allocation4 + $0x1b1] sm:$0xff]
    %v8163 = vld [vmem:[#allocation4 + $0x1b9] sm:$0xff]
    %v8164 = vld [vmem:[#allocation4 + $0x1c9] sm:$0xff]
    %v8165 = vld [vmem:[#allocation4 + $0x1d1] sm:$0xff]
    %v8166 = vld [vmem:[#allocation4 + $0x1e1] sm:$0xff]
    %v8167 = vld [vmem:[#allocation4 + $0x1e9] sm:$0xff]
    %v8168 = vld [vmem:[#allocation4 + $0x1f9] sm:$0xff]
    %v8169 = vld [vmem:[#allocation4 + $0x201] sm:$0xff]
    %v8170 = vld [vmem:[#allocation4 + $0x211] sm:$0xff]
    %v8171 = vld [vmem:[#allocation4 + $0x219] sm:$0xff]
    %v8172 = vld [vmem:[#allocation4 + $0x229] sm:$0xff]
    %v8173 = vld [vmem:[#allocation4 + $0x231] sm:$0xff]
    %v8174 = vld [vmem:[#allocation4 + $0x241] sm:$0xff]
    %v8175 = vld [vmem:[#allocation4 + $0x249] sm:$0xff]
    %v8176 = vld [vmem:[#allocation4 + $0x259] sm:$0xff]
    %v8177 = vld [vmem:[#allocation4 + $0x261] sm:$0xff]
    %v8178 = vld [vmem:[#allocation4 + $0x271] sm:$0xff]
    %v8179 = vld [vmem:[#allocation4 + $0x279] sm:$0xff]
    %v8180 = vld [vmem:[#allocation4 + $0x289] sm:$0xff]
    %v8181 = vld [vmem:[#allocation4 + $0x291] sm:$0xff]
    %v8182 = vld [vmem:[#allocation4 + $0x2a1] sm:$0xff]
    %v8183 = vld [vmem:[#allocation4 + $0x2a9] sm:$0xff]
    %v8184 = vld [vmem:[#allocation4 + $0x2b9] sm:$0xff]
    %v8185 = vld [vmem:[#allocation4 + $0x2c1] sm:$0xff]
    %v8186 = vld [vmem:[#allocation4 + $0x2d1] sm:$0xff]
    %v8187 = vld [vmem:[#allocation4 + $0x2d9] sm:$0xff]
    %v8188 = vld [vmem:[#allocation4 + $0x2e9] sm:$0xff]
    %v8189 = vld [vmem:[#allocation4 + $0x2f1] sm:$0xff]
    %v8190 = vld [vmem:[#allocation4 + $0x301] sm:$0xff]
    %v8191 = vld [vmem:[#allocation4 + $0x309] sm:$0xff]
    %v8192 = vld [vmem:[#allocation4 + $0x319] sm:$0xff]
    %v8193 = vld [vmem:[#allocation4 + $0x321] sm:$0xff]
    %v8194 = vld [vmem:[#allocation4 + $0x2] sm:$0xff]
    %v8195 = vld [vmem:[#allocation4 + $0xa] sm:$0xff]
    %v8196 = vld [vmem:[#allocation4 + $0x1a] sm:$0xff]
    %v8197 = vld [vmem:[#allocation4 + $0x22] sm:$0xff]
    %v8198 = vld [vmem:[#allocation4 + $0x32] sm:$0xff]
    %v8199 = vld [vmem:[#allocation4 + $0x3a] sm:$0xff]
    %v8200 = vld [vmem:[#allocation4 + $0x4a] sm:$0xff]
    %v8201 = vld [vmem:[#allocation4 + $0x52] sm:$0xff]
    %v8202 = vld [vmem:[#allocation4 + $0x62] sm:$0xff]
    %v8203 = vld [vmem:[#allocation4 + $0x6a] sm:$0xff]
    %v8204 = vld [vmem:[#allocation4 + $0x7a] sm:$0xff]
    %v8205 = vld [vmem:[#allocation4 + $0x82] sm:$0xff]
    %v8206 = vld [vmem:[#allocation4 + $0x92] sm:$0xff]
    %v8207 = vld [vmem:[#allocation4 + $0x9a] sm:$0xff]
    %v8208 = vld [vmem:[#allocation4 + $0xaa] sm:$0xff]
    %v8209 = vld [vmem:[#allocation4 + $0xb2] sm:$0xff]
    %v8210 = vld [vmem:[#allocation4 + $0xc2] sm:$0xff]
    %v8211 = vld [vmem:[#allocation4 + $0xca] sm:$0xff]
    %v8212 = vld [vmem:[#allocation4 + $0xda] sm:$0xff]
    %v8213 = vld [vmem:[#allocation4 + $0xe2] sm:$0xff]
    %v8214 = vld [vmem:[#allocation4 + $0xf2] sm:$0xff]
    %v8215 = vld [vmem:[#allocation4 + $0xfa] sm:$0xff]
    %v8216 = vld [vmem:[#allocation4 + $0x10a] sm:$0xff]
    %v8217 = vld [vmem:[#allocation4 + $0x112] sm:$0xff]
    %v8218 = vld [vmem:[#allocation4 + $0x122] sm:$0xff]
    %v8219 = vld [vmem:[#allocation4 + $0x12a] sm:$0xff]
    %v8220 = vld [vmem:[#allocation4 + $0x13a] sm:$0xff]
    %v8221 = vld [vmem:[#allocation4 + $0x142] sm:$0xff]
    %v8222 = vld [vmem:[#allocation4 + $0x152] sm:$0xff]
    %v8223 = vld [vmem:[#allocation4 + $0x15a] sm:$0xff]
    %v8224 = vld [vmem:[#allocation4 + $0x16a] sm:$0xff]
    %v8225 = vld [vmem:[#allocation4 + $0x172] sm:$0xff]
    %v8226 = vld [vmem:[#allocation4 + $0x1b2] sm:$0xff]
    %v8227 = vld [vmem:[#allocation4 + $0x1ba] sm:$0xff]
    %v8228 = vld [vmem:[#allocation4 + $0x1ca] sm:$0xff]
    %v8229 = vld [vmem:[#allocation4 + $0x1d2] sm:$0xff]
    %v8230 = vld [vmem:[#allocation4 + $0x1e2] sm:$0xff]
    %v8231 = vld [vmem:[#allocation4 + $0x1ea] sm:$0xff]
    %v8232 = vld [vmem:[#allocation4 + $0x1fa] sm:$0xff]
    %v8233 = vld [vmem:[#allocation4 + $0x202] sm:$0xff]
    %v8234 = vld [vmem:[#allocation4 + $0x212] sm:$0xff]
    %v8235 = vld [vmem:[#allocation4 + $0x21a] sm:$0xff]
    %v8236 = vld [vmem:[#allocation4 + $0x22a] sm:$0xff]
    %v8237 = vld [vmem:[#allocation4 + $0x232] sm:$0xff]
    %v8238 = vld [vmem:[#allocation4 + $0x242] sm:$0xff]
    %v8239 = vld [vmem:[#allocation4 + $0x24a] sm:$0xff]
    %v8240 = vld [vmem:[#allocation4 + $0x25a] sm:$0xff]
    %v8241 = vld [vmem:[#allocation4 + $0x262] sm:$0xff]
    %v8242 = vld [vmem:[#allocation4 + $0x272] sm:$0xff]
    %v8243 = vld [vmem:[#allocation4 + $0x27a] sm:$0xff]
    %v8244 = vld [vmem:[#allocation4 + $0x28a] sm:$0xff]
    %v8245 = vld [vmem:[#allocation4 + $0x292] sm:$0xff]
    %v8246 = vld [vmem:[#allocation4 + $0x2a2] sm:$0xff]
    %v8247 = vld [vmem:[#allocation4 + $0x2aa] sm:$0xff]
    %v8248 = vld [vmem:[#allocation4 + $0x2ba] sm:$0xff]
    %v8249 = vld [vmem:[#allocation4 + $0x2c2] sm:$0xff]
    %v8250 = vld [vmem:[#allocation4 + $0x2d2] sm:$0xff]
    %v8251 = vld [vmem:[#allocation4 + $0x2da] sm:$0xff]
    %v8252 = vld [vmem:[#allocation4 + $0x2ea] sm:$0xff]
    %v8253 = vld [vmem:[#allocation4 + $0x2f2] sm:$0xff]
    %v8254 = vld [vmem:[#allocation4 + $0x302] sm:$0xff]
    %v8255 = vld [vmem:[#allocation4 + $0x30a] sm:$0xff]
    %v8256 = vld [vmem:[#allocation4 + $0x31a] sm:$0xff]
    %v8257 = vld [vmem:[#allocation4 + $0x322] sm:$0xff]
    %v8258 = vld [vmem:[%s8001] sm:$0xff]
    %v8259 = vld [vmem:[%s8001 + $0x8] sm:$0xff]
    %v8260 = vld [vmem:[%s8001 + $0x18] sm:$0xff]
    %v8261 = vld [vmem:[%s8001 + $0x20] sm:$0xff]
    %v8262 = vld [vmem:[%s8001 + $0x30] sm:$0xff]
    %v8263 = vld [vmem:[%s8001 + $0x38] sm:$0xff]
    %v8264 = vld [vmem:[%s8001 + $0x48] sm:$0xff]
    %v8265 = vld [vmem:[%s8001 + $0x50] sm:$0xff]
    %v8266 = vld [vmem:[%s8001 + $0x60] sm:$0xff]
    %v8267 = vld [vmem:[%s8001 + $0x68] sm:$0xff]
    %v8268 = vld [vmem:[%s8001 + $0x78] sm:$0xff]
    %v8269 = vld [vmem:[%s8001 + $0x80] sm:$0xff]
    %v8270 = vld [vmem:[%s8001 + $0x90] sm:$0xff]
    %v8271 = vld [vmem:[%s8001 + $0x98] sm:$0xff]
    %v8272 = vld [vmem:[%s8001 + $0xa8] sm:$0xff]
    %v8273 = vld [vmem:[%s8001 + $0xb0] sm:$0xff]
    %v8274 = vld [vmem:[%s8001 + $0xc0] sm:$0xff]
    %v8275 = vld [vmem:[%s8001 + $0xc8] sm:$0xff]
    %v8276 = vld [vmem:[%s8001 + $0xd8] sm:$0xff]
    %v8277 = vld [vmem:[%s8001 + $0xe0] sm:$0xff]
    %v8278 = vld [vmem:[%s8001 + $0xf0] sm:$0xff]
    %v8279 = vld [vmem:[%s8001 + $0xf8] sm:$0xff]
    %v8280 = vld [vmem:[%s8001 + $0x108] sm:$0xff]
    %v8281 = vld [vmem:[%s8001 + $0x110] sm:$0xff]
    %v8282 = vld [vmem:[%s8001 + $0x120] sm:$0xff]
    %v8283 = vld [vmem:[%s8001 + $0x128] sm:$0xff]
    %v8284 = vld [vmem:[%s8001 + $0x138] sm:$0xff]
    %v8285 = vld [vmem:[%s8001 + $0x140] sm:$0xff]
    %v8286 = vld [vmem:[%s8001 + $0x150] sm:$0xff]
    %v8287 = vld [vmem:[%s8001 + $0x158] sm:$0xff]
    %v8288 = vld [vmem:[%s8001 + $0x168] sm:$0xff]
    %v8289 = vld [vmem:[%s8001 + $0x170] sm:$0xff]
    %v8290 = vld [vmem:[%s8001 + $0x1b0] sm:$0xff]
    %v8291 = vld [vmem:[%s8001 + $0x1b8] sm:$0xff]
    %v8292 = vld [vmem:[%s8001 + $0x1c8] sm:$0xff]
    %v8293 = vld [vmem:[%s8001 + $0x1d0] sm:$0xff]
    %v8294 = vld [vmem:[%s8001 + $0x1e0] sm:$0xff]
    %v8295 = vld [vmem:[%s8001 + $0x1e8] sm:$0xff]
    %v8296 = vld [vmem:[%s8001 + $0x1f8] sm:$0xff]
    %v8297 = vld [vmem:[%s8001 + $0x200] sm:$0xff]
    %v8298 = vld [vmem:[%s8001 + $0x210] sm:$0xff]
    %v8299 = vld [vmem:[%s8001 + $0x218] sm:$0xff]
    %v8300 = vld [vmem:[%s8001 + $0x228] sm:$0xff]
    %v8301 = vld [vmem:[%s8001 + $0x230] sm:$0xff]
    %v8302 = vld [vmem:[%s8001 + $0x240] sm:$0xff]
    %v8303 = vld [vmem:[%s8001 + $0x248] sm:$0xff]
    %v8304 = vld [vmem:[%s8001 + $0x258] sm:$0xff]
    %v8305 = vld [vmem:[%s8001 + $0x260] sm:$0xff]
    %v8306 = vld [vmem:[%s8001 + $0x270] sm:$0xff]
    %v8307 = vld [vmem:[%s8001 + $0x278] sm:$0xff]
    %v8308 = vld [vmem:[%s8001 + $0x288] sm:$0xff]
    %v8309 = vld [vmem:[%s8001 + $0x290] sm:$0xff]
    %v8310 = vld [vmem:[%s8001 + $0x2a0] sm:$0xff]
    %v8311 = vld [vmem:[%s8001 + $0x2a8] sm:$0xff]
    %v8312 = vld [vmem:[%s8001 + $0x2b8] sm:$0xff]
    %v8313 = vld [vmem:[%s8001 + $0x2c0] sm:$0xff]
    %v8314 = vld [vmem:[%s8001 + $0x2d0] sm:$0xff]
    %v8315 = vld [vmem:[%s8001 + $0x2d8] sm:$0xff]
    %v8316 = vld [vmem:[%s8001 + $0x2e8] sm:$0xff]
    %v8317 = vld [vmem:[%s8001 + $0x2f0] sm:$0xff]
    %v8318 = vld [vmem:[%s8001 + $0x300] sm:$0xff]
    %v8319 = vld [vmem:[%s8001 + $0x308] sm:$0xff]
    %v8320 = vld [vmem:[%s8001 + $0x318] sm:$0xff]
    %v8321 = vld [vmem:[%s8001 + $0x320] sm:$0xff]
    %v8322 = vld [vmem:[%s8001 + $0x1] sm:$0xff]
    %v8323 = vld [vmem:[%s8001 + $0x9] sm:$0xff]
    %v8324 = vld [vmem:[%s8001 + $0x19] sm:$0xff]
    %v8325 = vld [vmem:[%s8001 + $0x21] sm:$0xff]
    %v8326 = vld [vmem:[%s8001 + $0x31] sm:$0xff]
    %v8327 = vld [vmem:[%s8001 + $0x39] sm:$0xff]
    %v8328 = vld [vmem:[%s8001 + $0x49] sm:$0xff]
    %v8329 = vld [vmem:[%s8001 + $0x51] sm:$0xff]
    %v8330 = vld [vmem:[%s8001 + $0x61] sm:$0xff]
    %v8331 = vld [vmem:[%s8001 + $0x69] sm:$0xff]
    %v8332 = vld [vmem:[%s8001 + $0x79] sm:$0xff]
    %v8333 = vld [vmem:[%s8001 + $0x81] sm:$0xff]
    %v8334 = vld [vmem:[%s8001 + $0x91] sm:$0xff]
    %v8335 = vld [vmem:[%s8001 + $0x99] sm:$0xff]
    %v8336 = vld [vmem:[%s8001 + $0xa9] sm:$0xff]
    %v8337 = vld [vmem:[%s8001 + $0xb1] sm:$0xff]
    %v8338 = vld [vmem:[%s8001 + $0xc1] sm:$0xff]
    %v8339 = vld [vmem:[%s8001 + $0xc9] sm:$0xff]
    %v8340 = vld [vmem:[%s8001 + $0xd9] sm:$0xff]
    %v8341 = vld [vmem:[%s8001 + $0xe1] sm:$0xff]
    %v8342 = vld [vmem:[%s8001 + $0xf1] sm:$0xff]
    %v8343 = vld [vmem:[%s8001 + $0xf9] sm:$0xff]
    %v8344 = vld [vmem:[%s8001 + $0x109] sm:$0xff]
    %v8345 = vld [vmem:[%s8001 + $0x111] sm:$0xff]
    %v8346 = vld [vmem:[%s8001 + $0x121] sm:$0xff]
    %v8347 = vld [vmem:[%s8001 + $0x129] sm:$0xff]
    %v8348 = vld [vmem:[%s8001 + $0x139] sm:$0xff]
    %v8349 = vld [vmem:[%s8001 + $0x141] sm:$0xff]
    %v8350 = vld [vmem:[%s8001 + $0x151] sm:$0xff]
    %v8351 = vld [vmem:[%s8001 + $0x159] sm:$0xff]
    %v8352 = vld [vmem:[%s8001 + $0x169] sm:$0xff]
    %v8353 = vld [vmem:[%s8001 + $0x171] sm:$0xff]
    %v8354 = vld [vmem:[%s8001 + $0x1b1] sm:$0xff]
    %v8355 = vld [vmem:[%s8001 + $0x1b9] sm:$0xff]
    %v8356 = vld [vmem:[%s8001 + $0x1c9] sm:$0xff]
    %v8357 = vld [vmem:[%s8001 + $0x1d1] sm:$0xff]
    %v8358 = vld [vmem:[%s8001 + $0x1e1] sm:$0xff]
    %v8359 = vld [vmem:[%s8001 + $0x1e9] sm:$0xff]
    %v8360 = vld [vmem:[%s8001 + $0x1f9] sm:$0xff]
    %v8361 = vld [vmem:[%s8001 + $0x201] sm:$0xff]
    %v8362 = vld [vmem:[%s8001 + $0x211] sm:$0xff]
    %v8363 = vld [vmem:[%s8001 + $0x219] sm:$0xff]
    %v8364 = vld [vmem:[%s8001 + $0x229] sm:$0xff]
    %v8365 = vld [vmem:[%s8001 + $0x231] sm:$0xff]
    %v8366 = vld [vmem:[%s8001 + $0x241] sm:$0xff]
    %v8367 = vld [vmem:[%s8001 + $0x249] sm:$0xff]
    %v8368 = vld [vmem:[%s8001 + $0x259] sm:$0xff]
    %v8369 = vld [vmem:[%s8001 + $0x261] sm:$0xff]
    %v8370 = vld [vmem:[%s8001 + $0x271] sm:$0xff]
    %v8371 = vld [vmem:[%s8001 + $0x279] sm:$0xff]
    %v8372 = vld [vmem:[%s8001 + $0x289] sm:$0xff]
    %v8373 = vld [vmem:[%s8001 + $0x291] sm:$0xff]
    %v8374 = vld [vmem:[%s8001 + $0x2a1] sm:$0xff]
    %v8375 = vld [vmem:[%s8001 + $0x2a9] sm:$0xff]
    %v8376 = vld [vmem:[%s8001 + $0x2b9] sm:$0xff]
    %v8377 = vld [vmem:[%s8001 + $0x2c1] sm:$0xff]
    %v8378 = vld [vmem:[%s8001 + $0x2d1] sm:$0xff]
    %v8379 = vld [vmem:[%s8001 + $0x2d9] sm:$0xff]
    %v8380 = vld [vmem:[%s8001 + $0x2e9] sm:$0xff]
    %v8381 = vld [vmem:[%s8001 + $0x2f1] sm:$0xff]
    %v8382 = vld [vmem:[%s8001 + $0x301] sm:$0xff]
    %v8383 = vld [vmem:[%s8001 + $0x309] sm:$0xff]
    %v8384 = vld [vmem:[%s8001 + $0x319] sm:$0xff]
    %v8385 = vld [vmem:[%s8001 + $0x321] sm:$0xff]
    %v8386 = vld [vmem:[%s8001 + $0x2] sm:$0xff]
    %v8387 = vld [vmem:[%s8001 + $0xa] sm:$0xff]
    %v8388 = vld [vmem:[%s8001 + $0x1a] sm:$0xff]
    %v8389 = vld [vmem:[%s8001 + $0x22] sm:$0xff]
    %v8390 = vld [vmem:[%s8001 + $0x32] sm:$0xff]
    %v8391 = vld [vmem:[%s8001 + $0x3a] sm:$0xff]
    %v8392 = vld [vmem:[%s8001 + $0x4a] sm:$0xff]
    %v8393 = vld [vmem:[%s8001 + $0x52] sm:$0xff]
    %v8394 = vld [vmem:[%s8001 + $0x62] sm:$0xff]
    %v8395 = vld [vmem:[%s8001 + $0x6a] sm:$0xff]
    %v8396 = vld [vmem:[%s8001 + $0x7a] sm:$0xff]
    %v8397 = vld [vmem:[%s8001 + $0x82] sm:$0xff]
    %v8398 = vld [vmem:[%s8001 + $0x92] sm:$0xff]
    %v8399 = vld [vmem:[%s8001 + $0x9a] sm:$0xff]
    %v8400 = vld [vmem:[%s8001 + $0xaa] sm:$0xff]
    %v8401 = vld [vmem:[%s8001 + $0xb2] sm:$0xff]
    %v8402 = vld [vmem:[%s8001 + $0xc2] sm:$0xff]
    %v8403 = vld [vmem:[%s8001 + $0xca] sm:$0xff]
    %v8404 = vld [vmem:[%s8001 + $0xda] sm:$0xff]
    %v8405 = vld [vmem:[%s8001 + $0xe2] sm:$0xff]
    %v8406 = vld [vmem:[%s8001 + $0xf2] sm:$0xff]
    %v8407 = vld [vmem:[%s8001 + $0xfa] sm:$0xff]
    %v8408 = vld [vmem:[%s8001 + $0x10a] sm:$0xff]
    %v8409 = vld [vmem:[%s8001 + $0x112] sm:$0xff]
    %v8410 = vld [vmem:[%s8001 + $0x122] sm:$0xff]
    %v8411 = vld [vmem:[%s8001 + $0x12a] sm:$0xff]
    %v8412 = vld [vmem:[%s8001 + $0x13a] sm:$0xff]
    %v8413 = vld [vmem:[%s8001 + $0x142] sm:$0xff]
    %v8414 = vld [vmem:[%s8001 + $0x152] sm:$0xff]
    %v8415 = vld [vmem:[%s8001 + $0x15a] sm:$0xff]
    %v8416 = vld [vmem:[%s8001 + $0x16a] sm:$0xff]
    %v8417 = vld [vmem:[%s8001 + $0x172] sm:$0xff]
    %v8418 = vld [vmem:[%s8001 + $0x1b2] sm:$0xff]
    %v8419 = vld [vmem:[%s8001 + $0x1ba] sm:$0xff]
    %v8420 = vld [vmem:[%s8001 + $0x1ca] sm:$0xff]
    %v8421 = vld [vmem:[%s8001 + $0x1d2] sm:$0xff]
    %v8422 = vld [vmem:[%s8001 + $0x1e2] sm:$0xff]
    %v8423 = vld [vmem:[%s8001 + $0x1ea] sm:$0xff]
    %v8424 = vld [vmem:[%s8001 + $0x1fa] sm:$0xff]
    %v8425 = vld [vmem:[%s8001 + $0x202] sm:$0xff]
    %v8426 = vld [vmem:[%s8001 + $0x212] sm:$0xff]
    %v8427 = vld [vmem:[%s8001 + $0x21a] sm:$0xff]
    %v8428 = vld [vmem:[%s8001 + $0x22a] sm:$0xff]
    %v8429 = vld [vmem:[%s8001 + $0x232] sm:$0xff]
    %v8430 = vld [vmem:[%s8001 + $0x242] sm:$0xff]
    %v8431 = vld [vmem:[%s8001 + $0x24a] sm:$0xff]
    %v8432 = vld [vmem:[%s8001 + $0x25a] sm:$0xff]
    %v8433 = vld [vmem:[%s8001 + $0x262] sm:$0xff]
    %v8434 = vld [vmem:[%s8001 + $0x272] sm:$0xff]
    %v8435 = vld [vmem:[%s8001 + $0x27a] sm:$0xff]
    %v8436 = vld [vmem:[%s8001 + $0x28a] sm:$0xff]
    %v8437 = vld [vmem:[%s8001 + $0x292] sm:$0xff]
    %v8438 = vld [vmem:[%s8001 + $0x2a2] sm:$0xff]
    %v8439 = vld [vmem:[%s8001 + $0x2aa] sm:$0xff]
    %v8440 = vld [vmem:[%s8001 + $0x2ba] sm:$0xff]
    %v8441 = vld [vmem:[%s8001 + $0x2c2] sm:$0xff]
    %v8442 = vld [vmem:[%s8001 + $0x2d2] sm:$0xff]
    %v8443 = vld [vmem:[%s8001 + $0x2da] sm:$0xff]
    %v8444 = vld [vmem:[%s8001 + $0x2ea] sm:$0xff]
    %v8445 = vld [vmem:[%s8001 + $0x2f2] sm:$0xff]
    %v8446 = vld [vmem:[%s8001 + $0x302] sm:$0xff]
    %v8447 = vld [vmem:[%s8001 + $0x30a] sm:$0xff]
    %v8448 = vld [vmem:[%s8001 + $0x31a] sm:$0xff]
    %v8449 = vld [vmem:[%s8001 + $0x322] sm:$0xff]
    %s8450 = scalar_lea.vmem [#allocation4], 48
    %v8451 = vld [vmem:[%s8450] sm:$0xff]
    %v8452 = vld [vmem:[%s8450 + $0x8] sm:$0xff]
    %v8453 = vld [vmem:[%s8450 + $0x18] sm:$0xff]
    %v8454 = vld [vmem:[%s8450 + $0x20] sm:$0xff]
    %v8455 = vld [vmem:[%s8450 + $0x30] sm:$0xff]
    %v8456 = vld [vmem:[%s8450 + $0x38] sm:$0xff]
    %v8457 = vld [vmem:[%s8450 + $0x48] sm:$0xff]
    %v8458 = vld [vmem:[%s8450 + $0x50] sm:$0xff]
    %v8459 = vld [vmem:[%s8450 + $0x60] sm:$0xff]
    %v8460 = vld [vmem:[%s8450 + $0x68] sm:$0xff]
    %v8461 = vld [vmem:[%s8450 + $0x78] sm:$0xff]
    %v8462 = vld [vmem:[%s8450 + $0x80] sm:$0xff]
    %v8463 = vld [vmem:[%s8450 + $0x90] sm:$0xff]
    %v8464 = vld [vmem:[%s8450 + $0x98] sm:$0xff]
    %v8465 = vld [vmem:[%s8450 + $0xa8] sm:$0xff]
    %v8466 = vld [vmem:[%s8450 + $0xb0] sm:$0xff]
    %v8467 = vld [vmem:[%s8450 + $0xc0] sm:$0xff]
    %v8468 = vld [vmem:[%s8450 + $0xc8] sm:$0xff]
    %v8469 = vld [vmem:[%s8450 + $0xd8] sm:$0xff]
    %v8470 = vld [vmem:[%s8450 + $0xe0] sm:$0xff]
    %v8471 = vld [vmem:[%s8450 + $0xf0] sm:$0xff]
    %v8472 = vld [vmem:[%s8450 + $0xf8] sm:$0xff]
    %v8473 = vld [vmem:[%s8450 + $0x108] sm:$0xff]
    %v8474 = vld [vmem:[%s8450 + $0x110] sm:$0xff]
    %v8475 = vld [vmem:[%s8450 + $0x120] sm:$0xff]
    %v8476 = vld [vmem:[%s8450 + $0x128] sm:$0xff]
    %v8477 = vld [vmem:[%s8450 + $0x138] sm:$0xff]
    %v8478 = vld [vmem:[%s8450 + $0x140] sm:$0xff]
    %v8479 = vld [vmem:[%s8450 + $0x150] sm:$0xff]
    %v8480 = vld [vmem:[%s8450 + $0x158] sm:$0xff]
    %v8481 = vld [vmem:[%s8450 + $0x168] sm:$0xff]
    %v8482 = vld [vmem:[%s8450 + $0x170] sm:$0xff]
    %v8483 = vld [vmem:[%s8450 + $0x1b0] sm:$0xff]
    %v8484 = vld [vmem:[%s8450 + $0x1b8] sm:$0xff]
    %v8485 = vld [vmem:[%s8450 + $0x1c8] sm:$0xff]
    %v8486 = vld [vmem:[%s8450 + $0x1d0] sm:$0xff]
    %v8487 = vld [vmem:[%s8450 + $0x1e0] sm:$0xff]
    %v8488 = vld [vmem:[%s8450 + $0x1e8] sm:$0xff]
    %v8489 = vld [vmem:[%s8450 + $0x1f8] sm:$0xff]
    %v8490 = vld [vmem:[%s8450 + $0x200] sm:$0xff]
    %v8491 = vld [vmem:[%s8450 + $0x210] sm:$0xff]
    %v8492 = vld [vmem:[%s8450 + $0x218] sm:$0xff]
    %v8493 = vld [vmem:[%s8450 + $0x228] sm:$0xff]
    %v8494 = vld [vmem:[%s8450 + $0x230] sm:$0xff]
    %v8495 = vld [vmem:[%s8450 + $0x240] sm:$0xff]
    %v8496 = vld [vmem:[%s8450 + $0x248] sm:$0xff]
    %v8497 = vld [vmem:[%s8450 + $0x258] sm:$0xff]
    %v8498 = vld [vmem:[%s8450 + $0x260] sm:$0xff]
    %v8499 = vld [vmem:[%s8450 + $0x270] sm:$0xff]
    %v8500 = vld [vmem:[%s8450 + $0x278] sm:$0xff]
    %v8501 = vld [vmem:[%s8450 + $0x288] sm:$0xff]
    %v8502 = vld [vmem:[%s8450 + $0x290] sm:$0xff]
    %v8503 = vld [vmem:[%s8450 + $0x2a0] sm:$0xff]
    %v8504 = vld [vmem:[%s8450 + $0x2a8] sm:$0xff]
    %v8505 = vld [vmem:[%s8450 + $0x2b8] sm:$0xff]
    %v8506 = vld [vmem:[%s8450 + $0x2c0] sm:$0xff]
    %v8507 = vld [vmem:[%s8450 + $0x2d0] sm:$0xff]
    %v8508 = vld [vmem:[%s8450 + $0x2d8] sm:$0xff]
    %v8509 = vld [vmem:[%s8450 + $0x2e8] sm:$0xff]
    %v8510 = vld [vmem:[%s8450 + $0x2f0] sm:$0xff]
    %v8511 = vld [vmem:[%s8450 + $0x300] sm:$0xff]
    %v8512 = vld [vmem:[%s8450 + $0x308] sm:$0xff]
    %v8513 = vld [vmem:[%s8450 + $0x318] sm:$0xff]
    %v8514 = vld [vmem:[%s8450 + $0x320] sm:$0xff]
    %v8515 = vld [vmem:[%s8450 + $0x1] sm:$0xff]
    %v8516 = vld [vmem:[%s8450 + $0x9] sm:$0xff]
    %v8517 = vld [vmem:[%s8450 + $0x19] sm:$0xff]
    %v8518 = vld [vmem:[%s8450 + $0x21] sm:$0xff]
    %v8519 = vld [vmem:[%s8450 + $0x31] sm:$0xff]
    %v8520 = vld [vmem:[%s8450 + $0x39] sm:$0xff]
    %v8521 = vld [vmem:[%s8450 + $0x49] sm:$0xff]
    %v8522 = vld [vmem:[%s8450 + $0x51] sm:$0xff]
    %v8523 = vld [vmem:[%s8450 + $0x61] sm:$0xff]
    %v8524 = vld [vmem:[%s8450 + $0x69] sm:$0xff]
    %v8525 = vld [vmem:[%s8450 + $0x79] sm:$0xff]
    %v8526 = vld [vmem:[%s8450 + $0x81] sm:$0xff]
    %v8527 = vld [vmem:[%s8450 + $0x91] sm:$0xff]
    %v8528 = vld [vmem:[%s8450 + $0x99] sm:$0xff]
    %v8529 = vld [vmem:[%s8450 + $0xa9] sm:$0xff]
    %v8530 = vld [vmem:[%s8450 + $0xb1] sm:$0xff]
    %v8531 = vld [vmem:[%s8450 + $0xc1] sm:$0xff]
    %v8532 = vld [vmem:[%s8450 + $0xc9] sm:$0xff]
    %v8533 = vld [vmem:[%s8450 + $0xd9] sm:$0xff]
    %v8534 = vld [vmem:[%s8450 + $0xe1] sm:$0xff]
    %v8535 = vld [vmem:[%s8450 + $0xf1] sm:$0xff]
    %v8536 = vld [vmem:[%s8450 + $0xf9] sm:$0xff]
    %v8537 = vld [vmem:[%s8450 + $0x109] sm:$0xff]
    %v8538 = vld [vmem:[%s8450 + $0x111] sm:$0xff]
    %v8539 = vld [vmem:[%s8450 + $0x121] sm:$0xff]
    %v8540 = vld [vmem:[%s8450 + $0x129] sm:$0xff]
    %v8541 = vld [vmem:[%s8450 + $0x139] sm:$0xff]
    %v8542 = vld [vmem:[%s8450 + $0x141] sm:$0xff]
    %v8543 = vld [vmem:[%s8450 + $0x151] sm:$0xff]
    %v8544 = vld [vmem:[%s8450 + $0x159] sm:$0xff]
    %v8545 = vld [vmem:[%s8450 + $0x169] sm:$0xff]
    %v8546 = vld [vmem:[%s8450 + $0x171] sm:$0xff]
    %v8547 = vld [vmem:[%s8450 + $0x1b1] sm:$0xff]
    %v8548 = vld [vmem:[%s8450 + $0x1b9] sm:$0xff]
    %v8549 = vld [vmem:[%s8450 + $0x1c9] sm:$0xff]
    %v8550 = vld [vmem:[%s8450 + $0x1d1] sm:$0xff]
    %v8551 = vld [vmem:[%s8450 + $0x1e1] sm:$0xff]
    %v8552 = vld [vmem:[%s8450 + $0x1e9] sm:$0xff]
    %v8553 = vld [vmem:[%s8450 + $0x1f9] sm:$0xff]
    %v8554 = vld [vmem:[%s8450 + $0x201] sm:$0xff]
    %v8555 = vld [vmem:[%s8450 + $0x211] sm:$0xff]
    %v8556 = vld [vmem:[%s8450 + $0x219] sm:$0xff]
    %v8557 = vld [vmem:[%s8450 + $0x229] sm:$0xff]
    %v8558 = vld [vmem:[%s8450 + $0x231] sm:$0xff]
    %v8559 = vld [vmem:[%s8450 + $0x241] sm:$0xff]
    %v8560 = vld [vmem:[%s8450 + $0x249] sm:$0xff]
    %v8561 = vld [vmem:[%s8450 + $0x259] sm:$0xff]
    %v8562 = vld [vmem:[%s8450 + $0x261] sm:$0xff]
    %v8563 = vld [vmem:[%s8450 + $0x271] sm:$0xff]
    %v8564 = vld [vmem:[%s8450 + $0x279] sm:$0xff]
    %v8565 = vld [vmem:[%s8450 + $0x289] sm:$0xff]
    %v8566 = vld [vmem:[%s8450 + $0x291] sm:$0xff]
    %v8567 = vld [vmem:[%s8450 + $0x2a1] sm:$0xff]
    %v8568 = vld [vmem:[%s8450 + $0x2a9] sm:$0xff]
    %v8569 = vld [vmem:[%s8450 + $0x2b9] sm:$0xff]
    %v8570 = vld [vmem:[%s8450 + $0x2c1] sm:$0xff]
    %v8571 = vld [vmem:[%s8450 + $0x2d1] sm:$0xff]
    %v8572 = vld [vmem:[%s8450 + $0x2d9] sm:$0xff]
    %v8573 = vld [vmem:[%s8450 + $0x2e9] sm:$0xff]
    %v8574 = vld [vmem:[%s8450 + $0x2f1] sm:$0xff]
    %v8575 = vld [vmem:[%s8450 + $0x301] sm:$0xff]
    %v8576 = vld [vmem:[%s8450 + $0x309] sm:$0xff]
    %v8577 = vld [vmem:[%s8450 + $0x319] sm:$0xff]
    %v8578 = vld [vmem:[%s8450 + $0x321] sm:$0xff]
    %v8579 = vld [vmem:[%s8450 + $0x2] sm:$0xff]
    %v8580 = vld [vmem:[%s8450 + $0xa] sm:$0xff]
    %v8581 = vld [vmem:[%s8450 + $0x1a] sm:$0xff]
    %v8582 = vld [vmem:[%s8450 + $0x22] sm:$0xff]
    %v8583 = vld [vmem:[%s8450 + $0x32] sm:$0xff]
    %v8584 = vld [vmem:[%s8450 + $0x3a] sm:$0xff]
    %v8585 = vld [vmem:[%s8450 + $0x4a] sm:$0xff]
    %v8586 = vld [vmem:[%s8450 + $0x52] sm:$0xff]
    %v8587 = vld [vmem:[%s8450 + $0x62] sm:$0xff]
    %v8588 = vld [vmem:[%s8450 + $0x6a] sm:$0xff]
    %v8589 = vld [vmem:[%s8450 + $0x7a] sm:$0xff]
    %v8590 = vld [vmem:[%s8450 + $0x82] sm:$0xff]
    %v8591 = vld [vmem:[%s8450 + $0x92] sm:$0xff]
    %v8592 = vld [vmem:[%s8450 + $0x9a] sm:$0xff]
    %v8593 = vld [vmem:[%s8450 + $0xaa] sm:$0xff]
    %v8594 = vld [vmem:[%s8450 + $0xb2] sm:$0xff]
    %v8595 = vld [vmem:[%s8450 + $0xc2] sm:$0xff]
    %v8596 = vld [vmem:[%s8450 + $0xca] sm:$0xff]
    %v8597 = vld [vmem:[%s8450 + $0xda] sm:$0xff]
    %v8598 = vld [vmem:[%s8450 + $0xe2] sm:$0xff]
    %v8599 = vld [vmem:[%s8450 + $0xf2] sm:$0xff]
    %v8600 = vld [vmem:[%s8450 + $0xfa] sm:$0xff]
    %v8601 = vld [vmem:[%s8450 + $0x10a] sm:$0xff]
    %v8602 = vld [vmem:[%s8450 + $0x112] sm:$0xff]
    %v8603 = vld [vmem:[%s8450 + $0x122] sm:$0xff]
    %v8604 = vld [vmem:[%s8450 + $0x12a] sm:$0xff]
    %v8605 = vld [vmem:[%s8450 + $0x13a] sm:$0xff]
    %v8606 = vld [vmem:[%s8450 + $0x142] sm:$0xff]
    %v8607 = vld [vmem:[%s8450 + $0x152] sm:$0xff]
    %v8608 = vld [vmem:[%s8450 + $0x15a] sm:$0xff]
    %v8609 = vld [vmem:[%s8450 + $0x16a] sm:$0xff]
    %v8610 = vld [vmem:[%s8450 + $0x172] sm:$0xff]
    %v8611 = vld [vmem:[%s8450 + $0x1b2] sm:$0xff]
    %v8612 = vld [vmem:[%s8450 + $0x1ba] sm:$0xff]
    %v8613 = vld [vmem:[%s8450 + $0x1ca] sm:$0xff]
    %v8614 = vld [vmem:[%s8450 + $0x1d2] sm:$0xff]
    %v8615 = vld [vmem:[%s8450 + $0x1e2] sm:$0xff]
    %v8616 = vld [vmem:[%s8450 + $0x1ea] sm:$0xff]
    %v8617 = vld [vmem:[%s8450 + $0x1fa] sm:$0xff]
    %v8618 = vld [vmem:[%s8450 + $0x202] sm:$0xff]
    %v8619 = vld [vmem:[%s8450 + $0x212] sm:$0xff]
    %v8620 = vld [vmem:[%s8450 + $0x21a] sm:$0xff]
    %v8621 = vld [vmem:[%s8450 + $0x22a] sm:$0xff]
    %v8622 = vld [vmem:[%s8450 + $0x232] sm:$0xff]
    %v8623 = vld [vmem:[%s8450 + $0x242] sm:$0xff]
    %v8624 = vld [vmem:[%s8450 + $0x24a] sm:$0xff]
    %v8625 = vld [vmem:[%s8450 + $0x25a] sm:$0xff]
    %v8626 = vld [vmem:[%s8450 + $0x262] sm:$0xff]
    %v8627 = vld [vmem:[%s8450 + $0x272] sm:$0xff]
    %v8628 = vld [vmem:[%s8450 + $0x27a] sm:$0xff]
    %v8629 = vld [vmem:[%s8450 + $0x28a] sm:$0xff]
    %v8630 = vld [vmem:[%s8450 + $0x292] sm:$0xff]
    %v8631 = vld [vmem:[%s8450 + $0x2a2] sm:$0xff]
    %v8632 = vld [vmem:[%s8450 + $0x2aa] sm:$0xff]
    %v8633 = vld [vmem:[%s8450 + $0x2ba] sm:$0xff]
    %v8634 = vld [vmem:[%s8450 + $0x2c2] sm:$0xff]
    %v8635 = vld [vmem:[%s8450 + $0x2d2] sm:$0xff]
    %v8636 = vld [vmem:[%s8450 + $0x2da] sm:$0xff]
    %v8637 = vld [vmem:[%s8450 + $0x2ea] sm:$0xff]
    %v8638 = vld [vmem:[%s8450 + $0x2f2] sm:$0xff]
    %v8639 = vld [vmem:[%s8450 + $0x302] sm:$0xff]
    %v8640 = vld [vmem:[%s8450 + $0x30a] sm:$0xff]
    %v8641 = vld [vmem:[%s8450 + $0x31a] sm:$0xff]
    %v8642 = vld [vmem:[%s8450 + $0x322] sm:$0xff]
    %8707 = vrot.lane.b32.xlu0 %v8130, 32
    %v8708 = vpop.permute.xlu0 %8707
    %8709 = vrot.lane.b32.xlu0 %v8131, 32
    %v8710 = vpop.permute.xlu0 %8709
    %8711 = vrot.lane.b32.xlu0 %v8132, 32
    %v8712 = vpop.permute.xlu0 %8711
    %8713 = vrot.lane.b32.xlu0 %v8133, 32
    %v8714 = vpop.permute.xlu0 %8713
    %8715 = vrot.lane.b32.xlu0 %v8134, 32
    %v8716 = vpop.permute.xlu0 %8715
    %8717 = vrot.lane.b32.xlu0 %v8135, 32
    %v8718 = vpop.permute.xlu0 %8717
    %8719 = vrot.lane.b32.xlu0 %v8136, 32
    %v8720 = vpop.permute.xlu0 %8719
    %8721 = vrot.lane.b32.xlu0 %v8137, 32
    %v8722 = vpop.permute.xlu0 %8721
    %8723 = vrot.lane.b32.xlu0 %v8138, 32
    %v8724 = vpop.permute.xlu0 %8723
    %8725 = vrot.lane.b32.xlu0 %v8139, 32
    %v8726 = vpop.permute.xlu0 %8725
    %8727 = vrot.lane.b32.xlu0 %v8140, 32
    %v8728 = vpop.permute.xlu0 %8727
    %8729 = vrot.lane.b32.xlu0 %v8141, 32
    %v8730 = vpop.permute.xlu0 %8729
    %8731 = vrot.lane.b32.xlu0 %v8142, 32
    %v8732 = vpop.permute.xlu0 %8731
    %8733 = vrot.lane.b32.xlu0 %v8143, 32
    %v8734 = vpop.permute.xlu0 %8733
    %8735 = vrot.lane.b32.xlu0 %v8144, 32
    %v8736 = vpop.permute.xlu0 %8735
    %8737 = vrot.lane.b32.xlu0 %v8145, 32
    %v8738 = vpop.permute.xlu0 %8737
    %8739 = vrot.lane.b32.xlu0 %v8146, 32
    %v8740 = vpop.permute.xlu0 %8739
    %8741 = vrot.lane.b32.xlu0 %v8147, 32
    %v8742 = vpop.permute.xlu0 %8741
    %8743 = vrot.lane.b32.xlu0 %v8148, 32
    %v8744 = vpop.permute.xlu0 %8743
    %8745 = vrot.lane.b32.xlu0 %v8149, 32
    %v8746 = vpop.permute.xlu0 %8745
    %8747 = vrot.lane.b32.xlu0 %v8150, 32
    %v8748 = vpop.permute.xlu0 %8747
    %8749 = vrot.lane.b32.xlu0 %v8151, 32
    %v8750 = vpop.permute.xlu0 %8749
    %8751 = vrot.lane.b32.xlu0 %v8152, 32
    %v8752 = vpop.permute.xlu0 %8751
    %8753 = vrot.lane.b32.xlu0 %v8153, 32
    %v8754 = vpop.permute.xlu0 %8753
    %8755 = vrot.lane.b32.xlu0 %v8154, 32
    %v8756 = vpop.permute.xlu0 %8755
    %8757 = vrot.lane.b32.xlu0 %v8155, 32
    %v8758 = vpop.permute.xlu0 %8757
    %8759 = vrot.lane.b32.xlu0 %v8156, 32
    %v8760 = vpop.permute.xlu0 %8759
    %8761 = vrot.lane.b32.xlu0 %v8157, 32
    %v8762 = vpop.permute.xlu0 %8761
    %8763 = vrot.lane.b32.xlu0 %v8158, 32
    %v8764 = vpop.permute.xlu0 %8763
    %8765 = vrot.lane.b32.xlu0 %v8159, 32
    %v8766 = vpop.permute.xlu0 %8765
    %8767 = vrot.lane.b32.xlu0 %v8160, 32
    %v8768 = vpop.permute.xlu0 %8767
    %8769 = vrot.lane.b32.xlu0 %v8161, 32
    %v8770 = vpop.permute.xlu0 %8769
    %8771 = vrot.lane.b32.xlu0 %v8162, 32
    %v8772 = vpop.permute.xlu0 %8771
    %8773 = vrot.lane.b32.xlu0 %v8163, 32
    %v8774 = vpop.permute.xlu0 %8773
    %8775 = vrot.lane.b32.xlu0 %v8164, 32
    %v8776 = vpop.permute.xlu0 %8775
    %8777 = vrot.lane.b32.xlu0 %v8165, 32
    %v8778 = vpop.permute.xlu0 %8777
    %8779 = vrot.lane.b32.xlu0 %v8166, 32
    %v8780 = vpop.permute.xlu0 %8779
    %8781 = vrot.lane.b32.xlu0 %v8167, 32
    %v8782 = vpop.permute.xlu0 %8781
    %8783 = vrot.lane.b32.xlu0 %v8168, 32
    %v8784 = vpop.permute.xlu0 %8783
    %8785 = vrot.lane.b32.xlu0 %v8169, 32
    %v8786 = vpop.permute.xlu0 %8785
    %8787 = vrot.lane.b32.xlu0 %v8170, 32
    %v8788 = vpop.permute.xlu0 %8787
    %8789 = vrot.lane.b32.xlu0 %v8171, 32
    %v8790 = vpop.permute.xlu0 %8789
    %8791 = vrot.lane.b32.xlu0 %v8172, 32
    %v8792 = vpop.permute.xlu0 %8791
    %8793 = vrot.lane.b32.xlu0 %v8173, 32
    %v8794 = vpop.permute.xlu0 %8793
    %8795 = vrot.lane.b32.xlu0 %v8174, 32
    %v8796 = vpop.permute.xlu0 %8795
    %8797 = vrot.lane.b32.xlu0 %v8175, 32
    %v8798 = vpop.permute.xlu0 %8797
    %8799 = vrot.lane.b32.xlu0 %v8176, 32
    %v8800 = vpop.permute.xlu0 %8799
    %8801 = vrot.lane.b32.xlu0 %v8177, 32
    %v8802 = vpop.permute.xlu0 %8801
    %8803 = vrot.lane.b32.xlu0 %v8178, 32
    %v8804 = vpop.permute.xlu0 %8803
    %8805 = vrot.lane.b32.xlu0 %v8179, 32
    %v8806 = vpop.permute.xlu0 %8805
    %8807 = vrot.lane.b32.xlu0 %v8180, 32
    %v8808 = vpop.permute.xlu0 %8807
    %8809 = vrot.lane.b32.xlu0 %v8181, 32
    %v8810 = vpop.permute.xlu0 %8809
    %8811 = vrot.lane.b32.xlu0 %v8182, 32
    %v8812 = vpop.permute.xlu0 %8811
    %8813 = vrot.lane.b32.xlu0 %v8183, 32
    %v8814 = vpop.permute.xlu0 %8813
    %8815 = vrot.lane.b32.xlu0 %v8184, 32
    %v8816 = vpop.permute.xlu0 %8815
    %8817 = vrot.lane.b32.xlu0 %v8185, 32
    %v8818 = vpop.permute.xlu0 %8817
    %8819 = vrot.lane.b32.xlu0 %v8186, 32
    %v8820 = vpop.permute.xlu0 %8819
    %8821 = vrot.lane.b32.xlu0 %v8187, 32
    %v8822 = vpop.permute.xlu0 %8821
    %8823 = vrot.lane.b32.xlu0 %v8188, 32
    %v8824 = vpop.permute.xlu0 %8823
    %8825 = vrot.lane.b32.xlu0 %v8189, 32
    %v8826 = vpop.permute.xlu0 %8825
    %8827 = vrot.lane.b32.xlu0 %v8190, 32
    %v8828 = vpop.permute.xlu0 %8827
    %8829 = vrot.lane.b32.xlu0 %v8191, 32
    %v8830 = vpop.permute.xlu0 %8829
    %8831 = vrot.lane.b32.xlu0 %v8192, 32
    %v8832 = vpop.permute.xlu0 %8831
    %8833 = vrot.lane.b32.xlu0 %v8193, 32
    %v8834 = vpop.permute.xlu0 %8833
    %8963 = vrot.lane.b32.xlu0 %v8194, 64
    %v8964 = vpop.permute.xlu0 %8963
    %8965 = vrot.lane.b32.xlu0 %v8195, 64
    %v8966 = vpop.permute.xlu0 %8965
    %8967 = vrot.lane.b32.xlu0 %v8196, 64
    %v8968 = vpop.permute.xlu0 %8967
    %8969 = vrot.lane.b32.xlu0 %v8197, 64
    %v8970 = vpop.permute.xlu0 %8969
    %8971 = vrot.lane.b32.xlu0 %v8198, 64
    %v8972 = vpop.permute.xlu0 %8971
    %8973 = vrot.lane.b32.xlu0 %v8199, 64
    %v8974 = vpop.permute.xlu0 %8973
    %8975 = vrot.lane.b32.xlu0 %v8200, 64
    %v8976 = vpop.permute.xlu0 %8975
    %8977 = vrot.lane.b32.xlu0 %v8201, 64
    %v8978 = vpop.permute.xlu0 %8977
    %8979 = vrot.lane.b32.xlu0 %v8202, 64
    %v8980 = vpop.permute.xlu0 %8979
    %8981 = vrot.lane.b32.xlu0 %v8203, 64
    %v8982 = vpop.permute.xlu0 %8981
    %8983 = vrot.lane.b32.xlu0 %v8204, 64
    %v8984 = vpop.permute.xlu0 %8983
    %8985 = vrot.lane.b32.xlu0 %v8205, 64
    %v8986 = vpop.permute.xlu0 %8985
    %8987 = vrot.lane.b32.xlu0 %v8206, 64
    %v8988 = vpop.permute.xlu0 %8987
    %8989 = vrot.lane.b32.xlu0 %v8207, 64
    %v8990 = vpop.permute.xlu0 %8989
    %8991 = vrot.lane.b32.xlu0 %v8208, 64
    %v8992 = vpop.permute.xlu0 %8991
    %8993 = vrot.lane.b32.xlu0 %v8209, 64
    %v8994 = vpop.permute.xlu0 %8993
    %8995 = vrot.lane.b32.xlu0 %v8210, 64
    %v8996 = vpop.permute.xlu0 %8995
    %8997 = vrot.lane.b32.xlu0 %v8211, 64
    %v8998 = vpop.permute.xlu0 %8997
    %8999 = vrot.lane.b32.xlu0 %v8212, 64
    %v9000 = vpop.permute.xlu0 %8999
    %9001 = vrot.lane.b32.xlu0 %v8213, 64
    %v9002 = vpop.permute.xlu0 %9001
    %9003 = vrot.lane.b32.xlu0 %v8214, 64
    %v9004 = vpop.permute.xlu0 %9003
    %9005 = vrot.lane.b32.xlu0 %v8215, 64
    %v9006 = vpop.permute.xlu0 %9005
    %9007 = vrot.lane.b32.xlu0 %v8216, 64
    %v9008 = vpop.permute.xlu0 %9007
    %9009 = vrot.lane.b32.xlu0 %v8217, 64
    %v9010 = vpop.permute.xlu0 %9009
    %9011 = vrot.lane.b32.xlu0 %v8218, 64
    %v9012 = vpop.permute.xlu0 %9011
    %9013 = vrot.lane.b32.xlu0 %v8219, 64
    %v9014 = vpop.permute.xlu0 %9013
    %9015 = vrot.lane.b32.xlu0 %v8220, 64
    %v9016 = vpop.permute.xlu0 %9015
    %9017 = vrot.lane.b32.xlu0 %v8221, 64
    %v9018 = vpop.permute.xlu0 %9017
    %9019 = vrot.lane.b32.xlu0 %v8222, 64
    %v9020 = vpop.permute.xlu0 %9019
    %9021 = vrot.lane.b32.xlu0 %v8223, 64
    %v9022 = vpop.permute.xlu0 %9021
    %9023 = vrot.lane.b32.xlu0 %v8224, 64
    %v9024 = vpop.permute.xlu0 %9023
    %9025 = vrot.lane.b32.xlu0 %v8225, 64
    %v9026 = vpop.permute.xlu0 %9025
    %9027 = vrot.lane.b32.xlu0 %v8226, 64
    %v9028 = vpop.permute.xlu0 %9027
    %9029 = vrot.lane.b32.xlu0 %v8227, 64
    %v9030 = vpop.permute.xlu0 %9029
    %9031 = vrot.lane.b32.xlu0 %v8228, 64
    %v9032 = vpop.permute.xlu0 %9031
    %9033 = vrot.lane.b32.xlu0 %v8229, 64
    %v9034 = vpop.permute.xlu0 %9033
    %9035 = vrot.lane.b32.xlu0 %v8230, 64
    %v9036 = vpop.permute.xlu0 %9035
    %9037 = vrot.lane.b32.xlu0 %v8231, 64
    %v9038 = vpop.permute.xlu0 %9037
    %9039 = vrot.lane.b32.xlu0 %v8232, 64
    %v9040 = vpop.permute.xlu0 %9039
    %9041 = vrot.lane.b32.xlu0 %v8233, 64
    %v9042 = vpop.permute.xlu0 %9041
    %9043 = vrot.lane.b32.xlu0 %v8234, 64
    %v9044 = vpop.permute.xlu0 %9043
    %9045 = vrot.lane.b32.xlu0 %v8235, 64
    %v9046 = vpop.permute.xlu0 %9045
    %9047 = vrot.lane.b32.xlu0 %v8236, 64
    %v9048 = vpop.permute.xlu0 %9047
    %9049 = vrot.lane.b32.xlu0 %v8237, 64
    %v9050 = vpop.permute.xlu0 %9049
    %9051 = vrot.lane.b32.xlu0 %v8238, 64
    %v9052 = vpop.permute.xlu0 %9051
    %9053 = vrot.lane.b32.xlu0 %v8239, 64
    %v9054 = vpop.permute.xlu0 %9053
    %9055 = vrot.lane.b32.xlu0 %v8240, 64
    %v9056 = vpop.permute.xlu0 %9055
    %9057 = vrot.lane.b32.xlu0 %v8241, 64
    %v9058 = vpop.permute.xlu0 %9057
    %9059 = vrot.lane.b32.xlu0 %v8242, 64
    %v9060 = vpop.permute.xlu0 %9059
    %9061 = vrot.lane.b32.xlu0 %v8243, 64
    %v9062 = vpop.permute.xlu0 %9061
    %9063 = vrot.lane.b32.xlu0 %v8244, 64
    %v9064 = vpop.permute.xlu0 %9063
    %9065 = vrot.lane.b32.xlu0 %v8245, 64
    %v9066 = vpop.permute.xlu0 %9065
    %9067 = vrot.lane.b32.xlu0 %v8246, 64
    %v9068 = vpop.permute.xlu0 %9067
    %9069 = vrot.lane.b32.xlu0 %v8247, 64
    %v9070 = vpop.permute.xlu0 %9069
    %9071 = vrot.lane.b32.xlu0 %v8248, 64
    %v9072 = vpop.permute.xlu0 %9071
    %9073 = vrot.lane.b32.xlu0 %v8249, 64
    %v9074 = vpop.permute.xlu0 %9073
    %9075 = vrot.lane.b32.xlu0 %v8250, 64
    %v9076 = vpop.permute.xlu0 %9075
    %9077 = vrot.lane.b32.xlu0 %v8251, 64
    %v9078 = vpop.permute.xlu0 %9077
    %9079 = vrot.lane.b32.xlu0 %v8252, 64
    %v9080 = vpop.permute.xlu0 %9079
    %9081 = vrot.lane.b32.xlu0 %v8253, 64
    %v9082 = vpop.permute.xlu0 %9081
    %9083 = vrot.lane.b32.xlu0 %v8254, 64
    %v9084 = vpop.permute.xlu0 %9083
    %9085 = vrot.lane.b32.xlu0 %v8255, 64
    %v9086 = vpop.permute.xlu0 %9085
    %9087 = vrot.lane.b32.xlu0 %v8256, 64
    %v9088 = vpop.permute.xlu0 %9087
    %9089 = vrot.lane.b32.xlu0 %v8257, 64
    %v9090 = vpop.permute.xlu0 %9089
    %9219 = vrot.lane.b32.xlu0 %v8258, 96
    %v9220 = vpop.permute.xlu0 %9219
    %9221 = vrot.lane.b32.xlu0 %v8259, 96
    %v9222 = vpop.permute.xlu0 %9221
    %9223 = vrot.lane.b32.xlu0 %v8260, 96
    %v9224 = vpop.permute.xlu0 %9223
    %9225 = vrot.lane.b32.xlu0 %v8261, 96
    %v9226 = vpop.permute.xlu0 %9225
    %9227 = vrot.lane.b32.xlu0 %v8262, 96
    %v9228 = vpop.permute.xlu0 %9227
    %9229 = vrot.lane.b32.xlu0 %v8263, 96
    %v9230 = vpop.permute.xlu0 %9229
    %9231 = vrot.lane.b32.xlu0 %v8264, 96
    %v9232 = vpop.permute.xlu0 %9231
    %9233 = vrot.lane.b32.xlu0 %v8265, 96
    %v9234 = vpop.permute.xlu0 %9233
    %9235 = vrot.lane.b32.xlu0 %v8266, 96
    %v9236 = vpop.permute.xlu0 %9235
    %9237 = vrot.lane.b32.xlu0 %v8267, 96
    %v9238 = vpop.permute.xlu0 %9237
    %9239 = vrot.lane.b32.xlu0 %v8268, 96
    %v9240 = vpop.permute.xlu0 %9239
    %9241 = vrot.lane.b32.xlu0 %v8269, 96
    %v9242 = vpop.permute.xlu0 %9241
    %9243 = vrot.lane.b32.xlu0 %v8270, 96
    %v9244 = vpop.permute.xlu0 %9243
    %9245 = vrot.lane.b32.xlu0 %v8271, 96
    %v9246 = vpop.permute.xlu0 %9245
    %9247 = vrot.lane.b32.xlu0 %v8272, 96
    %v9248 = vpop.permute.xlu0 %9247
    %9249 = vrot.lane.b32.xlu0 %v8273, 96
    %v9250 = vpop.permute.xlu0 %9249
    %9251 = vrot.lane.b32.xlu0 %v8274, 96
    %v9252 = vpop.permute.xlu0 %9251
    %9253 = vrot.lane.b32.xlu0 %v8275, 96
    %v9254 = vpop.permute.xlu0 %9253
    %9255 = vrot.lane.b32.xlu0 %v8276, 96
    %v9256 = vpop.permute.xlu0 %9255
    %9257 = vrot.lane.b32.xlu0 %v8277, 96
    %v9258 = vpop.permute.xlu0 %9257
    %9259 = vrot.lane.b32.xlu0 %v8278, 96
    %v9260 = vpop.permute.xlu0 %9259
    %9261 = vrot.lane.b32.xlu0 %v8279, 96
    %v9262 = vpop.permute.xlu0 %9261
    %9263 = vrot.lane.b32.xlu0 %v8280, 96
    %v9264 = vpop.permute.xlu0 %9263
    %9265 = vrot.lane.b32.xlu0 %v8281, 96
    %v9266 = vpop.permute.xlu0 %9265
    %9267 = vrot.lane.b32.xlu0 %v8282, 96
    %v9268 = vpop.permute.xlu0 %9267
    %9269 = vrot.lane.b32.xlu0 %v8283, 96
    %v9270 = vpop.permute.xlu0 %9269
    %9271 = vrot.lane.b32.xlu0 %v8284, 96
    %v9272 = vpop.permute.xlu0 %9271
    %9273 = vrot.lane.b32.xlu0 %v8285, 96
    %v9274 = vpop.permute.xlu0 %9273
    %9275 = vrot.lane.b32.xlu0 %v8286, 96
    %v9276 = vpop.permute.xlu0 %9275
    %9277 = vrot.lane.b32.xlu0 %v8287, 96
    %v9278 = vpop.permute.xlu0 %9277
    %9279 = vrot.lane.b32.xlu0 %v8288, 96
    %v9280 = vpop.permute.xlu0 %9279
    %9281 = vrot.lane.b32.xlu0 %v8289, 96
    %v9282 = vpop.permute.xlu0 %9281
    %9283 = vrot.lane.b32.xlu0 %v8290, 96
    %v9284 = vpop.permute.xlu0 %9283
    %9285 = vrot.lane.b32.xlu0 %v8291, 96
    %v9286 = vpop.permute.xlu0 %9285
    %9287 = vrot.lane.b32.xlu0 %v8292, 96
    %v9288 = vpop.permute.xlu0 %9287
    %9289 = vrot.lane.b32.xlu0 %v8293, 96
    %v9290 = vpop.permute.xlu0 %9289
    %9291 = vrot.lane.b32.xlu0 %v8294, 96
    %v9292 = vpop.permute.xlu0 %9291
    %9293 = vrot.lane.b32.xlu0 %v8295, 96
    %v9294 = vpop.permute.xlu0 %9293
    %9295 = vrot.lane.b32.xlu0 %v8296, 96
    %v9296 = vpop.permute.xlu0 %9295
    %9297 = vrot.lane.b32.xlu0 %v8297, 96
    %v9298 = vpop.permute.xlu0 %9297
    %9299 = vrot.lane.b32.xlu0 %v8298, 96
    %v9300 = vpop.permute.xlu0 %9299
    %9301 = vrot.lane.b32.xlu0 %v8299, 96
    %v9302 = vpop.permute.xlu0 %9301
    %9303 = vrot.lane.b32.xlu0 %v8300, 96
    %v9304 = vpop.permute.xlu0 %9303
    %9305 = vrot.lane.b32.xlu0 %v8301, 96
    %v9306 = vpop.permute.xlu0 %9305
    %9307 = vrot.lane.b32.xlu0 %v8302, 96
    %v9308 = vpop.permute.xlu0 %9307
    %9309 = vrot.lane.b32.xlu0 %v8303, 96
    %v9310 = vpop.permute.xlu0 %9309
    %9311 = vrot.lane.b32.xlu0 %v8304, 96
    %v9312 = vpop.permute.xlu0 %9311
    %9313 = vrot.lane.b32.xlu0 %v8305, 96
    %v9314 = vpop.permute.xlu0 %9313
    %9315 = vrot.lane.b32.xlu0 %v8306, 96
    %v9316 = vpop.permute.xlu0 %9315
    %9317 = vrot.lane.b32.xlu0 %v8307, 96
    %v9318 = vpop.permute.xlu0 %9317
    %9319 = vrot.lane.b32.xlu0 %v8308, 96
    %v9320 = vpop.permute.xlu0 %9319
    %9321 = vrot.lane.b32.xlu0 %v8309, 96
    %v9322 = vpop.permute.xlu0 %9321
    %9323 = vrot.lane.b32.xlu0 %v8310, 96
    %v9324 = vpop.permute.xlu0 %9323
    %9325 = vrot.lane.b32.xlu0 %v8311, 96
    %v9326 = vpop.permute.xlu0 %9325
    %9327 = vrot.lane.b32.xlu0 %v8312, 96
    %v9328 = vpop.permute.xlu0 %9327
    %9329 = vrot.lane.b32.xlu0 %v8313, 96
    %v9330 = vpop.permute.xlu0 %9329
    %9331 = vrot.lane.b32.xlu0 %v8314, 96
    %v9332 = vpop.permute.xlu0 %9331
    %9333 = vrot.lane.b32.xlu0 %v8315, 96
    %v9334 = vpop.permute.xlu0 %9333
    %9335 = vrot.lane.b32.xlu0 %v8316, 96
    %v9336 = vpop.permute.xlu0 %9335
    %9337 = vrot.lane.b32.xlu0 %v8317, 96
    %v9338 = vpop.permute.xlu0 %9337
    %9339 = vrot.lane.b32.xlu0 %v8318, 96
    %v9340 = vpop.permute.xlu0 %9339
    %9341 = vrot.lane.b32.xlu0 %v8319, 96
    %v9342 = vpop.permute.xlu0 %9341
    %9343 = vrot.lane.b32.xlu0 %v8320, 96
    %v9344 = vpop.permute.xlu0 %9343
    %9345 = vrot.lane.b32.xlu0 %v8321, 96
    %v9346 = vpop.permute.xlu0 %9345
    %9475 = vrot.lane.b32.xlu0 %v8386, 32
    %v9476 = vpop.permute.xlu0 %9475
    %9477 = vrot.lane.b32.xlu0 %v8387, 32
    %v9478 = vpop.permute.xlu0 %9477
    %9479 = vrot.lane.b32.xlu0 %v8388, 32
    %v9480 = vpop.permute.xlu0 %9479
    %9481 = vrot.lane.b32.xlu0 %v8389, 32
    %v9482 = vpop.permute.xlu0 %9481
    %9483 = vrot.lane.b32.xlu0 %v8390, 32
    %v9484 = vpop.permute.xlu0 %9483
    %9485 = vrot.lane.b32.xlu0 %v8391, 32
    %v9486 = vpop.permute.xlu0 %9485
    %9487 = vrot.lane.b32.xlu0 %v8392, 32
    %v9488 = vpop.permute.xlu0 %9487
    %9489 = vrot.lane.b32.xlu0 %v8393, 32
    %v9490 = vpop.permute.xlu0 %9489
    %9491 = vrot.lane.b32.xlu0 %v8394, 32
    %v9492 = vpop.permute.xlu0 %9491
    %9493 = vrot.lane.b32.xlu0 %v8395, 32
    %v9494 = vpop.permute.xlu0 %9493
    %9495 = vrot.lane.b32.xlu0 %v8396, 32
    %v9496 = vpop.permute.xlu0 %9495
    %9497 = vrot.lane.b32.xlu0 %v8397, 32
    %v9498 = vpop.permute.xlu0 %9497
    %9499 = vrot.lane.b32.xlu0 %v8398, 32
    %v9500 = vpop.permute.xlu0 %9499
    %9501 = vrot.lane.b32.xlu0 %v8399, 32
    %v9502 = vpop.permute.xlu0 %9501
    %9503 = vrot.lane.b32.xlu0 %v8400, 32
    %v9504 = vpop.permute.xlu0 %9503
    %9505 = vrot.lane.b32.xlu0 %v8401, 32
    %v9506 = vpop.permute.xlu0 %9505
    %9507 = vrot.lane.b32.xlu0 %v8402, 32
    %v9508 = vpop.permute.xlu0 %9507
    %9509 = vrot.lane.b32.xlu0 %v8403, 32
    %v9510 = vpop.permute.xlu0 %9509
    %9511 = vrot.lane.b32.xlu0 %v8404, 32
    %v9512 = vpop.permute.xlu0 %9511
    %9513 = vrot.lane.b32.xlu0 %v8405, 32
    %v9514 = vpop.permute.xlu0 %9513
    %9515 = vrot.lane.b32.xlu0 %v8406, 32
    %v9516 = vpop.permute.xlu0 %9515
    %9517 = vrot.lane.b32.xlu0 %v8407, 32
    %v9518 = vpop.permute.xlu0 %9517
    %9519 = vrot.lane.b32.xlu0 %v8408, 32
    %v9520 = vpop.permute.xlu0 %9519
    %9521 = vrot.lane.b32.xlu0 %v8409, 32
    %v9522 = vpop.permute.xlu0 %9521
    %9523 = vrot.lane.b32.xlu0 %v8410, 32
    %v9524 = vpop.permute.xlu0 %9523
    %9525 = vrot.lane.b32.xlu0 %v8411, 32
    %v9526 = vpop.permute.xlu0 %9525
    %9527 = vrot.lane.b32.xlu0 %v8412, 32
    %v9528 = vpop.permute.xlu0 %9527
    %9529 = vrot.lane.b32.xlu0 %v8413, 32
    %v9530 = vpop.permute.xlu0 %9529
    %9531 = vrot.lane.b32.xlu0 %v8414, 32
    %v9532 = vpop.permute.xlu0 %9531
    %9533 = vrot.lane.b32.xlu0 %v8415, 32
    %v9534 = vpop.permute.xlu0 %9533
    %9535 = vrot.lane.b32.xlu0 %v8416, 32
    %v9536 = vpop.permute.xlu0 %9535
    %9537 = vrot.lane.b32.xlu0 %v8417, 32
    %v9538 = vpop.permute.xlu0 %9537
    %9539 = vrot.lane.b32.xlu0 %v8418, 32
    %v9540 = vpop.permute.xlu0 %9539
    %9541 = vrot.lane.b32.xlu0 %v8419, 32
    %v9542 = vpop.permute.xlu0 %9541
    %9543 = vrot.lane.b32.xlu0 %v8420, 32
    %v9544 = vpop.permute.xlu0 %9543
    %9545 = vrot.lane.b32.xlu0 %v8421, 32
    %v9546 = vpop.permute.xlu0 %9545
    %9547 = vrot.lane.b32.xlu0 %v8422, 32
    %v9548 = vpop.permute.xlu0 %9547
    %9549 = vrot.lane.b32.xlu0 %v8423, 32
    %v9550 = vpop.permute.xlu0 %9549
    %9551 = vrot.lane.b32.xlu0 %v8424, 32
    %v9552 = vpop.permute.xlu0 %9551
    %9553 = vrot.lane.b32.xlu0 %v8425, 32
    %v9554 = vpop.permute.xlu0 %9553
    %9555 = vrot.lane.b32.xlu0 %v8426, 32
    %v9556 = vpop.permute.xlu0 %9555
    %9557 = vrot.lane.b32.xlu0 %v8427, 32
    %v9558 = vpop.permute.xlu0 %9557
    %9559 = vrot.lane.b32.xlu0 %v8428, 32
    %v9560 = vpop.permute.xlu0 %9559
    %9561 = vrot.lane.b32.xlu0 %v8429, 32
    %v9562 = vpop.permute.xlu0 %9561
    %9563 = vrot.lane.b32.xlu0 %v8430, 32
    %v9564 = vpop.permute.xlu0 %9563
    %9565 = vrot.lane.b32.xlu0 %v8431, 32
    %v9566 = vpop.permute.xlu0 %9565
    %9567 = vrot.lane.b32.xlu0 %v8432, 32
    %v9568 = vpop.permute.xlu0 %9567
    %9569 = vrot.lane.b32.xlu0 %v8433, 32
    %v9570 = vpop.permute.xlu0 %9569
    %9571 = vrot.lane.b32.xlu0 %v8434, 32
    %v9572 = vpop.permute.xlu0 %9571
    %9573 = vrot.lane.b32.xlu0 %v8435, 32
    %v9574 = vpop.permute.xlu0 %9573
    %9575 = vrot.lane.b32.xlu0 %v8436, 32
    %v9576 = vpop.permute.xlu0 %9575
    %9577 = vrot.lane.b32.xlu0 %v8437, 32
    %v9578 = vpop.permute.xlu0 %9577
    %9579 = vrot.lane.b32.xlu0 %v8438, 32
    %v9580 = vpop.permute.xlu0 %9579
    %9581 = vrot.lane.b32.xlu0 %v8439, 32
    %v9582 = vpop.permute.xlu0 %9581
    %9583 = vrot.lane.b32.xlu0 %v8440, 32
    %v9584 = vpop.permute.xlu0 %9583
    %9585 = vrot.lane.b32.xlu0 %v8441, 32
    %v9586 = vpop.permute.xlu0 %9585
    %9587 = vrot.lane.b32.xlu0 %v8442, 32
    %v9588 = vpop.permute.xlu0 %9587
    %9589 = vrot.lane.b32.xlu0 %v8443, 32
    %v9590 = vpop.permute.xlu0 %9589
    %9591 = vrot.lane.b32.xlu0 %v8444, 32
    %v9592 = vpop.permute.xlu0 %9591
    %9593 = vrot.lane.b32.xlu0 %v8445, 32
    %v9594 = vpop.permute.xlu0 %9593
    %9595 = vrot.lane.b32.xlu0 %v8446, 32
    %v9596 = vpop.permute.xlu0 %9595
    %9597 = vrot.lane.b32.xlu0 %v8447, 32
    %v9598 = vpop.permute.xlu0 %9597
    %9599 = vrot.lane.b32.xlu0 %v8448, 32
    %v9600 = vpop.permute.xlu0 %9599
    %9601 = vrot.lane.b32.xlu0 %v8449, 32
    %v9602 = vpop.permute.xlu0 %9601
    %9731 = vrot.lane.b32.xlu0 %v8451, 64
    %v9732 = vpop.permute.xlu0 %9731
    %9733 = vrot.lane.b32.xlu0 %v8452, 64
    %v9734 = vpop.permute.xlu0 %9733
    %9735 = vrot.lane.b32.xlu0 %v8453, 64
    %v9736 = vpop.permute.xlu0 %9735
    %9737 = vrot.lane.b32.xlu0 %v8454, 64
    %v9738 = vpop.permute.xlu0 %9737
    %9739 = vrot.lane.b32.xlu0 %v8455, 64
    %v9740 = vpop.permute.xlu0 %9739
    %9741 = vrot.lane.b32.xlu0 %v8456, 64
    %v9742 = vpop.permute.xlu0 %9741
    %9743 = vrot.lane.b32.xlu0 %v8457, 64
    %v9744 = vpop.permute.xlu0 %9743
    %9745 = vrot.lane.b32.xlu0 %v8458, 64
    %v9746 = vpop.permute.xlu0 %9745
    %9747 = vrot.lane.b32.xlu0 %v8459, 64
    %v9748 = vpop.permute.xlu0 %9747
    %9749 = vrot.lane.b32.xlu0 %v8460, 64
    %v9750 = vpop.permute.xlu0 %9749
    %9751 = vrot.lane.b32.xlu0 %v8461, 64
    %v9752 = vpop.permute.xlu0 %9751
    %9753 = vrot.lane.b32.xlu0 %v8462, 64
    %v9754 = vpop.permute.xlu0 %9753
    %9755 = vrot.lane.b32.xlu0 %v8463, 64
    %v9756 = vpop.permute.xlu0 %9755
    %9757 = vrot.lane.b32.xlu0 %v8464, 64
    %v9758 = vpop.permute.xlu0 %9757
    %9759 = vrot.lane.b32.xlu0 %v8465, 64
    %v9760 = vpop.permute.xlu0 %9759
    %9761 = vrot.lane.b32.xlu0 %v8466, 64
    %v9762 = vpop.permute.xlu0 %9761
    %9763 = vrot.lane.b32.xlu0 %v8467, 64
    %v9764 = vpop.permute.xlu0 %9763
    %9765 = vrot.lane.b32.xlu0 %v8468, 64
    %v9766 = vpop.permute.xlu0 %9765
    %9767 = vrot.lane.b32.xlu0 %v8469, 64
    %v9768 = vpop.permute.xlu0 %9767
    %9769 = vrot.lane.b32.xlu0 %v8470, 64
    %v9770 = vpop.permute.xlu0 %9769
    %9771 = vrot.lane.b32.xlu0 %v8471, 64
    %v9772 = vpop.permute.xlu0 %9771
    %9773 = vrot.lane.b32.xlu0 %v8472, 64
    %v9774 = vpop.permute.xlu0 %9773
    %9775 = vrot.lane.b32.xlu0 %v8473, 64
    %v9776 = vpop.permute.xlu0 %9775
    %9777 = vrot.lane.b32.xlu0 %v8474, 64
    %v9778 = vpop.permute.xlu0 %9777
    %9779 = vrot.lane.b32.xlu0 %v8475, 64
    %v9780 = vpop.permute.xlu0 %9779
    %9781 = vrot.lane.b32.xlu0 %v8476, 64
    %v9782 = vpop.permute.xlu0 %9781
    %9783 = vrot.lane.b32.xlu0 %v8477, 64
    %v9784 = vpop.permute.xlu0 %9783
    %9785 = vrot.lane.b32.xlu0 %v8478, 64
    %v9786 = vpop.permute.xlu0 %9785
    %9787 = vrot.lane.b32.xlu0 %v8479, 64
    %v9788 = vpop.permute.xlu0 %9787
    %9789 = vrot.lane.b32.xlu0 %v8480, 64
    %v9790 = vpop.permute.xlu0 %9789
    %9791 = vrot.lane.b32.xlu0 %v8481, 64
    %v9792 = vpop.permute.xlu0 %9791
    %9793 = vrot.lane.b32.xlu0 %v8482, 64
    %v9794 = vpop.permute.xlu0 %9793
    %9795 = vrot.lane.b32.xlu0 %v8483, 64
    %v9796 = vpop.permute.xlu0 %9795
    %9797 = vrot.lane.b32.xlu0 %v8484, 64
    %v9798 = vpop.permute.xlu0 %9797
    %9799 = vrot.lane.b32.xlu0 %v8485, 64
    %v9800 = vpop.permute.xlu0 %9799
    %9801 = vrot.lane.b32.xlu0 %v8486, 64
    %v9802 = vpop.permute.xlu0 %9801
    %9803 = vrot.lane.b32.xlu0 %v8487, 64
    %v9804 = vpop.permute.xlu0 %9803
    %9805 = vrot.lane.b32.xlu0 %v8488, 64
    %v9806 = vpop.permute.xlu0 %9805
    %9807 = vrot.lane.b32.xlu0 %v8489, 64
    %v9808 = vpop.permute.xlu0 %9807
    %9809 = vrot.lane.b32.xlu0 %v8490, 64
    %v9810 = vpop.permute.xlu0 %9809
    %9811 = vrot.lane.b32.xlu0 %v8491, 64
    %v9812 = vpop.permute.xlu0 %9811
    %9813 = vrot.lane.b32.xlu0 %v8492, 64
    %v9814 = vpop.permute.xlu0 %9813
    %9815 = vrot.lane.b32.xlu0 %v8493, 64
    %v9816 = vpop.permute.xlu0 %9815
    %9817 = vrot.lane.b32.xlu0 %v8494, 64
    %v9818 = vpop.permute.xlu0 %9817
    %9819 = vrot.lane.b32.xlu0 %v8495, 64
    %v9820 = vpop.permute.xlu0 %9819
    %9821 = vrot.lane.b32.xlu0 %v8496, 64
    %v9822 = vpop.permute.xlu0 %9821
    %9823 = vrot.lane.b32.xlu0 %v8497, 64
    %v9824 = vpop.permute.xlu0 %9823
    %9825 = vrot.lane.b32.xlu0 %v8498, 64
    %v9826 = vpop.permute.xlu0 %9825
    %9827 = vrot.lane.b32.xlu0 %v8499, 64
    %v9828 = vpop.permute.xlu0 %9827
    %9829 = vrot.lane.b32.xlu0 %v8500, 64
    %v9830 = vpop.permute.xlu0 %9829
    %9831 = vrot.lane.b32.xlu0 %v8501, 64
    %v9832 = vpop.permute.xlu0 %9831
    %9833 = vrot.lane.b32.xlu0 %v8502, 64
    %v9834 = vpop.permute.xlu0 %9833
    %9835 = vrot.lane.b32.xlu0 %v8503, 64
    %v9836 = vpop.permute.xlu0 %9835
    %9837 = vrot.lane.b32.xlu0 %v8504, 64
    %v9838 = vpop.permute.xlu0 %9837
    %9839 = vrot.lane.b32.xlu0 %v8505, 64
    %v9840 = vpop.permute.xlu0 %9839
    %9841 = vrot.lane.b32.xlu0 %v8506, 64
    %v9842 = vpop.permute.xlu0 %9841
    %9843 = vrot.lane.b32.xlu0 %v8507, 64
    %v9844 = vpop.permute.xlu0 %9843
    %9845 = vrot.lane.b32.xlu0 %v8508, 64
    %v9846 = vpop.permute.xlu0 %9845
    %9847 = vrot.lane.b32.xlu0 %v8509, 64
    %v9848 = vpop.permute.xlu0 %9847
    %9849 = vrot.lane.b32.xlu0 %v8510, 64
    %v9850 = vpop.permute.xlu0 %9849
    %9851 = vrot.lane.b32.xlu0 %v8511, 64
    %v9852 = vpop.permute.xlu0 %9851
    %9853 = vrot.lane.b32.xlu0 %v8512, 64
    %v9854 = vpop.permute.xlu0 %9853
    %9855 = vrot.lane.b32.xlu0 %v8513, 64
    %v9856 = vpop.permute.xlu0 %9855
    %9857 = vrot.lane.b32.xlu0 %v8514, 64
    %v9858 = vpop.permute.xlu0 %9857
    %9987 = vrot.lane.b32.xlu0 %v8515, 96
    %v9988 = vpop.permute.xlu0 %9987
    %9989 = vrot.lane.b32.xlu0 %v8516, 96
    %v9990 = vpop.permute.xlu0 %9989
    %9991 = vrot.lane.b32.xlu0 %v8517, 96
    %v9992 = vpop.permute.xlu0 %9991
    %9993 = vrot.lane.b32.xlu0 %v8518, 96
    %v9994 = vpop.permute.xlu0 %9993
    %9995 = vrot.lane.b32.xlu0 %v8519, 96
    %v9996 = vpop.permute.xlu0 %9995
    %9997 = vrot.lane.b32.xlu0 %v8520, 96
    %v9998 = vpop.permute.xlu0 %9997
    %9999 = vrot.lane.b32.xlu0 %v8521, 96
    %v10000 = vpop.permute.xlu0 %9999
    %10001 = vrot.lane.b32.xlu0 %v8522, 96
    %v10002 = vpop.permute.xlu0 %10001
    %10003 = vrot.lane.b32.xlu0 %v8523, 96
    %v10004 = vpop.permute.xlu0 %10003
    %10005 = vrot.lane.b32.xlu0 %v8524, 96
    %v10006 = vpop.permute.xlu0 %10005
    %10007 = vrot.lane.b32.xlu0 %v8525, 96
    %v10008 = vpop.permute.xlu0 %10007
    %10009 = vrot.lane.b32.xlu0 %v8526, 96
    %v10010 = vpop.permute.xlu0 %10009
    %10011 = vrot.lane.b32.xlu0 %v8527, 96
    %v10012 = vpop.permute.xlu0 %10011
    %10013 = vrot.lane.b32.xlu0 %v8528, 96
    %v10014 = vpop.permute.xlu0 %10013
    %10015 = vrot.lane.b32.xlu0 %v8529, 96
    %v10016 = vpop.permute.xlu0 %10015
    %10017 = vrot.lane.b32.xlu0 %v8530, 96
    %v10018 = vpop.permute.xlu0 %10017
    %10019 = vrot.lane.b32.xlu0 %v8531, 96
    %v10020 = vpop.permute.xlu0 %10019
    %10021 = vrot.lane.b32.xlu0 %v8532, 96
    %v10022 = vpop.permute.xlu0 %10021
    %10023 = vrot.lane.b32.xlu0 %v8533, 96
    %v10024 = vpop.permute.xlu0 %10023
    %10025 = vrot.lane.b32.xlu0 %v8534, 96
    %v10026 = vpop.permute.xlu0 %10025
    %10027 = vrot.lane.b32.xlu0 %v8535, 96
    %v10028 = vpop.permute.xlu0 %10027
    %10029 = vrot.lane.b32.xlu0 %v8536, 96
    %v10030 = vpop.permute.xlu0 %10029
    %10031 = vrot.lane.b32.xlu0 %v8537, 96
    %v10032 = vpop.permute.xlu0 %10031
    %10033 = vrot.lane.b32.xlu0 %v8538, 96
    %v10034 = vpop.permute.xlu0 %10033
    %10035 = vrot.lane.b32.xlu0 %v8539, 96
    %v10036 = vpop.permute.xlu0 %10035
    %10037 = vrot.lane.b32.xlu0 %v8540, 96
    %v10038 = vpop.permute.xlu0 %10037
    %10039 = vrot.lane.b32.xlu0 %v8541, 96
    %v10040 = vpop.permute.xlu0 %10039
    %10041 = vrot.lane.b32.xlu0 %v8542, 96
    %v10042 = vpop.permute.xlu0 %10041
    %10043 = vrot.lane.b32.xlu0 %v8543, 96
    %v10044 = vpop.permute.xlu0 %10043
    %10045 = vrot.lane.b32.xlu0 %v8544, 96
    %v10046 = vpop.permute.xlu0 %10045
    %10047 = vrot.lane.b32.xlu0 %v8545, 96
    %v10048 = vpop.permute.xlu0 %10047
    %10049 = vrot.lane.b32.xlu0 %v8546, 96
    %v10050 = vpop.permute.xlu0 %10049
    %10051 = vrot.lane.b32.xlu0 %v8547, 96
    %v10052 = vpop.permute.xlu0 %10051
    %10053 = vrot.lane.b32.xlu0 %v8548, 96
    %v10054 = vpop.permute.xlu0 %10053
    %10055 = vrot.lane.b32.xlu0 %v8549, 96
    %v10056 = vpop.permute.xlu0 %10055
    %10057 = vrot.lane.b32.xlu0 %v8550, 96
    %v10058 = vpop.permute.xlu0 %10057
    %10059 = vrot.lane.b32.xlu0 %v8551, 96
    %v10060 = vpop.permute.xlu0 %10059
    %10061 = vrot.lane.b32.xlu0 %v8552, 96
    %v10062 = vpop.permute.xlu0 %10061
    %10063 = vrot.lane.b32.xlu0 %v8553, 96
    %v10064 = vpop.permute.xlu0 %10063
    %10065 = vrot.lane.b32.xlu0 %v8554, 96
    %v10066 = vpop.permute.xlu0 %10065
    %10067 = vrot.lane.b32.xlu0 %v8555, 96
    %v10068 = vpop.permute.xlu0 %10067
    %10069 = vrot.lane.b32.xlu0 %v8556, 96
    %v10070 = vpop.permute.xlu0 %10069
    %10071 = vrot.lane.b32.xlu0 %v8557, 96
    %v10072 = vpop.permute.xlu0 %10071
    %10073 = vrot.lane.b32.xlu0 %v8558, 96
    %v10074 = vpop.permute.xlu0 %10073
    %10075 = vrot.lane.b32.xlu0 %v8559, 96
    %v10076 = vpop.permute.xlu0 %10075
    %10077 = vrot.lane.b32.xlu0 %v8560, 96
    %v10078 = vpop.permute.xlu0 %10077
    %10079 = vrot.lane.b32.xlu0 %v8561, 96
    %v10080 = vpop.permute.xlu0 %10079
    %10081 = vrot.lane.b32.xlu0 %v8562, 96
    %v10082 = vpop.permute.xlu0 %10081
    %10083 = vrot.lane.b32.xlu0 %v8563, 96
    %v10084 = vpop.permute.xlu0 %10083
    %10085 = vrot.lane.b32.xlu0 %v8564, 96
    %v10086 = vpop.permute.xlu0 %10085
    %10087 = vrot.lane.b32.xlu0 %v8565, 96
    %v10088 = vpop.permute.xlu0 %10087
    %10089 = vrot.lane.b32.xlu0 %v8566, 96
    %v10090 = vpop.permute.xlu0 %10089
    %10091 = vrot.lane.b32.xlu0 %v8567, 96
    %v10092 = vpop.permute.xlu0 %10091
    %10093 = vrot.lane.b32.xlu0 %v8568, 96
    %v10094 = vpop.permute.xlu0 %10093
    %10095 = vrot.lane.b32.xlu0 %v8569, 96
    %v10096 = vpop.permute.xlu0 %10095
    %10097 = vrot.lane.b32.xlu0 %v8570, 96
    %v10098 = vpop.permute.xlu0 %10097
    %10099 = vrot.lane.b32.xlu0 %v8571, 96
    %v10100 = vpop.permute.xlu0 %10099
    %10101 = vrot.lane.b32.xlu0 %v8572, 96
    %v10102 = vpop.permute.xlu0 %10101
    %10103 = vrot.lane.b32.xlu0 %v8573, 96
    %v10104 = vpop.permute.xlu0 %10103
    %10105 = vrot.lane.b32.xlu0 %v8574, 96
    %v10106 = vpop.permute.xlu0 %10105
    %10107 = vrot.lane.b32.xlu0 %v8575, 96
    %v10108 = vpop.permute.xlu0 %10107
    %10109 = vrot.lane.b32.xlu0 %v8576, 96
    %v10110 = vpop.permute.xlu0 %10109
    %10111 = vrot.lane.b32.xlu0 %v8577, 96
    %v10112 = vpop.permute.xlu0 %10111
    %10113 = vrot.lane.b32.xlu0 %v8578, 96
    %v10114 = vpop.permute.xlu0 %10113
    %v10179 = vsel %vm112, %v8066, %v8708
    %v10180 = vsel %vm112, %v8067, %v8710
    %v10181 = vsel %vm112, %v8068, %v8712
    %v10182 = vsel %vm112, %v8069, %v8714
    %v10183 = vsel %vm112, %v8070, %v8716
    %v10184 = vsel %vm112, %v8071, %v8718
    %v10185 = vsel %vm112, %v8072, %v8720
    %v10186 = vsel %vm112, %v8073, %v8722
    %v10187 = vsel %vm112, %v8074, %v8724
    %v10188 = vsel %vm112, %v8075, %v8726
    %v10189 = vsel %vm112, %v8076, %v8728
    %v10190 = vsel %vm112, %v8077, %v8730
    %v10191 = vsel %vm112, %v8078, %v8732
    %v10192 = vsel %vm112, %v8079, %v8734
    %v10193 = vsel %vm112, %v8080, %v8736
    %v10194 = vsel %vm112, %v8081, %v8738
    %v10195 = vsel %vm112, %v8082, %v8740
    %v10196 = vsel %vm112, %v8083, %v8742
    %v10197 = vsel %vm112, %v8084, %v8744
    %v10198 = vsel %vm112, %v8085, %v8746
    %v10199 = vsel %vm112, %v8086, %v8748
    %v10200 = vsel %vm112, %v8087, %v8750
    %v10201 = vsel %vm112, %v8088, %v8752
    %v10202 = vsel %vm112, %v8089, %v8754
    %v10203 = vsel %vm112, %v8090, %v8756
    %v10204 = vsel %vm112, %v8091, %v8758
    %v10205 = vsel %vm112, %v8092, %v8760
    %v10206 = vsel %vm112, %v8093, %v8762
    %v10207 = vsel %vm112, %v8094, %v8764
    %v10208 = vsel %vm112, %v8095, %v8766
    %v10209 = vsel %vm112, %v8096, %v8768
    %v10210 = vsel %vm112, %v8097, %v8770
    %v10211 = vsel %vm112, %v8098, %v8772
    %v10212 = vsel %vm112, %v8099, %v8774
    %v10213 = vsel %vm112, %v8100, %v8776
    %v10214 = vsel %vm112, %v8101, %v8778
    %v10215 = vsel %vm112, %v8102, %v8780
    %v10216 = vsel %vm112, %v8103, %v8782
    %v10217 = vsel %vm112, %v8104, %v8784
    %v10218 = vsel %vm112, %v8105, %v8786
    %v10219 = vsel %vm112, %v8106, %v8788
    %v10220 = vsel %vm112, %v8107, %v8790
    %v10221 = vsel %vm112, %v8108, %v8792
    %v10222 = vsel %vm112, %v8109, %v8794
    %v10223 = vsel %vm112, %v8110, %v8796
    %v10224 = vsel %vm112, %v8111, %v8798
    %v10225 = vsel %vm112, %v8112, %v8800
    %v10226 = vsel %vm112, %v8113, %v8802
    %v10227 = vsel %vm112, %v8114, %v8804
    %v10228 = vsel %vm112, %v8115, %v8806
    %v10229 = vsel %vm112, %v8116, %v8808
    %v10230 = vsel %vm112, %v8117, %v8810
    %v10231 = vsel %vm112, %v8118, %v8812
    %v10232 = vsel %vm112, %v8119, %v8814
    %v10233 = vsel %vm112, %v8120, %v8816
    %v10234 = vsel %vm112, %v8121, %v8818
    %v10235 = vsel %vm112, %v8122, %v8820
    %v10236 = vsel %vm112, %v8123, %v8822
    %v10237 = vsel %vm112, %v8124, %v8824
    %v10238 = vsel %vm112, %v8125, %v8826
    %v10239 = vsel %vm112, %v8126, %v8828
    %v10240 = vsel %vm112, %v8127, %v8830
    %v10241 = vsel %vm112, %v8128, %v8832
    %v10242 = vsel %vm112, %v8129, %v8834
    %v10243 = vsel %vm2701, %v10179, %v8964
    %v10244 = vsel %vm2701, %v10180, %v8966
    %v10245 = vsel %vm2701, %v10181, %v8968
    %v10246 = vsel %vm2701, %v10182, %v8970
    %v10247 = vsel %vm2701, %v10183, %v8972
    %v10248 = vsel %vm2701, %v10184, %v8974
    %v10249 = vsel %vm2701, %v10185, %v8976
    %v10250 = vsel %vm2701, %v10186, %v8978
    %v10251 = vsel %vm2701, %v10187, %v8980
    %v10252 = vsel %vm2701, %v10188, %v8982
    %v10253 = vsel %vm2701, %v10189, %v8984
    %v10254 = vsel %vm2701, %v10190, %v8986
    %v10255 = vsel %vm2701, %v10191, %v8988
    %v10256 = vsel %vm2701, %v10192, %v8990
    %v10257 = vsel %vm2701, %v10193, %v8992
    %v10258 = vsel %vm2701, %v10194, %v8994
    %v10259 = vsel %vm2701, %v10195, %v8996
    %v10260 = vsel %vm2701, %v10196, %v8998
    %v10261 = vsel %vm2701, %v10197, %v9000
    %v10262 = vsel %vm2701, %v10198, %v9002
    %v10263 = vsel %vm2701, %v10199, %v9004
    %v10264 = vsel %vm2701, %v10200, %v9006
    %v10265 = vsel %vm2701, %v10201, %v9008
    %v10266 = vsel %vm2701, %v10202, %v9010
    %v10267 = vsel %vm2701, %v10203, %v9012
    %v10268 = vsel %vm2701, %v10204, %v9014
    %v10269 = vsel %vm2701, %v10205, %v9016
    %v10270 = vsel %vm2701, %v10206, %v9018
    %v10271 = vsel %vm2701, %v10207, %v9020
    %v10272 = vsel %vm2701, %v10208, %v9022
    %v10273 = vsel %vm2701, %v10209, %v9024
    %v10274 = vsel %vm2701, %v10210, %v9026
    %v10275 = vsel %vm2701, %v10211, %v9028
    %v10276 = vsel %vm2701, %v10212, %v9030
    %v10277 = vsel %vm2701, %v10213, %v9032
    %v10278 = vsel %vm2701, %v10214, %v9034
    %v10279 = vsel %vm2701, %v10215, %v9036
    %v10280 = vsel %vm2701, %v10216, %v9038
    %v10281 = vsel %vm2701, %v10217, %v9040
    %v10282 = vsel %vm2701, %v10218, %v9042
    %v10283 = vsel %vm2701, %v10219, %v9044
    %v10284 = vsel %vm2701, %v10220, %v9046
    %v10285 = vsel %vm2701, %v10221, %v9048
    %v10286 = vsel %vm2701, %v10222, %v9050
    %v10287 = vsel %vm2701, %v10223, %v9052
    %v10288 = vsel %vm2701, %v10224, %v9054
    %v10289 = vsel %vm2701, %v10225, %v9056
    %v10290 = vsel %vm2701, %v10226, %v9058
    %v10291 = vsel %vm2701, %v10227, %v9060
    %v10292 = vsel %vm2701, %v10228, %v9062
    %v10293 = vsel %vm2701, %v10229, %v9064
    %v10294 = vsel %vm2701, %v10230, %v9066
    %v10295 = vsel %vm2701, %v10231, %v9068
    %v10296 = vsel %vm2701, %v10232, %v9070
    %v10297 = vsel %vm2701, %v10233, %v9072
    %v10298 = vsel %vm2701, %v10234, %v9074
    %v10299 = vsel %vm2701, %v10235, %v9076
    %v10300 = vsel %vm2701, %v10236, %v9078
    %v10301 = vsel %vm2701, %v10237, %v9080
    %v10302 = vsel %vm2701, %v10238, %v9082
    %v10303 = vsel %vm2701, %v10239, %v9084
    %v10304 = vsel %vm2701, %v10240, %v9086
    %v10305 = vsel %vm2701, %v10241, %v9088
    %v10306 = vsel %vm2701, %v10242, %v9090
    %v10307 = vsel %vm2766, %v10243, %v9220
    %v10308 = vsel %vm2766, %v10244, %v9222
    %v10309 = vsel %vm2766, %v10245, %v9224
    %v10310 = vsel %vm2766, %v10246, %v9226
    %v10311 = vsel %vm2766, %v10247, %v9228
    %v10312 = vsel %vm2766, %v10248, %v9230
    %v10313 = vsel %vm2766, %v10249, %v9232
    %v10314 = vsel %vm2766, %v10250, %v9234
    %v10315 = vsel %vm2766, %v10251, %v9236
    %v10316 = vsel %vm2766, %v10252, %v9238
    %v10317 = vsel %vm2766, %v10253, %v9240
    %v10318 = vsel %vm2766, %v10254, %v9242
    %v10319 = vsel %vm2766, %v10255, %v9244
    %v10320 = vsel %vm2766, %v10256, %v9246
    %v10321 = vsel %vm2766, %v10257, %v9248
    %v10322 = vsel %vm2766, %v10258, %v9250
    %v10323 = vsel %vm2766, %v10259, %v9252
    %v10324 = vsel %vm2766, %v10260, %v9254
    %v10325 = vsel %vm2766, %v10261, %v9256
    %v10326 = vsel %vm2766, %v10262, %v9258
    %v10327 = vsel %vm2766, %v10263, %v9260
    %v10328 = vsel %vm2766, %v10264, %v9262
    %v10329 = vsel %vm2766, %v10265, %v9264
    %v10330 = vsel %vm2766, %v10266, %v9266
    %v10331 = vsel %vm2766, %v10267, %v9268
    %v10332 = vsel %vm2766, %v10268, %v9270
    %v10333 = vsel %vm2766, %v10269, %v9272
    %v10334 = vsel %vm2766, %v10270, %v9274
    %v10335 = vsel %vm2766, %v10271, %v9276
    %v10336 = vsel %vm2766, %v10272, %v9278
    %v10337 = vsel %vm2766, %v10273, %v9280
    %v10338 = vsel %vm2766, %v10274, %v9282
    %v10339 = vsel %vm2766, %v10275, %v9284
    %v10340 = vsel %vm2766, %v10276, %v9286
    %v10341 = vsel %vm2766, %v10277, %v9288
    %v10342 = vsel %vm2766, %v10278, %v9290
    %v10343 = vsel %vm2766, %v10279, %v9292
    %v10344 = vsel %vm2766, %v10280, %v9294
    %v10345 = vsel %vm2766, %v10281, %v9296
    %v10346 = vsel %vm2766, %v10282, %v9298
    %v10347 = vsel %vm2766, %v10283, %v9300
    %v10348 = vsel %vm2766, %v10284, %v9302
    %v10349 = vsel %vm2766, %v10285, %v9304
    %v10350 = vsel %vm2766, %v10286, %v9306
    %v10351 = vsel %vm2766, %v10287, %v9308
    %v10352 = vsel %vm2766, %v10288, %v9310
    %v10353 = vsel %vm2766, %v10289, %v9312
    %v10354 = vsel %vm2766, %v10290, %v9314
    %v10355 = vsel %vm2766, %v10291, %v9316
    %v10356 = vsel %vm2766, %v10292, %v9318
    %v10357 = vsel %vm2766, %v10293, %v9320
    %v10358 = vsel %vm2766, %v10294, %v9322
    %v10359 = vsel %vm2766, %v10295, %v9324
    %v10360 = vsel %vm2766, %v10296, %v9326
    %v10361 = vsel %vm2766, %v10297, %v9328
    %v10362 = vsel %vm2766, %v10298, %v9330
    %v10363 = vsel %vm2766, %v10299, %v9332
    %v10364 = vsel %vm2766, %v10300, %v9334
    %v10365 = vsel %vm2766, %v10301, %v9336
    %v10366 = vsel %vm2766, %v10302, %v9338
    %v10367 = vsel %vm2766, %v10303, %v9340
    %v10368 = vsel %vm2766, %v10304, %v9342
    %v10369 = vsel %vm2766, %v10305, %v9344
    %v10370 = vsel %vm2766, %v10306, %v9346
    %v10371 = vsel %vm112, %v8322, %v9476
    %v10372 = vsel %vm112, %v8323, %v9478
    %v10373 = vsel %vm112, %v8324, %v9480
    %v10374 = vsel %vm112, %v8325, %v9482
    %v10375 = vsel %vm112, %v8326, %v9484
    %v10376 = vsel %vm112, %v8327, %v9486
    %v10377 = vsel %vm112, %v8328, %v9488
    %v10378 = vsel %vm112, %v8329, %v9490
    %v10379 = vsel %vm112, %v8330, %v9492
    %v10380 = vsel %vm112, %v8331, %v9494
    %v10381 = vsel %vm112, %v8332, %v9496
    %v10382 = vsel %vm112, %v8333, %v9498
    %v10383 = vsel %vm112, %v8334, %v9500
    %v10384 = vsel %vm112, %v8335, %v9502
    %v10385 = vsel %vm112, %v8336, %v9504
    %v10386 = vsel %vm112, %v8337, %v9506
    %v10387 = vsel %vm112, %v8338, %v9508
    %v10388 = vsel %vm112, %v8339, %v9510
    %v10389 = vsel %vm112, %v8340, %v9512
    %v10390 = vsel %vm112, %v8341, %v9514
    %v10391 = vsel %vm112, %v8342, %v9516
    %v10392 = vsel %vm112, %v8343, %v9518
    %v10393 = vsel %vm112, %v8344, %v9520
    %v10394 = vsel %vm112, %v8345, %v9522
    %v10395 = vsel %vm112, %v8346, %v9524
    %v10396 = vsel %vm112, %v8347, %v9526
    %v10397 = vsel %vm112, %v8348, %v9528
    %v10398 = vsel %vm112, %v8349, %v9530
    %v10399 = vsel %vm112, %v8350, %v9532
    %v10400 = vsel %vm112, %v8351, %v9534
    %v10401 = vsel %vm112, %v8352, %v9536
    %v10402 = vsel %vm112, %v8353, %v9538
    %v10403 = vsel %vm112, %v8354, %v9540
    %v10404 = vsel %vm112, %v8355, %v9542
    %v10405 = vsel %vm112, %v8356, %v9544
    %v10406 = vsel %vm112, %v8357, %v9546
    %v10407 = vsel %vm112, %v8358, %v9548
    %v10408 = vsel %vm112, %v8359, %v9550
    %v10409 = vsel %vm112, %v8360, %v9552
    %v10410 = vsel %vm112, %v8361, %v9554
    %v10411 = vsel %vm112, %v8362, %v9556
    %v10412 = vsel %vm112, %v8363, %v9558
    %v10413 = vsel %vm112, %v8364, %v9560
    %v10414 = vsel %vm112, %v8365, %v9562
    %v10415 = vsel %vm112, %v8366, %v9564
    %v10416 = vsel %vm112, %v8367, %v9566
    %v10417 = vsel %vm112, %v8368, %v9568
    %v10418 = vsel %vm112, %v8369, %v9570
    %v10419 = vsel %vm112, %v8370, %v9572
    %v10420 = vsel %vm112, %v8371, %v9574
    %v10421 = vsel %vm112, %v8372, %v9576
    %v10422 = vsel %vm112, %v8373, %v9578
    %v10423 = vsel %vm112, %v8374, %v9580
    %v10424 = vsel %vm112, %v8375, %v9582
    %v10425 = vsel %vm112, %v8376, %v9584
    %v10426 = vsel %vm112, %v8377, %v9586
    %v10427 = vsel %vm112, %v8378, %v9588
    %v10428 = vsel %vm112, %v8379, %v9590
    %v10429 = vsel %vm112, %v8380, %v9592
    %v10430 = vsel %vm112, %v8381, %v9594
    %v10431 = vsel %vm112, %v8382, %v9596
    %v10432 = vsel %vm112, %v8383, %v9598
    %v10433 = vsel %vm112, %v8384, %v9600
    %v10434 = vsel %vm112, %v8385, %v9602
    %v10435 = vsel %vm2701, %v10371, %v9732
    %v10436 = vsel %vm2701, %v10372, %v9734
    %v10437 = vsel %vm2701, %v10373, %v9736
    %v10438 = vsel %vm2701, %v10374, %v9738
    %v10439 = vsel %vm2701, %v10375, %v9740
    %v10440 = vsel %vm2701, %v10376, %v9742
    %v10441 = vsel %vm2701, %v10377, %v9744
    %v10442 = vsel %vm2701, %v10378, %v9746
    %v10443 = vsel %vm2701, %v10379, %v9748
    %v10444 = vsel %vm2701, %v10380, %v9750
    %v10445 = vsel %vm2701, %v10381, %v9752
    %v10446 = vsel %vm2701, %v10382, %v9754
    %v10447 = vsel %vm2701, %v10383, %v9756
    %v10448 = vsel %vm2701, %v10384, %v9758
    %v10449 = vsel %vm2701, %v10385, %v9760
    %v10450 = vsel %vm2701, %v10386, %v9762
    %v10451 = vsel %vm2701, %v10387, %v9764
    %v10452 = vsel %vm2701, %v10388, %v9766
    %v10453 = vsel %vm2701, %v10389, %v9768
    %v10454 = vsel %vm2701, %v10390, %v9770
    %v10455 = vsel %vm2701, %v10391, %v9772
    %v10456 = vsel %vm2701, %v10392, %v9774
    %v10457 = vsel %vm2701, %v10393, %v9776
    %v10458 = vsel %vm2701, %v10394, %v9778
    %v10459 = vsel %vm2701, %v10395, %v9780
    %v10460 = vsel %vm2701, %v10396, %v9782
    %v10461 = vsel %vm2701, %v10397, %v9784
    %v10462 = vsel %vm2701, %v10398, %v9786
    %v10463 = vsel %vm2701, %v10399, %v9788
    %v10464 = vsel %vm2701, %v10400, %v9790
    %v10465 = vsel %vm2701, %v10401, %v9792
    %v10466 = vsel %vm2701, %v10402, %v9794
    %v10467 = vsel %vm2701, %v10403, %v9796
    %v10468 = vsel %vm2701, %v10404, %v9798
    %v10469 = vsel %vm2701, %v10405, %v9800
    %v10470 = vsel %vm2701, %v10406, %v9802
    %v10471 = vsel %vm2701, %v10407, %v9804
    %v10472 = vsel %vm2701, %v10408, %v9806
    %v10473 = vsel %vm2701, %v10409, %v9808
    %v10474 = vsel %vm2701, %v10410, %v9810
    %v10475 = vsel %vm2701, %v10411, %v9812
    %v10476 = vsel %vm2701, %v10412, %v9814
    %v10477 = vsel %vm2701, %v10413, %v9816
    %v10478 = vsel %vm2701, %v10414, %v9818
    %v10479 = vsel %vm2701, %v10415, %v9820
    %v10480 = vsel %vm2701, %v10416, %v9822
    %v10481 = vsel %vm2701, %v10417, %v9824
    %v10482 = vsel %vm2701, %v10418, %v9826
    %v10483 = vsel %vm2701, %v10419, %v9828
    %v10484 = vsel %vm2701, %v10420, %v9830
    %v10485 = vsel %vm2701, %v10421, %v9832
    %v10486 = vsel %vm2701, %v10422, %v9834
    %v10487 = vsel %vm2701, %v10423, %v9836
    %v10488 = vsel %vm2701, %v10424, %v9838
    %v10489 = vsel %vm2701, %v10425, %v9840
    %v10490 = vsel %vm2701, %v10426, %v9842
    %v10491 = vsel %vm2701, %v10427, %v9844
    %v10492 = vsel %vm2701, %v10428, %v9846
    %v10493 = vsel %vm2701, %v10429, %v9848
    %v10494 = vsel %vm2701, %v10430, %v9850
    %v10495 = vsel %vm2701, %v10431, %v9852
    %v10496 = vsel %vm2701, %v10432, %v9854
    %v10497 = vsel %vm2701, %v10433, %v9856
    %v10498 = vsel %vm2701, %v10434, %v9858
    %v10499 = vsel %vm2766, %v10435, %v9988
    %v10500 = vsel %vm2766, %v10436, %v9990
    %v10501 = vsel %vm2766, %v10437, %v9992
    %v10502 = vsel %vm2766, %v10438, %v9994
    %v10503 = vsel %vm2766, %v10439, %v9996
    %v10504 = vsel %vm2766, %v10440, %v9998
    %v10505 = vsel %vm2766, %v10441, %v10000
    %v10506 = vsel %vm2766, %v10442, %v10002
    %v10507 = vsel %vm2766, %v10443, %v10004
    %v10508 = vsel %vm2766, %v10444, %v10006
    %v10509 = vsel %vm2766, %v10445, %v10008
    %v10510 = vsel %vm2766, %v10446, %v10010
    %v10511 = vsel %vm2766, %v10447, %v10012
    %v10512 = vsel %vm2766, %v10448, %v10014
    %v10513 = vsel %vm2766, %v10449, %v10016
    %v10514 = vsel %vm2766, %v10450, %v10018
    %v10515 = vsel %vm2766, %v10451, %v10020
    %v10516 = vsel %vm2766, %v10452, %v10022
    %v10517 = vsel %vm2766, %v10453, %v10024
    %v10518 = vsel %vm2766, %v10454, %v10026
    %v10519 = vsel %vm2766, %v10455, %v10028
    %v10520 = vsel %vm2766, %v10456, %v10030
    %v10521 = vsel %vm2766, %v10457, %v10032
    %v10522 = vsel %vm2766, %v10458, %v10034
    %v10523 = vsel %vm2766, %v10459, %v10036
    %v10524 = vsel %vm2766, %v10460, %v10038
    %v10525 = vsel %vm2766, %v10461, %v10040
    %v10526 = vsel %vm2766, %v10462, %v10042
    %v10527 = vsel %vm2766, %v10463, %v10044
    %v10528 = vsel %vm2766, %v10464, %v10046
    %v10529 = vsel %vm2766, %v10465, %v10048
    %v10530 = vsel %vm2766, %v10466, %v10050
    %v10531 = vsel %vm2766, %v10467, %v10052
    %v10532 = vsel %vm2766, %v10468, %v10054
    %v10533 = vsel %vm2766, %v10469, %v10056
    %v10534 = vsel %vm2766, %v10470, %v10058
    %v10535 = vsel %vm2766, %v10471, %v10060
    %v10536 = vsel %vm2766, %v10472, %v10062
    %v10537 = vsel %vm2766, %v10473, %v10064
    %v10538 = vsel %vm2766, %v10474, %v10066
    %v10539 = vsel %vm2766, %v10475, %v10068
    %v10540 = vsel %vm2766, %v10476, %v10070
    %v10541 = vsel %vm2766, %v10477, %v10072
    %v10542 = vsel %vm2766, %v10478, %v10074
    %v10543 = vsel %vm2766, %v10479, %v10076
    %v10544 = vsel %vm2766, %v10480, %v10078
    %v10545 = vsel %vm2766, %v10481, %v10080
    %v10546 = vsel %vm2766, %v10482, %v10082
    %v10547 = vsel %vm2766, %v10483, %v10084
    %v10548 = vsel %vm2766, %v10484, %v10086
    %v10549 = vsel %vm2766, %v10485, %v10088
    %v10550 = vsel %vm2766, %v10486, %v10090
    %v10551 = vsel %vm2766, %v10487, %v10092
    %v10552 = vsel %vm2766, %v10488, %v10094
    %v10553 = vsel %vm2766, %v10489, %v10096
    %v10554 = vsel %vm2766, %v10490, %v10098
    %v10555 = vsel %vm2766, %v10491, %v10100
    %v10556 = vsel %vm2766, %v10492, %v10102
    %v10557 = vsel %vm2766, %v10493, %v10104
    %v10558 = vsel %vm2766, %v10494, %v10106
    %v10559 = vsel %vm2766, %v10495, %v10108
    %v10560 = vsel %vm2766, %v10496, %v10110
    %v10561 = vsel %vm2766, %v10497, %v10112
    %v10562 = vsel %vm2766, %v10498, %v10114
    %v10563 = vpack.c.bf16 %v10308, %v10307
    %v10564 = vpack.c.bf16 %v10500, %v10499
    %v10565 = vpack.c.bf16 %v8580, %v8579
    %v10566 = vpack.c.bf16 %v10310, %v10309
    %v10567 = vpack.c.bf16 %v10502, %v10501
    %v10568 = vpack.c.bf16 %v8582, %v8581
    %v10569 = vpack.c.bf16 %v10312, %v10311
    %v10570 = vpack.c.bf16 %v10504, %v10503
    %v10571 = vpack.c.bf16 %v8584, %v8583
    %v10572 = vpack.c.bf16 %v10314, %v10313
    %v10573 = vpack.c.bf16 %v10506, %v10505
    %v10574 = vpack.c.bf16 %v8586, %v8585
    %v10575 = vpack.c.bf16 %v10316, %v10315
    %v10576 = vpack.c.bf16 %v10508, %v10507
    %v10577 = vpack.c.bf16 %v8588, %v8587
    %v10578 = vpack.c.bf16 %v10318, %v10317
    %v10579 = vpack.c.bf16 %v10510, %v10509
    %v10580 = vpack.c.bf16 %v8590, %v8589
    %v10581 = vpack.c.bf16 %v10320, %v10319
    %v10582 = vpack.c.bf16 %v10512, %v10511
    %v10583 = vpack.c.bf16 %v8592, %v8591
    %v10584 = vpack.c.bf16 %v10322, %v10321
    %v10585 = vpack.c.bf16 %v10514, %v10513
    %v10586 = vpack.c.bf16 %v8594, %v8593
    %v10587 = vpack.c.bf16 %v10324, %v10323
    %v10588 = vpack.c.bf16 %v10516, %v10515
    %v10589 = vpack.c.bf16 %v8596, %v8595
    %v10590 = vpack.c.bf16 %v10326, %v10325
    %v10591 = vpack.c.bf16 %v10518, %v10517
    %v10592 = vpack.c.bf16 %v8598, %v8597
    %v10593 = vpack.c.bf16 %v10328, %v10327
    %v10594 = vpack.c.bf16 %v10520, %v10519
    %v10595 = vpack.c.bf16 %v8600, %v8599
    %v10596 = vpack.c.bf16 %v10330, %v10329
    %v10597 = vpack.c.bf16 %v10522, %v10521
    %v10598 = vpack.c.bf16 %v8602, %v8601
    %v10599 = vpack.c.bf16 %v10332, %v10331
    %v10600 = vpack.c.bf16 %v10524, %v10523
    %v10601 = vpack.c.bf16 %v8604, %v8603
    %v10602 = vpack.c.bf16 %v10334, %v10333
    %v10603 = vpack.c.bf16 %v10526, %v10525
    %v10604 = vpack.c.bf16 %v8606, %v8605
    %v10605 = vpack.c.bf16 %v10336, %v10335
    %v10606 = vpack.c.bf16 %v10528, %v10527
    %v10607 = vpack.c.bf16 %v8608, %v8607
    %v10608 = vpack.c.bf16 %v10338, %v10337
    %v10609 = vpack.c.bf16 %v10530, %v10529
    %v10610 = vpack.c.bf16 %v8610, %v8609
    %v10611 = vpack.c.bf16 %v10340, %v10339
    %v10612 = vpack.c.bf16 %v10532, %v10531
    %v10613 = vpack.c.bf16 %v8612, %v8611
    %v10614 = vpack.c.bf16 %v10342, %v10341
    %v10615 = vpack.c.bf16 %v10534, %v10533
    %v10616 = vpack.c.bf16 %v8614, %v8613
    %v10617 = vpack.c.bf16 %v10344, %v10343
    %v10618 = vpack.c.bf16 %v10536, %v10535
    %v10619 = vpack.c.bf16 %v8616, %v8615
    %v10620 = vpack.c.bf16 %v10346, %v10345
    %v10621 = vpack.c.bf16 %v10538, %v10537
    %v10622 = vpack.c.bf16 %v8618, %v8617
    %v10623 = vpack.c.bf16 %v10348, %v10347
    %v10624 = vpack.c.bf16 %v10540, %v10539
    %v10625 = vpack.c.bf16 %v8620, %v8619
    %v10626 = vpack.c.bf16 %v10350, %v10349
    %v10627 = vpack.c.bf16 %v10542, %v10541
    %v10628 = vpack.c.bf16 %v8622, %v8621
    %v10629 = vpack.c.bf16 %v10352, %v10351
    %v10630 = vpack.c.bf16 %v10544, %v10543
    %v10631 = vpack.c.bf16 %v8624, %v8623
    %v10632 = vpack.c.bf16 %v10354, %v10353
    %v10633 = vpack.c.bf16 %v10546, %v10545
    %v10634 = vpack.c.bf16 %v8626, %v8625
    %v10635 = vpack.c.bf16 %v10356, %v10355
    %v10636 = vpack.c.bf16 %v10548, %v10547
    %v10637 = vpack.c.bf16 %v8628, %v8627
    %v10638 = vpack.c.bf16 %v10358, %v10357
    %v10639 = vpack.c.bf16 %v10550, %v10549
    %v10640 = vpack.c.bf16 %v8630, %v8629
    %v10641 = vpack.c.bf16 %v10360, %v10359
    %v10642 = vpack.c.bf16 %v10552, %v10551
    %v10643 = vpack.c.bf16 %v8632, %v8631
    %v10644 = vpack.c.bf16 %v10362, %v10361
    %v10645 = vpack.c.bf16 %v10554, %v10553
    %v10646 = vpack.c.bf16 %v8634, %v8633
    %v10647 = vpack.c.bf16 %v10364, %v10363
    %v10648 = vpack.c.bf16 %v10556, %v10555
    %v10649 = vpack.c.bf16 %v8636, %v8635
    %v10650 = vpack.c.bf16 %v10366, %v10365
    %v10651 = vpack.c.bf16 %v10558, %v10557
    %v10652 = vpack.c.bf16 %v8638, %v8637
    %v10653 = vpack.c.bf16 %v10368, %v10367
    %v10654 = vpack.c.bf16 %v10560, %v10559
    %v10655 = vpack.c.bf16 %v8640, %v8639
    %v10656 = vpack.c.bf16 %v10370, %v10369
    %v10657 = vpack.c.bf16 %v10562, %v10561
    %v10658 = vpack.c.bf16 %v8642, %v8641
    %v10659 = vld [vmem:[%s6] sm:$0xf]
    %v10660 = vld [vmem:[%s6 + $0x4] sm:$0xf]
    %v10661 = vld [vmem:[%s6 + $0x8] sm:$0xf]
    %v10662 = vld [vmem:[%s6 + $0xc] sm:$0xf]
    %v10663 = vld [vmem:[%s6 + $0x10] sm:$0xf]
    %v10664 = vld [vmem:[%s6 + $0x14] sm:$0xf]
    %v10665 = vld [vmem:[%s6 + $0x18] sm:$0xf]
    %v10666 = vld [vmem:[%s6 + $0x1c] sm:$0xf]
    %v10667 = vld [vmem:[%s6 + $0x20] sm:$0xf]
    %v10668 = vld [vmem:[%s6 + $0x24] sm:$0xf]
    %v10669 = vld [vmem:[%s6 + $0x28] sm:$0xf]
    %v10670 = vld [vmem:[%s6 + $0x2c] sm:$0xf]
    %v10671 = vld [vmem:[%s6 + $0x30] sm:$0xf]
    %v10672 = vld [vmem:[%s6 + $0x34] sm:$0xf]
    %v10673 = vld [vmem:[%s6 + $0x38] sm:$0xf]
    %v10674 = vld [vmem:[%s6 + $0x3c] sm:$0xf]
    %v10675 = vld [vmem:[%s6 + $0x40] sm:$0xf]
    %v10676 = vld [vmem:[%s6 + $0x44] sm:$0xf]
    %v10677 = vld [vmem:[%s6 + $0x48] sm:$0xf]
    %v10678 = vld [vmem:[%s6 + $0x4c] sm:$0xf]
    %v10679 = vld [vmem:[%s6 + $0x50] sm:$0xf]
    %v10680 = vld [vmem:[%s6 + $0x54] sm:$0xf]
    %v10681 = vld [vmem:[%s6 + $0x58] sm:$0xf]
    %v10682 = vld [vmem:[%s6 + $0x5c] sm:$0xf]
    %v10683 = vld [vmem:[%s6 + $0x60] sm:$0xf]
    %v10684 = vld [vmem:[%s6 + $0x64] sm:$0xf]
    %v10685 = vld [vmem:[%s6 + $0x68] sm:$0xf]
    %v10686 = vld [vmem:[%s6 + $0x6c] sm:$0xf]
    %v10687 = vld [vmem:[%s6 + $0x70] sm:$0xf]
    %v10688 = vld [vmem:[%s6 + $0x74] sm:$0xf]
    %v10689 = vld [vmem:[%s6 + $0x78] sm:$0xf]
    %v10690 = vld [vmem:[%s6 + $0x7c] sm:$0xf]
    %v10691 = vld [vmem:[%s6 + $0x80] sm:$0xf]
    %v10692 = vld [vmem:[%s6 + $0x84] sm:$0xf]
    %v10693 = vld [vmem:[%s6 + $0x88] sm:$0xf]
    %v10694 = vld [vmem:[%s6 + $0x8c] sm:$0xf]
    %v10731 = vunpack.c.l.b16 %v10659
    %v10732 = vunpack.c.l.b16 %v10660
    %v10733 = vunpack.c.l.b16 %v10661
    %v10734 = vunpack.c.l.b16 %v10662
    %v10735 = vunpack.c.l.b16 %v10663
    %v10736 = vunpack.c.l.b16 %v10664
    %v10737 = vunpack.c.l.b16 %v10665
    %v10738 = vunpack.c.l.b16 %v10666
    %v10739 = vunpack.c.l.b16 %v10667
    %v10740 = vunpack.c.l.b16 %v10668
    %v10741 = vunpack.c.l.b16 %v10669
    %v10742 = vunpack.c.l.b16 %v10670
    %v10743 = vunpack.c.l.b16 %v10671
    %v10744 = vunpack.c.l.b16 %v10672
    %v10745 = vunpack.c.l.b16 %v10673
    %v10746 = vunpack.c.l.b16 %v10674
    %v10747 = vunpack.c.l.b16 %v10675
    %v10748 = vunpack.c.l.b16 %v10676
    %v10749 = vunpack.c.l.b16 %v10677
    %v10750 = vunpack.c.l.b16 %v10678
    %v10751 = vunpack.c.l.b16 %v10679
    %v10752 = vunpack.c.l.b16 %v10680
    %v10753 = vunpack.c.l.b16 %v10681
    %v10754 = vunpack.c.l.b16 %v10682
    %v10755 = vunpack.c.l.b16 %v10683
    %v10756 = vunpack.c.l.b16 %v10684
    %v10757 = vunpack.c.l.b16 %v10685
    %v10758 = vunpack.c.l.b16 %v10686
    %v10759 = vunpack.c.l.b16 %v10687
    %v10760 = vunpack.c.l.b16 %v10688
    %v10761 = vunpack.c.l.b16 %v10689
    %v10762 = vunpack.c.l.b16 %v10690
    %v10763 = vunpack.c.l.b16 %v10691
    %v10764 = vunpack.c.l.b16 %v10692
    %v10765 = vunpack.c.l.b16 %v10693
    %v10766 = vunpack.c.l.b16 %v10694
    %v10767 = vpack.c.b16 %v10732, %v10731
    %v10768 = vpack.c.b16 %v10734, %v10733
    %v10769 = vpack.c.b16 %v10736, %v10735
    %v10770 = vpack.c.b16 %v10738, %v10737
    %v10771 = vpack.c.b16 %v10740, %v10739
    %v10772 = vpack.c.b16 %v10742, %v10741
    %v10773 = vpack.c.b16 %v10744, %v10743
    %v10774 = vpack.c.b16 %v10746, %v10745
    %v10775 = vpack.c.b16 %v10748, %v10747
    %v10776 = vpack.c.b16 %v10750, %v10749
    %v10777 = vpack.c.b16 %v10752, %v10751
    %v10778 = vpack.c.b16 %v10754, %v10753
    %v10779 = vpack.c.b16 %v10756, %v10755
    %v10780 = vpack.c.b16 %v10758, %v10757
    %v10781 = vpack.c.b16 %v10760, %v10759
    %v10782 = vpack.c.b16 %v10762, %v10761
    %v10783 = vpack.c.b16 %v10764, %v10763
    %v10784 = vpack.c.b16 %v10766, %v10765
    %v10804 = vsel %vm112, %v10565, 0
    %v10807 = vsel %vm112, %v10568, 0
    %v10810 = vsel %vm112, %v10571, 0
    %v10813 = vsel %vm112, %v10574, 0
    %v10816 = vsel %vm112, %v10577, 0
    %v10819 = vsel %vm112, %v10580, 0
    %v10822 = vsel %vm112, %v10583, 0
    %v10825 = vsel %vm112, %v10586, 0
    %v10828 = vsel %vm112, %v10589, 0
    %v10831 = vsel %vm112, %v10592, 0
    %v10834 = vsel %vm112, %v10595, 0
    %v10837 = vsel %vm112, %v10598, 0
    %v10840 = vsel %vm112, %v10601, 0
    %v10843 = vsel %vm112, %v10604, 0
    %v10846 = vsel %vm112, %v10607, 0
    %v10849 = vsel %vm112, %v10610, 0
    %v10852 = vsel %vm112, %v10613, 0
    %v10855 = vsel %vm112, %v10616, 0
    %v10858 = vsel %vm112, %v10619, 0
    %v10861 = vsel %vm112, %v10622, 0
    %v10864 = vsel %vm112, %v10625, 0
    %v10867 = vsel %vm112, %v10628, 0
    %v10870 = vsel %vm112, %v10631, 0
    %v10873 = vsel %vm112, %v10634, 0
    %v10876 = vsel %vm112, %v10637, 0
    %v10879 = vsel %vm112, %v10640, 0
    %v10882 = vsel %vm112, %v10643, 0
    %v10885 = vsel %vm112, %v10646, 0
    %v10888 = vsel %vm112, %v10649, 0
    %v10891 = vsel %vm112, %v10652, 0
    %v10894 = vsel %vm112, %v10655, 0
    %v10897 = vsel %vm112, %v10658, 0
    %10899 = vmatprep.subr.bf16.mxu0 0
    %10900 = vmatpush1.bf16.msra.mxu0 %v10767
    %10901 = vmatprep.subr.bf16.mxu0 0
    %10902 = vmatpush1.bf16.msra.mxu0 %v10768
    %10903 = vmatprep.subr.bf16.mxu0 0
    %10904 = vmatpush1.bf16.msra.mxu0 %v10769
    %10905 = vmatprep.subr.bf16.mxu0 0
    %10906 = vmatpush1.bf16.msra.mxu0 %v10770
    %10907 = vmatprep.subr.bf16.mxu0 0
    %10908 = vmatpush1.bf16.msra.mxu0 %v10771
    %10909 = vmatprep.subr.bf16.mxu0 0
    %10910 = vmatpush1.bf16.msra.mxu0 %v10772
    %10911 = vmatprep.subr.bf16.mxu0 0
    %10912 = vmatpush1.bf16.msra.mxu0 %v10773
    %10913 = vmatprep.subr.bf16.mxu0 0
    %10914 = vmatpush1.bf16.msra.mxu0 %v10774
    %10915 = vmatprep.subr.bf16.mxu0 0
    %10916 = vmatpush1.bf16.msra.mxu0 %v10775
    %10917 = vmatprep.subr.bf16.mxu0 0
    %10918 = vmatpush1.bf16.msra.mxu0 %v10776
    %10919 = vmatprep.subr.bf16.mxu0 0
    %10920 = vmatpush1.bf16.msra.mxu0 %v10777
    %10921 = vmatprep.subr.bf16.mxu0 0
    %10922 = vmatpush1.bf16.msra.mxu0 %v10778
    %10923 = vmatprep.subr.bf16.mxu0 0
    %10924 = vmatpush1.bf16.msra.mxu0 %v10779
    %10925 = vmatprep.subr.bf16.mxu0 0
    %10926 = vmatpush1.bf16.msra.mxu0 %v10780
    %10927 = vmatprep.subr.bf16.mxu0 0
    %10928 = vmatpush1.bf16.msra.mxu0 %v10781
    %10929 = vmatprep.subr.bf16.mxu0 0
    %10930 = vmatpush1.bf16.msra.mxu0 %v10782
    %10931 = vmatprep.mubr.bf16.mxu0 %v10564
    %10932 = vmatmul.mubr.bf16.gmra.mrb[0].mxu0 %v10563
    %v10933 = vpop.f32.mrb[0].mxu0
    %v10934 = vadd.f32 0.0, %v10933
    %v10935 = vpop.f32.mrb[0].mxu0
    %v10936 = vpop.f32.mrb[0].mxu0
    %v10937 = vadd.f32 0.0, %v10936
    %v10938 = vpop.f32.mrb[0].mxu0
    %10939 = vmatprep.mubr.bf16.mxu0 %v10567
    %10940 = vmatmul.mubr.bf16.gmra.mrb[0].mxu0 %v10566
    %v10941 = vpop.f32.mrb[0].mxu0
    %v10942 = vadd.f32 0.0, %v10941
    %v10943 = vpop.f32.mrb[0].mxu0
    %v10944 = vpop.f32.mrb[0].mxu0
    %v10945 = vadd.f32 0.0, %v10944
    %v10946 = vpop.f32.mrb[0].mxu0
    %10947 = vmatprep.mubr.bf16.mxu0 %v10570
    %10948 = vmatmul.mubr.bf16.gmra.mrb[0].mxu0 %v10569
    %v10949 = vpop.f32.mrb[0].mxu0
    %v10950 = vadd.f32 0.0, %v10949
    %v10951 = vpop.f32.mrb[0].mxu0
    %v10952 = vpop.f32.mrb[0].mxu0
    %v10953 = vadd.f32 0.0, %v10952
    %v10954 = vpop.f32.mrb[0].mxu0
    %10955 = vmatprep.mubr.bf16.mxu0 %v10573
    %10956 = vmatmul.mubr.bf16.gmra.mrb[0].mxu0 %v10572
    %v10957 = vpop.f32.mrb[0].mxu0
    %v10958 = vadd.f32 0.0, %v10957
    %v10959 = vpop.f32.mrb[0].mxu0
    %v10960 = vpop.f32.mrb[0].mxu0
    %v10961 = vadd.f32 0.0, %v10960
    %v10962 = vpop.f32.mrb[0].mxu0
    %10963 = vmatprep.mubr.bf16.mxu0 %v10576
    %10964 = vmatmul.mubr.bf16.gmra.mrb[0].mxu0 %v10575
    %v10965 = vpop.f32.mrb[0].mxu0
    %v10966 = vadd.f32 0.0, %v10965
    %v10967 = vpop.f32.mrb[0].mxu0
    %v10968 = vpop.f32.mrb[0].mxu0
    %v10969 = vadd.f32 0.0, %v10968
    %v10970 = vpop.f32.mrb[0].mxu0
    %10971 = vmatprep.mubr.bf16.mxu0 %v10579
    %10972 = vmatmul.mubr.bf16.gmra.mrb[0].mxu0 %v10578
    %v10973 = vpop.f32.mrb[0].mxu0
    %v10974 = vadd.f32 0.0, %v10973
    %v10975 = vpop.f32.mrb[0].mxu0
    %v10976 = vpop.f32.mrb[0].mxu0
    %v10977 = vadd.f32 0.0, %v10976
    %v10978 = vpop.f32.mrb[0].mxu0
    %10979 = vmatprep.mubr.bf16.mxu0 %v10582
    %10980 = vmatmul.mubr.bf16.gmra.mrb[0].mxu0 %v10581
    %v10981 = vpop.f32.mrb[0].mxu0
    %v10982 = vadd.f32 0.0, %v10981
    %v10983 = vpop.f32.mrb[0].mxu0
    %v10984 = vpop.f32.mrb[0].mxu0
    %v10985 = vadd.f32 0.0, %v10984
    %v10986 = vpop.f32.mrb[0].mxu0
    %10987 = vmatprep.mubr.bf16.mxu0 %v10585
    %10988 = vmatmul.mubr.bf16.gmra.mrb[0].mxu0 %v10584
    %v10989 = vpop.f32.mrb[0].mxu0
    %v10990 = vadd.f32 0.0, %v10989
    %v10991 = vpop.f32.mrb[0].mxu0
    %v10992 = vpop.f32.mrb[0].mxu0
    %v10993 = vadd.f32 0.0, %v10992
    %v10994 = vpop.f32.mrb[0].mxu0
    %10995 = vmatprep.mubr.bf16.mxu0 %v10588
    %10996 = vmatmul.mubr.bf16.gmra.mrb[0].mxu0 %v10587
    %v10997 = vpop.f32.mrb[0].mxu0
    %v10998 = vadd.f32 0.0, %v10997
    %v10999 = vpop.f32.mrb[0].mxu0
    %v11000 = vpop.f32.mrb[0].mxu0
    %v11001 = vadd.f32 0.0, %v11000
    %v11002 = vpop.f32.mrb[0].mxu0
    %11003 = vmatprep.mubr.bf16.mxu0 %v10591
    %11004 = vmatmul.mubr.bf16.gmra.mrb[0].mxu0 %v10590
    %v11005 = vpop.f32.mrb[0].mxu0
    %v11006 = vadd.f32 0.0, %v11005
    %v11007 = vpop.f32.mrb[0].mxu0
    %v11008 = vpop.f32.mrb[0].mxu0
    %v11009 = vadd.f32 0.0, %v11008
    %v11010 = vpop.f32.mrb[0].mxu0
    %11011 = vmatprep.mubr.bf16.mxu0 %v10594
    %11012 = vmatmul.mubr.bf16.gmra.mrb[0].mxu0 %v10593
    %v11013 = vpop.f32.mrb[0].mxu0
    %v11014 = vadd.f32 0.0, %v11013
    %v11015 = vpop.f32.mrb[0].mxu0
    %v11016 = vpop.f32.mrb[0].mxu0
    %v11017 = vadd.f32 0.0, %v11016
    %v11018 = vpop.f32.mrb[0].mxu0
    %11019 = vmatprep.mubr.bf16.mxu0 %v10597
    %11020 = vmatmul.mubr.bf16.gmra.mrb[0].mxu0 %v10596
    %v11021 = vpop.f32.mrb[0].mxu0
    %v11022 = vadd.f32 0.0, %v11021
    %v11023 = vpop.f32.mrb[0].mxu0
    %v11024 = vpop.f32.mrb[0].mxu0
    %v11025 = vadd.f32 0.0, %v11024
    %v11026 = vpop.f32.mrb[0].mxu0
    %11027 = vmatprep.mubr.bf16.mxu0 %v10600
    %11028 = vmatmul.mubr.bf16.gmra.mrb[0].mxu0 %v10599
    %v11029 = vpop.f32.mrb[0].mxu0
    %v11030 = vadd.f32 0.0, %v11029
    %v11031 = vpop.f32.mrb[0].mxu0
    %v11032 = vpop.f32.mrb[0].mxu0
    %v11033 = vadd.f32 0.0, %v11032
    %v11034 = vpop.f32.mrb[0].mxu0
    %11035 = vmatprep.mubr.bf16.mxu0 %v10603
    %11036 = vmatmul.mubr.bf16.gmra.mrb[0].mxu0 %v10602
    %v11037 = vpop.f32.mrb[0].mxu0
    %v11038 = vadd.f32 0.0, %v11037
    %v11039 = vpop.f32.mrb[0].mxu0
    %v11040 = vpop.f32.mrb[0].mxu0
    %v11041 = vadd.f32 0.0, %v11040
    %v11042 = vpop.f32.mrb[0].mxu0
    %11043 = vmatprep.mubr.bf16.mxu0 %v10606
    %11044 = vmatmul.mubr.bf16.gmra.mrb[0].mxu0 %v10605
    %v11045 = vpop.f32.mrb[0].mxu0
    %v11046 = vadd.f32 0.0, %v11045
    %v11047 = vpop.f32.mrb[0].mxu0
    %v11048 = vpop.f32.mrb[0].mxu0
    %v11049 = vadd.f32 0.0, %v11048
    %v11050 = vpop.f32.mrb[0].mxu0
    %11051 = vmatprep.mubr.bf16.mxu0 %v10609
    %11052 = vmatmul.mubr.bf16.gmra.mrb[0].mxu0 %v10608
    %v11053 = vpop.f32.mrb[0].mxu0
    %v11054 = vadd.f32 0.0, %v11053
    %v11055 = vpop.f32.mrb[0].mxu0
    %v11056 = vpop.f32.mrb[0].mxu0
    %v11057 = vadd.f32 0.0, %v11056
    %v11058 = vpop.f32.mrb[0].mxu0
    %11059 = vmatprep.mubr.bf16.mxu0 %v10612
    %11060 = vmatmul.mubr.bf16.gmra.mrb[0].mxu0 %v10611
    %v11061 = vpop.f32.mrb[0].mxu0
    %v11062 = vadd.f32 0.0, %v11061
    %v11063 = vpop.f32.mrb[0].mxu0
    %v11064 = vpop.f32.mrb[0].mxu0
    %v11065 = vadd.f32 0.0, %v11064
    %v11066 = vpop.f32.mrb[0].mxu0
    %11067 = vmatprep.mubr.bf16.mxu0 %v10615
    %11068 = vmatmul.mubr.bf16.gmra.mrb[0].mxu0 %v10614
    %v11069 = vpop.f32.mrb[0].mxu0
    %v11070 = vadd.f32 0.0, %v11069
    %v11071 = vpop.f32.mrb[0].mxu0
    %v11072 = vpop.f32.mrb[0].mxu0
    %v11073 = vadd.f32 0.0, %v11072
    %v11074 = vpop.f32.mrb[0].mxu0
    %11075 = vmatprep.mubr.bf16.mxu0 %v10618
    %11076 = vmatmul.mubr.bf16.gmra.mrb[0].mxu0 %v10617
    %v11077 = vpop.f32.mrb[0].mxu0
    %v11078 = vadd.f32 0.0, %v11077
    %v11079 = vpop.f32.mrb[0].mxu0
    %v11080 = vpop.f32.mrb[0].mxu0
    %v11081 = vadd.f32 0.0, %v11080
    %v11082 = vpop.f32.mrb[0].mxu0
    %11083 = vmatprep.mubr.bf16.mxu0 %v10621
    %11084 = vmatmul.mubr.bf16.gmra.mrb[0].mxu0 %v10620
    %v11085 = vpop.f32.mrb[0].mxu0
    %v11086 = vadd.f32 0.0, %v11085
    %v11087 = vpop.f32.mrb[0].mxu0
    %v11088 = vpop.f32.mrb[0].mxu0
    %v11089 = vadd.f32 0.0, %v11088
    %v11090 = vpop.f32.mrb[0].mxu0
    %11091 = vmatprep.mubr.bf16.mxu0 %v10624
    %11092 = vmatmul.mubr.bf16.gmra.mrb[0].mxu0 %v10623
    %v11093 = vpop.f32.mrb[0].mxu0
    %v11094 = vadd.f32 0.0, %v11093
    %v11095 = vpop.f32.mrb[0].mxu0
    %v11096 = vpop.f32.mrb[0].mxu0
    %v11097 = vadd.f32 0.0, %v11096
    %v11098 = vpop.f32.mrb[0].mxu0
    %11099 = vmatprep.mubr.bf16.mxu0 %v10627
    %11100 = vmatmul.mubr.bf16.gmra.mrb[0].mxu0 %v10626
    %v11101 = vpop.f32.mrb[0].mxu0
    %v11102 = vadd.f32 0.0, %v11101
    %v11103 = vpop.f32.mrb[0].mxu0
    %v11104 = vpop.f32.mrb[0].mxu0
    %v11105 = vadd.f32 0.0, %v11104
    %v11106 = vpop.f32.mrb[0].mxu0
    %11107 = vmatprep.mubr.bf16.mxu0 %v10630
    %11108 = vmatmul.mubr.bf16.gmra.mrb[0].mxu0 %v10629
    %v11109 = vpop.f32.mrb[0].mxu0
    %v11110 = vadd.f32 0.0, %v11109
    %v11111 = vpop.f32.mrb[0].mxu0
    %v11112 = vpop.f32.mrb[0].mxu0
    %v11113 = vadd.f32 0.0, %v11112
    %v11114 = vpop.f32.mrb[0].mxu0
    %11115 = vmatprep.mubr.bf16.mxu0 %v10633
    %11116 = vmatmul.mubr.bf16.gmra.mrb[0].mxu0 %v10632
    %v11117 = vpop.f32.mrb[0].mxu0
    %v11118 = vadd.f32 0.0, %v11117
    %v11119 = vpop.f32.mrb[0].mxu0
    %v11120 = vpop.f32.mrb[0].mxu0
    %v11121 = vadd.f32 0.0, %v11120
    %v11122 = vpop.f32.mrb[0].mxu0
    %11123 = vmatprep.mubr.bf16.mxu0 %v10636
    %11124 = vmatmul.mubr.bf16.gmra.mrb[0].mxu0 %v10635
    %v11125 = vpop.f32.mrb[0].mxu0
    %v11126 = vadd.f32 0.0, %v11125
    %v11127 = vpop.f32.mrb[0].mxu0
    %v11128 = vpop.f32.mrb[0].mxu0
    %v11129 = vadd.f32 0.0, %v11128
    %v11130 = vpop.f32.mrb[0].mxu0
    %11131 = vmatprep.mubr.bf16.mxu0 %v10639
    %11132 = vmatmul.mubr.bf16.gmra.mrb[0].mxu0 %v10638
    %v11133 = vpop.f32.mrb[0].mxu0
    %v11134 = vadd.f32 0.0, %v11133
    %v11135 = vpop.f32.mrb[0].mxu0
    %v11136 = vpop.f32.mrb[0].mxu0
    %v11137 = vadd.f32 0.0, %v11136
    %v11138 = vpop.f32.mrb[0].mxu0
    %11139 = vmatprep.mubr.bf16.mxu0 %v10642
    %11140 = vmatmul.mubr.bf16.gmra.mrb[0].mxu0 %v10641
    %v11141 = vpop.f32.mrb[0].mxu0
    %v11142 = vadd.f32 0.0, %v11141
    %v11143 = vpop.f32.mrb[0].mxu0
    %v11144 = vpop.f32.mrb[0].mxu0
    %v11145 = vadd.f32 0.0, %v11144
    %v11146 = vpop.f32.mrb[0].mxu0
    %11147 = vmatprep.mubr.bf16.mxu0 %v10645
    %11148 = vmatmul.mubr.bf16.gmra.mrb[0].mxu0 %v10644
    %v11149 = vpop.f32.mrb[0].mxu0
    %v11150 = vadd.f32 0.0, %v11149
    %v11151 = vpop.f32.mrb[0].mxu0
    %v11152 = vpop.f32.mrb[0].mxu0
    %v11153 = vadd.f32 0.0, %v11152
    %v11154 = vpop.f32.mrb[0].mxu0
    %11155 = vmatprep.mubr.bf16.mxu0 %v10648
    %11156 = vmatmul.mubr.bf16.gmra.mrb[0].mxu0 %v10647
    %v11157 = vpop.f32.mrb[0].mxu0
    %v11158 = vadd.f32 0.0, %v11157
    %v11159 = vpop.f32.mrb[0].mxu0
    %v11160 = vpop.f32.mrb[0].mxu0
    %v11161 = vadd.f32 0.0, %v11160
    %v11162 = vpop.f32.mrb[0].mxu0
    %11163 = vmatprep.mubr.bf16.mxu0 %v10651
    %11164 = vmatmul.mubr.bf16.gmra.mrb[0].mxu0 %v10650
    %v11165 = vpop.f32.mrb[0].mxu0
    %v11166 = vadd.f32 0.0, %v11165
    %v11167 = vpop.f32.mrb[0].mxu0
    %v11168 = vpop.f32.mrb[0].mxu0
    %v11169 = vadd.f32 0.0, %v11168
    %v11170 = vpop.f32.mrb[0].mxu0
    %11171 = vmatprep.mubr.bf16.mxu0 %v10654
    %11172 = vmatmul.mubr.bf16.gmra.mrb[0].mxu0 %v10653
    %v11173 = vpop.f32.mrb[0].mxu0
    %v11174 = vadd.f32 0.0, %v11173
    %v11175 = vpop.f32.mrb[0].mxu0
    %v11176 = vpop.f32.mrb[0].mxu0
    %v11177 = vadd.f32 0.0, %v11176
    %v11178 = vpop.f32.mrb[0].mxu0
    %11179 = vmatprep.mubr.bf16.mxu0 %v10657
    %11180 = vmatmul.mubr.bf16.gmra.mrb[0].mxu0 %v10656
    %v11181 = vpop.f32.mrb[0].mxu0
    %v11182 = vadd.f32 0.0, %v11181
    %v11183 = vpop.f32.mrb[0].mxu0
    %v11184 = vpop.f32.mrb[0].mxu0
    %v11185 = vadd.f32 0.0, %v11184
    %v11186 = vpop.f32.mrb[0].mxu0
    %11187 = vdwg.mxu0
    %11188 = vmatprep.subr.bf16.mxu0 0
    %11189 = vmatpush1.bf16.msra.mxu0 %v10783
    %11190 = vmatprep.subr.bf16.mxu0 0
    %11191 = vmatpush1.bf16.msra.mxu0 %v10784
    %11192 = vmatprep.subr.bf16.mxu0 0
    %11193 = vmatpush1.bf16.msra.mxu0 0
    %11194 = vmatprep.subr.bf16.mxu0 0
    %11195 = vmatpush1.bf16.msra.mxu0 0
    %11196 = vmatprep.subr.bf16.mxu0 0
    %11197 = vmatpush1.bf16.msra.mxu0 0
    %11198 = vmatprep.subr.bf16.mxu0 0
    %11199 = vmatpush1.bf16.msra.mxu0 0
    %11200 = vmatprep.subr.bf16.mxu0 0
    %11201 = vmatpush1.bf16.msra.mxu0 0
    %11202 = vmatprep.subr.bf16.mxu0 0
    %11203 = vmatpush1.bf16.msra.mxu0 0
    %11204 = vmatprep.subr.bf16.mxu0 0
    %11205 = vmatpush1.bf16.msra.mxu0 0
    %11206 = vmatprep.subr.bf16.mxu0 0
    %11207 = vmatpush1.bf16.msra.mxu0 0
    %11208 = vmatprep.subr.bf16.mxu0 0
    %11209 = vmatpush1.bf16.msra.mxu0 0
    %11210 = vmatprep.subr.bf16.mxu0 0
    %11211 = vmatpush1.bf16.msra.mxu0 0
    %11212 = vmatprep.subr.bf16.mxu0 0
    %11213 = vmatpush1.bf16.msra.mxu0 0
    %11214 = vmatprep.subr.bf16.mxu0 0
    %11215 = vmatpush1.bf16.msra.mxu0 0
    %11216 = vmatprep.subr.bf16.mxu0 0
    %11217 = vmatpush1.bf16.msra.mxu0 0
    %11218 = vmatprep.subr.bf16.mxu0 0
    %11219 = vmatpush1.bf16.msra.mxu0 0
    %11220 = vmatprep.mubr.bf16.mxu0 0
    %11221 = vmatmul.mubr.bf16.gmra.mrb[0].mxu0 %v10804
    %v11222 = vpop.f32.mrb[0].mxu0
    %v11223 = vadd.f32 %v10934, %v11222
    %v11224 = vpop.f32.mrb[0].mxu0
    %v11225 = vpop.f32.mrb[0].mxu0
    %v11226 = vadd.f32 %v10937, %v11225
    %v11227 = vpop.f32.mrb[0].mxu0
    %11228 = vmatprep.mubr.bf16.mxu0 0
    %11229 = vmatmul.mubr.bf16.gmra.mrb[0].mxu0 %v10807
    %v11230 = vpop.f32.mrb[0].mxu0
    %v11231 = vadd.f32 %v10942, %v11230
    %v11232 = vpop.f32.mrb[0].mxu0
    %v11233 = vpop.f32.mrb[0].mxu0
    %v11234 = vadd.f32 %v10945, %v11233
    %v11235 = vpop.f32.mrb[0].mxu0
    %11236 = vmatprep.mubr.bf16.mxu0 0
    %11237 = vmatmul.mubr.bf16.gmra.mrb[0].mxu0 %v10810
    %v11238 = vpop.f32.mrb[0].mxu0
    %v11239 = vadd.f32 %v10950, %v11238
    %v11240 = vpop.f32.mrb[0].mxu0
    %v11241 = vpop.f32.mrb[0].mxu0
    %v11242 = vadd.f32 %v10953, %v11241
    %v11243 = vpop.f32.mrb[0].mxu0
    %11244 = vmatprep.mubr.bf16.mxu0 0
    %11245 = vmatmul.mubr.bf16.gmra.mrb[0].mxu0 %v10813
    %v11246 = vpop.f32.mrb[0].mxu0
    %v11247 = vadd.f32 %v10958, %v11246
    %v11248 = vpop.f32.mrb[0].mxu0
    %v11249 = vpop.f32.mrb[0].mxu0
    %v11250 = vadd.f32 %v10961, %v11249
    %v11251 = vpop.f32.mrb[0].mxu0
    %11252 = vmatprep.mubr.bf16.mxu0 0
    %11253 = vmatmul.mubr.bf16.gmra.mrb[0].mxu0 %v10816
    %v11254 = vpop.f32.mrb[0].mxu0
    %v11255 = vadd.f32 %v10966, %v11254
    %v11256 = vpop.f32.mrb[0].mxu0
    %v11257 = vpop.f32.mrb[0].mxu0
    %v11258 = vadd.f32 %v10969, %v11257
    %v11259 = vpop.f32.mrb[0].mxu0
    %11260 = vmatprep.mubr.bf16.mxu0 0
    %11261 = vmatmul.mubr.bf16.gmra.mrb[0].mxu0 %v10819
    %v11262 = vpop.f32.mrb[0].mxu0
    %v11263 = vadd.f32 %v10974, %v11262
    %v11264 = vpop.f32.mrb[0].mxu0
    %v11265 = vpop.f32.mrb[0].mxu0
    %v11266 = vadd.f32 %v10977, %v11265
    %v11267 = vpop.f32.mrb[0].mxu0
    %11268 = vmatprep.mubr.bf16.mxu0 0
    %11269 = vmatmul.mubr.bf16.gmra.mrb[0].mxu0 %v10822
    %v11270 = vpop.f32.mrb[0].mxu0
    %v11271 = vadd.f32 %v10982, %v11270
    %v11272 = vpop.f32.mrb[0].mxu0
    %v11273 = vpop.f32.mrb[0].mxu0
    %v11274 = vadd.f32 %v10985, %v11273
    %v11275 = vpop.f32.mrb[0].mxu0
    %11276 = vmatprep.mubr.bf16.mxu0 0
    %11277 = vmatmul.mubr.bf16.gmra.mrb[0].mxu0 %v10825
    %v11278 = vpop.f32.mrb[0].mxu0
    %v11279 = vadd.f32 %v10990, %v11278
    %v11280 = vpop.f32.mrb[0].mxu0
    %v11281 = vpop.f32.mrb[0].mxu0
    %v11282 = vadd.f32 %v10993, %v11281
    %v11283 = vpop.f32.mrb[0].mxu0
    %11284 = vmatprep.mubr.bf16.mxu0 0
    %11285 = vmatmul.mubr.bf16.gmra.mrb[0].mxu0 %v10828
    %v11286 = vpop.f32.mrb[0].mxu0
    %v11287 = vadd.f32 %v10998, %v11286
    %v11288 = vpop.f32.mrb[0].mxu0
    %v11289 = vpop.f32.mrb[0].mxu0
    %v11290 = vadd.f32 %v11001, %v11289
    %v11291 = vpop.f32.mrb[0].mxu0
    %11292 = vmatprep.mubr.bf16.mxu0 0
    %11293 = vmatmul.mubr.bf16.gmra.mrb[0].mxu0 %v10831
    %v11294 = vpop.f32.mrb[0].mxu0
    %v11295 = vadd.f32 %v11006, %v11294
    %v11296 = vpop.f32.mrb[0].mxu0
    %v11297 = vpop.f32.mrb[0].mxu0
    %v11298 = vadd.f32 %v11009, %v11297
    %v11299 = vpop.f32.mrb[0].mxu0
    %11300 = vmatprep.mubr.bf16.mxu0 0
    %11301 = vmatmul.mubr.bf16.gmra.mrb[0].mxu0 %v10834
    %v11302 = vpop.f32.mrb[0].mxu0
    %v11303 = vadd.f32 %v11014, %v11302
    %v11304 = vpop.f32.mrb[0].mxu0
    %v11305 = vpop.f32.mrb[0].mxu0
    %v11306 = vadd.f32 %v11017, %v11305
    %v11307 = vpop.f32.mrb[0].mxu0
    %11308 = vmatprep.mubr.bf16.mxu0 0
    %11309 = vmatmul.mubr.bf16.gmra.mrb[0].mxu0 %v10837
    %v11310 = vpop.f32.mrb[0].mxu0
    %v11311 = vadd.f32 %v11022, %v11310
    %v11312 = vpop.f32.mrb[0].mxu0
    %v11313 = vpop.f32.mrb[0].mxu0
    %v11314 = vadd.f32 %v11025, %v11313
    %v11315 = vpop.f32.mrb[0].mxu0
    %11316 = vmatprep.mubr.bf16.mxu0 0
    %11317 = vmatmul.mubr.bf16.gmra.mrb[0].mxu0 %v10840
    %v11318 = vpop.f32.mrb[0].mxu0
    %v11319 = vadd.f32 %v11030, %v11318
    %v11320 = vpop.f32.mrb[0].mxu0
    %v11321 = vpop.f32.mrb[0].mxu0
    %v11322 = vadd.f32 %v11033, %v11321
    %v11323 = vpop.f32.mrb[0].mxu0
    %11324 = vmatprep.mubr.bf16.mxu0 0
    %11325 = vmatmul.mubr.bf16.gmra.mrb[0].mxu0 %v10843
    %v11326 = vpop.f32.mrb[0].mxu0
    %v11327 = vadd.f32 %v11038, %v11326
    %v11328 = vpop.f32.mrb[0].mxu0
    %v11329 = vpop.f32.mrb[0].mxu0
    %v11330 = vadd.f32 %v11041, %v11329
    %v11331 = vpop.f32.mrb[0].mxu0
    %11332 = vmatprep.mubr.bf16.mxu0 0
    %11333 = vmatmul.mubr.bf16.gmra.mrb[0].mxu0 %v10846
    %v11334 = vpop.f32.mrb[0].mxu0
    %v11335 = vadd.f32 %v11046, %v11334
    %v11336 = vpop.f32.mrb[0].mxu0
    %v11337 = vpop.f32.mrb[0].mxu0
    %v11338 = vadd.f32 %v11049, %v11337
    %v11339 = vpop.f32.mrb[0].mxu0
    %11340 = vmatprep.mubr.bf16.mxu0 0
    %11341 = vmatmul.mubr.bf16.gmra.mrb[0].mxu0 %v10849
    %v11342 = vpop.f32.mrb[0].mxu0
    %v11343 = vadd.f32 %v11054, %v11342
    %v11344 = vpop.f32.mrb[0].mxu0
    %v11345 = vpop.f32.mrb[0].mxu0
    %v11346 = vadd.f32 %v11057, %v11345
    %v11347 = vpop.f32.mrb[0].mxu0
    %11348 = vmatprep.mubr.bf16.mxu0 0
    %11349 = vmatmul.mubr.bf16.gmra.mrb[0].mxu0 %v10852
    %v11350 = vpop.f32.mrb[0].mxu0
    %v11351 = vadd.f32 %v11062, %v11350
    %v11352 = vpop.f32.mrb[0].mxu0
    %v11353 = vpop.f32.mrb[0].mxu0
    %v11354 = vadd.f32 %v11065, %v11353
    %v11355 = vpop.f32.mrb[0].mxu0
    %11356 = vmatprep.mubr.bf16.mxu0 0
    %11357 = vmatmul.mubr.bf16.gmra.mrb[0].mxu0 %v10855
    %v11358 = vpop.f32.mrb[0].mxu0
    %v11359 = vadd.f32 %v11070, %v11358
    %v11360 = vpop.f32.mrb[0].mxu0
    %v11361 = vpop.f32.mrb[0].mxu0
    %v11362 = vadd.f32 %v11073, %v11361
    %v11363 = vpop.f32.mrb[0].mxu0
    %11364 = vmatprep.mubr.bf16.mxu0 0
    %11365 = vmatmul.mubr.bf16.gmra.mrb[0].mxu0 %v10858
    %v11366 = vpop.f32.mrb[0].mxu0
    %v11367 = vadd.f32 %v11078, %v11366
    %v11368 = vpop.f32.mrb[0].mxu0
    %v11369 = vpop.f32.mrb[0].mxu0
    %v11370 = vadd.f32 %v11081, %v11369
    %v11371 = vpop.f32.mrb[0].mxu0
    %11372 = vmatprep.mubr.bf16.mxu0 0
    %11373 = vmatmul.mubr.bf16.gmra.mrb[0].mxu0 %v10861
    %v11374 = vpop.f32.mrb[0].mxu0
    %v11375 = vadd.f32 %v11086, %v11374
    %v11376 = vpop.f32.mrb[0].mxu0
    %v11377 = vpop.f32.mrb[0].mxu0
    %v11378 = vadd.f32 %v11089, %v11377
    %v11379 = vpop.f32.mrb[0].mxu0
    %11380 = vmatprep.mubr.bf16.mxu0 0
    %11381 = vmatmul.mubr.bf16.gmra.mrb[0].mxu0 %v10864
    %v11382 = vpop.f32.mrb[0].mxu0
    %v11383 = vadd.f32 %v11094, %v11382
    %v11384 = vpop.f32.mrb[0].mxu0
    %v11385 = vpop.f32.mrb[0].mxu0
    %v11386 = vadd.f32 %v11097, %v11385
    %v11387 = vpop.f32.mrb[0].mxu0
    %11388 = vmatprep.mubr.bf16.mxu0 0
    %11389 = vmatmul.mubr.bf16.gmra.mrb[0].mxu0 %v10867
    %v11390 = vpop.f32.mrb[0].mxu0
    %v11391 = vadd.f32 %v11102, %v11390
    %v11392 = vpop.f32.mrb[0].mxu0
    %v11393 = vpop.f32.mrb[0].mxu0
    %v11394 = vadd.f32 %v11105, %v11393
    %v11395 = vpop.f32.mrb[0].mxu0
    %11396 = vmatprep.mubr.bf16.mxu0 0
    %11397 = vmatmul.mubr.bf16.gmra.mrb[0].mxu0 %v10870
    %v11398 = vpop.f32.mrb[0].mxu0
    %v11399 = vadd.f32 %v11110, %v11398
    %v11400 = vpop.f32.mrb[0].mxu0
    %v11401 = vpop.f32.mrb[0].mxu0
    %v11402 = vadd.f32 %v11113, %v11401
    %v11403 = vpop.f32.mrb[0].mxu0
    %11404 = vmatprep.mubr.bf16.mxu0 0
    %11405 = vmatmul.mubr.bf16.gmra.mrb[0].mxu0 %v10873
    %v11406 = vpop.f32.mrb[0].mxu0
    %v11407 = vadd.f32 %v11118, %v11406
    %v11408 = vpop.f32.mrb[0].mxu0
    %v11409 = vpop.f32.mrb[0].mxu0
    %v11410 = vadd.f32 %v11121, %v11409
    %v11411 = vpop.f32.mrb[0].mxu0
    %11412 = vmatprep.mubr.bf16.mxu0 0
    %11413 = vmatmul.mubr.bf16.gmra.mrb[0].mxu0 %v10876
    %v11414 = vpop.f32.mrb[0].mxu0
    %v11415 = vadd.f32 %v11126, %v11414
    %v11416 = vpop.f32.mrb[0].mxu0
    %v11417 = vpop.f32.mrb[0].mxu0
    %v11418 = vadd.f32 %v11129, %v11417
    %v11419 = vpop.f32.mrb[0].mxu0
    %11420 = vmatprep.mubr.bf16.mxu0 0
    %11421 = vmatmul.mubr.bf16.gmra.mrb[0].mxu0 %v10879
    %v11422 = vpop.f32.mrb[0].mxu0
    %v11423 = vadd.f32 %v11134, %v11422
    %v11424 = vpop.f32.mrb[0].mxu0
    %v11425 = vpop.f32.mrb[0].mxu0
    %v11426 = vadd.f32 %v11137, %v11425
    %v11427 = vpop.f32.mrb[0].mxu0
    %11428 = vmatprep.mubr.bf16.mxu0 0
    %11429 = vmatmul.mubr.bf16.gmra.mrb[0].mxu0 %v10882
    %v11430 = vpop.f32.mrb[0].mxu0
    %v11431 = vadd.f32 %v11142, %v11430
    %v11432 = vpop.f32.mrb[0].mxu0
    %v11433 = vpop.f32.mrb[0].mxu0
    %v11434 = vadd.f32 %v11145, %v11433
    %v11435 = vpop.f32.mrb[0].mxu0
    %11436 = vmatprep.mubr.bf16.mxu0 0
    %11437 = vmatmul.mubr.bf16.gmra.mrb[0].mxu0 %v10885
    %v11438 = vpop.f32.mrb[0].mxu0
    %v11439 = vadd.f32 %v11150, %v11438
    %v11440 = vpop.f32.mrb[0].mxu0
    %v11441 = vpop.f32.mrb[0].mxu0
    %v11442 = vadd.f32 %v11153, %v11441
    %v11443 = vpop.f32.mrb[0].mxu0
    %11444 = vmatprep.mubr.bf16.mxu0 0
    %11445 = vmatmul.mubr.bf16.gmra.mrb[0].mxu0 %v10888
    %v11446 = vpop.f32.mrb[0].mxu0
    %v11447 = vadd.f32 %v11158, %v11446
    %v11448 = vpop.f32.mrb[0].mxu0
    %v11449 = vpop.f32.mrb[0].mxu0
    %v11450 = vadd.f32 %v11161, %v11449
    %v11451 = vpop.f32.mrb[0].mxu0
    %11452 = vmatprep.mubr.bf16.mxu0 0
    %11453 = vmatmul.mubr.bf16.gmra.mrb[0].mxu0 %v10891
    %v11454 = vpop.f32.mrb[0].mxu0
    %v11455 = vadd.f32 %v11166, %v11454
    %v11456 = vpop.f32.mrb[0].mxu0
    %v11457 = vpop.f32.mrb[0].mxu0
    %v11458 = vadd.f32 %v11169, %v11457
    %v11459 = vpop.f32.mrb[0].mxu0
    %11460 = vmatprep.mubr.bf16.mxu0 0
    %11461 = vmatmul.mubr.bf16.gmra.mrb[0].mxu0 %v10894
    %v11462 = vpop.f32.mrb[0].mxu0
    %v11463 = vadd.f32 %v11174, %v11462
    %v11464 = vpop.f32.mrb[0].mxu0
    %v11465 = vpop.f32.mrb[0].mxu0
    %v11466 = vadd.f32 %v11177, %v11465
    %v11467 = vpop.f32.mrb[0].mxu0
    %11468 = vmatprep.mubr.bf16.mxu0 0
    %11469 = vmatmul.mubr.bf16.gmra.mrb[0].mxu0 %v10897
    %v11470 = vpop.f32.mrb[0].mxu0
    %v11471 = vadd.f32 %v11182, %v11470
    %v11472 = vpop.f32.mrb[0].mxu0
    %v11473 = vpop.f32.mrb[0].mxu0
    %v11474 = vadd.f32 %v11185, %v11473
    %v11475 = vpop.f32.mrb[0].mxu0
    %11476 = vdwg.mxu0
    %v11477 = vld [vmem:[%s7] sm:$0x1]
    %v11478 = vld [vmem:[%s8] sm:$0x1]
    %v11479 = vsel %vm112, %v11223, 0.0
    %v11480 = vsel %vm112, %v11226, 0.0
    %v11481 = vadd.f32 %v11479, %v11480
    %v11482 = vsel %vm112, %v11231, 0.0
    %v11483 = vadd.f32 %v11481, %v11482
    %v11484 = vsel %vm112, %v11234, 0.0
    %v11485 = vadd.f32 %v11483, %v11484
    %v11486 = vsel %vm112, %v11239, 0.0
    %v11487 = vadd.f32 %v11485, %v11486
    %v11488 = vsel %vm112, %v11242, 0.0
    %v11489 = vadd.f32 %v11487, %v11488
    %v11490 = vsel %vm112, %v11247, 0.0
    %v11491 = vadd.f32 %v11489, %v11490
    %v11492 = vsel %vm112, %v11250, 0.0
    %v11493 = vadd.f32 %v11491, %v11492
    %v11494 = vsel %vm112, %v11255, 0.0
    %v11495 = vadd.f32 %v11493, %v11494
    %v11496 = vsel %vm112, %v11258, 0.0
    %v11497 = vadd.f32 %v11495, %v11496
    %v11498 = vsel %vm112, %v11263, 0.0
    %v11499 = vadd.f32 %v11497, %v11498
    %v11500 = vsel %vm112, %v11266, 0.0
    %v11501 = vadd.f32 %v11499, %v11500
    %v11502 = vsel %vm112, %v11271, 0.0
    %v11503 = vadd.f32 %v11501, %v11502
    %v11504 = vsel %vm112, %v11274, 0.0
    %v11505 = vadd.f32 %v11503, %v11504
    %v11506 = vsel %vm112, %v11279, 0.0
    %v11507 = vadd.f32 %v11505, %v11506
    %v11508 = vsel %vm112, %v11282, 0.0
    %v11509 = vadd.f32 %v11507, %v11508
    %v11510 = vsel %vm112, %v11287, 0.0
    %v11511 = vadd.f32 %v11509, %v11510
    %v11512 = vsel %vm112, %v11290, 0.0
    %v11513 = vadd.f32 %v11511, %v11512
    %v11514 = vsel %vm112, %v11295, 0.0
    %v11515 = vadd.f32 %v11513, %v11514
    %v11516 = vsel %vm112, %v11298, 0.0
    %v11517 = vadd.f32 %v11515, %v11516
    %v11518 = vsel %vm112, %v11303, 0.0
    %v11519 = vadd.f32 %v11517, %v11518
    %v11520 = vsel %vm112, %v11306, 0.0
    %v11521 = vadd.f32 %v11519, %v11520
    %v11522 = vsel %vm112, %v11311, 0.0
    %v11523 = vadd.f32 %v11521, %v11522
    %v11524 = vsel %vm112, %v11314, 0.0
    %v11525 = vadd.f32 %v11523, %v11524
    %v11526 = vsel %vm112, %v11319, 0.0
    %v11527 = vadd.f32 %v11525, %v11526
    %v11528 = vsel %vm112, %v11322, 0.0
    %v11529 = vadd.f32 %v11527, %v11528
    %v11530 = vsel %vm112, %v11327, 0.0
    %v11531 = vadd.f32 %v11529, %v11530
    %v11532 = vsel %vm112, %v11330, 0.0
    %v11533 = vadd.f32 %v11531, %v11532
    %v11534 = vsel %vm112, %v11335, 0.0
    %v11535 = vadd.f32 %v11533, %v11534
    %v11536 = vsel %vm112, %v11338, 0.0
    %v11537 = vadd.f32 %v11535, %v11536
    %v11538 = vsel %vm112, %v11343, 0.0
    %v11539 = vadd.f32 %v11537, %v11538
    %v11540 = vsel %vm112, %v11346, 0.0
    %v11541 = vadd.f32 %v11539, %v11540
    %v11542 = vsel %vm112, %v11351, 0.0
    %v11543 = vadd.f32 %v11541, %v11542
    %v11544 = vsel %vm112, %v11354, 0.0
    %v11545 = vadd.f32 %v11543, %v11544
    %v11546 = vsel %vm112, %v11359, 0.0
    %v11547 = vadd.f32 %v11545, %v11546
    %v11548 = vsel %vm112, %v11362, 0.0
    %v11549 = vadd.f32 %v11547, %v11548
    %v11550 = vsel %vm112, %v11367, 0.0
    %v11551 = vadd.f32 %v11549, %v11550
    %v11552 = vsel %vm112, %v11370, 0.0
    %v11553 = vadd.f32 %v11551, %v11552
    %v11554 = vsel %vm112, %v11375, 0.0
    %v11555 = vadd.f32 %v11553, %v11554
    %v11556 = vsel %vm112, %v11378, 0.0
    %v11557 = vadd.f32 %v11555, %v11556
    %v11558 = vsel %vm112, %v11383, 0.0
    %v11559 = vadd.f32 %v11557, %v11558
    %v11560 = vsel %vm112, %v11386, 0.0
    %v11561 = vadd.f32 %v11559, %v11560
    %v11562 = vsel %vm112, %v11391, 0.0
    %v11563 = vadd.f32 %v11561, %v11562
    %v11564 = vsel %vm112, %v11394, 0.0
    %v11565 = vadd.f32 %v11563, %v11564
    %v11566 = vsel %vm112, %v11399, 0.0
    %v11567 = vadd.f32 %v11565, %v11566
    %v11568 = vsel %vm112, %v11402, 0.0
    %v11569 = vadd.f32 %v11567, %v11568
    %v11570 = vsel %vm112, %v11407, 0.0
    %v11571 = vadd.f32 %v11569, %v11570
    %v11572 = vsel %vm112, %v11410, 0.0
    %v11573 = vadd.f32 %v11571, %v11572
    %v11574 = vsel %vm112, %v11415, 0.0
    %v11575 = vadd.f32 %v11573, %v11574
    %v11576 = vsel %vm112, %v11418, 0.0
    %v11577 = vadd.f32 %v11575, %v11576
    %v11578 = vsel %vm112, %v11423, 0.0
    %v11579 = vadd.f32 %v11577, %v11578
    %v11580 = vsel %vm112, %v11426, 0.0
    %v11581 = vadd.f32 %v11579, %v11580
    %v11582 = vsel %vm112, %v11431, 0.0
    %v11583 = vadd.f32 %v11581, %v11582
    %v11584 = vsel %vm112, %v11434, 0.0
    %v11585 = vadd.f32 %v11583, %v11584
    %v11586 = vsel %vm112, %v11439, 0.0
    %v11587 = vadd.f32 %v11585, %v11586
    %v11588 = vsel %vm112, %v11442, 0.0
    %v11589 = vadd.f32 %v11587, %v11588
    %v11590 = vsel %vm112, %v11447, 0.0
    %v11591 = vadd.f32 %v11589, %v11590
    %v11592 = vsel %vm112, %v11450, 0.0
    %v11593 = vadd.f32 %v11591, %v11592
    %v11594 = vsel %vm112, %v11455, 0.0
    %v11595 = vadd.f32 %v11593, %v11594
    %v11596 = vsel %vm112, %v11458, 0.0
    %v11597 = vadd.f32 %v11595, %v11596
    %v11598 = vsel %vm112, %v11463, 0.0
    %v11599 = vadd.f32 %v11597, %v11598
    %v11600 = vsel %vm112, %v11466, 0.0
    %v11601 = vadd.f32 %v11599, %v11600
    %v11602 = vsel %vm112, %v11471, 0.0
    %v11603 = vadd.f32 %v11601, %v11602
    %v11604 = vsel %vm112, %v11474, 0.0
    %v11605 = vadd.f32 %v11603, %v11604
    %v11606 = vrot.slane %v11605, 4
    %v11607 = vadd.f32 %v11605, %v11606
    %v11608 = vrot.slane %v11607, 2
    %v11609 = vadd.f32 %v11607, %v11608
    %v11610 = vrot.slane %v11609, 1
    %v11611 = vadd.f32 %v11609, %v11610
    %v11612 = vmul.f32 %v11611, 0.001953125
    %v11613 = vmul.f32 %v11223, %v11223
    %v11614 = vmul.f32 %v11226, %v11226
    %v11615 = vmul.f32 %v11231, %v11231
    %v11616 = vmul.f32 %v11234, %v11234
    %v11617 = vmul.f32 %v11239, %v11239
    %v11618 = vmul.f32 %v11242, %v11242
    %v11619 = vmul.f32 %v11247, %v11247
    %v11620 = vmul.f32 %v11250, %v11250
    %v11621 = vmul.f32 %v11255, %v11255
    %v11622 = vmul.f32 %v11258, %v11258
    %v11623 = vmul.f32 %v11263, %v11263
    %v11624 = vmul.f32 %v11266, %v11266
    %v11625 = vmul.f32 %v11271, %v11271
    %v11626 = vmul.f32 %v11274, %v11274
    %v11627 = vmul.f32 %v11279, %v11279
    %v11628 = vmul.f32 %v11282, %v11282
    %v11629 = vmul.f32 %v11287, %v11287
    %v11630 = vmul.f32 %v11290, %v11290
    %v11631 = vmul.f32 %v11295, %v11295
    %v11632 = vmul.f32 %v11298, %v11298
    %v11633 = vmul.f32 %v11303, %v11303
    %v11634 = vmul.f32 %v11306, %v11306
    %v11635 = vmul.f32 %v11311, %v11311
    %v11636 = vmul.f32 %v11314, %v11314
    %v11637 = vmul.f32 %v11319, %v11319
    %v11638 = vmul.f32 %v11322, %v11322
    %v11639 = vmul.f32 %v11327, %v11327
    %v11640 = vmul.f32 %v11330, %v11330
    %v11641 = vmul.f32 %v11335, %v11335
    %v11642 = vmul.f32 %v11338, %v11338
    %v11643 = vmul.f32 %v11343, %v11343
    %v11644 = vmul.f32 %v11346, %v11346
    %v11645 = vmul.f32 %v11351, %v11351
    %v11646 = vmul.f32 %v11354, %v11354
    %v11647 = vmul.f32 %v11359, %v11359
    %v11648 = vmul.f32 %v11362, %v11362
    %v11649 = vmul.f32 %v11367, %v11367
    %v11650 = vmul.f32 %v11370, %v11370
    %v11651 = vmul.f32 %v11375, %v11375
    %v11652 = vmul.f32 %v11378, %v11378
    %v11653 = vmul.f32 %v11383, %v11383
    %v11654 = vmul.f32 %v11386, %v11386
    %v11655 = vmul.f32 %v11391, %v11391
    %v11656 = vmul.f32 %v11394, %v11394
    %v11657 = vmul.f32 %v11399, %v11399
    %v11658 = vmul.f32 %v11402, %v11402
    %v11659 = vmul.f32 %v11407, %v11407
    %v11660 = vmul.f32 %v11410, %v11410
    %v11661 = vmul.f32 %v11415, %v11415
    %v11662 = vmul.f32 %v11418, %v11418
    %v11663 = vmul.f32 %v11423, %v11423
    %v11664 = vmul.f32 %v11426, %v11426
    %v11665 = vmul.f32 %v11431, %v11431
    %v11666 = vmul.f32 %v11434, %v11434
    %v11667 = vmul.f32 %v11439, %v11439
    %v11668 = vmul.f32 %v11442, %v11442
    %v11669 = vmul.f32 %v11447, %v11447
    %v11670 = vmul.f32 %v11450, %v11450
    %v11671 = vmul.f32 %v11455, %v11455
    %v11672 = vmul.f32 %v11458, %v11458
    %v11673 = vmul.f32 %v11463, %v11463
    %v11674 = vmul.f32 %v11466, %v11466
    %v11675 = vmul.f32 %v11471, %v11471
    %v11676 = vmul.f32 %v11474, %v11474
    %v11677 = vsel %vm112, %v11613, 0.0
    %v11678 = vsel %vm112, %v11614, 0.0
    %v11679 = vadd.f32 %v11677, %v11678
    %v11680 = vsel %vm112, %v11615, 0.0
    %v11681 = vadd.f32 %v11679, %v11680
    %v11682 = vsel %vm112, %v11616, 0.0
    %v11683 = vadd.f32 %v11681, %v11682
    %v11684 = vsel %vm112, %v11617, 0.0
    %v11685 = vadd.f32 %v11683, %v11684
    %v11686 = vsel %vm112, %v11618, 0.0
    %v11687 = vadd.f32 %v11685, %v11686
    %v11688 = vsel %vm112, %v11619, 0.0
    %v11689 = vadd.f32 %v11687, %v11688
    %v11690 = vsel %vm112, %v11620, 0.0
    %v11691 = vadd.f32 %v11689, %v11690
    %v11692 = vsel %vm112, %v11621, 0.0
    %v11693 = vadd.f32 %v11691, %v11692
    %v11694 = vsel %vm112, %v11622, 0.0
    %v11695 = vadd.f32 %v11693, %v11694
    %v11696 = vsel %vm112, %v11623, 0.0
    %v11697 = vadd.f32 %v11695, %v11696
    %v11698 = vsel %vm112, %v11624, 0.0
    %v11699 = vadd.f32 %v11697, %v11698
    %v11700 = vsel %vm112, %v11625, 0.0
    %v11701 = vadd.f32 %v11699, %v11700
    %v11702 = vsel %vm112, %v11626, 0.0
    %v11703 = vadd.f32 %v11701, %v11702
    %v11704 = vsel %vm112, %v11627, 0.0
    %v11705 = vadd.f32 %v11703, %v11704
    %v11706 = vsel %vm112, %v11628, 0.0
    %v11707 = vadd.f32 %v11705, %v11706
    %v11708 = vsel %vm112, %v11629, 0.0
    %v11709 = vadd.f32 %v11707, %v11708
    %v11710 = vsel %vm112, %v11630, 0.0
    %v11711 = vadd.f32 %v11709, %v11710
    %v11712 = vsel %vm112, %v11631, 0.0
    %v11713 = vadd.f32 %v11711, %v11712
    %v11714 = vsel %vm112, %v11632, 0.0
    %v11715 = vadd.f32 %v11713, %v11714
    %v11716 = vsel %vm112, %v11633, 0.0
    %v11717 = vadd.f32 %v11715, %v11716
    %v11718 = vsel %vm112, %v11634, 0.0
    %v11719 = vadd.f32 %v11717, %v11718
    %v11720 = vsel %vm112, %v11635, 0.0
    %v11721 = vadd.f32 %v11719, %v11720
    %v11722 = vsel %vm112, %v11636, 0.0
    %v11723 = vadd.f32 %v11721, %v11722
    %v11724 = vsel %vm112, %v11637, 0.0
    %v11725 = vadd.f32 %v11723, %v11724
    %v11726 = vsel %vm112, %v11638, 0.0
    %v11727 = vadd.f32 %v11725, %v11726
    %v11728 = vsel %vm112, %v11639, 0.0
    %v11729 = vadd.f32 %v11727, %v11728
    %v11730 = vsel %vm112, %v11640, 0.0
    %v11731 = vadd.f32 %v11729, %v11730
    %v11732 = vsel %vm112, %v11641, 0.0
    %v11733 = vadd.f32 %v11731, %v11732
    %v11734 = vsel %vm112, %v11642, 0.0
    %v11735 = vadd.f32 %v11733, %v11734
    %v11736 = vsel %vm112, %v11643, 0.0
    %v11737 = vadd.f32 %v11735, %v11736
    %v11738 = vsel %vm112, %v11644, 0.0
    %v11739 = vadd.f32 %v11737, %v11738
    %v11740 = vsel %vm112, %v11645, 0.0
    %v11741 = vadd.f32 %v11739, %v11740
    %v11742 = vsel %vm112, %v11646, 0.0
    %v11743 = vadd.f32 %v11741, %v11742
    %v11744 = vsel %vm112, %v11647, 0.0
    %v11745 = vadd.f32 %v11743, %v11744
    %v11746 = vsel %vm112, %v11648, 0.0
    %v11747 = vadd.f32 %v11745, %v11746
    %v11748 = vsel %vm112, %v11649, 0.0
    %v11749 = vadd.f32 %v11747, %v11748
    %v11750 = vsel %vm112, %v11650, 0.0
    %v11751 = vadd.f32 %v11749, %v11750
    %v11752 = vsel %vm112, %v11651, 0.0
    %v11753 = vadd.f32 %v11751, %v11752
    %v11754 = vsel %vm112, %v11652, 0.0
    %v11755 = vadd.f32 %v11753, %v11754
    %v11756 = vsel %vm112, %v11653, 0.0
    %v11757 = vadd.f32 %v11755, %v11756
    %v11758 = vsel %vm112, %v11654, 0.0
    %v11759 = vadd.f32 %v11757, %v11758
    %v11760 = vsel %vm112, %v11655, 0.0
    %v11761 = vadd.f32 %v11759, %v11760
    %v11762 = vsel %vm112, %v11656, 0.0
    %v11763 = vadd.f32 %v11761, %v11762
    %v11764 = vsel %vm112, %v11657, 0.0
    %v11765 = vadd.f32 %v11763, %v11764
    %v11766 = vsel %vm112, %v11658, 0.0
    %v11767 = vadd.f32 %v11765, %v11766
    %v11768 = vsel %vm112, %v11659, 0.0
    %v11769 = vadd.f32 %v11767, %v11768
    %v11770 = vsel %vm112, %v11660, 0.0
    %v11771 = vadd.f32 %v11769, %v11770
    %v11772 = vsel %vm112, %v11661, 0.0
    %v11773 = vadd.f32 %v11771, %v11772
    %v11774 = vsel %vm112, %v11662, 0.0
    %v11775 = vadd.f32 %v11773, %v11774
    %v11776 = vsel %vm112, %v11663, 0.0
    %v11777 = vadd.f32 %v11775, %v11776
    %v11778 = vsel %vm112, %v11664, 0.0
    %v11779 = vadd.f32 %v11777, %v11778
    %v11780 = vsel %vm112, %v11665, 0.0
    %v11781 = vadd.f32 %v11779, %v11780
    %v11782 = vsel %vm112, %v11666, 0.0
    %v11783 = vadd.f32 %v11781, %v11782
    %v11784 = vsel %vm112, %v11667, 0.0
    %v11785 = vadd.f32 %v11783, %v11784
    %v11786 = vsel %vm112, %v11668, 0.0
    %v11787 = vadd.f32 %v11785, %v11786
    %v11788 = vsel %vm112, %v11669, 0.0
    %v11789 = vadd.f32 %v11787, %v11788
    %v11790 = vsel %vm112, %v11670, 0.0
    %v11791 = vadd.f32 %v11789, %v11790
    %v11792 = vsel %vm112, %v11671, 0.0
    %v11793 = vadd.f32 %v11791, %v11792
    %v11794 = vsel %vm112, %v11672, 0.0
    %v11795 = vadd.f32 %v11793, %v11794
    %v11796 = vsel %vm112, %v11673, 0.0
    %v11797 = vadd.f32 %v11795, %v11796
    %v11798 = vsel %vm112, %v11674, 0.0
    %v11799 = vadd.f32 %v11797, %v11798
    %v11800 = vsel %vm112, %v11675, 0.0
    %v11801 = vadd.f32 %v11799, %v11800
    %v11802 = vsel %vm112, %v11676, 0.0
    %v11803 = vadd.f32 %v11801, %v11802
    %v11804 = vrot.slane %v11803, 4
    %v11805 = vadd.f32 %v11803, %v11804
    %v11806 = vrot.slane %v11805, 2
    %v11807 = vadd.f32 %v11805, %v11806
    %v11808 = vrot.slane %v11807, 1
    %v11809 = vadd.f32 %v11807, %v11808
    %v11810 = vmul.f32 %v11809, 0.001953125
    %v11811 = vmul.f32 %v11612, %v11612
    %v11812 = vsub.f32 %v11810, %v11811
    %v11813 = vadd.f32 %v11812, 1e-05
    %v11814 = vrsqrt.pop %v11813
    %v11815 = vmul.f32 %v11477, %v11814
    %v11816 = vmul.f32 %v11612, %v11815
    %v11817 = vsub.f32 %v11478, %v11816
    %v11819 = vlaneseq
    %v11820 = vshrl.u32 %v11819, 7
    %v11821 = vsub.s32 0, %v11820
    %v11822 = vrot.slane %v11815, %v11821
    %v11824 = vmul.f32 %v11223, %v11822
    %v11825 = vmul.f32 %v11226, %v11822
    %v11826 = vmul.f32 %v11231, %v11822
    %v11827 = vmul.f32 %v11234, %v11822
    %v11828 = vmul.f32 %v11239, %v11822
    %v11829 = vmul.f32 %v11242, %v11822
    %v11830 = vmul.f32 %v11247, %v11822
    %v11831 = vmul.f32 %v11250, %v11822
    %v11832 = vmul.f32 %v11255, %v11822
    %v11833 = vmul.f32 %v11258, %v11822
    %v11834 = vmul.f32 %v11263, %v11822
    %v11835 = vmul.f32 %v11266, %v11822
    %v11836 = vmul.f32 %v11271, %v11822
    %v11837 = vmul.f32 %v11274, %v11822
    %v11838 = vmul.f32 %v11279, %v11822
    %v11839 = vmul.f32 %v11282, %v11822
    %v11840 = vmul.f32 %v11287, %v11822
    %v11841 = vmul.f32 %v11290, %v11822
    %v11842 = vmul.f32 %v11295, %v11822
    %v11843 = vmul.f32 %v11298, %v11822
    %v11844 = vmul.f32 %v11303, %v11822
    %v11845 = vmul.f32 %v11306, %v11822
    %v11846 = vmul.f32 %v11311, %v11822
    %v11847 = vmul.f32 %v11314, %v11822
    %v11848 = vmul.f32 %v11319, %v11822
    %v11849 = vmul.f32 %v11322, %v11822
    %v11850 = vmul.f32 %v11327, %v11822
    %v11851 = vmul.f32 %v11330, %v11822
    %v11852 = vmul.f32 %v11335, %v11822
    %v11853 = vmul.f32 %v11338, %v11822
    %v11854 = vmul.f32 %v11343, %v11822
    %v11855 = vmul.f32 %v11346, %v11822
    %v11856 = vmul.f32 %v11351, %v11822
    %v11857 = vmul.f32 %v11354, %v11822
    %v11858 = vmul.f32 %v11359, %v11822
    %v11859 = vmul.f32 %v11362, %v11822
    %v11860 = vmul.f32 %v11367, %v11822
    %v11861 = vmul.f32 %v11370, %v11822
    %v11862 = vmul.f32 %v11375, %v11822
    %v11863 = vmul.f32 %v11378, %v11822
    %v11864 = vmul.f32 %v11383, %v11822
    %v11865 = vmul.f32 %v11386, %v11822
    %v11866 = vmul.f32 %v11391, %v11822
    %v11867 = vmul.f32 %v11394, %v11822
    %v11868 = vmul.f32 %v11399, %v11822
    %v11869 = vmul.f32 %v11402, %v11822
    %v11870 = vmul.f32 %v11407, %v11822
    %v11871 = vmul.f32 %v11410, %v11822
    %v11872 = vmul.f32 %v11415, %v11822
    %v11873 = vmul.f32 %v11418, %v11822
    %v11874 = vmul.f32 %v11423, %v11822
    %v11875 = vmul.f32 %v11426, %v11822
    %v11876 = vmul.f32 %v11431, %v11822
    %v11877 = vmul.f32 %v11434, %v11822
    %v11878 = vmul.f32 %v11439, %v11822
    %v11879 = vmul.f32 %v11442, %v11822
    %v11880 = vmul.f32 %v11447, %v11822
    %v11881 = vmul.f32 %v11450, %v11822
    %v11882 = vmul.f32 %v11455, %v11822
    %v11883 = vmul.f32 %v11458, %v11822
    %v11884 = vmul.f32 %v11463, %v11822
    %v11885 = vmul.f32 %v11466, %v11822
    %v11886 = vmul.f32 %v11471, %v11822
    %v11887 = vmul.f32 %v11474, %v11822
    %v11889 = vlaneseq
    %v11890 = vshrl.u32 %v11889, 7
    %v11891 = vsub.s32 0, %v11890
    %v11892 = vrot.slane %v11817, %v11891
    %v11894 = vadd.f32 %v11824, %v11892
    %v11895 = vadd.f32 %v11825, %v11892
    %v11896 = vadd.f32 %v11826, %v11892
    %v11897 = vadd.f32 %v11827, %v11892
    %v11898 = vadd.f32 %v11828, %v11892
    %v11899 = vadd.f32 %v11829, %v11892
    %v11900 = vadd.f32 %v11830, %v11892
    %v11901 = vadd.f32 %v11831, %v11892
    %v11902 = vadd.f32 %v11832, %v11892
    %v11903 = vadd.f32 %v11833, %v11892
    %v11904 = vadd.f32 %v11834, %v11892
    %v11905 = vadd.f32 %v11835, %v11892
    %v11906 = vadd.f32 %v11836, %v11892
    %v11907 = vadd.f32 %v11837, %v11892
    %v11908 = vadd.f32 %v11838, %v11892
    %v11909 = vadd.f32 %v11839, %v11892
    %v11910 = vadd.f32 %v11840, %v11892
    %v11911 = vadd.f32 %v11841, %v11892
    %v11912 = vadd.f32 %v11842, %v11892
    %v11913 = vadd.f32 %v11843, %v11892
    %v11914 = vadd.f32 %v11844, %v11892
    %v11915 = vadd.f32 %v11845, %v11892
    %v11916 = vadd.f32 %v11846, %v11892
    %v11917 = vadd.f32 %v11847, %v11892
    %v11918 = vadd.f32 %v11848, %v11892
    %v11919 = vadd.f32 %v11849, %v11892
    %v11920 = vadd.f32 %v11850, %v11892
    %v11921 = vadd.f32 %v11851, %v11892
    %v11922 = vadd.f32 %v11852, %v11892
    %v11923 = vadd.f32 %v11853, %v11892
    %v11924 = vadd.f32 %v11854, %v11892
    %v11925 = vadd.f32 %v11855, %v11892
    %v11926 = vadd.f32 %v11856, %v11892
    %v11927 = vadd.f32 %v11857, %v11892
    %v11928 = vadd.f32 %v11858, %v11892
    %v11929 = vadd.f32 %v11859, %v11892
    %v11930 = vadd.f32 %v11860, %v11892
    %v11931 = vadd.f32 %v11861, %v11892
    %v11932 = vadd.f32 %v11862, %v11892
    %v11933 = vadd.f32 %v11863, %v11892
    %v11934 = vadd.f32 %v11864, %v11892
    %v11935 = vadd.f32 %v11865, %v11892
    %v11936 = vadd.f32 %v11866, %v11892
    %v11937 = vadd.f32 %v11867, %v11892
    %v11938 = vadd.f32 %v11868, %v11892
    %v11939 = vadd.f32 %v11869, %v11892
    %v11940 = vadd.f32 %v11870, %v11892
    %v11941 = vadd.f32 %v11871, %v11892
    %v11942 = vadd.f32 %v11872, %v11892
    %v11943 = vadd.f32 %v11873, %v11892
    %v11944 = vadd.f32 %v11874, %v11892
    %v11945 = vadd.f32 %v11875, %v11892
    %v11946 = vadd.f32 %v11876, %v11892
    %v11947 = vadd.f32 %v11877, %v11892
    %v11948 = vadd.f32 %v11878, %v11892
    %v11949 = vadd.f32 %v11879, %v11892
    %v11950 = vadd.f32 %v11880, %v11892
    %v11951 = vadd.f32 %v11881, %v11892
    %v11952 = vadd.f32 %v11882, %v11892
    %v11953 = vadd.f32 %v11883, %v11892
    %v11954 = vadd.f32 %v11884, %v11892
    %v11955 = vadd.f32 %v11885, %v11892
    %v11956 = vadd.f32 %v11886, %v11892
    %v11957 = vadd.f32 %v11887, %v11892
    %v11958 = vmax.f32 %v11894, 0.0
    %v11959 = vmax.f32 %v11895, 0.0
    %v11960 = vmax.f32 %v11896, 0.0
    %v11961 = vmax.f32 %v11897, 0.0
    %v11962 = vmax.f32 %v11898, 0.0
    %v11963 = vmax.f32 %v11899, 0.0
    %v11964 = vmax.f32 %v11900, 0.0
    %v11965 = vmax.f32 %v11901, 0.0
    %v11966 = vmax.f32 %v11902, 0.0
    %v11967 = vmax.f32 %v11903, 0.0
    %v11968 = vmax.f32 %v11904, 0.0
    %v11969 = vmax.f32 %v11905, 0.0
    %v11970 = vmax.f32 %v11906, 0.0
    %v11971 = vmax.f32 %v11907, 0.0
    %v11972 = vmax.f32 %v11908, 0.0
    %v11973 = vmax.f32 %v11909, 0.0
    %v11974 = vmax.f32 %v11910, 0.0
    %v11975 = vmax.f32 %v11911, 0.0
    %v11976 = vmax.f32 %v11912, 0.0
    %v11977 = vmax.f32 %v11913, 0.0
    %v11978 = vmax.f32 %v11914, 0.0
    %v11979 = vmax.f32 %v11915, 0.0
    %v11980 = vmax.f32 %v11916, 0.0
    %v11981 = vmax.f32 %v11917, 0.0
    %v11982 = vmax.f32 %v11918, 0.0
    %v11983 = vmax.f32 %v11919, 0.0
    %v11984 = vmax.f32 %v11920, 0.0
    %v11985 = vmax.f32 %v11921, 0.0
    %v11986 = vmax.f32 %v11922, 0.0
    %v11987 = vmax.f32 %v11923, 0.0
    %v11988 = vmax.f32 %v11924, 0.0
    %v11989 = vmax.f32 %v11925, 0.0
    %v11990 = vmax.f32 %v11926, 0.0
    %v11991 = vmax.f32 %v11927, 0.0
    %v11992 = vmax.f32 %v11928, 0.0
    %v11993 = vmax.f32 %v11929, 0.0
    %v11994 = vmax.f32 %v11930, 0.0
    %v11995 = vmax.f32 %v11931, 0.0
    %v11996 = vmax.f32 %v11932, 0.0
    %v11997 = vmax.f32 %v11933, 0.0
    %v11998 = vmax.f32 %v11934, 0.0
    %v11999 = vmax.f32 %v11935, 0.0
    %v12000 = vmax.f32 %v11936, 0.0
    %v12001 = vmax.f32 %v11937, 0.0
    %v12002 = vmax.f32 %v11938, 0.0
    %v12003 = vmax.f32 %v11939, 0.0
    %v12004 = vmax.f32 %v11940, 0.0
    %v12005 = vmax.f32 %v11941, 0.0
    %v12006 = vmax.f32 %v11942, 0.0
    %v12007 = vmax.f32 %v11943, 0.0
    %v12008 = vmax.f32 %v11944, 0.0
    %v12009 = vmax.f32 %v11945, 0.0
    %v12010 = vmax.f32 %v11946, 0.0
    %v12011 = vmax.f32 %v11947, 0.0
    %v12012 = vmax.f32 %v11948, 0.0
    %v12013 = vmax.f32 %v11949, 0.0
    %v12014 = vmax.f32 %v11950, 0.0
    %v12015 = vmax.f32 %v11951, 0.0
    %v12016 = vmax.f32 %v11952, 0.0
    %v12017 = vmax.f32 %v11953, 0.0
    %v12018 = vmax.f32 %v11954, 0.0
    %v12019 = vmax.f32 %v11955, 0.0
    %v12020 = vmax.f32 %v11956, 0.0
    %v12021 = vmax.f32 %v11957, 0.0
    %v12022 = vpack.c.bf16 %v11959, %v11958
    %v12023 = vpack.c.bf16 %v11961, %v11960
    %v12024 = vpack.c.bf16 %v11963, %v11962
    %v12025 = vpack.c.bf16 %v11965, %v11964
    %v12026 = vpack.c.bf16 %v11967, %v11966
    %v12027 = vpack.c.bf16 %v11969, %v11968
    %v12028 = vpack.c.bf16 %v11971, %v11970
    %v12029 = vpack.c.bf16 %v11973, %v11972
    %v12030 = vpack.c.bf16 %v11975, %v11974
    %v12031 = vpack.c.bf16 %v11977, %v11976
    %v12032 = vpack.c.bf16 %v11979, %v11978
    %v12033 = vpack.c.bf16 %v11981, %v11980
    %v12034 = vpack.c.bf16 %v11983, %v11982
    %v12035 = vpack.c.bf16 %v11985, %v11984
    %v12036 = vpack.c.bf16 %v11987, %v11986
    %v12037 = vpack.c.bf16 %v11989, %v11988
    %v12038 = vpack.c.bf16 %v11991, %v11990
    %v12039 = vpack.c.bf16 %v11993, %v11992
    %v12040 = vpack.c.bf16 %v11995, %v11994
    %v12041 = vpack.c.bf16 %v11997, %v11996
    %v12042 = vpack.c.bf16 %v11999, %v11998
    %v12043 = vpack.c.bf16 %v12001, %v12000
    %v12044 = vpack.c.bf16 %v12003, %v12002
    %v12045 = vpack.c.bf16 %v12005, %v12004
    %v12046 = vpack.c.bf16 %v12007, %v12006
    %v12047 = vpack.c.bf16 %v12009, %v12008
    %v12048 = vpack.c.bf16 %v12011, %v12010
    %v12049 = vpack.c.bf16 %v12013, %v12012
    %v12050 = vpack.c.bf16 %v12015, %v12014
    %v12051 = vpack.c.bf16 %v12017, %v12016
    %v12052 = vpack.c.bf16 %v12019, %v12018
    %v12053 = vpack.c.bf16 %v12021, %v12020
    %v12086 = vunpack.c.l.b16 %v12022
    %v12087 = vunpack.c.h.b16 %v12022
    %v12088 = vunpack.c.l.b16 %v12023
    %v12089 = vunpack.c.h.b16 %v12023
    %v12090 = vunpack.c.l.b16 %v12024
    %v12091 = vunpack.c.h.b16 %v12024
    %v12092 = vunpack.c.l.b16 %v12025
    %v12093 = vunpack.c.h.b16 %v12025
    %v12094 = vunpack.c.l.b16 %v12026
    %v12095 = vunpack.c.h.b16 %v12026
    %v12096 = vunpack.c.l.b16 %v12027
    %v12097 = vunpack.c.h.b16 %v12027
    %v12098 = vunpack.c.l.b16 %v12028
    %v12099 = vunpack.c.h.b16 %v12028
    %v12100 = vunpack.c.l.b16 %v12029
    %v12101 = vunpack.c.h.b16 %v12029
    %v12102 = vunpack.c.l.b16 %v12030
    %v12103 = vunpack.c.h.b16 %v12030
    %v12104 = vunpack.c.l.b16 %v12031
    %v12105 = vunpack.c.h.b16 %v12031
    %v12106 = vunpack.c.l.b16 %v12032
    %v12107 = vunpack.c.h.b16 %v12032
    %v12108 = vunpack.c.l.b16 %v12033
    %v12109 = vunpack.c.h.b16 %v12033
    %v12110 = vunpack.c.l.b16 %v12034
    %v12111 = vunpack.c.h.b16 %v12034
    %v12112 = vunpack.c.l.b16 %v12035
    %v12113 = vunpack.c.h.b16 %v12035
    %v12114 = vunpack.c.l.b16 %v12036
    %v12115 = vunpack.c.h.b16 %v12036
    %v12116 = vunpack.c.l.b16 %v12037
    %v12117 = vunpack.c.h.b16 %v12037
    %v12118 = vunpack.c.l.b16 %v12038
    %v12119 = vunpack.c.h.b16 %v12038
    %v12120 = vunpack.c.l.b16 %v12039
    %v12121 = vunpack.c.h.b16 %v12039
    %v12122 = vunpack.c.l.b16 %v12040
    %v12123 = vunpack.c.h.b16 %v12040
    %v12124 = vunpack.c.l.b16 %v12041
    %v12125 = vunpack.c.h.b16 %v12041
    %v12126 = vunpack.c.l.b16 %v12042
    %v12127 = vunpack.c.h.b16 %v12042
    %v12128 = vunpack.c.l.b16 %v12043
    %v12129 = vunpack.c.h.b16 %v12043
    %v12130 = vunpack.c.l.b16 %v12044
    %v12131 = vunpack.c.h.b16 %v12044
    %v12132 = vunpack.c.l.b16 %v12045
    %v12133 = vunpack.c.h.b16 %v12045
    %v12134 = vunpack.c.l.b16 %v12046
    %v12135 = vunpack.c.h.b16 %v12046
    %v12136 = vunpack.c.l.b16 %v12047
    %v12137 = vunpack.c.h.b16 %v12047
    %v12138 = vunpack.c.l.b16 %v12048
    %v12139 = vunpack.c.h.b16 %v12048
    %v12140 = vunpack.c.l.b16 %v12049
    %v12141 = vunpack.c.h.b16 %v12049
    %v12142 = vunpack.c.l.b16 %v12050
    %v12143 = vunpack.c.h.b16 %v12050
    %v12144 = vunpack.c.l.b16 %v12051
    %v12145 = vunpack.c.h.b16 %v12051
    %v12146 = vunpack.c.l.b16 %v12052
    %v12147 = vunpack.c.h.b16 %v12052
    %v12148 = vunpack.c.l.b16 %v12053
    %v12149 = vunpack.c.h.b16 %v12053
    %v12150 = vpack.c.b16 %v12086, %v12086
    %v12151 = vpack.c.b16 %v12087, %v12087
    %v12152 = vpack.c.b16 %v12088, %v12088
    %v12153 = vpack.c.b16 %v12089, %v12089
    %v12154 = vpack.c.b16 %v12090, %v12090
    %v12155 = vpack.c.b16 %v12091, %v12091
    %v12156 = vpack.c.b16 %v12092, %v12092
    %v12157 = vpack.c.b16 %v12093, %v12093
    %v12158 = vpack.c.b16 %v12094, %v12094
    %v12159 = vpack.c.b16 %v12095, %v12095
    %v12160 = vpack.c.b16 %v12096, %v12096
    %v12161 = vpack.c.b16 %v12097, %v12097
    %v12162 = vpack.c.b16 %v12098, %v12098
    %v12163 = vpack.c.b16 %v12099, %v12099
    %v12164 = vpack.c.b16 %v12100, %v12100
    %v12165 = vpack.c.b16 %v12101, %v12101
    %v12166 = vpack.c.b16 %v12102, %v12102
    %v12167 = vpack.c.b16 %v12103, %v12103
    %v12168 = vpack.c.b16 %v12104, %v12104
    %v12169 = vpack.c.b16 %v12105, %v12105
    %v12170 = vpack.c.b16 %v12106, %v12106
    %v12171 = vpack.c.b16 %v12107, %v12107
    %v12172 = vpack.c.b16 %v12108, %v12108
    %v12173 = vpack.c.b16 %v12109, %v12109
    %v12174 = vpack.c.b16 %v12110, %v12110
    %v12175 = vpack.c.b16 %v12111, %v12111
    %v12176 = vpack.c.b16 %v12112, %v12112
    %v12177 = vpack.c.b16 %v12113, %v12113
    %v12178 = vpack.c.b16 %v12114, %v12114
    %v12179 = vpack.c.b16 %v12115, %v12115
    %v12180 = vpack.c.b16 %v12116, %v12116
    %v12181 = vpack.c.b16 %v12117, %v12117
    %v12182 = vpack.c.b16 %v12118, %v12118
    %v12183 = vpack.c.b16 %v12119, %v12119
    %v12184 = vpack.c.b16 %v12120, %v12120
    %v12185 = vpack.c.b16 %v12121, %v12121
    %v12186 = vpack.c.b16 %v12122, %v12122
    %v12187 = vpack.c.b16 %v12123, %v12123
    %v12188 = vpack.c.b16 %v12124, %v12124
    %v12189 = vpack.c.b16 %v12125, %v12125
    %v12190 = vpack.c.b16 %v12126, %v12126
    %v12191 = vpack.c.b16 %v12127, %v12127
    %v12192 = vpack.c.b16 %v12128, %v12128
    %v12193 = vpack.c.b16 %v12129, %v12129
    %v12194 = vpack.c.b16 %v12130, %v12130
    %v12195 = vpack.c.b16 %v12131, %v12131
    %v12196 = vpack.c.b16 %v12132, %v12132
    %v12197 = vpack.c.b16 %v12133, %v12133
    %v12198 = vpack.c.b16 %v12134, %v12134
    %v12199 = vpack.c.b16 %v12135, %v12135
    %v12200 = vpack.c.b16 %v12136, %v12136
    %v12201 = vpack.c.b16 %v12137, %v12137
    %v12202 = vpack.c.b16 %v12138, %v12138
    %v12203 = vpack.c.b16 %v12139, %v12139
    %v12204 = vpack.c.b16 %v12140, %v12140
    %v12205 = vpack.c.b16 %v12141, %v12141
    %v12206 = vpack.c.b16 %v12142, %v12142
    %v12207 = vpack.c.b16 %v12143, %v12143
    %v12208 = vpack.c.b16 %v12144, %v12144
    %v12209 = vpack.c.b16 %v12145, %v12145
    %v12210 = vpack.c.b16 %v12146, %v12146
    %v12211 = vpack.c.b16 %v12147, %v12147
    %v12212 = vpack.c.b16 %v12148, %v12148
    %v12213 = vpack.c.b16 %v12149, %v12149
    %vm12278 = vcmask 257024
    %12279 = vst.msk [vmem:[#allocation8] sm:$0xf] %vm12278, %v12150
    %12280 = vst.msk [vmem:[#allocation8 + $0x4] sm:$0xf] %vm12278, %v12151
    %12281 = vst.msk [vmem:[#allocation8 + $0x8] sm:$0xf] %vm12278, %v12152
    %12282 = vst.msk [vmem:[#allocation8 + $0xc] sm:$0xf] %vm12278, %v12153
    %12283 = vst.msk [vmem:[#allocation8 + $0x10] sm:$0xf] %vm12278, %v12154
    %12284 = vst.msk [vmem:[#allocation8 + $0x14] sm:$0xf] %vm12278, %v12155
    %12285 = vst.msk [vmem:[#allocation8 + $0x18] sm:$0xf] %vm12278, %v12156
    %12286 = vst.msk [vmem:[#allocation8 + $0x1c] sm:$0xf] %vm12278, %v12157
    %12287 = vst.msk [vmem:[#allocation8 + $0x20] sm:$0xf] %vm12278, %v12158
    %12288 = vst.msk [vmem:[#allocation8 + $0x24] sm:$0xf] %vm12278, %v12159
    %12289 = vst.msk [vmem:[#allocation8 + $0x28] sm:$0xf] %vm12278, %v12160
    %12290 = vst.msk [vmem:[#allocation8 + $0x2c] sm:$0xf] %vm12278, %v12161
    %12291 = vst.msk [vmem:[#allocation8 + $0x30] sm:$0xf] %vm12278, %v12162
    %12292 = vst.msk [vmem:[#allocation8 + $0x34] sm:$0xf] %vm12278, %v12163
    %12293 = vst.msk [vmem:[#allocation8 + $0x38] sm:$0xf] %vm12278, %v12164
    %12294 = vst.msk [vmem:[#allocation8 + $0x3c] sm:$0xf] %vm12278, %v12165
    %12295 = vst.msk [vmem:[#allocation8 + $0x40] sm:$0xf] %vm12278, %v12166
    %12296 = vst.msk [vmem:[#allocation8 + $0x44] sm:$0xf] %vm12278, %v12167
    %12297 = vst.msk [vmem:[#allocation8 + $0x48] sm:$0xf] %vm12278, %v12168
    %12298 = vst.msk [vmem:[#allocation8 + $0x4c] sm:$0xf] %vm12278, %v12169
    %12299 = vst.msk [vmem:[#allocation8 + $0x50] sm:$0xf] %vm12278, %v12170
    %12300 = vst.msk [vmem:[#allocation8 + $0x54] sm:$0xf] %vm12278, %v12171
    %12301 = vst.msk [vmem:[#allocation8 + $0x58] sm:$0xf] %vm12278, %v12172
    %12302 = vst.msk [vmem:[#allocation8 + $0x5c] sm:$0xf] %vm12278, %v12173
    %12303 = vst.msk [vmem:[#allocation8 + $0x60] sm:$0xf] %vm12278, %v12174
    %12304 = vst.msk [vmem:[#allocation8 + $0x64] sm:$0xf] %vm12278, %v12175
    %12305 = vst.msk [vmem:[#allocation8 + $0x68] sm:$0xf] %vm12278, %v12176
    %12306 = vst.msk [vmem:[#allocation8 + $0x6c] sm:$0xf] %vm12278, %v12177
    %12307 = vst.msk [vmem:[#allocation8 + $0x70] sm:$0xf] %vm12278, %v12178
    %12308 = vst.msk [vmem:[#allocation8 + $0x74] sm:$0xf] %vm12278, %v12179
    %12309 = vst.msk [vmem:[#allocation8 + $0x78] sm:$0xf] %vm12278, %v12180
    %12310 = vst.msk [vmem:[#allocation8 + $0x7c] sm:$0xf] %vm12278, %v12181
    %12311 = vst.msk [vmem:[#allocation8 + $0x80] sm:$0xf] %vm12278, %v12182
    %12312 = vst.msk [vmem:[#allocation8 + $0x84] sm:$0xf] %vm12278, %v12183
    %12313 = vst.msk [vmem:[#allocation8 + $0x88] sm:$0xf] %vm12278, %v12184
    %12314 = vst.msk [vmem:[#allocation8 + $0x8c] sm:$0xf] %vm12278, %v12185
    %12315 = vst.msk [vmem:[#allocation8 + $0x90] sm:$0xf] %vm12278, %v12186
    %12316 = vst.msk [vmem:[#allocation8 + $0x94] sm:$0xf] %vm12278, %v12187
    %12317 = vst.msk [vmem:[#allocation8 + $0x98] sm:$0xf] %vm12278, %v12188
    %12318 = vst.msk [vmem:[#allocation8 + $0x9c] sm:$0xf] %vm12278, %v12189
    %12319 = vst.msk [vmem:[#allocation8 + $0xa0] sm:$0xf] %vm12278, %v12190
    %12320 = vst.msk [vmem:[#allocation8 + $0xa4] sm:$0xf] %vm12278, %v12191
    %12321 = vst.msk [vmem:[#allocation8 + $0xa8] sm:$0xf] %vm12278, %v12192
    %12322 = vst.msk [vmem:[#allocation8 + $0xac] sm:$0xf] %vm12278, %v12193
    %12323 = vst.msk [vmem:[#allocation8 + $0xb0] sm:$0xf] %vm12278, %v12194
    %12324 = vst.msk [vmem:[#allocation8 + $0xb4] sm:$0xf] %vm12278, %v12195
    %12325 = vst.msk [vmem:[#allocation8 + $0xb8] sm:$0xf] %vm12278, %v12196
    %12326 = vst.msk [vmem:[#allocation8 + $0xbc] sm:$0xf] %vm12278, %v12197
    %12327 = vst.msk [vmem:[#allocation8 + $0xc0] sm:$0xf] %vm12278, %v12198
    %12328 = vst.msk [vmem:[#allocation8 + $0xc4] sm:$0xf] %vm12278, %v12199
    %12329 = vst.msk [vmem:[#allocation8 + $0xc8] sm:$0xf] %vm12278, %v12200
    %12330 = vst.msk [vmem:[#allocation8 + $0xcc] sm:$0xf] %vm12278, %v12201
    %12331 = vst.msk [vmem:[#allocation8 + $0xd0] sm:$0xf] %vm12278, %v12202
    %12332 = vst.msk [vmem:[#allocation8 + $0xd4] sm:$0xf] %vm12278, %v12203
    %12333 = vst.msk [vmem:[#allocation8 + $0xd8] sm:$0xf] %vm12278, %v12204
    %12334 = vst.msk [vmem:[#allocation8 + $0xdc] sm:$0xf] %vm12278, %v12205
    %12335 = vst.msk [vmem:[#allocation8 + $0xe0] sm:$0xf] %vm12278, %v12206
    %12336 = vst.msk [vmem:[#allocation8 + $0xe4] sm:$0xf] %vm12278, %v12207
    %12337 = vst.msk [vmem:[#allocation8 + $0xe8] sm:$0xf] %vm12278, %v12208
    %12338 = vst.msk [vmem:[#allocation8 + $0xec] sm:$0xf] %vm12278, %v12209
    %12339 = vst.msk [vmem:[#allocation8 + $0xf0] sm:$0xf] %vm12278, %v12210
    %12340 = vst.msk [vmem:[#allocation8 + $0xf4] sm:$0xf] %vm12278, %v12211
    %12341 = vst.msk [vmem:[#allocation8 + $0xf8] sm:$0xf] %vm12278, %v12212
    %12342 = vst.msk [vmem:[#allocation8 + $0xfc] sm:$0xf] %vm12278, %v12213
    // Predicated region
    $region42: #{tpu_custom_call.1} parent=1 // pred_check
      _
    $region43: #{tpu_custom_call.1} parent=1 // pred_check_branch
      %12344 = sbr.rel (0) target = $region45
    $region44: #{tpu_custom_call.1} parent=1 // pred_region
      %s12346 = ssub.s32 4096, 4096
      %12347 = vsyncadd [#allocation7], %s12346
      %s12348 = sshll.u32 [#allocation8], 4
      %s12349 = int_to_ptr.vmem [resolvable:$true] %s12348
      %12354 = dma.vmem_to_hbm [thread:$0]  %s12349, 4096, %s9, [#allocation7], 64, 64, 4
    $region45: #{tpu_custom_call.1} parent=1 // pred_fallthru
      _
    // Predicated region
    $region46: #{tpu_custom_call.1} parent=1 // pred_check
      _
    $region47: #{tpu_custom_call.1} parent=1 // pred_check_branch
      %12356 = sbr.rel (0) target = $region49
    $region48: #{tpu_custom_call.1} parent=1 // pred_region
      %12357 = dma.done [#allocation7], 4096
    $region49: #{tpu_custom_call.1} parent=1 // pred_fallthru
      _
    %12358 = vsyncpa [#allocation6], 1
    %12359 = vsyncpa [#allocation7], 1

</llo_original>
